<compile_context>
chip_gen: v7x
topology: tpu7x:2x2x1
jax: 0.10.0
libtpu: 0.0.40
codegen_flags: <defaults>
</compile_context>

<pallas_src>
import math

import numpy as np
import jax
import jax.numpy as jnp
from jax.experimental import pallas as pl
from jax.experimental.pallas import tpu as pltpu

LANE = 128  # lane width; every stage's W*C equals this in the lane-dense layout


# ----------------------------------------------------------------------------
# In-kernel helpers (operate on traced values living in vregs/VMEM)
# ----------------------------------------------------------------------------
def _shift_rows(y, delta):
    """Shift rows of a (H, L) value by `delta` (+1: down, -1: up), zero fill."""
    h, l = y.shape
    zero = jnp.zeros((abs(delta), l), y.dtype)
    if delta > 0:
        return jnp.concatenate([zero, y[: h - delta]], axis=0)
    return jnp.concatenate([y[-delta:], zero], axis=0)


def _decimate_rows(y, stride):
    """Keep every `stride`-th row of a (H, L) value."""
    if stride == 1:
        return y
    h, l = y.shape
    return y.reshape(h // stride, stride, l)[:, 0, :]


def _make_resnet_kernel(block_meta, n_mats, n_bias):
    """block_meta: static tuple of (stride, has_projection) per BasicBlock."""

    def kernel(x_ref, w_ref, b_ref, o_ref):
        widx = [0]
        bidx = [0]

        def next_w(k):
            i = widx[0]
            widx[0] = i + k
            return i

        def next_b():
            j = bidx[0]
            bidx[0] = j + 1
            return j

        def conv3x3(act, stride, relu):
            # act: (H_in, 128) f32.  Three banded (128,128) bf16 mats, one per
            # kernel-row tap; W taps / W padding / W stride folded into the band.
            i = next_w(3)
            j = next_b()
            a16 = act.astype(jnp.bfloat16)
            y_up = jnp.dot(a16, w_ref[i], preferred_element_type=jnp.float32)
            y_mid = jnp.dot(a16, w_ref[i + 1], preferred_element_type=jnp.float32)
            y_dn = jnp.dot(a16, w_ref[i + 2], preferred_element_type=jnp.float32)
            full = _shift_rows(y_up, +1) + y_mid + _shift_rows(y_dn, -1)
            out = _decimate_rows(full, stride) + b_ref[pl.ds(j, 1), :]
            if relu:
                out = jnp.maximum(out, 0.0)
            return out

        def conv1x1(act, stride):
            i = next_w(1)
            j = next_b()
            y = jnp.dot(act.astype(jnp.bfloat16), w_ref[i],
                        preferred_element_type=jnp.float32)
            return _decimate_rows(y, stride) + b_ref[pl.ds(j, 1), :]

        act = x_ref[0]                              # (H, 128) f32, lane = w*C + c

        # Stem: 3x3 conv + folded BN + ReLU.
        act = conv3x3(act, stride=1, relu=True)

        # BasicBlocks: residual branch + shortcut + ReLU, all in vregs/VMEM.
        for stride, has_proj in block_meta:
            y = conv3x3(act, stride=stride, relu=True)
            y = conv3x3(y, stride=1, relu=False)
            sc = conv1x1(act, stride) if has_proj else act
            act = jnp.maximum(y + sc, 0.0)

        # Head: avgpool + FC folded into one matmul (1/(H*W) inside the weights,
        # padded classes carry a -1e9 bias), then log_softmax over the 128 lanes.
        i = next_w(1)
        j = next_b()
        pooled = jnp.sum(act, axis=0, keepdims=True)            # (1, 128) f32
        logits = jnp.dot(pooled.astype(jnp.bfloat16), w_ref[i],
                         preferred_element_type=jnp.float32) + b_ref[pl.ds(j, 1), :]
        m = jnp.max(logits, axis=-1, keepdims=True)
        s = logits - m
        lse = jnp.log(jnp.sum(jnp.exp(s), axis=-1, keepdims=True))
        o_ref[0] = (s - lse).astype(o_ref.dtype)

        # Static (trace-time) sanity check: consumed exactly what was packed.
        assert widx[0] == n_mats and bidx[0] == n_bias

    return kernel


# ----------------------------------------------------------------------------
# Wrapper-side packing: fold BN, build banded (128,128) mats, pack two slabs
# ----------------------------------------------------------------------------
def _fold_bn(w_hwio, scale):
    """Fold inference-mode BN scale into HWIO conv weights (host-side, numpy)."""
    return np.asarray(w_hwio, np.float32) * np.asarray(scale, np.float32)[None, None, None, :]


def _banded_mats(w_folded, w_in, w_out, stride):
    """One (W_in*Cin, W_out*Cout) banded matrix per kernel-row tap.

    Lane layout l = w*C + c.  W-axis taps, zero padding and stride are encoded
    in the band structure, so the kernel never shifts/pads along W.
    """
    kh, kw, cin, cout = w_folded.shape
    pad = (kw - 1) // 2
    mats = np.zeros((kh, w_in * cin, w_out * cout), np.float32)
    for ki in range(kh):
        for kj in range(kw):
            for wo in range(w_out):
                wi = stride * wo + kj - pad
                if 0 <= wi < w_in:
                    mats[ki, wi * cin:(wi + 1) * cin,
                         wo * cout:(wo + 1) * cout] = w_folded[ki, kj]
    return list(mats)


def resnet_forward(x_nchw, params):
    """x_nchw: (N, 3, H, W) float32 (PyTorch layout). Returns (N, classes) log-probs."""
    n, c_in, h, w = x_nchw.shape
    assert LANE % w == 0, "W must divide 128 for the lane-dense (N, H, W*C) layout"
    c0 = LANE // w                         # stem input channels, zero-padded 3 -> c0
    assert c0 >= c_in

    # Input: NCHW -> NHWC -> zero-pad channels -> lane-dense (N, H, W*C0).
    x = jnp.transpose(x_nchw, (0, 2, 3, 1)).astype(jnp.float32)
    x = jnp.pad(x, ((0, 0), (0, 0), (0, 0), (0, c0 - c_in)))
    x = x.reshape(n, h, w * c0)

    mats, biases = [], []
    mm_rows = [0]                          # matmul rows per image, for CostEstimate

    def add_conv(w_hwio, scale, bias, h_in, w_in, w_out, stride, cin_pad=None):
        wf = _fold_bn(w_hwio, scale)
        if cin_pad is not None and cin_pad > wf.shape[2]:
            zpad = np.zeros(wf.shape[:2] + (cin_pad - wf.shape[2], wf.shape[3]),
                            np.float32)
            wf = np.concatenate([wf, zpad], axis=2)
        kh, kw, cin, cout = wf.shape
        assert w_in * cin == LANE and w_out * cout == LANE, \
            "W*C must equal 128 at every stage for the lane-dense layout"
        assert h_in % stride == 0 and w_in % stride == 0, \
            "spatial dims must be divisible by the stride"
        mats.extend(_banded_mats(wf, w_in, w_out, stride))
        biases.append(np.tile(np.asarray(bias, np.float32), w_out))
        mm_rows[0] += kh * h_in

    # Stem.
    cur_h, cur_w, cur_c = h, w, int(params["conv1_w"].shape[3])
    add_conv(params["conv1_w"], params["conv1_scale"], params["conv1_bias"],
             h, w, w, 1, cin_pad=c0)

    # BasicBlocks.
    block_meta = []
    for blk in params["blocks"]:
        s = int(blk["stride"])
        h_o, w_o, c_o = cur_h // s, cur_w // s, int(blk["w1"].shape[3])
        add_conv(blk["w1"], blk["scale1"], blk["bias1"], cur_h, cur_w, w_o, s)
        add_conv(blk["w2"], blk["scale2"], blk["bias2"], h_o, w_o, w_o, 1)
        has_proj = "ws" in blk
        if has_proj:
            add_conv(blk["ws"], blk["scale_s"], blk["bias_s"], cur_h, cur_w, w_o, s)
        block_meta.append((s, has_proj))
        cur_h, cur_w, cur_c = h_o, w_o, c_o

    # Head: avgpool + FC as one (128,128) matmul; classes padded to 128 lanes.
    fc_w = np.asarray(params["fc_w"], np.float32)
    fc_b = np.asarray(params["fc_b"], np.float32)
    num_classes = fc_w.shape[1]
    assert num_classes <= LANE
    fc_mat = np.zeros((LANE, LANE), np.float32)
    for wi in range(cur_w):
        fc_mat[wi * cur_c:(wi + 1) * cur_c, :num_classes] = fc_w / float(cur_h * cur_w)
    mats.append(fc_mat)
    fc_bias = np.full((LANE,), -1e9, np.float32)        # padded classes: exp() == 0
    fc_bias[:num_classes] = fc_b
    biases.append(fc_bias)
    mm_rows[0] += 1

    w_slab = jnp.asarray(np.stack(mats), dtype=jnp.bfloat16)    # (NMAT, 128, 128)
    b_slab = jnp.asarray(np.stack(biases), dtype=jnp.float32)   # (NBIAS, 128)
    n_mats, n_bias = int(w_slab.shape[0]), int(b_slab.shape[0])

    kernel = _make_resnet_kernel(tuple(block_meta), n_mats, n_bias)

    cost = pl.CostEstimate(
        flops=int(2 * n * mm_rows[0] * LANE * LANE),
        transcendentals=int(n * (LANE + 1)),
        bytes_accessed=int(x.size * 4 + w_slab.size * 2 + b_slab.size * 4
                           + n * LANE * 4))

    out = pl.pallas_call(
        kernel,
        out_shape=jax.ShapeDtypeStruct((n, 1, LANE), jnp.float32),
        grid_spec=pltpu.PrefetchScalarGridSpec(
            num_scalar_prefetch=0,
            grid=(n,),                                   # batch -> TensorCores (v7x)
            in_specs=[
                pl.BlockSpec((1, h, LANE), lambda i: (i, 0, 0)),
                pl.BlockSpec((n_mats, LANE, LANE), lambda i: (0, 0, 0)),
                pl.BlockSpec((n_bias, LANE), lambda i: (0, 0)),
            ],
            out_specs=pl.BlockSpec((1, 1, LANE), lambda i: (i, 0, 0)),
        ),
        compiler_params=pltpu.CompilerParams(dimension_semantics=("parallel",)),
        cost_estimate=cost,
    )(x, w_slab, b_slab)

    return out[:, 0, :num_classes]


# ----------------------------------------------------------------------------
# Pure-JAX (XLA) reference with identical semantics, for validation
# ----------------------------------------------------------------------------
def resnet_reference(x_nchw, params):
    hi = jax.lax.Precision.HIGHEST

    def conv(x, w, stride, pad):
        return jax.lax.conv_general_dilated(
            x, w, window_strides=(stride, stride),
            padding=((pad, pad), (pad, pad)),
            dimension_numbers=("NHWC", "HWIO", "NHWC"), precision=hi)

    x = jnp.transpose(x_nchw, (0, 2, 3, 1)).astype(jnp.float32)
    x = jax.nn.relu(conv(x, params["conv1_w"], 1, 1) * params["conv1_scale"]
                    + params["conv1_bias"])
    for blk in params["blocks"]:
        s = blk["stride"]
        y = jax.nn.relu(conv(x, blk["w1"], s, 1) * blk["scale1"] + blk["bias1"])
        y = conv(y, blk["w2"], 1, 1) * blk["scale2"] + blk["bias2"]
        if "ws" in blk:
            sc = conv(x, blk["ws"], s, 0) * blk["scale_s"] + blk["bias_s"]
        else:
            sc = x
        x = jax.nn.relu(y + sc)
    pooled = jnp.mean(x, axis=(1, 2))
    logits = jnp.dot(pooled, params["fc_w"], precision=hi) + params["fc_b"]
    return jax.nn.log_softmax(logits, axis=-1)


# ----------------------------------------------------------------------------
# Deterministic synthetic parameters (shapes from ResNet.__init__ / BasicBlock)
# ----------------------------------------------------------------------------
def _make_conv(key, kh, kw, cin, cout):
    std = math.sqrt(2.0 / (kh * kw * cout))  # kaiming_normal_, fan_out, relu
    return std * jax.random.normal(key, (kh, kw, cin, cout), jnp.float32)


def _make_bn(key, c):
    # Inference-mode BatchNorm folded into per-channel (scale, bias).  Uses
    # deterministic, non-degenerate values (gamma=1/beta=0 + zero_init_residual
    # would make several residual branches identically zero and hide bugs).
    k1, k2, k3, k4 = jax.random.split(key, 4)
    gamma = 1.0 + 0.1 * jax.random.normal(k1, (c,), jnp.float32)
    beta = 0.1 * jax.random.normal(k2, (c,), jnp.float32)
    mean = 0.1 * jax.random.normal(k3, (c,), jnp.float32)
    var = jnp.abs(1.0 + 0.1 * jax.random.normal(k4, (c,), jnp.float32))
    scale = gamma / jnp.sqrt(var + 1e-5)
    bias = beta - mean * scale
    return scale, bias


def init_resnet_params(key, num_block, num_classes, small_dense_density):
    sd = math.sqrt(small_dense_density)
    widths = [int(64 * sd), int(128 * sd), int(256 * sd), int(512 * sd)]
    keys = iter(jax.random.split(key, 256))

    params = {}
    params["conv1_w"] = _make_conv(next(keys), 3, 3, 3, widths[0])
    params["conv1_scale"], params["conv1_bias"] = _make_bn(next(keys), widths[0])

    in_c = widths[0]
    blocks = []
    for li, (w_out, n_blk) in enumerate(zip(widths, num_block)):
        first_stride = 1 if li == 0 else 2
        for bi in range(n_blk):
            stride = first_stride if bi == 0 else 1
            blk = {
                "stride": stride,
                "w1": _make_conv(next(keys), 3, 3, in_c, w_out),
                "w2": _make_conv(next(keys), 3, 3, w_out, w_out),
            }
            blk["scale1"], blk["bias1"] = _make_bn(next(keys), w_out)
            blk["scale2"], blk["bias2"] = _make_bn(next(keys), w_out)
            if stride != 1 or in_c != w_out:  # BasicBlock.expansion == 1
                blk["ws"] = _make_conv(next(keys), 1, 1, in_c, w_out)
                blk["scale_s"], blk["bias_s"] = _make_bn(next(keys), w_out)
            blocks.append(blk)
            in_c = w_out
    params["blocks"] = blocks

    kfw, kfb = jax.random.split(next(keys))
    bound = 1.0 / math.sqrt(in_c)
    params["fc_w"] = bound * jax.random.normal(kfw, (in_c, num_classes), jnp.float32)
    params["fc_b"] = bound * jax.random.normal(kfb, (num_classes,), jnp.float32)
    return params


# ----------------------------------------------------------------------------
if __name__ == "__main__":
    key = jax.random.PRNGKey(0)
    k_x, k_p = jax.random.split(key)

    # Small ResNet-18 config: num_block=(2,2,2,2), small_dense_density=1/64
    # -> channel widths (8, 16, 32, 64), num_classes=10, input 2x3x16x16 (NCHW).
    params = init_resnet_params(k_p, num_block=(2, 2, 2, 2), num_classes=10,
                                small_dense_density=1.0 / 64.0)
    x = jax.random.normal(k_x, (2, 3, 16, 16), jnp.float32)  # NCHW like PyTorch

    out = jax.block_until_ready(resnet_forward(x, params))
    ref = jax.block_until_ready(resnet_reference(x, params))

    assert out.shape == (2, 10), out.shape
    assert bool(jnp.all(jnp.isfinite(out)))
    # log_softmax rows must exponentiate-sum to ~1
    assert bool(jnp.allclose(jnp.sum(jnp.exp(out), axis=1), 1.0, atol=1e-4))
    # Match the f32 precision=HIGHEST XLA reference.  Tolerance is loose by
    # design: the kernel deliberately uses bf16 MXU operands (f32 accumulation),
    # so per-layer relative errors of ~2^-9 compound over ~17 conv layers.
    assert bool(jnp.allclose(out, ref, atol=1e-1, rtol=1e-1)), \
        float(jnp.max(jnp.abs(out - ref)))
    print("KERNEL_OK")
</pallas_src>

<mosaic_0001>
module attributes {stable_mosaic.version = 11 : i64} {
  func.func @kernel(%arg0: i32, %arg1: memref<1x16x128xf32, #tpu.memory_space<vmem>>, %arg2: memref<55x128x128xbf16, #tpu.memory_space<vmem>>, %arg3: memref<21x128xf32, #tpu.memory_space<vmem>>, %arg4: memref<1x1x128xf32, #tpu.memory_space<vmem>>) attributes {dimension_semantics = [#tpu.dimension_semantics<parallel>], iteration_bounds = array<i64: 2>, scalar_prefetch = 0 : i64, scratch_operands = 0 : i64, tpu.core_type = #tpu.core_type<tc>, window_params = [{transform_indices = @transform_0, window_bounds = array<i64: 1, 16, 128>}, {pipeline_mode = #tpu.pipeline_mode<synchronous>, transform_indices = @transform_1, window_bounds = array<i64: 55, 128, 128>}, {pipeline_mode = #tpu.pipeline_mode<synchronous>, transform_indices = @transform_2, window_bounds = array<i64: 21, 128>}, {transform_indices = @transform_3, window_bounds = array<i64: 1, 1, 128>}]} {
    %c0 = arith.constant 0 : index
    %c0_0 = arith.constant 0 : index
    %c0_1 = arith.constant 0 : index
    %0 = vector.load %arg1[%c0, %c0_0, %c0_1] : memref<1x16x128xf32, #tpu.memory_space<vmem>>, vector<1x16x128xf32>
    %1 = vector.shape_cast %0 : vector<1x16x128xf32> to vector<16x128xf32>
    %2 = arith.truncf %1 : vector<16x128xf32> to vector<16x128xbf16>
    %c0_2 = arith.constant 0 : index
    %c0_3 = arith.constant 0 : index
    %c0_4 = arith.constant 0 : index
    %3 = vector.load %arg2[%c0_2, %c0_3, %c0_4] : memref<55x128x128xbf16, #tpu.memory_space<vmem>>, vector<1x128x128xbf16>
    %4 = vector.shape_cast %3 : vector<1x128x128xbf16> to vector<128x128xbf16>
    %cst = arith.constant dense<0.000000e+00> : vector<16x128xf32>
    %5 = tpu.matmul %2, %4, %cst {dimension_numbers = #tpu.dot_dimension_numbers<[1], [0], [0], [1], [0, 0, 1, 1], [], []>} : vector<16x128xbf16>, vector<128x128xbf16>, vector<16x128xf32> -> vector<16x128xf32>
    %c1 = arith.constant 1 : index
    %c0_5 = arith.constant 0 : index
    %c0_6 = arith.constant 0 : index
    %6 = vector.load %arg2[%c1, %c0_5, %c0_6] : memref<55x128x128xbf16, #tpu.memory_space<vmem>>, vector<1x128x128xbf16>
    %7 = vector.shape_cast %6 : vector<1x128x128xbf16> to vector<128x128xbf16>
    %cst_7 = arith.constant dense<0.000000e+00> : vector<16x128xf32>
    %8 = tpu.matmul %2, %7, %cst_7 {dimension_numbers = #tpu.dot_dimension_numbers<[1], [0], [0], [1], [0, 0, 1, 1], [], []>} : vector<16x128xbf16>, vector<128x128xbf16>, vector<16x128xf32> -> vector<16x128xf32>
    %c2 = arith.constant 2 : index
    %c0_8 = arith.constant 0 : index
    %c0_9 = arith.constant 0 : index
    %9 = vector.load %arg2[%c2, %c0_8, %c0_9] : memref<55x128x128xbf16, #tpu.memory_space<vmem>>, vector<1x128x128xbf16>
    %10 = vector.shape_cast %9 : vector<1x128x128xbf16> to vector<128x128xbf16>
    %cst_10 = arith.constant dense<0.000000e+00> : vector<16x128xf32>
    %11 = tpu.matmul %2, %10, %cst_10 {dimension_numbers = #tpu.dot_dimension_numbers<[1], [0], [0], [1], [0, 0, 1, 1], [], []>} : vector<16x128xbf16>, vector<128x128xbf16>, vector<16x128xf32> -> vector<16x128xf32>
    %cst_11 = arith.constant 0.000000e+00 : f32
    %12 = vector.broadcast %cst_11 : f32 to vector<1x128xf32>
    %13 = vector.extract_strided_slice %5 {offsets = [0, 0], sizes = [15, 128], strides = [1, 1]} : vector<16x128xf32> to vector<15x128xf32>
    %14 = tpu.concatenate %12, %13 in 0 : vector<1x128xf32>, vector<15x128xf32> -> vector<16x128xf32>
    %15 = arith.addf %14, %8 : vector<16x128xf32>
    %cst_12 = arith.constant 0.000000e+00 : f32
    %16 = vector.broadcast %cst_12 : f32 to vector<1x128xf32>
    %17 = vector.extract_strided_slice %11 {offsets = [1, 0], sizes = [15, 128], strides = [1, 1]} : vector<16x128xf32> to vector<15x128xf32>
    %18 = tpu.concatenate %17, %16 in 0 : vector<15x128xf32>, vector<1x128xf32> -> vector<16x128xf32>
    %19 = arith.addf %15, %18 : vector<16x128xf32>
    %c0_13 = arith.constant 0 : index
    %c0_14 = arith.constant 0 : index
    %20 = vector.load %arg3[%c0_13, %c0_14] : memref<21x128xf32, #tpu.memory_space<vmem>>, vector<1x128xf32>
    %21 = vector.broadcast %20 : vector<1x128xf32> to vector<16x128xf32>
    %22 = arith.addf %19, %21 : vector<16x128xf32>
    %cst_15 = arith.constant 0.000000e+00 : f32
    %23 = vector.broadcast %cst_15 : f32 to vector<16x128xf32>
    %24 = arith.maximumf %22, %23 : vector<16x128xf32>
    %25 = arith.truncf %24 : vector<16x128xf32> to vector<16x128xbf16>
    %c3 = arith.constant 3 : index
    %c0_16 = arith.constant 0 : index
    %c0_17 = arith.constant 0 : index
    %26 = vector.load %arg2[%c3, %c0_16, %c0_17] : memref<55x128x128xbf16, #tpu.memory_space<vmem>>, vector<1x128x128xbf16>
    %27 = vector.shape_cast %26 : vector<1x128x128xbf16> to vector<128x128xbf16>
    %cst_18 = arith.constant dense<0.000000e+00> : vector<16x128xf32>
    %28 = tpu.matmul %25, %27, %cst_18 {dimension_numbers = #tpu.dot_dimension_numbers<[1], [0], [0], [1], [0, 0, 1, 1], [], []>} : vector<16x128xbf16>, vector<128x128xbf16>, vector<16x128xf32> -> vector<16x128xf32>
    %c4 = arith.constant 4 : index
    %c0_19 = arith.constant 0 : index
    %c0_20 = arith.constant 0 : index
    %29 = vector.load %arg2[%c4, %c0_19, %c0_20] : memref<55x128x128xbf16, #tpu.memory_space<vmem>>, vector<1x128x128xbf16>
    %30 = vector.shape_cast %29 : vector<1x128x128xbf16> to vector<128x128xbf16>
    %cst_21 = arith.constant dense<0.000000e+00> : vector<16x128xf32>
    %31 = tpu.matmul %25, %30, %cst_21 {dimension_numbers = #tpu.dot_dimension_numbers<[1], [0], [0], [1], [0, 0, 1, 1], [], []>} : vector<16x128xbf16>, vector<128x128xbf16>, vector<16x128xf32> -> vector<16x128xf32>
    %c5 = arith.constant 5 : index
    %c0_22 = arith.constant 0 : index
    %c0_23 = arith.constant 0 : index
    %32 = vector.load %arg2[%c5, %c0_22, %c0_23] : memref<55x128x128xbf16, #tpu.memory_space<vmem>>, vector<1x128x128xbf16>
    %33 = vector.shape_cast %32 : vector<1x128x128xbf16> to vector<128x128xbf16>
    %cst_24 = arith.constant dense<0.000000e+00> : vector<16x128xf32>
    %34 = tpu.matmul %25, %33, %cst_24 {dimension_numbers = #tpu.dot_dimension_numbers<[1], [0], [0], [1], [0, 0, 1, 1], [], []>} : vector<16x128xbf16>, vector<128x128xbf16>, vector<16x128xf32> -> vector<16x128xf32>
    %cst_25 = arith.constant 0.000000e+00 : f32
    %35 = vector.broadcast %cst_25 : f32 to vector<1x128xf32>
    %36 = vector.extract_strided_slice %28 {offsets = [0, 0], sizes = [15, 128], strides = [1, 1]} : vector<16x128xf32> to vector<15x128xf32>
    %37 = tpu.concatenate %35, %36 in 0 : vector<1x128xf32>, vector<15x128xf32> -> vector<16x128xf32>
    %38 = arith.addf %37, %31 : vector<16x128xf32>
    %cst_26 = arith.constant 0.000000e+00 : f32
    %39 = vector.broadcast %cst_26 : f32 to vector<1x128xf32>
    %40 = vector.extract_strided_slice %34 {offsets = [1, 0], sizes = [15, 128], strides = [1, 1]} : vector<16x128xf32> to vector<15x128xf32>
    %41 = tpu.concatenate %40, %39 in 0 : vector<15x128xf32>, vector<1x128xf32> -> vector<16x128xf32>
    %42 = arith.addf %38, %41 : vector<16x128xf32>
    %c1_27 = arith.constant 1 : index
    %c0_28 = arith.constant 0 : index
    %43 = vector.load %arg3[%c1_27, %c0_28] : memref<21x128xf32, #tpu.memory_space<vmem>>, vector<1x128xf32>
    %44 = vector.broadcast %43 : vector<1x128xf32> to vector<16x128xf32>
    %45 = arith.addf %42, %44 : vector<16x128xf32>
    %cst_29 = arith.constant 0.000000e+00 : f32
    %46 = vector.broadcast %cst_29 : f32 to vector<16x128xf32>
    %47 = arith.maximumf %45, %46 : vector<16x128xf32>
    %48 = arith.truncf %47 : vector<16x128xf32> to vector<16x128xbf16>
    %c6 = arith.constant 6 : index
    %c0_30 = arith.constant 0 : index
    %c0_31 = arith.constant 0 : index
    %49 = vector.load %arg2[%c6, %c0_30, %c0_31] : memref<55x128x128xbf16, #tpu.memory_space<vmem>>, vector<1x128x128xbf16>
    %50 = vector.shape_cast %49 : vector<1x128x128xbf16> to vector<128x128xbf16>
    %cst_32 = arith.constant dense<0.000000e+00> : vector<16x128xf32>
    %51 = tpu.matmul %48, %50, %cst_32 {dimension_numbers = #tpu.dot_dimension_numbers<[1], [0], [0], [1], [0, 0, 1, 1], [], []>} : vector<16x128xbf16>, vector<128x128xbf16>, vector<16x128xf32> -> vector<16x128xf32>
    %c7 = arith.constant 7 : index
    %c0_33 = arith.constant 0 : index
    %c0_34 = arith.constant 0 : index
    %52 = vector.load %arg2[%c7, %c0_33, %c0_34] : memref<55x128x128xbf16, #tpu.memory_space<vmem>>, vector<1x128x128xbf16>
    %53 = vector.shape_cast %52 : vector<1x128x128xbf16> to vector<128x128xbf16>
    %cst_35 = arith.constant dense<0.000000e+00> : vector<16x128xf32>
    %54 = tpu.matmul %48, %53, %cst_35 {dimension_numbers = #tpu.dot_dimension_numbers<[1], [0], [0], [1], [0, 0, 1, 1], [], []>} : vector<16x128xbf16>, vector<128x128xbf16>, vector<16x128xf32> -> vector<16x128xf32>
    %c8 = arith.constant 8 : index
    %c0_36 = arith.constant 0 : index
    %c0_37 = arith.constant 0 : index
    %55 = vector.load %arg2[%c8, %c0_36, %c0_37] : memref<55x128x128xbf16, #tpu.memory_space<vmem>>, vector<1x128x128xbf16>
    %56 = vector.shape_cast %55 : vector<1x128x128xbf16> to vector<128x128xbf16>
    %cst_38 = arith.constant dense<0.000000e+00> : vector<16x128xf32>
    %57 = tpu.matmul %48, %56, %cst_38 {dimension_numbers = #tpu.dot_dimension_numbers<[1], [0], [0], [1], [0, 0, 1, 1], [], []>} : vector<16x128xbf16>, vector<128x128xbf16>, vector<16x128xf32> -> vector<16x128xf32>
    %cst_39 = arith.constant 0.000000e+00 : f32
    %58 = vector.broadcast %cst_39 : f32 to vector<1x128xf32>
    %59 = vector.extract_strided_slice %51 {offsets = [0, 0], sizes = [15, 128], strides = [1, 1]} : vector<16x128xf32> to vector<15x128xf32>
    %60 = tpu.concatenate %58, %59 in 0 : vector<1x128xf32>, vector<15x128xf32> -> vector<16x128xf32>
    %61 = arith.addf %60, %54 : vector<16x128xf32>
    %cst_40 = arith.constant 0.000000e+00 : f32
    %62 = vector.broadcast %cst_40 : f32 to vector<1x128xf32>
    %63 = vector.extract_strided_slice %57 {offsets = [1, 0], sizes = [15, 128], strides = [1, 1]} : vector<16x128xf32> to vector<15x128xf32>
    %64 = tpu.concatenate %63, %62 in 0 : vector<15x128xf32>, vector<1x128xf32> -> vector<16x128xf32>
    %65 = arith.addf %61, %64 : vector<16x128xf32>
    %c2_41 = arith.constant 2 : index
    %c0_42 = arith.constant 0 : index
    %66 = vector.load %arg3[%c2_41, %c0_42] : memref<21x128xf32, #tpu.memory_space<vmem>>, vector<1x128xf32>
    %67 = vector.broadcast %66 : vector<1x128xf32> to vector<16x128xf32>
    %68 = arith.addf %65, %67 : vector<16x128xf32>
    %69 = arith.addf %68, %24 : vector<16x128xf32>
    %cst_43 = arith.constant 0.000000e+00 : f32
    %70 = vector.broadcast %cst_43 : f32 to vector<16x128xf32>
    %71 = arith.maximumf %69, %70 : vector<16x128xf32>
    %72 = arith.truncf %71 : vector<16x128xf32> to vector<16x128xbf16>
    %c9 = arith.constant 9 : index
    %c0_44 = arith.constant 0 : index
    %c0_45 = arith.constant 0 : index
    %73 = vector.load %arg2[%c9, %c0_44, %c0_45] : memref<55x128x128xbf16, #tpu.memory_space<vmem>>, vector<1x128x128xbf16>
    %74 = vector.shape_cast %73 : vector<1x128x128xbf16> to vector<128x128xbf16>
    %cst_46 = arith.constant dense<0.000000e+00> : vector<16x128xf32>
    %75 = tpu.matmul %72, %74, %cst_46 {dimension_numbers = #tpu.dot_dimension_numbers<[1], [0], [0], [1], [0, 0, 1, 1], [], []>} : vector<16x128xbf16>, vector<128x128xbf16>, vector<16x128xf32> -> vector<16x128xf32>
    %c10 = arith.constant 10 : index
    %c0_47 = arith.constant 0 : index
    %c0_48 = arith.constant 0 : index
    %76 = vector.load %arg2[%c10, %c0_47, %c0_48] : memref<55x128x128xbf16, #tpu.memory_space<vmem>>, vector<1x128x128xbf16>
    %77 = vector.shape_cast %76 : vector<1x128x128xbf16> to vector<128x128xbf16>
    %cst_49 = arith.constant dense<0.000000e+00> : vector<16x128xf32>
    %78 = tpu.matmul %72, %77, %cst_49 {dimension_numbers = #tpu.dot_dimension_numbers<[1], [0], [0], [1], [0, 0, 1, 1], [], []>} : vector<16x128xbf16>, vector<128x128xbf16>, vector<16x128xf32> -> vector<16x128xf32>
    %c11 = arith.constant 11 : index
    %c0_50 = arith.constant 0 : index
    %c0_51 = arith.constant 0 : index
    %79 = vector.load %arg2[%c11, %c0_50, %c0_51] : memref<55x128x128xbf16, #tpu.memory_space<vmem>>, vector<1x128x128xbf16>
    %80 = vector.shape_cast %79 : vector<1x128x128xbf16> to vector<128x128xbf16>
    %cst_52 = arith.constant dense<0.000000e+00> : vector<16x128xf32>
    %81 = tpu.matmul %72, %80, %cst_52 {dimension_numbers = #tpu.dot_dimension_numbers<[1], [0], [0], [1], [0, 0, 1, 1], [], []>} : vector<16x128xbf16>, vector<128x128xbf16>, vector<16x128xf32> -> vector<16x128xf32>
    %cst_53 = arith.constant 0.000000e+00 : f32
    %82 = vector.broadcast %cst_53 : f32 to vector<1x128xf32>
    %83 = vector.extract_strided_slice %75 {offsets = [0, 0], sizes = [15, 128], strides = [1, 1]} : vector<16x128xf32> to vector<15x128xf32>
    %84 = tpu.concatenate %82, %83 in 0 : vector<1x128xf32>, vector<15x128xf32> -> vector<16x128xf32>
    %85 = arith.addf %84, %78 : vector<16x128xf32>
    %cst_54 = arith.constant 0.000000e+00 : f32
    %86 = vector.broadcast %cst_54 : f32 to vector<1x128xf32>
    %87 = vector.extract_strided_slice %81 {offsets = [1, 0], sizes = [15, 128], strides = [1, 1]} : vector<16x128xf32> to vector<15x128xf32>
    %88 = tpu.concatenate %87, %86 in 0 : vector<15x128xf32>, vector<1x128xf32> -> vector<16x128xf32>
    %89 = arith.addf %85, %88 : vector<16x128xf32>
    %c3_55 = arith.constant 3 : index
    %c0_56 = arith.constant 0 : index
    %90 = vector.load %arg3[%c3_55, %c0_56] : memref<21x128xf32, #tpu.memory_space<vmem>>, vector<1x128xf32>
    %91 = vector.broadcast %90 : vector<1x128xf32> to vector<16x128xf32>
    %92 = arith.addf %89, %91 : vector<16x128xf32>
    %cst_57 = arith.constant 0.000000e+00 : f32
    %93 = vector.broadcast %cst_57 : f32 to vector<16x128xf32>
    %94 = arith.maximumf %92, %93 : vector<16x128xf32>
    %95 = arith.truncf %94 : vector<16x128xf32> to vector<16x128xbf16>
    %c12 = arith.constant 12 : index
    %c0_58 = arith.constant 0 : index
    %c0_59 = arith.constant 0 : index
    %96 = vector.load %arg2[%c12, %c0_58, %c0_59] : memref<55x128x128xbf16, #tpu.memory_space<vmem>>, vector<1x128x128xbf16>
    %97 = vector.shape_cast %96 : vector<1x128x128xbf16> to vector<128x128xbf16>
    %cst_60 = arith.constant dense<0.000000e+00> : vector<16x128xf32>
    %98 = tpu.matmul %95, %97, %cst_60 {dimension_numbers = #tpu.dot_dimension_numbers<[1], [0], [0], [1], [0, 0, 1, 1], [], []>} : vector<16x128xbf16>, vector<128x128xbf16>, vector<16x128xf32> -> vector<16x128xf32>
    %c13 = arith.constant 13 : index
    %c0_61 = arith.constant 0 : index
    %c0_62 = arith.constant 0 : index
    %99 = vector.load %arg2[%c13, %c0_61, %c0_62] : memref<55x128x128xbf16, #tpu.memory_space<vmem>>, vector<1x128x128xbf16>
    %100 = vector.shape_cast %99 : vector<1x128x128xbf16> to vector<128x128xbf16>
    %cst_63 = arith.constant dense<0.000000e+00> : vector<16x128xf32>
    %101 = tpu.matmul %95, %100, %cst_63 {dimension_numbers = #tpu.dot_dimension_numbers<[1], [0], [0], [1], [0, 0, 1, 1], [], []>} : vector<16x128xbf16>, vector<128x128xbf16>, vector<16x128xf32> -> vector<16x128xf32>
    %c14 = arith.constant 14 : index
    %c0_64 = arith.constant 0 : index
    %c0_65 = arith.constant 0 : index
    %102 = vector.load %arg2[%c14, %c0_64, %c0_65] : memref<55x128x128xbf16, #tpu.memory_space<vmem>>, vector<1x128x128xbf16>
    %103 = vector.shape_cast %102 : vector<1x128x128xbf16> to vector<128x128xbf16>
    %cst_66 = arith.constant dense<0.000000e+00> : vector<16x128xf32>
    %104 = tpu.matmul %95, %103, %cst_66 {dimension_numbers = #tpu.dot_dimension_numbers<[1], [0], [0], [1], [0, 0, 1, 1], [], []>} : vector<16x128xbf16>, vector<128x128xbf16>, vector<16x128xf32> -> vector<16x128xf32>
    %cst_67 = arith.constant 0.000000e+00 : f32
    %105 = vector.broadcast %cst_67 : f32 to vector<1x128xf32>
    %106 = vector.extract_strided_slice %98 {offsets = [0, 0], sizes = [15, 128], strides = [1, 1]} : vector<16x128xf32> to vector<15x128xf32>
    %107 = tpu.concatenate %105, %106 in 0 : vector<1x128xf32>, vector<15x128xf32> -> vector<16x128xf32>
    %108 = arith.addf %107, %101 : vector<16x128xf32>
    %cst_68 = arith.constant 0.000000e+00 : f32
    %109 = vector.broadcast %cst_68 : f32 to vector<1x128xf32>
    %110 = vector.extract_strided_slice %104 {offsets = [1, 0], sizes = [15, 128], strides = [1, 1]} : vector<16x128xf32> to vector<15x128xf32>
    %111 = tpu.concatenate %110, %109 in 0 : vector<15x128xf32>, vector<1x128xf32> -> vector<16x128xf32>
    %112 = arith.addf %108, %111 : vector<16x128xf32>
    %c4_69 = arith.constant 4 : index
    %c0_70 = arith.constant 0 : index
    %113 = vector.load %arg3[%c4_69, %c0_70] : memref<21x128xf32, #tpu.memory_space<vmem>>, vector<1x128xf32>
    %114 = vector.broadcast %113 : vector<1x128xf32> to vector<16x128xf32>
    %115 = arith.addf %112, %114 : vector<16x128xf32>
    %116 = arith.addf %115, %71 : vector<16x128xf32>
    %cst_71 = arith.constant 0.000000e+00 : f32
    %117 = vector.broadcast %cst_71 : f32 to vector<16x128xf32>
    %118 = arith.maximumf %116, %117 : vector<16x128xf32>
    %119 = arith.truncf %118 : vector<16x128xf32> to vector<16x128xbf16>
    %c15 = arith.constant 15 : index
    %c0_72 = arith.constant 0 : index
    %c0_73 = arith.constant 0 : index
    %120 = vector.load %arg2[%c15, %c0_72, %c0_73] : memref<55x128x128xbf16, #tpu.memory_space<vmem>>, vector<1x128x128xbf16>
    %121 = vector.shape_cast %120 : vector<1x128x128xbf16> to vector<128x128xbf16>
    %cst_74 = arith.constant dense<0.000000e+00> : vector<16x128xf32>
    %122 = tpu.matmul %119, %121, %cst_74 {dimension_numbers = #tpu.dot_dimension_numbers<[1], [0], [0], [1], [0, 0, 1, 1], [], []>} : vector<16x128xbf16>, vector<128x128xbf16>, vector<16x128xf32> -> vector<16x128xf32>
    %c16 = arith.constant 16 : index
    %c0_75 = arith.constant 0 : index
    %c0_76 = arith.constant 0 : index
    %123 = vector.load %arg2[%c16, %c0_75, %c0_76] : memref<55x128x128xbf16, #tpu.memory_space<vmem>>, vector<1x128x128xbf16>
    %124 = vector.shape_cast %123 : vector<1x128x128xbf16> to vector<128x128xbf16>
    %cst_77 = arith.constant dense<0.000000e+00> : vector<16x128xf32>
    %125 = tpu.matmul %119, %124, %cst_77 {dimension_numbers = #tpu.dot_dimension_numbers<[1], [0], [0], [1], [0, 0, 1, 1], [], []>} : vector<16x128xbf16>, vector<128x128xbf16>, vector<16x128xf32> -> vector<16x128xf32>
    %c17 = arith.constant 17 : index
    %c0_78 = arith.constant 0 : index
    %c0_79 = arith.constant 0 : index
    %126 = vector.load %arg2[%c17, %c0_78, %c0_79] : memref<55x128x128xbf16, #tpu.memory_space<vmem>>, vector<1x128x128xbf16>
    %127 = vector.shape_cast %126 : vector<1x128x128xbf16> to vector<128x128xbf16>
    %cst_80 = arith.constant dense<0.000000e+00> : vector<16x128xf32>
    %128 = tpu.matmul %119, %127, %cst_80 {dimension_numbers = #tpu.dot_dimension_numbers<[1], [0], [0], [1], [0, 0, 1, 1], [], []>} : vector<16x128xbf16>, vector<128x128xbf16>, vector<16x128xf32> -> vector<16x128xf32>
    %cst_81 = arith.constant 0.000000e+00 : f32
    %129 = vector.broadcast %cst_81 : f32 to vector<1x128xf32>
    %130 = vector.extract_strided_slice %122 {offsets = [0, 0], sizes = [15, 128], strides = [1, 1]} : vector<16x128xf32> to vector<15x128xf32>
    %131 = tpu.concatenate %129, %130 in 0 : vector<1x128xf32>, vector<15x128xf32> -> vector<16x128xf32>
    %132 = arith.addf %131, %125 : vector<16x128xf32>
    %cst_82 = arith.constant 0.000000e+00 : f32
    %133 = vector.broadcast %cst_82 : f32 to vector<1x128xf32>
    %134 = vector.extract_strided_slice %128 {offsets = [1, 0], sizes = [15, 128], strides = [1, 1]} : vector<16x128xf32> to vector<15x128xf32>
    %135 = tpu.concatenate %134, %133 in 0 : vector<15x128xf32>, vector<1x128xf32> -> vector<16x128xf32>
    %136 = arith.addf %132, %135 : vector<16x128xf32>
    %137 = vector.shape_cast %136 : vector<16x128xf32> to vector<8x2x128xf32>
    %138 = vector.extract_strided_slice %137 {offsets = [0, 0, 0], sizes = [8, 1, 128], strides = [1, 1, 1]} : vector<8x2x128xf32> to vector<8x1x128xf32>
    %139 = vector.shape_cast %138 : vector<8x1x128xf32> to vector<8x128xf32>
    %c5_83 = arith.constant 5 : index
    %c0_84 = arith.constant 0 : index
    %140 = vector.load %arg3[%c5_83, %c0_84] : memref<21x128xf32, #tpu.memory_space<vmem>>, vector<1x128xf32>
    %141 = vector.broadcast %140 : vector<1x128xf32> to vector<8x128xf32>
    %142 = arith.addf %139, %141 : vector<8x128xf32>
    %cst_85 = arith.constant 0.000000e+00 : f32
    %143 = vector.broadcast %cst_85 : f32 to vector<8x128xf32>
    %144 = arith.maximumf %142, %143 : vector<8x128xf32>
    %145 = arith.truncf %144 : vector<8x128xf32> to vector<8x128xbf16>
    %c18 = arith.constant 18 : index
    %c0_86 = arith.constant 0 : index
    %c0_87 = arith.constant 0 : index
    %146 = vector.load %arg2[%c18, %c0_86, %c0_87] : memref<55x128x128xbf16, #tpu.memory_space<vmem>>, vector<1x128x128xbf16>
    %147 = vector.shape_cast %146 : vector<1x128x128xbf16> to vector<128x128xbf16>
    %cst_88 = arith.constant dense<0.000000e+00> : vector<8x128xf32>
    %148 = tpu.matmul %145, %147, %cst_88 {dimension_numbers = #tpu.dot_dimension_numbers<[1], [0], [0], [1], [0, 0, 1, 1], [], []>} : vector<8x128xbf16>, vector<128x128xbf16>, vector<8x128xf32> -> vector<8x128xf32>
    %c19 = arith.constant 19 : index
    %c0_89 = arith.constant 0 : index
    %c0_90 = arith.constant 0 : index
    %149 = vector.load %arg2[%c19, %c0_89, %c0_90] : memref<55x128x128xbf16, #tpu.memory_space<vmem>>, vector<1x128x128xbf16>
    %150 = vector.shape_cast %149 : vector<1x128x128xbf16> to vector<128x128xbf16>
    %cst_91 = arith.constant dense<0.000000e+00> : vector<8x128xf32>
    %151 = tpu.matmul %145, %150, %cst_91 {dimension_numbers = #tpu.dot_dimension_numbers<[1], [0], [0], [1], [0, 0, 1, 1], [], []>} : vector<8x128xbf16>, vector<128x128xbf16>, vector<8x128xf32> -> vector<8x128xf32>
    %c20 = arith.constant 20 : index
    %c0_92 = arith.constant 0 : index
    %c0_93 = arith.constant 0 : index
    %152 = vector.load %arg2[%c20, %c0_92, %c0_93] : memref<55x128x128xbf16, #tpu.memory_space<vmem>>, vector<1x128x128xbf16>
    %153 = vector.shape_cast %152 : vector<1x128x128xbf16> to vector<128x128xbf16>
    %cst_94 = arith.constant dense<0.000000e+00> : vector<8x128xf32>
    %154 = tpu.matmul %145, %153, %cst_94 {dimension_numbers = #tpu.dot_dimension_numbers<[1], [0], [0], [1], [0, 0, 1, 1], [], []>} : vector<8x128xbf16>, vector<128x128xbf16>, vector<8x128xf32> -> vector<8x128xf32>
    %cst_95 = arith.constant 0.000000e+00 : f32
    %155 = vector.broadcast %cst_95 : f32 to vector<1x128xf32>
    %156 = vector.extract_strided_slice %148 {offsets = [0, 0], sizes = [7, 128], strides = [1, 1]} : vector<8x128xf32> to vector<7x128xf32>
    %157 = tpu.concatenate %155, %156 in 0 : vector<1x128xf32>, vector<7x128xf32> -> vector<8x128xf32>
    %158 = arith.addf %157, %151 : vector<8x128xf32>
    %cst_96 = arith.constant 0.000000e+00 : f32
    %159 = vector.broadcast %cst_96 : f32 to vector<1x128xf32>
    %160 = vector.extract_strided_slice %154 {offsets = [1, 0], sizes = [7, 128], strides = [1, 1]} : vector<8x128xf32> to vector<7x128xf32>
    %161 = tpu.concatenate %160, %159 in 0 : vector<7x128xf32>, vector<1x128xf32> -> vector<8x128xf32>
    %162 = arith.addf %158, %161 : vector<8x128xf32>
    %c6_97 = arith.constant 6 : index
    %c0_98 = arith.constant 0 : index
    %163 = vector.load %arg3[%c6_97, %c0_98] : memref<21x128xf32, #tpu.memory_space<vmem>>, vector<1x128xf32>
    %164 = vector.broadcast %163 : vector<1x128xf32> to vector<8x128xf32>
    %165 = arith.addf %162, %164 : vector<8x128xf32>
    %166 = arith.truncf %118 : vector<16x128xf32> to vector<16x128xbf16>
    %c21 = arith.constant 21 : index
    %c0_99 = arith.constant 0 : index
    %c0_100 = arith.constant 0 : index
    %167 = vector.load %arg2[%c21, %c0_99, %c0_100] : memref<55x128x128xbf16, #tpu.memory_space<vmem>>, vector<1x128x128xbf16>
    %168 = vector.shape_cast %167 : vector<1x128x128xbf16> to vector<128x128xbf16>
    %cst_101 = arith.constant dense<0.000000e+00> : vector<16x128xf32>
    %169 = tpu.matmul %166, %168, %cst_101 {dimension_numbers = #tpu.dot_dimension_numbers<[1], [0], [0], [1], [0, 0, 1, 1], [], []>} : vector<16x128xbf16>, vector<128x128xbf16>, vector<16x128xf32> -> vector<16x128xf32>
    %170 = vector.shape_cast %169 : vector<16x128xf32> to vector<8x2x128xf32>
    %171 = vector.extract_strided_slice %170 {offsets = [0, 0, 0], sizes = [8, 1, 128], strides = [1, 1, 1]} : vector<8x2x128xf32> to vector<8x1x128xf32>
    %172 = vector.shape_cast %171 : vector<8x1x128xf32> to vector<8x128xf32>
    %c7_102 = arith.constant 7 : index
    %c0_103 = arith.constant 0 : index
    %173 = vector.load %arg3[%c7_102, %c0_103] : memref<21x128xf32, #tpu.memory_space<vmem>>, vector<1x128xf32>
    %174 = vector.broadcast %173 : vector<1x128xf32> to vector<8x128xf32>
    %175 = arith.addf %172, %174 : vector<8x128xf32>
    %176 = arith.addf %165, %175 : vector<8x128xf32>
    %cst_104 = arith.constant 0.000000e+00 : f32
    %177 = vector.broadcast %cst_104 : f32 to vector<8x128xf32>
    %178 = arith.maximumf %176, %177 : vector<8x128xf32>
    %179 = arith.truncf %178 : vector<8x128xf32> to vector<8x128xbf16>
    %c22 = arith.constant 22 : index
    %c0_105 = arith.constant 0 : index
    %c0_106 = arith.constant 0 : index
    %180 = vector.load %arg2[%c22, %c0_105, %c0_106] : memref<55x128x128xbf16, #tpu.memory_space<vmem>>, vector<1x128x128xbf16>
    %181 = vector.shape_cast %180 : vector<1x128x128xbf16> to vector<128x128xbf16>
    %cst_107 = arith.constant dense<0.000000e+00> : vector<8x128xf32>
    %182 = tpu.matmul %179, %181, %cst_107 {dimension_numbers = #tpu.dot_dimension_numbers<[1], [0], [0], [1], [0, 0, 1, 1], [], []>} : vector<8x128xbf16>, vector<128x128xbf16>, vector<8x128xf32> -> vector<8x128xf32>
    %c23 = arith.constant 23 : index
    %c0_108 = arith.constant 0 : index
    %c0_109 = arith.constant 0 : index
    %183 = vector.load %arg2[%c23, %c0_108, %c0_109] : memref<55x128x128xbf16, #tpu.memory_space<vmem>>, vector<1x128x128xbf16>
    %184 = vector.shape_cast %183 : vector<1x128x128xbf16> to vector<128x128xbf16>
    %cst_110 = arith.constant dense<0.000000e+00> : vector<8x128xf32>
    %185 = tpu.matmul %179, %184, %cst_110 {dimension_numbers = #tpu.dot_dimension_numbers<[1], [0], [0], [1], [0, 0, 1, 1], [], []>} : vector<8x128xbf16>, vector<128x128xbf16>, vector<8x128xf32> -> vector<8x128xf32>
    %c24 = arith.constant 24 : index
    %c0_111 = arith.constant 0 : index
    %c0_112 = arith.constant 0 : index
    %186 = vector.load %arg2[%c24, %c0_111, %c0_112] : memref<55x128x128xbf16, #tpu.memory_space<vmem>>, vector<1x128x128xbf16>
    %187 = vector.shape_cast %186 : vector<1x128x128xbf16> to vector<128x128xbf16>
    %cst_113 = arith.constant dense<0.000000e+00> : vector<8x128xf32>
    %188 = tpu.matmul %179, %187, %cst_113 {dimension_numbers = #tpu.dot_dimension_numbers<[1], [0], [0], [1], [0, 0, 1, 1], [], []>} : vector<8x128xbf16>, vector<128x128xbf16>, vector<8x128xf32> -> vector<8x128xf32>
    %cst_114 = arith.constant 0.000000e+00 : f32
    %189 = vector.broadcast %cst_114 : f32 to vector<1x128xf32>
    %190 = vector.extract_strided_slice %182 {offsets = [0, 0], sizes = [7, 128], strides = [1, 1]} : vector<8x128xf32> to vector<7x128xf32>
    %191 = tpu.concatenate %189, %190 in 0 : vector<1x128xf32>, vector<7x128xf32> -> vector<8x128xf32>
    %192 = arith.addf %191, %185 : vector<8x128xf32>
    %cst_115 = arith.constant 0.000000e+00 : f32
    %193 = vector.broadcast %cst_115 : f32 to vector<1x128xf32>
    %194 = vector.extract_strided_slice %188 {offsets = [1, 0], sizes = [7, 128], strides = [1, 1]} : vector<8x128xf32> to vector<7x128xf32>
    %195 = tpu.concatenate %194, %193 in 0 : vector<7x128xf32>, vector<1x128xf32> -> vector<8x128xf32>
    %196 = arith.addf %192, %195 : vector<8x128xf32>
    %c8_116 = arith.constant 8 : index
    %c0_117 = arith.constant 0 : index
    %197 = vector.load %arg3[%c8_116, %c0_117] : memref<21x128xf32, #tpu.memory_space<vmem>>, vector<1x128xf32>
    %198 = vector.broadcast %197 : vector<1x128xf32> to vector<8x128xf32>
    %199 = arith.addf %196, %198 : vector<8x128xf32>
    %cst_118 = arith.constant 0.000000e+00 : f32
    %200 = vector.broadcast %cst_118 : f32 to vector<8x128xf32>
    %201 = arith.maximumf %199, %200 : vector<8x128xf32>
    %202 = arith.truncf %201 : vector<8x128xf32> to vector<8x128xbf16>
    %c25 = arith.constant 25 : index
    %c0_119 = arith.constant 0 : index
    %c0_120 = arith.constant 0 : index
    %203 = vector.load %arg2[%c25, %c0_119, %c0_120] : memref<55x128x128xbf16, #tpu.memory_space<vmem>>, vector<1x128x128xbf16>
    %204 = vector.shape_cast %203 : vector<1x128x128xbf16> to vector<128x128xbf16>
    %cst_121 = arith.constant dense<0.000000e+00> : vector<8x128xf32>
    %205 = tpu.matmul %202, %204, %cst_121 {dimension_numbers = #tpu.dot_dimension_numbers<[1], [0], [0], [1], [0, 0, 1, 1], [], []>} : vector<8x128xbf16>, vector<128x128xbf16>, vector<8x128xf32> -> vector<8x128xf32>
    %c26 = arith.constant 26 : index
    %c0_122 = arith.constant 0 : index
    %c0_123 = arith.constant 0 : index
    %206 = vector.load %arg2[%c26, %c0_122, %c0_123] : memref<55x128x128xbf16, #tpu.memory_space<vmem>>, vector<1x128x128xbf16>
    %207 = vector.shape_cast %206 : vector<1x128x128xbf16> to vector<128x128xbf16>
    %cst_124 = arith.constant dense<0.000000e+00> : vector<8x128xf32>
    %208 = tpu.matmul %202, %207, %cst_124 {dimension_numbers = #tpu.dot_dimension_numbers<[1], [0], [0], [1], [0, 0, 1, 1], [], []>} : vector<8x128xbf16>, vector<128x128xbf16>, vector<8x128xf32> -> vector<8x128xf32>
    %c27 = arith.constant 27 : index
    %c0_125 = arith.constant 0 : index
    %c0_126 = arith.constant 0 : index
    %209 = vector.load %arg2[%c27, %c0_125, %c0_126] : memref<55x128x128xbf16, #tpu.memory_space<vmem>>, vector<1x128x128xbf16>
    %210 = vector.shape_cast %209 : vector<1x128x128xbf16> to vector<128x128xbf16>
    %cst_127 = arith.constant dense<0.000000e+00> : vector<8x128xf32>
    %211 = tpu.matmul %202, %210, %cst_127 {dimension_numbers = #tpu.dot_dimension_numbers<[1], [0], [0], [1], [0, 0, 1, 1], [], []>} : vector<8x128xbf16>, vector<128x128xbf16>, vector<8x128xf32> -> vector<8x128xf32>
    %cst_128 = arith.constant 0.000000e+00 : f32
    %212 = vector.broadcast %cst_128 : f32 to vector<1x128xf32>
    %213 = vector.extract_strided_slice %205 {offsets = [0, 0], sizes = [7, 128], strides = [1, 1]} : vector<8x128xf32> to vector<7x128xf32>
    %214 = tpu.concatenate %212, %213 in 0 : vector<1x128xf32>, vector<7x128xf32> -> vector<8x128xf32>
    %215 = arith.addf %214, %208 : vector<8x128xf32>
    %cst_129 = arith.constant 0.000000e+00 : f32
    %216 = vector.broadcast %cst_129 : f32 to vector<1x128xf32>
    %217 = vector.extract_strided_slice %211 {offsets = [1, 0], sizes = [7, 128], strides = [1, 1]} : vector<8x128xf32> to vector<7x128xf32>
    %218 = tpu.concatenate %217, %216 in 0 : vector<7x128xf32>, vector<1x128xf32> -> vector<8x128xf32>
    %219 = arith.addf %215, %218 : vector<8x128xf32>
    %c9_130 = arith.constant 9 : index
    %c0_131 = arith.constant 0 : index
    %220 = vector.load %arg3[%c9_130, %c0_131] : memref<21x128xf32, #tpu.memory_space<vmem>>, vector<1x128xf32>
    %221 = vector.broadcast %220 : vector<1x128xf32> to vector<8x128xf32>
    %222 = arith.addf %219, %221 : vector<8x128xf32>
    %223 = arith.addf %222, %178 : vector<8x128xf32>
    %cst_132 = arith.constant 0.000000e+00 : f32
    %224 = vector.broadcast %cst_132 : f32 to vector<8x128xf32>
    %225 = arith.maximumf %223, %224 : vector<8x128xf32>
    %226 = arith.truncf %225 : vector<8x128xf32> to vector<8x128xbf16>
    %c28 = arith.constant 28 : index
    %c0_133 = arith.constant 0 : index
    %c0_134 = arith.constant 0 : index
    %227 = vector.load %arg2[%c28, %c0_133, %c0_134] : memref<55x128x128xbf16, #tpu.memory_space<vmem>>, vector<1x128x128xbf16>
    %228 = vector.shape_cast %227 : vector<1x128x128xbf16> to vector<128x128xbf16>
    %cst_135 = arith.constant dense<0.000000e+00> : vector<8x128xf32>
    %229 = tpu.matmul %226, %228, %cst_135 {dimension_numbers = #tpu.dot_dimension_numbers<[1], [0], [0], [1], [0, 0, 1, 1], [], []>} : vector<8x128xbf16>, vector<128x128xbf16>, vector<8x128xf32> -> vector<8x128xf32>
    %c29 = arith.constant 29 : index
    %c0_136 = arith.constant 0 : index
    %c0_137 = arith.constant 0 : index
    %230 = vector.load %arg2[%c29, %c0_136, %c0_137] : memref<55x128x128xbf16, #tpu.memory_space<vmem>>, vector<1x128x128xbf16>
    %231 = vector.shape_cast %230 : vector<1x128x128xbf16> to vector<128x128xbf16>
    %cst_138 = arith.constant dense<0.000000e+00> : vector<8x128xf32>
    %232 = tpu.matmul %226, %231, %cst_138 {dimension_numbers = #tpu.dot_dimension_numbers<[1], [0], [0], [1], [0, 0, 1, 1], [], []>} : vector<8x128xbf16>, vector<128x128xbf16>, vector<8x128xf32> -> vector<8x128xf32>
    %c30 = arith.constant 30 : index
    %c0_139 = arith.constant 0 : index
    %c0_140 = arith.constant 0 : index
    %233 = vector.load %arg2[%c30, %c0_139, %c0_140] : memref<55x128x128xbf16, #tpu.memory_space<vmem>>, vector<1x128x128xbf16>
    %234 = vector.shape_cast %233 : vector<1x128x128xbf16> to vector<128x128xbf16>
    %cst_141 = arith.constant dense<0.000000e+00> : vector<8x128xf32>
    %235 = tpu.matmul %226, %234, %cst_141 {dimension_numbers = #tpu.dot_dimension_numbers<[1], [0], [0], [1], [0, 0, 1, 1], [], []>} : vector<8x128xbf16>, vector<128x128xbf16>, vector<8x128xf32> -> vector<8x128xf32>
    %cst_142 = arith.constant 0.000000e+00 : f32
    %236 = vector.broadcast %cst_142 : f32 to vector<1x128xf32>
    %237 = vector.extract_strided_slice %229 {offsets = [0, 0], sizes = [7, 128], strides = [1, 1]} : vector<8x128xf32> to vector<7x128xf32>
    %238 = tpu.concatenate %236, %237 in 0 : vector<1x128xf32>, vector<7x128xf32> -> vector<8x128xf32>
    %239 = arith.addf %238, %232 : vector<8x128xf32>
    %cst_143 = arith.constant 0.000000e+00 : f32
    %240 = vector.broadcast %cst_143 : f32 to vector<1x128xf32>
    %241 = vector.extract_strided_slice %235 {offsets = [1, 0], sizes = [7, 128], strides = [1, 1]} : vector<8x128xf32> to vector<7x128xf32>
    %242 = tpu.concatenate %241, %240 in 0 : vector<7x128xf32>, vector<1x128xf32> -> vector<8x128xf32>
    %243 = arith.addf %239, %242 : vector<8x128xf32>
    %244 = vector.shape_cast %243 : vector<8x128xf32> to vector<4x2x128xf32>
    %245 = vector.extract_strided_slice %244 {offsets = [0, 0, 0], sizes = [4, 1, 128], strides = [1, 1, 1]} : vector<4x2x128xf32> to vector<4x1x128xf32>
    %246 = vector.shape_cast %245 : vector<4x1x128xf32> to vector<4x128xf32>
    %c10_144 = arith.constant 10 : index
    %c0_145 = arith.constant 0 : index
    %247 = vector.load %arg3[%c10_144, %c0_145] : memref<21x128xf32, #tpu.memory_space<vmem>>, vector<1x128xf32>
    %248 = vector.broadcast %247 : vector<1x128xf32> to vector<4x128xf32>
    %249 = arith.addf %246, %248 : vector<4x128xf32>
    %cst_146 = arith.constant 0.000000e+00 : f32
    %250 = vector.broadcast %cst_146 : f32 to vector<4x128xf32>
    %251 = arith.maximumf %249, %250 : vector<4x128xf32>
    %252 = arith.truncf %251 : vector<4x128xf32> to vector<4x128xbf16>
    %c31 = arith.constant 31 : index
    %c0_147 = arith.constant 0 : index
    %c0_148 = arith.constant 0 : index
    %253 = vector.load %arg2[%c31, %c0_147, %c0_148] : memref<55x128x128xbf16, #tpu.memory_space<vmem>>, vector<1x128x128xbf16>
    %254 = vector.shape_cast %253 : vector<1x128x128xbf16> to vector<128x128xbf16>
    %cst_149 = arith.constant dense<0.000000e+00> : vector<4x128xf32>
    %255 = tpu.matmul %252, %254, %cst_149 {dimension_numbers = #tpu.dot_dimension_numbers<[1], [0], [0], [1], [0, 0, 1, 1], [], []>} : vector<4x128xbf16>, vector<128x128xbf16>, vector<4x128xf32> -> vector<4x128xf32>
    %c32 = arith.constant 32 : index
    %c0_150 = arith.constant 0 : index
    %c0_151 = arith.constant 0 : index
    %256 = vector.load %arg2[%c32, %c0_150, %c0_151] : memref<55x128x128xbf16, #tpu.memory_space<vmem>>, vector<1x128x128xbf16>
    %257 = vector.shape_cast %256 : vector<1x128x128xbf16> to vector<128x128xbf16>
    %cst_152 = arith.constant dense<0.000000e+00> : vector<4x128xf32>
    %258 = tpu.matmul %252, %257, %cst_152 {dimension_numbers = #tpu.dot_dimension_numbers<[1], [0], [0], [1], [0, 0, 1, 1], [], []>} : vector<4x128xbf16>, vector<128x128xbf16>, vector<4x128xf32> -> vector<4x128xf32>
    %c33 = arith.constant 33 : index
    %c0_153 = arith.constant 0 : index
    %c0_154 = arith.constant 0 : index
    %259 = vector.load %arg2[%c33, %c0_153, %c0_154] : memref<55x128x128xbf16, #tpu.memory_space<vmem>>, vector<1x128x128xbf16>
    %260 = vector.shape_cast %259 : vector<1x128x128xbf16> to vector<128x128xbf16>
    %cst_155 = arith.constant dense<0.000000e+00> : vector<4x128xf32>
    %261 = tpu.matmul %252, %260, %cst_155 {dimension_numbers = #tpu.dot_dimension_numbers<[1], [0], [0], [1], [0, 0, 1, 1], [], []>} : vector<4x128xbf16>, vector<128x128xbf16>, vector<4x128xf32> -> vector<4x128xf32>
    %cst_156 = arith.constant 0.000000e+00 : f32
    %262 = vector.broadcast %cst_156 : f32 to vector<1x128xf32>
    %263 = vector.extract_strided_slice %255 {offsets = [0, 0], sizes = [3, 128], strides = [1, 1]} : vector<4x128xf32> to vector<3x128xf32>
    %264 = tpu.concatenate %262, %263 in 0 : vector<1x128xf32>, vector<3x128xf32> -> vector<4x128xf32>
    %265 = arith.addf %264, %258 : vector<4x128xf32>
    %cst_157 = arith.constant 0.000000e+00 : f32
    %266 = vector.broadcast %cst_157 : f32 to vector<1x128xf32>
    %267 = vector.extract_strided_slice %261 {offsets = [1, 0], sizes = [3, 128], strides = [1, 1]} : vector<4x128xf32> to vector<3x128xf32>
    %268 = tpu.concatenate %267, %266 in 0 : vector<3x128xf32>, vector<1x128xf32> -> vector<4x128xf32>
    %269 = arith.addf %265, %268 : vector<4x128xf32>
    %c11_158 = arith.constant 11 : index
    %c0_159 = arith.constant 0 : index
    %270 = vector.load %arg3[%c11_158, %c0_159] : memref<21x128xf32, #tpu.memory_space<vmem>>, vector<1x128xf32>
    %271 = vector.broadcast %270 : vector<1x128xf32> to vector<4x128xf32>
    %272 = arith.addf %269, %271 : vector<4x128xf32>
    %273 = arith.truncf %225 : vector<8x128xf32> to vector<8x128xbf16>
    %c34 = arith.constant 34 : index
    %c0_160 = arith.constant 0 : index
    %c0_161 = arith.constant 0 : index
    %274 = vector.load %arg2[%c34, %c0_160, %c0_161] : memref<55x128x128xbf16, #tpu.memory_space<vmem>>, vector<1x128x128xbf16>
    %275 = vector.shape_cast %274 : vector<1x128x128xbf16> to vector<128x128xbf16>
    %cst_162 = arith.constant dense<0.000000e+00> : vector<8x128xf32>
    %276 = tpu.matmul %273, %275, %cst_162 {dimension_numbers = #tpu.dot_dimension_numbers<[1], [0], [0], [1], [0, 0, 1, 1], [], []>} : vector<8x128xbf16>, vector<128x128xbf16>, vector<8x128xf32> -> vector<8x128xf32>
    %277 = vector.shape_cast %276 : vector<8x128xf32> to vector<4x2x128xf32>
    %278 = vector.extract_strided_slice %277 {offsets = [0, 0, 0], sizes = [4, 1, 128], strides = [1, 1, 1]} : vector<4x2x128xf32> to vector<4x1x128xf32>
    %279 = vector.shape_cast %278 : vector<4x1x128xf32> to vector<4x128xf32>
    %c12_163 = arith.constant 12 : index
    %c0_164 = arith.constant 0 : index
    %280 = vector.load %arg3[%c12_163, %c0_164] : memref<21x128xf32, #tpu.memory_space<vmem>>, vector<1x128xf32>
    %281 = vector.broadcast %280 : vector<1x128xf32> to vector<4x128xf32>
    %282 = arith.addf %279, %281 : vector<4x128xf32>
    %283 = arith.addf %272, %282 : vector<4x128xf32>
    %cst_165 = arith.constant 0.000000e+00 : f32
    %284 = vector.broadcast %cst_165 : f32 to vector<4x128xf32>
    %285 = arith.maximumf %283, %284 : vector<4x128xf32>
    %286 = arith.truncf %285 : vector<4x128xf32> to vector<4x128xbf16>
    %c35 = arith.constant 35 : index
    %c0_166 = arith.constant 0 : index
    %c0_167 = arith.constant 0 : index
    %287 = vector.load %arg2[%c35, %c0_166, %c0_167] : memref<55x128x128xbf16, #tpu.memory_space<vmem>>, vector<1x128x128xbf16>
    %288 = vector.shape_cast %287 : vector<1x128x128xbf16> to vector<128x128xbf16>
    %cst_168 = arith.constant dense<0.000000e+00> : vector<4x128xf32>
    %289 = tpu.matmul %286, %288, %cst_168 {dimension_numbers = #tpu.dot_dimension_numbers<[1], [0], [0], [1], [0, 0, 1, 1], [], []>} : vector<4x128xbf16>, vector<128x128xbf16>, vector<4x128xf32> -> vector<4x128xf32>
    %c36 = arith.constant 36 : index
    %c0_169 = arith.constant 0 : index
    %c0_170 = arith.constant 0 : index
    %290 = vector.load %arg2[%c36, %c0_169, %c0_170] : memref<55x128x128xbf16, #tpu.memory_space<vmem>>, vector<1x128x128xbf16>
    %291 = vector.shape_cast %290 : vector<1x128x128xbf16> to vector<128x128xbf16>
    %cst_171 = arith.constant dense<0.000000e+00> : vector<4x128xf32>
    %292 = tpu.matmul %286, %291, %cst_171 {dimension_numbers = #tpu.dot_dimension_numbers<[1], [0], [0], [1], [0, 0, 1, 1], [], []>} : vector<4x128xbf16>, vector<128x128xbf16>, vector<4x128xf32> -> vector<4x128xf32>
    %c37 = arith.constant 37 : index
    %c0_172 = arith.constant 0 : index
    %c0_173 = arith.constant 0 : index
    %293 = vector.load %arg2[%c37, %c0_172, %c0_173] : memref<55x128x128xbf16, #tpu.memory_space<vmem>>, vector<1x128x128xbf16>
    %294 = vector.shape_cast %293 : vector<1x128x128xbf16> to vector<128x128xbf16>
    %cst_174 = arith.constant dense<0.000000e+00> : vector<4x128xf32>
    %295 = tpu.matmul %286, %294, %cst_174 {dimension_numbers = #tpu.dot_dimension_numbers<[1], [0], [0], [1], [0, 0, 1, 1], [], []>} : vector<4x128xbf16>, vector<128x128xbf16>, vector<4x128xf32> -> vector<4x128xf32>
    %cst_175 = arith.constant 0.000000e+00 : f32
    %296 = vector.broadcast %cst_175 : f32 to vector<1x128xf32>
    %297 = vector.extract_strided_slice %289 {offsets = [0, 0], sizes = [3, 128], strides = [1, 1]} : vector<4x128xf32> to vector<3x128xf32>
    %298 = tpu.concatenate %296, %297 in 0 : vector<1x128xf32>, vector<3x128xf32> -> vector<4x128xf32>
    %299 = arith.addf %298, %292 : vector<4x128xf32>
    %cst_176 = arith.constant 0.000000e+00 : f32
    %300 = vector.broadcast %cst_176 : f32 to vector<1x128xf32>
    %301 = vector.extract_strided_slice %295 {offsets = [1, 0], sizes = [3, 128], strides = [1, 1]} : vector<4x128xf32> to vector<3x128xf32>
    %302 = tpu.concatenate %301, %300 in 0 : vector<3x128xf32>, vector<1x128xf32> -> vector<4x128xf32>
    %303 = arith.addf %299, %302 : vector<4x128xf32>
    %c13_177 = arith.constant 13 : index
    %c0_178 = arith.constant 0 : index
    %304 = vector.load %arg3[%c13_177, %c0_178] : memref<21x128xf32, #tpu.memory_space<vmem>>, vector<1x128xf32>
    %305 = vector.broadcast %304 : vector<1x128xf32> to vector<4x128xf32>
    %306 = arith.addf %303, %305 : vector<4x128xf32>
    %cst_179 = arith.constant 0.000000e+00 : f32
    %307 = vector.broadcast %cst_179 : f32 to vector<4x128xf32>
    %308 = arith.maximumf %306, %307 : vector<4x128xf32>
    %309 = arith.truncf %308 : vector<4x128xf32> to vector<4x128xbf16>
    %c38 = arith.constant 38 : index
    %c0_180 = arith.constant 0 : index
    %c0_181 = arith.constant 0 : index
    %310 = vector.load %arg2[%c38, %c0_180, %c0_181] : memref<55x128x128xbf16, #tpu.memory_space<vmem>>, vector<1x128x128xbf16>
    %311 = vector.shape_cast %310 : vector<1x128x128xbf16> to vector<128x128xbf16>
    %cst_182 = arith.constant dense<0.000000e+00> : vector<4x128xf32>
    %312 = tpu.matmul %309, %311, %cst_182 {dimension_numbers = #tpu.dot_dimension_numbers<[1], [0], [0], [1], [0, 0, 1, 1], [], []>} : vector<4x128xbf16>, vector<128x128xbf16>, vector<4x128xf32> -> vector<4x128xf32>
    %c39 = arith.constant 39 : index
    %c0_183 = arith.constant 0 : index
    %c0_184 = arith.constant 0 : index
    %313 = vector.load %arg2[%c39, %c0_183, %c0_184] : memref<55x128x128xbf16, #tpu.memory_space<vmem>>, vector<1x128x128xbf16>
    %314 = vector.shape_cast %313 : vector<1x128x128xbf16> to vector<128x128xbf16>
    %cst_185 = arith.constant dense<0.000000e+00> : vector<4x128xf32>
    %315 = tpu.matmul %309, %314, %cst_185 {dimension_numbers = #tpu.dot_dimension_numbers<[1], [0], [0], [1], [0, 0, 1, 1], [], []>} : vector<4x128xbf16>, vector<128x128xbf16>, vector<4x128xf32> -> vector<4x128xf32>
    %c40 = arith.constant 40 : index
    %c0_186 = arith.constant 0 : index
    %c0_187 = arith.constant 0 : index
    %316 = vector.load %arg2[%c40, %c0_186, %c0_187] : memref<55x128x128xbf16, #tpu.memory_space<vmem>>, vector<1x128x128xbf16>
    %317 = vector.shape_cast %316 : vector<1x128x128xbf16> to vector<128x128xbf16>
    %cst_188 = arith.constant dense<0.000000e+00> : vector<4x128xf32>
    %318 = tpu.matmul %309, %317, %cst_188 {dimension_numbers = #tpu.dot_dimension_numbers<[1], [0], [0], [1], [0, 0, 1, 1], [], []>} : vector<4x128xbf16>, vector<128x128xbf16>, vector<4x128xf32> -> vector<4x128xf32>
    %cst_189 = arith.constant 0.000000e+00 : f32
    %319 = vector.broadcast %cst_189 : f32 to vector<1x128xf32>
    %320 = vector.extract_strided_slice %312 {offsets = [0, 0], sizes = [3, 128], strides = [1, 1]} : vector<4x128xf32> to vector<3x128xf32>
    %321 = tpu.concatenate %319, %320 in 0 : vector<1x128xf32>, vector<3x128xf32> -> vector<4x128xf32>
    %322 = arith.addf %321, %315 : vector<4x128xf32>
    %cst_190 = arith.constant 0.000000e+00 : f32
    %323 = vector.broadcast %cst_190 : f32 to vector<1x128xf32>
    %324 = vector.extract_strided_slice %318 {offsets = [1, 0], sizes = [3, 128], strides = [1, 1]} : vector<4x128xf32> to vector<3x128xf32>
    %325 = tpu.concatenate %324, %323 in 0 : vector<3x128xf32>, vector<1x128xf32> -> vector<4x128xf32>
    %326 = arith.addf %322, %325 : vector<4x128xf32>
    %c14_191 = arith.constant 14 : index
    %c0_192 = arith.constant 0 : index
    %327 = vector.load %arg3[%c14_191, %c0_192] : memref<21x128xf32, #tpu.memory_space<vmem>>, vector<1x128xf32>
    %328 = vector.broadcast %327 : vector<1x128xf32> to vector<4x128xf32>
    %329 = arith.addf %326, %328 : vector<4x128xf32>
    %330 = arith.addf %329, %285 : vector<4x128xf32>
    %cst_193 = arith.constant 0.000000e+00 : f32
    %331 = vector.broadcast %cst_193 : f32 to vector<4x128xf32>
    %332 = arith.maximumf %330, %331 : vector<4x128xf32>
    %333 = arith.truncf %332 : vector<4x128xf32> to vector<4x128xbf16>
    %c41 = arith.constant 41 : index
    %c0_194 = arith.constant 0 : index
    %c0_195 = arith.constant 0 : index
    %334 = vector.load %arg2[%c41, %c0_194, %c0_195] : memref<55x128x128xbf16, #tpu.memory_space<vmem>>, vector<1x128x128xbf16>
    %335 = vector.shape_cast %334 : vector<1x128x128xbf16> to vector<128x128xbf16>
    %cst_196 = arith.constant dense<0.000000e+00> : vector<4x128xf32>
    %336 = tpu.matmul %333, %335, %cst_196 {dimension_numbers = #tpu.dot_dimension_numbers<[1], [0], [0], [1], [0, 0, 1, 1], [], []>} : vector<4x128xbf16>, vector<128x128xbf16>, vector<4x128xf32> -> vector<4x128xf32>
    %c42 = arith.constant 42 : index
    %c0_197 = arith.constant 0 : index
    %c0_198 = arith.constant 0 : index
    %337 = vector.load %arg2[%c42, %c0_197, %c0_198] : memref<55x128x128xbf16, #tpu.memory_space<vmem>>, vector<1x128x128xbf16>
    %338 = vector.shape_cast %337 : vector<1x128x128xbf16> to vector<128x128xbf16>
    %cst_199 = arith.constant dense<0.000000e+00> : vector<4x128xf32>
    %339 = tpu.matmul %333, %338, %cst_199 {dimension_numbers = #tpu.dot_dimension_numbers<[1], [0], [0], [1], [0, 0, 1, 1], [], []>} : vector<4x128xbf16>, vector<128x128xbf16>, vector<4x128xf32> -> vector<4x128xf32>
    %c43 = arith.constant 43 : index
    %c0_200 = arith.constant 0 : index
    %c0_201 = arith.constant 0 : index
    %340 = vector.load %arg2[%c43, %c0_200, %c0_201] : memref<55x128x128xbf16, #tpu.memory_space<vmem>>, vector<1x128x128xbf16>
    %341 = vector.shape_cast %340 : vector<1x128x128xbf16> to vector<128x128xbf16>
    %cst_202 = arith.constant dense<0.000000e+00> : vector<4x128xf32>
    %342 = tpu.matmul %333, %341, %cst_202 {dimension_numbers = #tpu.dot_dimension_numbers<[1], [0], [0], [1], [0, 0, 1, 1], [], []>} : vector<4x128xbf16>, vector<128x128xbf16>, vector<4x128xf32> -> vector<4x128xf32>
    %cst_203 = arith.constant 0.000000e+00 : f32
    %343 = vector.broadcast %cst_203 : f32 to vector<1x128xf32>
    %344 = vector.extract_strided_slice %336 {offsets = [0, 0], sizes = [3, 128], strides = [1, 1]} : vector<4x128xf32> to vector<3x128xf32>
    %345 = tpu.concatenate %343, %344 in 0 : vector<1x128xf32>, vector<3x128xf32> -> vector<4x128xf32>
    %346 = arith.addf %345, %339 : vector<4x128xf32>
    %cst_204 = arith.constant 0.000000e+00 : f32
    %347 = vector.broadcast %cst_204 : f32 to vector<1x128xf32>
    %348 = vector.extract_strided_slice %342 {offsets = [1, 0], sizes = [3, 128], strides = [1, 1]} : vector<4x128xf32> to vector<3x128xf32>
    %349 = tpu.concatenate %348, %347 in 0 : vector<3x128xf32>, vector<1x128xf32> -> vector<4x128xf32>
    %350 = arith.addf %346, %349 : vector<4x128xf32>
    %351 = vector.shape_cast %350 : vector<4x128xf32> to vector<2x2x128xf32>
    %352 = vector.extract_strided_slice %351 {offsets = [0, 0, 0], sizes = [2, 1, 128], strides = [1, 1, 1]} : vector<2x2x128xf32> to vector<2x1x128xf32>
    %353 = vector.shape_cast %352 : vector<2x1x128xf32> to vector<2x128xf32>
    %c15_205 = arith.constant 15 : index
    %c0_206 = arith.constant 0 : index
    %354 = vector.load %arg3[%c15_205, %c0_206] : memref<21x128xf32, #tpu.memory_space<vmem>>, vector<1x128xf32>
    %355 = vector.broadcast %354 : vector<1x128xf32> to vector<2x128xf32>
    %356 = arith.addf %353, %355 : vector<2x128xf32>
    %cst_207 = arith.constant 0.000000e+00 : f32
    %357 = vector.broadcast %cst_207 : f32 to vector<2x128xf32>
    %358 = arith.maximumf %356, %357 : vector<2x128xf32>
    %359 = arith.truncf %358 : vector<2x128xf32> to vector<2x128xbf16>
    %c44 = arith.constant 44 : index
    %c0_208 = arith.constant 0 : index
    %c0_209 = arith.constant 0 : index
    %360 = vector.load %arg2[%c44, %c0_208, %c0_209] : memref<55x128x128xbf16, #tpu.memory_space<vmem>>, vector<1x128x128xbf16>
    %361 = vector.shape_cast %360 : vector<1x128x128xbf16> to vector<128x128xbf16>
    %cst_210 = arith.constant dense<0.000000e+00> : vector<2x128xf32>
    %362 = tpu.matmul %359, %361, %cst_210 {dimension_numbers = #tpu.dot_dimension_numbers<[1], [0], [0], [1], [0, 0, 1, 1], [], []>} : vector<2x128xbf16>, vector<128x128xbf16>, vector<2x128xf32> -> vector<2x128xf32>
    %c45 = arith.constant 45 : index
    %c0_211 = arith.constant 0 : index
    %c0_212 = arith.constant 0 : index
    %363 = vector.load %arg2[%c45, %c0_211, %c0_212] : memref<55x128x128xbf16, #tpu.memory_space<vmem>>, vector<1x128x128xbf16>
    %364 = vector.shape_cast %363 : vector<1x128x128xbf16> to vector<128x128xbf16>
    %cst_213 = arith.constant dense<0.000000e+00> : vector<2x128xf32>
    %365 = tpu.matmul %359, %364, %cst_213 {dimension_numbers = #tpu.dot_dimension_numbers<[1], [0], [0], [1], [0, 0, 1, 1], [], []>} : vector<2x128xbf16>, vector<128x128xbf16>, vector<2x128xf32> -> vector<2x128xf32>
    %c46 = arith.constant 46 : index
    %c0_214 = arith.constant 0 : index
    %c0_215 = arith.constant 0 : index
    %366 = vector.load %arg2[%c46, %c0_214, %c0_215] : memref<55x128x128xbf16, #tpu.memory_space<vmem>>, vector<1x128x128xbf16>
    %367 = vector.shape_cast %366 : vector<1x128x128xbf16> to vector<128x128xbf16>
    %cst_216 = arith.constant dense<0.000000e+00> : vector<2x128xf32>
    %368 = tpu.matmul %359, %367, %cst_216 {dimension_numbers = #tpu.dot_dimension_numbers<[1], [0], [0], [1], [0, 0, 1, 1], [], []>} : vector<2x128xbf16>, vector<128x128xbf16>, vector<2x128xf32> -> vector<2x128xf32>
    %cst_217 = arith.constant 0.000000e+00 : f32
    %369 = vector.broadcast %cst_217 : f32 to vector<1x128xf32>
    %370 = vector.extract_strided_slice %362 {offsets = [0, 0], sizes = [1, 128], strides = [1, 1]} : vector<2x128xf32> to vector<1x128xf32>
    %371 = tpu.concatenate %369, %370 in 0 : vector<1x128xf32>, vector<1x128xf32> -> vector<2x128xf32>
    %372 = arith.addf %371, %365 : vector<2x128xf32>
    %cst_218 = arith.constant 0.000000e+00 : f32
    %373 = vector.broadcast %cst_218 : f32 to vector<1x128xf32>
    %374 = vector.extract_strided_slice %368 {offsets = [1, 0], sizes = [1, 128], strides = [1, 1]} : vector<2x128xf32> to vector<1x128xf32>
    %375 = tpu.concatenate %374, %373 in 0 : vector<1x128xf32>, vector<1x128xf32> -> vector<2x128xf32>
    %376 = arith.addf %372, %375 : vector<2x128xf32>
    %c16_219 = arith.constant 16 : index
    %c0_220 = arith.constant 0 : index
    %377 = vector.load %arg3[%c16_219, %c0_220] : memref<21x128xf32, #tpu.memory_space<vmem>>, vector<1x128xf32>
    %378 = vector.broadcast %377 : vector<1x128xf32> to vector<2x128xf32>
    %379 = arith.addf %376, %378 : vector<2x128xf32>
    %380 = arith.truncf %332 : vector<4x128xf32> to vector<4x128xbf16>
    %c47 = arith.constant 47 : index
    %c0_221 = arith.constant 0 : index
    %c0_222 = arith.constant 0 : index
    %381 = vector.load %arg2[%c47, %c0_221, %c0_222] : memref<55x128x128xbf16, #tpu.memory_space<vmem>>, vector<1x128x128xbf16>
    %382 = vector.shape_cast %381 : vector<1x128x128xbf16> to vector<128x128xbf16>
    %cst_223 = arith.constant dense<0.000000e+00> : vector<4x128xf32>
    %383 = tpu.matmul %380, %382, %cst_223 {dimension_numbers = #tpu.dot_dimension_numbers<[1], [0], [0], [1], [0, 0, 1, 1], [], []>} : vector<4x128xbf16>, vector<128x128xbf16>, vector<4x128xf32> -> vector<4x128xf32>
    %384 = vector.shape_cast %383 : vector<4x128xf32> to vector<2x2x128xf32>
    %385 = vector.extract_strided_slice %384 {offsets = [0, 0, 0], sizes = [2, 1, 128], strides = [1, 1, 1]} : vector<2x2x128xf32> to vector<2x1x128xf32>
    %386 = vector.shape_cast %385 : vector<2x1x128xf32> to vector<2x128xf32>
    %c17_224 = arith.constant 17 : index
    %c0_225 = arith.constant 0 : index
    %387 = vector.load %arg3[%c17_224, %c0_225] : memref<21x128xf32, #tpu.memory_space<vmem>>, vector<1x128xf32>
    %388 = vector.broadcast %387 : vector<1x128xf32> to vector<2x128xf32>
    %389 = arith.addf %386, %388 : vector<2x128xf32>
    %390 = arith.addf %379, %389 : vector<2x128xf32>
    %cst_226 = arith.constant 0.000000e+00 : f32
    %391 = vector.broadcast %cst_226 : f32 to vector<2x128xf32>
    %392 = arith.maximumf %390, %391 : vector<2x128xf32>
    %393 = arith.truncf %392 : vector<2x128xf32> to vector<2x128xbf16>
    %c48 = arith.constant 48 : index
    %c0_227 = arith.constant 0 : index
    %c0_228 = arith.constant 0 : index
    %394 = vector.load %arg2[%c48, %c0_227, %c0_228] : memref<55x128x128xbf16, #tpu.memory_space<vmem>>, vector<1x128x128xbf16>
    %395 = vector.shape_cast %394 : vector<1x128x128xbf16> to vector<128x128xbf16>
    %cst_229 = arith.constant dense<0.000000e+00> : vector<2x128xf32>
    %396 = tpu.matmul %393, %395, %cst_229 {dimension_numbers = #tpu.dot_dimension_numbers<[1], [0], [0], [1], [0, 0, 1, 1], [], []>} : vector<2x128xbf16>, vector<128x128xbf16>, vector<2x128xf32> -> vector<2x128xf32>
    %c49 = arith.constant 49 : index
    %c0_230 = arith.constant 0 : index
    %c0_231 = arith.constant 0 : index
    %397 = vector.load %arg2[%c49, %c0_230, %c0_231] : memref<55x128x128xbf16, #tpu.memory_space<vmem>>, vector<1x128x128xbf16>
    %398 = vector.shape_cast %397 : vector<1x128x128xbf16> to vector<128x128xbf16>
    %cst_232 = arith.constant dense<0.000000e+00> : vector<2x128xf32>
    %399 = tpu.matmul %393, %398, %cst_232 {dimension_numbers = #tpu.dot_dimension_numbers<[1], [0], [0], [1], [0, 0, 1, 1], [], []>} : vector<2x128xbf16>, vector<128x128xbf16>, vector<2x128xf32> -> vector<2x128xf32>
    %c50 = arith.constant 50 : index
    %c0_233 = arith.constant 0 : index
    %c0_234 = arith.constant 0 : index
    %400 = vector.load %arg2[%c50, %c0_233, %c0_234] : memref<55x128x128xbf16, #tpu.memory_space<vmem>>, vector<1x128x128xbf16>
    %401 = vector.shape_cast %400 : vector<1x128x128xbf16> to vector<128x128xbf16>
    %cst_235 = arith.constant dense<0.000000e+00> : vector<2x128xf32>
    %402 = tpu.matmul %393, %401, %cst_235 {dimension_numbers = #tpu.dot_dimension_numbers<[1], [0], [0], [1], [0, 0, 1, 1], [], []>} : vector<2x128xbf16>, vector<128x128xbf16>, vector<2x128xf32> -> vector<2x128xf32>
    %cst_236 = arith.constant 0.000000e+00 : f32
    %403 = vector.broadcast %cst_236 : f32 to vector<1x128xf32>
    %404 = vector.extract_strided_slice %396 {offsets = [0, 0], sizes = [1, 128], strides = [1, 1]} : vector<2x128xf32> to vector<1x128xf32>
    %405 = tpu.concatenate %403, %404 in 0 : vector<1x128xf32>, vector<1x128xf32> -> vector<2x128xf32>
    %406 = arith.addf %405, %399 : vector<2x128xf32>
    %cst_237 = arith.constant 0.000000e+00 : f32
    %407 = vector.broadcast %cst_237 : f32 to vector<1x128xf32>
    %408 = vector.extract_strided_slice %402 {offsets = [1, 0], sizes = [1, 128], strides = [1, 1]} : vector<2x128xf32> to vector<1x128xf32>
    %409 = tpu.concatenate %408, %407 in 0 : vector<1x128xf32>, vector<1x128xf32> -> vector<2x128xf32>
    %410 = arith.addf %406, %409 : vector<2x128xf32>
    %c18_238 = arith.constant 18 : index
    %c0_239 = arith.constant 0 : index
    %411 = vector.load %arg3[%c18_238, %c0_239] : memref<21x128xf32, #tpu.memory_space<vmem>>, vector<1x128xf32>
    %412 = vector.broadcast %411 : vector<1x128xf32> to vector<2x128xf32>
    %413 = arith.addf %410, %412 : vector<2x128xf32>
    %cst_240 = arith.constant 0.000000e+00 : f32
    %414 = vector.broadcast %cst_240 : f32 to vector<2x128xf32>
    %415 = arith.maximumf %413, %414 : vector<2x128xf32>
    %416 = arith.truncf %415 : vector<2x128xf32> to vector<2x128xbf16>
    %c51 = arith.constant 51 : index
    %c0_241 = arith.constant 0 : index
    %c0_242 = arith.constant 0 : index
    %417 = vector.load %arg2[%c51, %c0_241, %c0_242] : memref<55x128x128xbf16, #tpu.memory_space<vmem>>, vector<1x128x128xbf16>
    %418 = vector.shape_cast %417 : vector<1x128x128xbf16> to vector<128x128xbf16>
    %cst_243 = arith.constant dense<0.000000e+00> : vector<2x128xf32>
    %419 = tpu.matmul %416, %418, %cst_243 {dimension_numbers = #tpu.dot_dimension_numbers<[1], [0], [0], [1], [0, 0, 1, 1], [], []>} : vector<2x128xbf16>, vector<128x128xbf16>, vector<2x128xf32> -> vector<2x128xf32>
    %c52 = arith.constant 52 : index
    %c0_244 = arith.constant 0 : index
    %c0_245 = arith.constant 0 : index
    %420 = vector.load %arg2[%c52, %c0_244, %c0_245] : memref<55x128x128xbf16, #tpu.memory_space<vmem>>, vector<1x128x128xbf16>
    %421 = vector.shape_cast %420 : vector<1x128x128xbf16> to vector<128x128xbf16>
    %cst_246 = arith.constant dense<0.000000e+00> : vector<2x128xf32>
    %422 = tpu.matmul %416, %421, %cst_246 {dimension_numbers = #tpu.dot_dimension_numbers<[1], [0], [0], [1], [0, 0, 1, 1], [], []>} : vector<2x128xbf16>, vector<128x128xbf16>, vector<2x128xf32> -> vector<2x128xf32>
    %c53 = arith.constant 53 : index
    %c0_247 = arith.constant 0 : index
    %c0_248 = arith.constant 0 : index
    %423 = vector.load %arg2[%c53, %c0_247, %c0_248] : memref<55x128x128xbf16, #tpu.memory_space<vmem>>, vector<1x128x128xbf16>
    %424 = vector.shape_cast %423 : vector<1x128x128xbf16> to vector<128x128xbf16>
    %cst_249 = arith.constant dense<0.000000e+00> : vector<2x128xf32>
    %425 = tpu.matmul %416, %424, %cst_249 {dimension_numbers = #tpu.dot_dimension_numbers<[1], [0], [0], [1], [0, 0, 1, 1], [], []>} : vector<2x128xbf16>, vector<128x128xbf16>, vector<2x128xf32> -> vector<2x128xf32>
    %cst_250 = arith.constant 0.000000e+00 : f32
    %426 = vector.broadcast %cst_250 : f32 to vector<1x128xf32>
    %427 = vector.extract_strided_slice %419 {offsets = [0, 0], sizes = [1, 128], strides = [1, 1]} : vector<2x128xf32> to vector<1x128xf32>
    %428 = tpu.concatenate %426, %427 in 0 : vector<1x128xf32>, vector<1x128xf32> -> vector<2x128xf32>
    %429 = arith.addf %428, %422 : vector<2x128xf32>
    %cst_251 = arith.constant 0.000000e+00 : f32
    %430 = vector.broadcast %cst_251 : f32 to vector<1x128xf32>
    %431 = vector.extract_strided_slice %425 {offsets = [1, 0], sizes = [1, 128], strides = [1, 1]} : vector<2x128xf32> to vector<1x128xf32>
    %432 = tpu.concatenate %431, %430 in 0 : vector<1x128xf32>, vector<1x128xf32> -> vector<2x128xf32>
    %433 = arith.addf %429, %432 : vector<2x128xf32>
    %c19_252 = arith.constant 19 : index
    %c0_253 = arith.constant 0 : index
    %434 = vector.load %arg3[%c19_252, %c0_253] : memref<21x128xf32, #tpu.memory_space<vmem>>, vector<1x128xf32>
    %435 = vector.broadcast %434 : vector<1x128xf32> to vector<2x128xf32>
    %436 = arith.addf %433, %435 : vector<2x128xf32>
    %437 = arith.addf %436, %392 : vector<2x128xf32>
    %cst_254 = arith.constant 0.000000e+00 : f32
    %438 = vector.broadcast %cst_254 : f32 to vector<2x128xf32>
    %439 = arith.maximumf %437, %438 : vector<2x128xf32>
    %cst_255 = arith.constant dense<0.000000e+00> : vector<128xf32>
    %440 = vector.multi_reduction <add>, %439, %cst_255 [0] : vector<2x128xf32> to vector<128xf32>
    %441 = vector.shape_cast %440 : vector<128xf32> to vector<1x128xf32>
    %442 = arith.truncf %441 : vector<1x128xf32> to vector<1x128xbf16>
    %c54 = arith.constant 54 : index
    %c0_256 = arith.constant 0 : index
    %c0_257 = arith.constant 0 : index
    %443 = vector.load %arg2[%c54, %c0_256, %c0_257] : memref<55x128x128xbf16, #tpu.memory_space<vmem>>, vector<1x128x128xbf16>
    %444 = vector.shape_cast %443 : vector<1x128x128xbf16> to vector<128x128xbf16>
    %cst_258 = arith.constant dense<0.000000e+00> : vector<1x128xf32>
    %445 = tpu.matmul %442, %444, %cst_258 {dimension_numbers = #tpu.dot_dimension_numbers<[1], [0], [0], [1], [0, 0, 1, 1], [], []>} : vector<1x128xbf16>, vector<128x128xbf16>, vector<1x128xf32> -> vector<1x128xf32>
    %c20_259 = arith.constant 20 : index
    %c0_260 = arith.constant 0 : index
    %446 = vector.load %arg3[%c20_259, %c0_260] : memref<21x128xf32, #tpu.memory_space<vmem>>, vector<1x128xf32>
    %447 = arith.addf %445, %446 : vector<1x128xf32>
    %cst_261 = arith.constant dense<0xFF800000> : vector<1xf32>
    %448 = vector.multi_reduction <maximumf>, %447, %cst_261 [1] : vector<1x128xf32> to vector<1xf32>
    %449 = vector.shape_cast %448 : vector<1xf32> to vector<1x1xf32>
    %450 = vector.broadcast %449 : vector<1x1xf32> to vector<1x128xf32>
    %451 = arith.subf %447, %450 : vector<1x128xf32>
    %452 = math.exp %451 : vector<1x128xf32>
    %cst_262 = arith.constant dense<0.000000e+00> : vector<1xf32>
    %453 = vector.multi_reduction <add>, %452, %cst_262 [1] : vector<1x128xf32> to vector<1xf32>
    %454 = vector.shape_cast %453 : vector<1xf32> to vector<1x1xf32>
    %455 = math.log %454 : vector<1x1xf32>
    %456 = vector.broadcast %455 : vector<1x1xf32> to vector<1x128xf32>
    %457 = arith.subf %451, %456 : vector<1x128xf32>
    %c0_263 = arith.constant 0 : index
    %c0_264 = arith.constant 0 : index
    %c0_265 = arith.constant 0 : index
    %458 = vector.load %arg4[%c0_263, %c0_264, %c0_265] : memref<1x1x128xf32, #tpu.memory_space<vmem>>, vector<1x1x128xf32>
    %459 = vector.shape_cast %458 : vector<1x1x128xf32> to vector<1x128xf32>
    %460 = vector.shape_cast %457 : vector<1x128xf32> to vector<1x1x128xf32>
    tpu.vector_store %arg4[%c0_263, %c0_264, %c0_265], %460 {strides = array<i32>} : memref<1x1x128xf32, #tpu.memory_space<vmem>>, vector<1x1x128xf32>,
    return
  }
  func.func @transform_0(%arg0: i32) -> (i32, i32, i32) {
    %c0_i32 = arith.constant 0 : i32
    %c0_i32_0 = arith.constant 0 : i32
    %c0_i32_1 = arith.constant 0 : i32
    return %arg0, %c0_i32, %c0_i32_0 : i32, i32, i32
  }
  func.func @transform_1(%arg0: i32) -> (i32, i32, i32) {
    %c0_i32 = arith.constant 0 : i32
    %c0_i32_0 = arith.constant 0 : i32
    %c0_i32_1 = arith.constant 0 : i32
    %c0_i32_2 = arith.constant 0 : i32
    return %c0_i32, %c0_i32_0, %c0_i32_1 : i32, i32, i32
  }
  func.func @transform_2(%arg0: i32) -> (i32, i32) {
    %c0_i32 = arith.constant 0 : i32
    %c0_i32_0 = arith.constant 0 : i32
    %c0_i32_1 = arith.constant 0 : i32
    return %c0_i32, %c0_i32_0 : i32, i32
  }
  func.func @transform_3(%arg0: i32) -> (i32, i32, i32) {
    %c0_i32 = arith.constant 0 : i32
    %c0_i32_0 = arith.constant 0 : i32
    %c0_i32_1 = arith.constant 0 : i32
    return %arg0, %c0_i32, %c0_i32_0 : i32, i32, i32
  }
}

</mosaic_0001>

<llo_original>
// kernel: tpu_custom_call.1
$region0: #{tpu_custom_call.1}
  #allocation0 [shape = 'u32[]', space=smem, size = 0x4, offset = 0x4, fixed_abs, tag = 'smem constant byte address 0x4 - core index']
  #allocation1 [shape = 'u32[144,128]{1,0:T(1,128)}', space=vmem, size = 0x12000, scoped, tag = 'internal scratch']
  %s0 = inlined_call_operand.hbm [shape: f32[2,16,128], index: 0, kind: input, shape index: {}]
  %s1 = inlined_call_operand.hbm [shape: bf16[55,128,128], index: 1, kind: input, shape index: {}]
  %s2 = inlined_call_operand.hbm [shape: f32[21,128], index: 2, kind: input, shape index: {}]
  %s3 = inlined_call_operand.hbm [shape: f32[2,1,128], index: 3, kind: output, shape index: {}]
  %s4 = sld [smem:[#allocation0]]
  $region57: #{tpu_custom_call.1} parent=0
    _
  %s6 = ssub.s32 1, %s4
  %s7 = scalar_select 0, %s6, %s4
  $region1: #{tpu_custom_call.1} parent=0
    #allocation2 [shape = 'u8[16384]{0}', space=vmem, size = 0x4000, scoped, tag = 'input window, operand 0']
    #allocation3 [shape = 's32[2]{0}', space=sflag, size = 0x8, scoped, tag = 'scoped memory for tpu_custom_call.1']
    #allocation4 [shape = 's32[2]{0}', space=sflag, size = 0x8, scoped, tag = 'scoped memory for tpu_custom_call.1']
    #allocation5 [shape = 'u8[1802240]{0}', space=vmem, size = 0x1b8000, scoped, tag = 'input window, operand 1, single buffered']
    #allocation6 [shape = 's32[1]{0}', space=sflag, size = 0x4, scoped, tag = 'scoped memory for tpu_custom_call.1']
    #allocation7 [shape = 'u8[12288]{0}', space=vmem, size = 0x3000, scoped, tag = 'input window, operand 2, single buffered']
    #allocation8 [shape = 'u8[1024]{0}', space=vmem, size = 0x400, scoped, tag = 'output window, operand 0']
    %8 = vsyncpa [#allocation3], 0
    %s9 = scalar_lea.sflag [#allocation3], 1
    %10 = vsyncpa %s9, 0
    %11 = vsyncpa [#allocation6], 0
    %12 = vsyncpa [#allocation4], 0
    %s13 = scalar_lea.sflag [#allocation4], 1
    %14 = vsyncpa %s13, 0
    loop: start=0, step=1, limit=4
    $region2: #{tpu_custom_call.1} parent=1 // loop_pre_header
      _
    $region3: #{tpu_custom_call.1} parent=1 // loop_header
      %s16 = sphi 0, %s20
      %p17 = scmp.ge.s32.totalorder %s16, 4
      %s26 = sphi 0, %s28
      %s29 = sphi 0, %s26
      %s30 = sphi 0, %s29
      %s46 = sphi 0, %s30
      %s50 = sphi 0, %s50
      %s52 = sphi 0, %s50
      %s53 = sphi 0, %s52
      %s67 = sphi 0, %s53
      %s71 = sphi 0, %s71
      %s73 = sphi 0, %s71
      %s74 = sphi 0, %s73
      %s88 = sphi 0, %s74
      %s94 = sphi 0, %s96
      %s97 = sphi 0, %s94
      %s98 = sphi 0, %s97
      %s114 = sphi 0, %s98
    $region4: #{tpu_custom_call.1} parent=1 // loop_header_branch
      %19 = sbr.rel (%p17) target = $region8
    $region5: #{tpu_custom_call.1} parent=1 // loop_body
      %s21 = ssub.s32 %s16, 1
      %s22 = ssub.s32 %s16, 2
      %s23 = sadd.s32 %s16, 1
      %s24 = ssub.s32 %s16, %s23
      %p25 = scmp.eq.s32.totalorder %s24, 0
      %s27 = sadd.s32 %s26, 1
      %s28 = scalar_select %p25, %s26, %s27
      %p31 = pneg %p25
      %p32 = scmp.eq.s32.totalorder %s16, 1
      %p33 = por %p31, %p32
      %p34 = scmp.ne.s32.totalorder %s26, %s29
      %p35 = scmp.eq.s32.totalorder %s16, 0
      %p36 = por %p34, %p35
      %p37 = scmp.ne.s32.totalorder %s26, %s29
      %p38 = scmp.eq.s32.totalorder %s21, 1
      %p39 = por %p37, %p38
      %p40 = scmp.ne.s32.totalorder %s29, %s30
      %p41 = scmp.eq.s32.totalorder %s21, 0
      %p42 = por %p40, %p41
      %p43 = scmp.ne.s32.totalorder %s29, %s30
      %p44 = scmp.eq.s32.totalorder %s22, 1
      %p45 = por %p43, %p44
      %p47 = scmp.ne.s32.totalorder %s30, %s46
      %p48 = scmp.eq.s32.totalorder %s22, 0
      %p49 = por %p47, %p48
      %s51 = sadd.s32 %s50, 1
      %p54 = scmp.eq.s32.totalorder %s16, 1
      %p55 = scmp.ne.s32.totalorder %s50, %s52
      %p56 = scmp.eq.s32.totalorder %s16, 0
      %p57 = por %p55, %p56
      %p58 = scmp.ne.s32.totalorder %s50, %s52
      %p59 = scmp.eq.s32.totalorder %s21, 1
      %p60 = por %p58, %p59
      %p61 = scmp.ne.s32.totalorder %s52, %s53
      %p62 = scmp.eq.s32.totalorder %s21, 0
      %p63 = por %p61, %p62
      %p64 = scmp.ne.s32.totalorder %s52, %s53
      %p65 = scmp.eq.s32.totalorder %s22, 1
      %p66 = por %p64, %p65
      %p68 = scmp.ne.s32.totalorder %s53, %s67
      %p69 = scmp.eq.s32.totalorder %s22, 0
      %p70 = por %p68, %p69
      %s72 = sadd.s32 %s71, 1
      %p75 = scmp.eq.s32.totalorder %s16, 1
      %p76 = scmp.ne.s32.totalorder %s71, %s73
      %p77 = scmp.eq.s32.totalorder %s16, 0
      %p78 = por %p76, %p77
      %p79 = scmp.ne.s32.totalorder %s71, %s73
      %p80 = scmp.eq.s32.totalorder %s21, 1
      %p81 = por %p79, %p80
      %p82 = scmp.ne.s32.totalorder %s73, %s74
      %p83 = scmp.eq.s32.totalorder %s21, 0
      %p84 = por %p82, %p83
      %p85 = scmp.ne.s32.totalorder %s73, %s74
      %p86 = scmp.eq.s32.totalorder %s22, 1
      %p87 = por %p85, %p86
      %p89 = scmp.ne.s32.totalorder %s74, %s88
      %p90 = scmp.eq.s32.totalorder %s22, 0
      %p91 = por %p89, %p90
      %s92 = ssub.s32 %s16, %s23
      %p93 = scmp.eq.s32.totalorder %s92, 0
      %s95 = sadd.s32 %s94, 1
      %s96 = scalar_select %p93, %s94, %s95
      %p99 = pneg %p93
      %p100 = scmp.eq.s32.totalorder %s16, 1
      %p101 = por %p99, %p100
      %p102 = scmp.ne.s32.totalorder %s94, %s97
      %p103 = scmp.eq.s32.totalorder %s16, 0
      %p104 = por %p102, %p103
      %p105 = scmp.ne.s32.totalorder %s94, %s97
      %p106 = scmp.eq.s32.totalorder %s21, 1
      %p107 = por %p105, %p106
      %p108 = scmp.ne.s32.totalorder %s97, %s98
      %p109 = scmp.eq.s32.totalorder %s21, 0
      %p110 = por %p108, %p109
      %p111 = scmp.ne.s32.totalorder %s97, %s98
      %p112 = scmp.eq.s32.totalorder %s22, 1
      %p113 = por %p111, %p112
      %p115 = scmp.ne.s32.totalorder %s98, %s114
      %p116 = scmp.eq.s32.totalorder %s22, 0
      %p117 = por %p115, %p116
      %p118 = scmp.le.s32.totalorder 1, %s16
      %p119 = scmp.lt.s32.totalorder %s16, 3
      %p120 = pnand %p118, %p119
      %p121 = pneg %p120
      // Predicated region
      $region9: #{tpu_custom_call.1} parent=5 // pred_check
        _
      $region10: #{tpu_custom_call.1} parent=5 // pred_check_branch
        %123 = sbr.rel (%p120) target = $region12
      $region11: #{tpu_custom_call.1} parent=5 // pred_region
        %s124 = ssub.s32 %s16, 1
        // Predicated region
        $region13: #{tpu_custom_call.1} parent=11 // pred_check
          %p125 = pneg %p63
        $region14: #{tpu_custom_call.1} parent=11 // pred_check_branch
          %127 = sbr.rel (%p125) target = $region16
        $region15: #{tpu_custom_call.1} parent=11 // pred_region
          %s129 = ssub.s32 56320, 56320
          %130 = vsyncadd [#allocation6], %s129
          %s131 = sshll.u32 [#allocation5], 4
          %s132 = int_to_ptr.vmem [resolvable:$true] %s131
          %137 = dma.hbm_to_vmem [thread:$0]  %s1, 56320, %s132, [#allocation6], 64, 64, 4
        $region16: #{tpu_custom_call.1} parent=11 // pred_fallthru
          _
        // Predicated region
        $region17: #{tpu_custom_call.1} parent=11 // pred_check
          %p138 = pneg %p84
        $region18: #{tpu_custom_call.1} parent=11 // pred_check_branch
          %140 = sbr.rel (%p138) target = $region20
        $region19: #{tpu_custom_call.1} parent=11 // pred_region
          %s142 = ssub.s32 384, 384
          %143 = vsyncadd [#allocation6], %s142
          %s144 = sshll.u32 [#allocation7], 4
          %s145 = int_to_ptr.vmem [resolvable:$true] %s144
          %150 = dma.hbm_to_vmem [thread:$0]  %s2, 384, %s145, [#allocation6], 128, 128, 8
        $region20: #{tpu_custom_call.1} parent=11 // pred_fallthru
          _
      $region12: #{tpu_custom_call.1} parent=5 // pred_fallthru
        _
      %p151 = scmp.lt.s32.totalorder %s16, 2
      // Predicated region
      $region21: #{tpu_custom_call.1} parent=5 // pred_check
        %p152 = pneg %p151
      $region22: #{tpu_custom_call.1} parent=5 // pred_check_branch
        %154 = sbr.rel (%p152) target = $region24
      $region23: #{tpu_custom_call.1} parent=5 // pred_region
        // Predicated region
        $region25: #{tpu_custom_call.1} parent=23 // pred_check
          %p155 = pneg %p36
        $region26: #{tpu_custom_call.1} parent=23 // pred_check_branch
          %157 = sbr.rel (%p155) target = $region28
        $region27: #{tpu_custom_call.1} parent=23 // pred_region
          %s158 = sand.u32 %s26, 1
          %s159 = scalar_lea.sflag [#allocation3], %s158
          %s160 = sand.u32 %s26, 1
          %s161 = smul.addr %s160, 16
          %s162 = scalar_lea.vmem [#allocation2], %s161
          %s164 = ssub.s32 256, 256
          %165 = vsyncadd %s159, %s164
          %s166 = smul.addr %s16, 2
          %s167 = smul.addr %s166, 128
          %s168 = scalar_lea.hbm %s0, %s167
          %s169 = sshll.u32 %s162, 4
          %s170 = int_to_ptr.vmem [resolvable:$true] %s169
          %175 = dma.hbm_to_vmem [thread:$0]  %s168, 256, %s170, %s159, 128, 128, 8
        $region28: #{tpu_custom_call.1} parent=23 // pred_fallthru
          _
      $region24: #{tpu_custom_call.1} parent=5 // pred_fallthru
        _
      %p176 = scmp.le.s32.totalorder 1, %s16
      %p177 = scmp.lt.s32.totalorder %s16, 3
      %p178 = pnand %p176, %p177
      %p179 = pneg %p178
      // Predicated region
      $region29: #{tpu_custom_call.1} parent=5 // pred_check
        _
      $region30: #{tpu_custom_call.1} parent=5 // pred_check_branch
        %181 = sbr.rel (%p178) target = $region32
      $region31: #{tpu_custom_call.1} parent=5 // pred_region
        %s182 = ssub.s32 %s16, 1
        %s183 = sand.u32 %s29, 1
        %s184 = scalar_lea.sflag [#allocation3], %s183
        %s185 = sand.u32 %s29, 1
        %s186 = smul.addr %s185, 16
        %s187 = scalar_lea.vmem [#allocation2], %s186
        // Predicated region
        $region33: #{tpu_custom_call.1} parent=31 // pred_check
          %p188 = pneg %p42
        $region34: #{tpu_custom_call.1} parent=31 // pred_check_branch
          %190 = sbr.rel (%p188) target = $region36
        $region35: #{tpu_custom_call.1} parent=31 // pred_region
          %191 = dma.done %s184, 256
        $region36: #{tpu_custom_call.1} parent=31 // pred_fallthru
          _
        // Predicated region
        $region37: #{tpu_custom_call.1} parent=31 // pred_check
          %p192 = pneg %p63
        $region38: #{tpu_custom_call.1} parent=31 // pred_check_branch
          %194 = sbr.rel (%p192) target = $region40
        $region39: #{tpu_custom_call.1} parent=31 // pred_region
          %195 = dma.done [#allocation6], 56320
        $region40: #{tpu_custom_call.1} parent=31 // pred_fallthru
          _
        // Predicated region
        $region41: #{tpu_custom_call.1} parent=31 // pred_check
          %p196 = pneg %p84
        $region42: #{tpu_custom_call.1} parent=31 // pred_check_branch
          %198 = sbr.rel (%p196) target = $region44
        $region43: #{tpu_custom_call.1} parent=31 // pred_region
          %199 = dma.done [#allocation6], 384
        $region44: #{tpu_custom_call.1} parent=31 // pred_fallthru
          _
        %s200 = sand.u32 %s29, 1
        %s201 = scalar_lea.sflag [#allocation3], %s200
        %s202 = sand.u32 %s29, 1
        %s203 = smul.addr %s202, 16
        %s204 = scalar_lea.vmem [#allocation2], %s203
        %p205 = pneg %p42
        %p206 = pneg %p39
        %p207 = pneg %p63
        %p208 = pneg %p60
        %p209 = pneg %p84
        %p210 = pneg %p81
        %p211 = pneg %p110
        %p212 = pneg %p107
        %s213 = sand.u32 %s97, 1
        %s214 = scalar_lea.sflag [#allocation4], %s213
        %s215 = sand.u32 %s97, 1
        %s216 = scalar_lea.vmem [#allocation8], %s215
        %v218 = vld [vmem:[%s187] sm:$0xff]
        %v219 = vld [vmem:[%s187 + $0x8] sm:$0xff]
        %v220 = vpack.c.bf16 %v219, %v218
        %v221 = vld [vmem:[#allocation5] sm:$0xf]
        %v222 = vld [vmem:[#allocation5 + $0x4] sm:$0xf]
        %v223 = vld [vmem:[#allocation5 + $0x8] sm:$0xf]
        %v224 = vld [vmem:[#allocation5 + $0xc] sm:$0xf]
        %v225 = vld [vmem:[#allocation5 + $0x10] sm:$0xf]
        %v226 = vld [vmem:[#allocation5 + $0x14] sm:$0xf]
        %v227 = vld [vmem:[#allocation5 + $0x18] sm:$0xf]
        %v228 = vld [vmem:[#allocation5 + $0x1c] sm:$0xf]
        %v229 = vld [vmem:[#allocation5 + $0x20] sm:$0xf]
        %v230 = vld [vmem:[#allocation5 + $0x24] sm:$0xf]
        %v231 = vld [vmem:[#allocation5 + $0x28] sm:$0xf]
        %v232 = vld [vmem:[#allocation5 + $0x2c] sm:$0xf]
        %v233 = vld [vmem:[#allocation5 + $0x30] sm:$0xf]
        %v234 = vld [vmem:[#allocation5 + $0x34] sm:$0xf]
        %v235 = vld [vmem:[#allocation5 + $0x38] sm:$0xf]
        %v236 = vld [vmem:[#allocation5 + $0x3c] sm:$0xf]
        %v253 = vunpack.c.l.b16 %v221
        %v254 = vunpack.c.l.b16 %v222
        %v255 = vunpack.c.l.b16 %v223
        %v256 = vunpack.c.l.b16 %v224
        %v257 = vunpack.c.l.b16 %v225
        %v258 = vunpack.c.l.b16 %v226
        %v259 = vunpack.c.l.b16 %v227
        %v260 = vunpack.c.l.b16 %v228
        %v261 = vunpack.c.l.b16 %v229
        %v262 = vunpack.c.l.b16 %v230
        %v263 = vunpack.c.l.b16 %v231
        %v264 = vunpack.c.l.b16 %v232
        %v265 = vunpack.c.l.b16 %v233
        %v266 = vunpack.c.l.b16 %v234
        %v267 = vunpack.c.l.b16 %v235
        %v268 = vunpack.c.l.b16 %v236
        %v269 = vpack.c.b16 %v254, %v253
        %v270 = vpack.c.b16 %v256, %v255
        %v271 = vpack.c.b16 %v258, %v257
        %v272 = vpack.c.b16 %v260, %v259
        %v273 = vpack.c.b16 %v262, %v261
        %v274 = vpack.c.b16 %v264, %v263
        %v275 = vpack.c.b16 %v266, %v265
        %v276 = vpack.c.b16 %v268, %v267
        %285 = vmatprep.subr.bf16.mxu0 0
        %286 = vmatpush1.bf16.msra.mxu0 %v269
        %287 = vmatprep.subr.bf16.mxu0 0
        %288 = vmatpush1.bf16.msra.mxu0 %v270
        %289 = vmatprep.subr.bf16.mxu0 0
        %290 = vmatpush1.bf16.msra.mxu0 %v271
        %291 = vmatprep.subr.bf16.mxu0 0
        %292 = vmatpush1.bf16.msra.mxu0 %v272
        %293 = vmatprep.subr.bf16.mxu0 0
        %294 = vmatpush1.bf16.msra.mxu0 %v273
        %295 = vmatprep.subr.bf16.mxu0 0
        %296 = vmatpush1.bf16.msra.mxu0 %v274
        %297 = vmatprep.subr.bf16.mxu0 0
        %298 = vmatpush1.bf16.msra.mxu0 %v275
        %299 = vmatprep.subr.bf16.mxu0 0
        %300 = vmatpush1.bf16.msra.mxu0 %v276
        %301 = vmatprep.subr.bf16.mxu0 0
        %302 = vmatpush1.bf16.msra.mxu0 0
        %303 = vmatprep.subr.bf16.mxu0 0
        %304 = vmatpush1.bf16.msra.mxu0 0
        %305 = vmatprep.subr.bf16.mxu0 0
        %306 = vmatpush1.bf16.msra.mxu0 0
        %307 = vmatprep.subr.bf16.mxu0 0
        %308 = vmatpush1.bf16.msra.mxu0 0
        %309 = vmatprep.subr.bf16.mxu0 0
        %310 = vmatpush1.bf16.msra.mxu0 0
        %311 = vmatprep.subr.bf16.mxu0 0
        %312 = vmatpush1.bf16.msra.mxu0 0
        %313 = vmatprep.subr.bf16.mxu0 0
        %314 = vmatpush1.bf16.msra.mxu0 0
        %315 = vmatprep.subr.bf16.mxu0 0
        %316 = vmatpush1.bf16.msra.mxu0 0
        %317 = vmatprep.mubr.bf16.mxu0 0
        %318 = vmatmul.mubr.bf16.gmra.mrb[0].mxu0 %v220
        %v319 = vpop.f32.mrb[0].mxu0
        %v320 = vadd.f32 0.0, %v319
        %v321 = vpop.f32.mrb[0].mxu0
        %v322 = vpop.f32.mrb[0].mxu0
        %v323 = vadd.f32 0.0, %v322
        %v324 = vpop.f32.mrb[0].mxu0
        %325 = vdwg.mxu0
        %s326 = scalar_lea.vmem [#allocation5], 64
        %v327 = vld [vmem:[%s326] sm:$0xf]
        %v328 = vld [vmem:[%s326 + $0x4] sm:$0xf]
        %v329 = vld [vmem:[%s326 + $0x8] sm:$0xf]
        %v330 = vld [vmem:[%s326 + $0xc] sm:$0xf]
        %v331 = vld [vmem:[%s326 + $0x10] sm:$0xf]
        %v332 = vld [vmem:[%s326 + $0x14] sm:$0xf]
        %v333 = vld [vmem:[%s326 + $0x18] sm:$0xf]
        %v334 = vld [vmem:[%s326 + $0x1c] sm:$0xf]
        %v335 = vld [vmem:[%s326 + $0x20] sm:$0xf]
        %v336 = vld [vmem:[%s326 + $0x24] sm:$0xf]
        %v337 = vld [vmem:[%s326 + $0x28] sm:$0xf]
        %v338 = vld [vmem:[%s326 + $0x2c] sm:$0xf]
        %v339 = vld [vmem:[%s326 + $0x30] sm:$0xf]
        %v340 = vld [vmem:[%s326 + $0x34] sm:$0xf]
        %v341 = vld [vmem:[%s326 + $0x38] sm:$0xf]
        %v342 = vld [vmem:[%s326 + $0x3c] sm:$0xf]
        %v359 = vunpack.c.l.b16 %v327
        %v360 = vunpack.c.l.b16 %v328
        %v361 = vunpack.c.l.b16 %v329
        %v362 = vunpack.c.l.b16 %v330
        %v363 = vunpack.c.l.b16 %v331
        %v364 = vunpack.c.l.b16 %v332
        %v365 = vunpack.c.l.b16 %v333
        %v366 = vunpack.c.l.b16 %v334
        %v367 = vunpack.c.l.b16 %v335
        %v368 = vunpack.c.l.b16 %v336
        %v369 = vunpack.c.l.b16 %v337
        %v370 = vunpack.c.l.b16 %v338
        %v371 = vunpack.c.l.b16 %v339
        %v372 = vunpack.c.l.b16 %v340
        %v373 = vunpack.c.l.b16 %v341
        %v374 = vunpack.c.l.b16 %v342
        %v375 = vpack.c.b16 %v360, %v359
        %v376 = vpack.c.b16 %v362, %v361
        %v377 = vpack.c.b16 %v364, %v363
        %v378 = vpack.c.b16 %v366, %v365
        %v379 = vpack.c.b16 %v368, %v367
        %v380 = vpack.c.b16 %v370, %v369
        %v381 = vpack.c.b16 %v372, %v371
        %v382 = vpack.c.b16 %v374, %v373
        %391 = vmatprep.subr.bf16.mxu0 0
        %392 = vmatpush1.bf16.msra.mxu0 %v375
        %393 = vmatprep.subr.bf16.mxu0 0
        %394 = vmatpush1.bf16.msra.mxu0 %v376
        %395 = vmatprep.subr.bf16.mxu0 0
        %396 = vmatpush1.bf16.msra.mxu0 %v377
        %397 = vmatprep.subr.bf16.mxu0 0
        %398 = vmatpush1.bf16.msra.mxu0 %v378
        %399 = vmatprep.subr.bf16.mxu0 0
        %400 = vmatpush1.bf16.msra.mxu0 %v379
        %401 = vmatprep.subr.bf16.mxu0 0
        %402 = vmatpush1.bf16.msra.mxu0 %v380
        %403 = vmatprep.subr.bf16.mxu0 0
        %404 = vmatpush1.bf16.msra.mxu0 %v381
        %405 = vmatprep.subr.bf16.mxu0 0
        %406 = vmatpush1.bf16.msra.mxu0 %v382
        %407 = vmatprep.subr.bf16.mxu0 0
        %408 = vmatpush1.bf16.msra.mxu0 0
        %409 = vmatprep.subr.bf16.mxu0 0
        %410 = vmatpush1.bf16.msra.mxu0 0
        %411 = vmatprep.subr.bf16.mxu0 0
        %412 = vmatpush1.bf16.msra.mxu0 0
        %413 = vmatprep.subr.bf16.mxu0 0
        %414 = vmatpush1.bf16.msra.mxu0 0
        %415 = vmatprep.subr.bf16.mxu0 0
        %416 = vmatpush1.bf16.msra.mxu0 0
        %417 = vmatprep.subr.bf16.mxu0 0
        %418 = vmatpush1.bf16.msra.mxu0 0
        %419 = vmatprep.subr.bf16.mxu0 0
        %420 = vmatpush1.bf16.msra.mxu0 0
        %421 = vmatprep.subr.bf16.mxu0 0
        %422 = vmatpush1.bf16.msra.mxu0 0
        %423 = vmatprep.mubr.bf16.mxu0 0
        %424 = vmatmul.mubr.bf16.gmra.mrb[0].mxu0 %v220
        %v425 = vpop.f32.mrb[0].mxu0
        %v426 = vadd.f32 0.0, %v425
        %v427 = vpop.f32.mrb[0].mxu0
        %v428 = vpop.f32.mrb[0].mxu0
        %v429 = vadd.f32 0.0, %v428
        %v430 = vpop.f32.mrb[0].mxu0
        %431 = vdwg.mxu0
        %s432 = scalar_lea.vmem [#allocation5], 128
        %v433 = vld [vmem:[%s432] sm:$0xf]
        %v434 = vld [vmem:[%s432 + $0x4] sm:$0xf]
        %v435 = vld [vmem:[%s432 + $0x8] sm:$0xf]
        %v436 = vld [vmem:[%s432 + $0xc] sm:$0xf]
        %v437 = vld [vmem:[%s432 + $0x10] sm:$0xf]
        %v438 = vld [vmem:[%s432 + $0x14] sm:$0xf]
        %v439 = vld [vmem:[%s432 + $0x18] sm:$0xf]
        %v440 = vld [vmem:[%s432 + $0x1c] sm:$0xf]
        %v441 = vld [vmem:[%s432 + $0x20] sm:$0xf]
        %v442 = vld [vmem:[%s432 + $0x24] sm:$0xf]
        %v443 = vld [vmem:[%s432 + $0x28] sm:$0xf]
        %v444 = vld [vmem:[%s432 + $0x2c] sm:$0xf]
        %v445 = vld [vmem:[%s432 + $0x30] sm:$0xf]
        %v446 = vld [vmem:[%s432 + $0x34] sm:$0xf]
        %v447 = vld [vmem:[%s432 + $0x38] sm:$0xf]
        %v448 = vld [vmem:[%s432 + $0x3c] sm:$0xf]
        %v465 = vunpack.c.l.b16 %v433
        %v466 = vunpack.c.l.b16 %v434
        %v467 = vunpack.c.l.b16 %v435
        %v468 = vunpack.c.l.b16 %v436
        %v469 = vunpack.c.l.b16 %v437
        %v470 = vunpack.c.l.b16 %v438
        %v471 = vunpack.c.l.b16 %v439
        %v472 = vunpack.c.l.b16 %v440
        %v473 = vunpack.c.l.b16 %v441
        %v474 = vunpack.c.l.b16 %v442
        %v475 = vunpack.c.l.b16 %v443
        %v476 = vunpack.c.l.b16 %v444
        %v477 = vunpack.c.l.b16 %v445
        %v478 = vunpack.c.l.b16 %v446
        %v479 = vunpack.c.l.b16 %v447
        %v480 = vunpack.c.l.b16 %v448
        %v481 = vpack.c.b16 %v466, %v465
        %v482 = vpack.c.b16 %v468, %v467
        %v483 = vpack.c.b16 %v470, %v469
        %v484 = vpack.c.b16 %v472, %v471
        %v485 = vpack.c.b16 %v474, %v473
        %v486 = vpack.c.b16 %v476, %v475
        %v487 = vpack.c.b16 %v478, %v477
        %v488 = vpack.c.b16 %v480, %v479
        %497 = vmatprep.subr.bf16.mxu0 0
        %498 = vmatpush1.bf16.msra.mxu0 %v481
        %499 = vmatprep.subr.bf16.mxu0 0
        %500 = vmatpush1.bf16.msra.mxu0 %v482
        %501 = vmatprep.subr.bf16.mxu0 0
        %502 = vmatpush1.bf16.msra.mxu0 %v483
        %503 = vmatprep.subr.bf16.mxu0 0
        %504 = vmatpush1.bf16.msra.mxu0 %v484
        %505 = vmatprep.subr.bf16.mxu0 0
        %506 = vmatpush1.bf16.msra.mxu0 %v485
        %507 = vmatprep.subr.bf16.mxu0 0
        %508 = vmatpush1.bf16.msra.mxu0 %v486
        %509 = vmatprep.subr.bf16.mxu0 0
        %510 = vmatpush1.bf16.msra.mxu0 %v487
        %511 = vmatprep.subr.bf16.mxu0 0
        %512 = vmatpush1.bf16.msra.mxu0 %v488
        %513 = vmatprep.subr.bf16.mxu0 0
        %514 = vmatpush1.bf16.msra.mxu0 0
        %515 = vmatprep.subr.bf16.mxu0 0
        %516 = vmatpush1.bf16.msra.mxu0 0
        %517 = vmatprep.subr.bf16.mxu0 0
        %518 = vmatpush1.bf16.msra.mxu0 0
        %519 = vmatprep.subr.bf16.mxu0 0
        %520 = vmatpush1.bf16.msra.mxu0 0
        %521 = vmatprep.subr.bf16.mxu0 0
        %522 = vmatpush1.bf16.msra.mxu0 0
        %523 = vmatprep.subr.bf16.mxu0 0
        %524 = vmatpush1.bf16.msra.mxu0 0
        %525 = vmatprep.subr.bf16.mxu0 0
        %526 = vmatpush1.bf16.msra.mxu0 0
        %527 = vmatprep.subr.bf16.mxu0 0
        %528 = vmatpush1.bf16.msra.mxu0 0
        %529 = vmatprep.mubr.bf16.mxu0 0
        %530 = vmatmul.mubr.bf16.gmra.mrb[0].mxu0 %v220
        %v531 = vpop.f32.mrb[0].mxu0
        %v532 = vadd.f32 0.0, %v531
        %v533 = vpop.f32.mrb[0].mxu0
        %v534 = vpop.f32.mrb[0].mxu0
        %v535 = vadd.f32 0.0, %v534
        %v536 = vpop.f32.mrb[0].mxu0
        %537 = vdwg.mxu0
        %vm540 = vcmask 1040384
        %v541 = vrot.slane %v320, 7
        %v542 = vrot.slane %v323, 7
        %v543 = vsel %vm540, %v541, %v542
        %v546 = vsel %vm540, 0.0, %v541
        %v547 = vadd.f32 %v546, %v426
        %v548 = vadd.f32 %v543, %v429
        %vm551 = vcmask 1046528
        %v552 = vrot.slane %v532, 1
        %v553 = vrot.slane %v535, 1
        %v554 = vsel %vm551, %v552, %v553
        %v557 = vsel %vm551, %v553, 0.0
        %v558 = vadd.f32 %v547, %v554
        %v559 = vadd.f32 %v548, %v557
        %v560 = vld [vmem:[#allocation7] sm:$0x1]
        %v561 = vlaneseq
        %v562 = vshrl.u32 %v561, 7
        %v563 = vsub.s32 0, %v562
        %v564 = vrot.slane %v560, %v563
        %v565 = vadd.f32 %v558, %v564
        %v566 = vadd.f32 %v559, %v564
        %v567 = vmax.f32 %v565, 0.0
        %v568 = vmax.f32 %v566, 0.0
        %v569 = vpack.c.bf16 %v568, %v567
        %s570 = scalar_lea.vmem [#allocation5], 192
        %v571 = vld [vmem:[%s570] sm:$0xf]
        %v572 = vld [vmem:[%s570 + $0x4] sm:$0xf]
        %v573 = vld [vmem:[%s570 + $0x8] sm:$0xf]
        %v574 = vld [vmem:[%s570 + $0xc] sm:$0xf]
        %v575 = vld [vmem:[%s570 + $0x10] sm:$0xf]
        %v576 = vld [vmem:[%s570 + $0x14] sm:$0xf]
        %v577 = vld [vmem:[%s570 + $0x18] sm:$0xf]
        %v578 = vld [vmem:[%s570 + $0x1c] sm:$0xf]
        %v579 = vld [vmem:[%s570 + $0x20] sm:$0xf]
        %v580 = vld [vmem:[%s570 + $0x24] sm:$0xf]
        %v581 = vld [vmem:[%s570 + $0x28] sm:$0xf]
        %v582 = vld [vmem:[%s570 + $0x2c] sm:$0xf]
        %v583 = vld [vmem:[%s570 + $0x30] sm:$0xf]
        %v584 = vld [vmem:[%s570 + $0x34] sm:$0xf]
        %v585 = vld [vmem:[%s570 + $0x38] sm:$0xf]
        %v586 = vld [vmem:[%s570 + $0x3c] sm:$0xf]
        %v603 = vunpack.c.l.b16 %v571
        %v604 = vunpack.c.l.b16 %v572
        %v605 = vunpack.c.l.b16 %v573
        %v606 = vunpack.c.l.b16 %v574
        %v607 = vunpack.c.l.b16 %v575
        %v608 = vunpack.c.l.b16 %v576
        %v609 = vunpack.c.l.b16 %v577
        %v610 = vunpack.c.l.b16 %v578
        %v611 = vunpack.c.l.b16 %v579
        %v612 = vunpack.c.l.b16 %v580
        %v613 = vunpack.c.l.b16 %v581
        %v614 = vunpack.c.l.b16 %v582
        %v615 = vunpack.c.l.b16 %v583
        %v616 = vunpack.c.l.b16 %v584
        %v617 = vunpack.c.l.b16 %v585
        %v618 = vunpack.c.l.b16 %v586
        %v619 = vpack.c.b16 %v604, %v603
        %v620 = vpack.c.b16 %v606, %v605
        %v621 = vpack.c.b16 %v608, %v607
        %v622 = vpack.c.b16 %v610, %v609
        %v623 = vpack.c.b16 %v612, %v611
        %v624 = vpack.c.b16 %v614, %v613
        %v625 = vpack.c.b16 %v616, %v615
        %v626 = vpack.c.b16 %v618, %v617
        %635 = vmatprep.subr.bf16.mxu0 0
        %636 = vmatpush1.bf16.msra.mxu0 %v619
        %637 = vmatprep.subr.bf16.mxu0 0
        %638 = vmatpush1.bf16.msra.mxu0 %v620
        %639 = vmatprep.subr.bf16.mxu0 0
        %640 = vmatpush1.bf16.msra.mxu0 %v621
        %641 = vmatprep.subr.bf16.mxu0 0
        %642 = vmatpush1.bf16.msra.mxu0 %v622
        %643 = vmatprep.subr.bf16.mxu0 0
        %644 = vmatpush1.bf16.msra.mxu0 %v623
        %645 = vmatprep.subr.bf16.mxu0 0
        %646 = vmatpush1.bf16.msra.mxu0 %v624
        %647 = vmatprep.subr.bf16.mxu0 0
        %648 = vmatpush1.bf16.msra.mxu0 %v625
        %649 = vmatprep.subr.bf16.mxu0 0
        %650 = vmatpush1.bf16.msra.mxu0 %v626
        %651 = vmatprep.subr.bf16.mxu0 0
        %652 = vmatpush1.bf16.msra.mxu0 0
        %653 = vmatprep.subr.bf16.mxu0 0
        %654 = vmatpush1.bf16.msra.mxu0 0
        %655 = vmatprep.subr.bf16.mxu0 0
        %656 = vmatpush1.bf16.msra.mxu0 0
        %657 = vmatprep.subr.bf16.mxu0 0
        %658 = vmatpush1.bf16.msra.mxu0 0
        %659 = vmatprep.subr.bf16.mxu0 0
        %660 = vmatpush1.bf16.msra.mxu0 0
        %661 = vmatprep.subr.bf16.mxu0 0
        %662 = vmatpush1.bf16.msra.mxu0 0
        %663 = vmatprep.subr.bf16.mxu0 0
        %664 = vmatpush1.bf16.msra.mxu0 0
        %665 = vmatprep.subr.bf16.mxu0 0
        %666 = vmatpush1.bf16.msra.mxu0 0
        %667 = vmatprep.mubr.bf16.mxu0 0
        %668 = vmatmul.mubr.bf16.gmra.mrb[0].mxu0 %v569
        %v669 = vpop.f32.mrb[0].mxu0
        %v670 = vadd.f32 0.0, %v669
        %v671 = vpop.f32.mrb[0].mxu0
        %v672 = vpop.f32.mrb[0].mxu0
        %v673 = vadd.f32 0.0, %v672
        %v674 = vpop.f32.mrb[0].mxu0
        %675 = vdwg.mxu0
        %s676 = scalar_lea.vmem [#allocation5], 256
        %v677 = vld [vmem:[%s676] sm:$0xf]
        %v678 = vld [vmem:[%s676 + $0x4] sm:$0xf]
        %v679 = vld [vmem:[%s676 + $0x8] sm:$0xf]
        %v680 = vld [vmem:[%s676 + $0xc] sm:$0xf]
        %v681 = vld [vmem:[%s676 + $0x10] sm:$0xf]
        %v682 = vld [vmem:[%s676 + $0x14] sm:$0xf]
        %v683 = vld [vmem:[%s676 + $0x18] sm:$0xf]
        %v684 = vld [vmem:[%s676 + $0x1c] sm:$0xf]
        %v685 = vld [vmem:[%s676 + $0x20] sm:$0xf]
        %v686 = vld [vmem:[%s676 + $0x24] sm:$0xf]
        %v687 = vld [vmem:[%s676 + $0x28] sm:$0xf]
        %v688 = vld [vmem:[%s676 + $0x2c] sm:$0xf]
        %v689 = vld [vmem:[%s676 + $0x30] sm:$0xf]
        %v690 = vld [vmem:[%s676 + $0x34] sm:$0xf]
        %v691 = vld [vmem:[%s676 + $0x38] sm:$0xf]
        %v692 = vld [vmem:[%s676 + $0x3c] sm:$0xf]
        %v709 = vunpack.c.l.b16 %v677
        %v710 = vunpack.c.l.b16 %v678
        %v711 = vunpack.c.l.b16 %v679
        %v712 = vunpack.c.l.b16 %v680
        %v713 = vunpack.c.l.b16 %v681
        %v714 = vunpack.c.l.b16 %v682
        %v715 = vunpack.c.l.b16 %v683
        %v716 = vunpack.c.l.b16 %v684
        %v717 = vunpack.c.l.b16 %v685
        %v718 = vunpack.c.l.b16 %v686
        %v719 = vunpack.c.l.b16 %v687
        %v720 = vunpack.c.l.b16 %v688
        %v721 = vunpack.c.l.b16 %v689
        %v722 = vunpack.c.l.b16 %v690
        %v723 = vunpack.c.l.b16 %v691
        %v724 = vunpack.c.l.b16 %v692
        %v725 = vpack.c.b16 %v710, %v709
        %v726 = vpack.c.b16 %v712, %v711
        %v727 = vpack.c.b16 %v714, %v713
        %v728 = vpack.c.b16 %v716, %v715
        %v729 = vpack.c.b16 %v718, %v717
        %v730 = vpack.c.b16 %v720, %v719
        %v731 = vpack.c.b16 %v722, %v721
        %v732 = vpack.c.b16 %v724, %v723
        %741 = vmatprep.subr.bf16.mxu0 0
        %742 = vmatpush1.bf16.msra.mxu0 %v725
        %743 = vmatprep.subr.bf16.mxu0 0
        %744 = vmatpush1.bf16.msra.mxu0 %v726
        %745 = vmatprep.subr.bf16.mxu0 0
        %746 = vmatpush1.bf16.msra.mxu0 %v727
        %747 = vmatprep.subr.bf16.mxu0 0
        %748 = vmatpush1.bf16.msra.mxu0 %v728
        %749 = vmatprep.subr.bf16.mxu0 0
        %750 = vmatpush1.bf16.msra.mxu0 %v729
        %751 = vmatprep.subr.bf16.mxu0 0
        %752 = vmatpush1.bf16.msra.mxu0 %v730
        %753 = vmatprep.subr.bf16.mxu0 0
        %754 = vmatpush1.bf16.msra.mxu0 %v731
        %755 = vmatprep.subr.bf16.mxu0 0
        %756 = vmatpush1.bf16.msra.mxu0 %v732
        %757 = vmatprep.subr.bf16.mxu0 0
        %758 = vmatpush1.bf16.msra.mxu0 0
        %759 = vmatprep.subr.bf16.mxu0 0
        %760 = vmatpush1.bf16.msra.mxu0 0
        %761 = vmatprep.subr.bf16.mxu0 0
        %762 = vmatpush1.bf16.msra.mxu0 0
        %763 = vmatprep.subr.bf16.mxu0 0
        %764 = vmatpush1.bf16.msra.mxu0 0
        %765 = vmatprep.subr.bf16.mxu0 0
        %766 = vmatpush1.bf16.msra.mxu0 0
        %767 = vmatprep.subr.bf16.mxu0 0
        %768 = vmatpush1.bf16.msra.mxu0 0
        %769 = vmatprep.subr.bf16.mxu0 0
        %770 = vmatpush1.bf16.msra.mxu0 0
        %771 = vmatprep.subr.bf16.mxu0 0
        %772 = vmatpush1.bf16.msra.mxu0 0
        %773 = vmatprep.mubr.bf16.mxu0 0
        %774 = vmatmul.mubr.bf16.gmra.mrb[0].mxu0 %v569
        %v775 = vpop.f32.mrb[0].mxu0
        %v776 = vadd.f32 0.0, %v775
        %v777 = vpop.f32.mrb[0].mxu0
        %v778 = vpop.f32.mrb[0].mxu0
        %v779 = vadd.f32 0.0, %v778
        %v780 = vpop.f32.mrb[0].mxu0
        %781 = vdwg.mxu0
        %s782 = scalar_lea.vmem [#allocation5], 320
        %v783 = vld [vmem:[%s782] sm:$0xf]
        %v784 = vld [vmem:[%s782 + $0x4] sm:$0xf]
        %v785 = vld [vmem:[%s782 + $0x8] sm:$0xf]
        %v786 = vld [vmem:[%s782 + $0xc] sm:$0xf]
        %v787 = vld [vmem:[%s782 + $0x10] sm:$0xf]
        %v788 = vld [vmem:[%s782 + $0x14] sm:$0xf]
        %v789 = vld [vmem:[%s782 + $0x18] sm:$0xf]
        %v790 = vld [vmem:[%s782 + $0x1c] sm:$0xf]
        %v791 = vld [vmem:[%s782 + $0x20] sm:$0xf]
        %v792 = vld [vmem:[%s782 + $0x24] sm:$0xf]
        %v793 = vld [vmem:[%s782 + $0x28] sm:$0xf]
        %v794 = vld [vmem:[%s782 + $0x2c] sm:$0xf]
        %v795 = vld [vmem:[%s782 + $0x30] sm:$0xf]
        %v796 = vld [vmem:[%s782 + $0x34] sm:$0xf]
        %v797 = vld [vmem:[%s782 + $0x38] sm:$0xf]
        %v798 = vld [vmem:[%s782 + $0x3c] sm:$0xf]
        %v815 = vunpack.c.l.b16 %v783
        %v816 = vunpack.c.l.b16 %v784
        %v817 = vunpack.c.l.b16 %v785
        %v818 = vunpack.c.l.b16 %v786
        %v819 = vunpack.c.l.b16 %v787
        %v820 = vunpack.c.l.b16 %v788
        %v821 = vunpack.c.l.b16 %v789
        %v822 = vunpack.c.l.b16 %v790
        %v823 = vunpack.c.l.b16 %v791
        %v824 = vunpack.c.l.b16 %v792
        %v825 = vunpack.c.l.b16 %v793
        %v826 = vunpack.c.l.b16 %v794
        %v827 = vunpack.c.l.b16 %v795
        %v828 = vunpack.c.l.b16 %v796
        %v829 = vunpack.c.l.b16 %v797
        %v830 = vunpack.c.l.b16 %v798
        %v831 = vpack.c.b16 %v816, %v815
        %v832 = vpack.c.b16 %v818, %v817
        %v833 = vpack.c.b16 %v820, %v819
        %v834 = vpack.c.b16 %v822, %v821
        %v835 = vpack.c.b16 %v824, %v823
        %v836 = vpack.c.b16 %v826, %v825
        %v837 = vpack.c.b16 %v828, %v827
        %v838 = vpack.c.b16 %v830, %v829
        %847 = vmatprep.subr.bf16.mxu0 0
        %848 = vmatpush1.bf16.msra.mxu0 %v831
        %849 = vmatprep.subr.bf16.mxu0 0
        %850 = vmatpush1.bf16.msra.mxu0 %v832
        %851 = vmatprep.subr.bf16.mxu0 0
        %852 = vmatpush1.bf16.msra.mxu0 %v833
        %853 = vmatprep.subr.bf16.mxu0 0
        %854 = vmatpush1.bf16.msra.mxu0 %v834
        %855 = vmatprep.subr.bf16.mxu0 0
        %856 = vmatpush1.bf16.msra.mxu0 %v835
        %857 = vmatprep.subr.bf16.mxu0 0
        %858 = vmatpush1.bf16.msra.mxu0 %v836
        %859 = vmatprep.subr.bf16.mxu0 0
        %860 = vmatpush1.bf16.msra.mxu0 %v837
        %861 = vmatprep.subr.bf16.mxu0 0
        %862 = vmatpush1.bf16.msra.mxu0 %v838
        %863 = vmatprep.subr.bf16.mxu0 0
        %864 = vmatpush1.bf16.msra.mxu0 0
        %865 = vmatprep.subr.bf16.mxu0 0
        %866 = vmatpush1.bf16.msra.mxu0 0
        %867 = vmatprep.subr.bf16.mxu0 0
        %868 = vmatpush1.bf16.msra.mxu0 0
        %869 = vmatprep.subr.bf16.mxu0 0
        %870 = vmatpush1.bf16.msra.mxu0 0
        %871 = vmatprep.subr.bf16.mxu0 0
        %872 = vmatpush1.bf16.msra.mxu0 0
        %873 = vmatprep.subr.bf16.mxu0 0
        %874 = vmatpush1.bf16.msra.mxu0 0
        %875 = vmatprep.subr.bf16.mxu0 0
        %876 = vmatpush1.bf16.msra.mxu0 0
        %877 = vmatprep.subr.bf16.mxu0 0
        %878 = vmatpush1.bf16.msra.mxu0 0
        %879 = vmatprep.mubr.bf16.mxu0 0
        %880 = vmatmul.mubr.bf16.gmra.mrb[0].mxu0 %v569
        %v881 = vpop.f32.mrb[0].mxu0
        %v882 = vadd.f32 0.0, %v881
        %v883 = vpop.f32.mrb[0].mxu0
        %v884 = vpop.f32.mrb[0].mxu0
        %v885 = vadd.f32 0.0, %v884
        %v886 = vpop.f32.mrb[0].mxu0
        %887 = vdwg.mxu0
        %v890 = vrot.slane %v670, 7
        %v891 = vrot.slane %v673, 7
        %v892 = vsel %vm540, %v890, %v891
        %v895 = vsel %vm540, 0.0, %v890
        %v896 = vadd.f32 %v895, %v776
        %v897 = vadd.f32 %v892, %v779
        %v900 = vrot.slane %v882, 1
        %v901 = vrot.slane %v885, 1
        %v902 = vsel %vm551, %v900, %v901
        %v905 = vsel %vm551, %v901, 0.0
        %v906 = vadd.f32 %v896, %v902
        %v907 = vadd.f32 %v897, %v905
        %v908 = vld [vmem:[#allocation7 + $0x1] sm:$0x1]
        %v909 = vlaneseq
        %v910 = vshrl.u32 %v909, 7
        %v911 = vsub.s32 0, %v910
        %v912 = vrot.slane %v908, %v911
        %v913 = vadd.f32 %v906, %v912
        %v914 = vadd.f32 %v907, %v912
        %v915 = vmax.f32 %v913, 0.0
        %v916 = vmax.f32 %v914, 0.0
        %v917 = vpack.c.bf16 %v916, %v915
        %s918 = scalar_lea.vmem [#allocation5], 384
        %v919 = vld [vmem:[%s918] sm:$0xf]
        %v920 = vld [vmem:[%s918 + $0x4] sm:$0xf]
        %v921 = vld [vmem:[%s918 + $0x8] sm:$0xf]
        %v922 = vld [vmem:[%s918 + $0xc] sm:$0xf]
        %v923 = vld [vmem:[%s918 + $0x10] sm:$0xf]
        %v924 = vld [vmem:[%s918 + $0x14] sm:$0xf]
        %v925 = vld [vmem:[%s918 + $0x18] sm:$0xf]
        %v926 = vld [vmem:[%s918 + $0x1c] sm:$0xf]
        %v927 = vld [vmem:[%s918 + $0x20] sm:$0xf]
        %v928 = vld [vmem:[%s918 + $0x24] sm:$0xf]
        %v929 = vld [vmem:[%s918 + $0x28] sm:$0xf]
        %v930 = vld [vmem:[%s918 + $0x2c] sm:$0xf]
        %v931 = vld [vmem:[%s918 + $0x30] sm:$0xf]
        %v932 = vld [vmem:[%s918 + $0x34] sm:$0xf]
        %v933 = vld [vmem:[%s918 + $0x38] sm:$0xf]
        %v934 = vld [vmem:[%s918 + $0x3c] sm:$0xf]
        %v951 = vunpack.c.l.b16 %v919
        %v952 = vunpack.c.l.b16 %v920
        %v953 = vunpack.c.l.b16 %v921
        %v954 = vunpack.c.l.b16 %v922
        %v955 = vunpack.c.l.b16 %v923
        %v956 = vunpack.c.l.b16 %v924
        %v957 = vunpack.c.l.b16 %v925
        %v958 = vunpack.c.l.b16 %v926
        %v959 = vunpack.c.l.b16 %v927
        %v960 = vunpack.c.l.b16 %v928
        %v961 = vunpack.c.l.b16 %v929
        %v962 = vunpack.c.l.b16 %v930
        %v963 = vunpack.c.l.b16 %v931
        %v964 = vunpack.c.l.b16 %v932
        %v965 = vunpack.c.l.b16 %v933
        %v966 = vunpack.c.l.b16 %v934
        %v967 = vpack.c.b16 %v952, %v951
        %v968 = vpack.c.b16 %v954, %v953
        %v969 = vpack.c.b16 %v956, %v955
        %v970 = vpack.c.b16 %v958, %v957
        %v971 = vpack.c.b16 %v960, %v959
        %v972 = vpack.c.b16 %v962, %v961
        %v973 = vpack.c.b16 %v964, %v963
        %v974 = vpack.c.b16 %v966, %v965
        %983 = vmatprep.subr.bf16.mxu0 0
        %984 = vmatpush1.bf16.msra.mxu0 %v967
        %985 = vmatprep.subr.bf16.mxu0 0
        %986 = vmatpush1.bf16.msra.mxu0 %v968
        %987 = vmatprep.subr.bf16.mxu0 0
        %988 = vmatpush1.bf16.msra.mxu0 %v969
        %989 = vmatprep.subr.bf16.mxu0 0
        %990 = vmatpush1.bf16.msra.mxu0 %v970
        %991 = vmatprep.subr.bf16.mxu0 0
        %992 = vmatpush1.bf16.msra.mxu0 %v971
        %993 = vmatprep.subr.bf16.mxu0 0
        %994 = vmatpush1.bf16.msra.mxu0 %v972
        %995 = vmatprep.subr.bf16.mxu0 0
        %996 = vmatpush1.bf16.msra.mxu0 %v973
        %997 = vmatprep.subr.bf16.mxu0 0
        %998 = vmatpush1.bf16.msra.mxu0 %v974
        %999 = vmatprep.subr.bf16.mxu0 0
        %1000 = vmatpush1.bf16.msra.mxu0 0
        %1001 = vmatprep.subr.bf16.mxu0 0
        %1002 = vmatpush1.bf16.msra.mxu0 0
        %1003 = vmatprep.subr.bf16.mxu0 0
        %1004 = vmatpush1.bf16.msra.mxu0 0
        %1005 = vmatprep.subr.bf16.mxu0 0
        %1006 = vmatpush1.bf16.msra.mxu0 0
        %1007 = vmatprep.subr.bf16.mxu0 0
        %1008 = vmatpush1.bf16.msra.mxu0 0
        %1009 = vmatprep.subr.bf16.mxu0 0
        %1010 = vmatpush1.bf16.msra.mxu0 0
        %1011 = vmatprep.subr.bf16.mxu0 0
        %1012 = vmatpush1.bf16.msra.mxu0 0
        %1013 = vmatprep.subr.bf16.mxu0 0
        %1014 = vmatpush1.bf16.msra.mxu0 0
        %1015 = vmatprep.mubr.bf16.mxu0 0
        %1016 = vmatmul.mubr.bf16.gmra.mrb[0].mxu0 %v917
        %v1017 = vpop.f32.mrb[0].mxu0
        %v1018 = vadd.f32 0.0, %v1017
        %v1019 = vpop.f32.mrb[0].mxu0
        %v1020 = vpop.f32.mrb[0].mxu0
        %v1021 = vadd.f32 0.0, %v1020
        %v1022 = vpop.f32.mrb[0].mxu0
        %1023 = vdwg.mxu0
        %s1024 = scalar_lea.vmem [#allocation5], 448
        %v1025 = vld [vmem:[%s1024] sm:$0xf]
        %v1026 = vld [vmem:[%s1024 + $0x4] sm:$0xf]
        %v1027 = vld [vmem:[%s1024 + $0x8] sm:$0xf]
        %v1028 = vld [vmem:[%s1024 + $0xc] sm:$0xf]
        %v1029 = vld [vmem:[%s1024 + $0x10] sm:$0xf]
        %v1030 = vld [vmem:[%s1024 + $0x14] sm:$0xf]
        %v1031 = vld [vmem:[%s1024 + $0x18] sm:$0xf]
        %v1032 = vld [vmem:[%s1024 + $0x1c] sm:$0xf]
        %v1033 = vld [vmem:[%s1024 + $0x20] sm:$0xf]
        %v1034 = vld [vmem:[%s1024 + $0x24] sm:$0xf]
        %v1035 = vld [vmem:[%s1024 + $0x28] sm:$0xf]
        %v1036 = vld [vmem:[%s1024 + $0x2c] sm:$0xf]
        %v1037 = vld [vmem:[%s1024 + $0x30] sm:$0xf]
        %v1038 = vld [vmem:[%s1024 + $0x34] sm:$0xf]
        %v1039 = vld [vmem:[%s1024 + $0x38] sm:$0xf]
        %v1040 = vld [vmem:[%s1024 + $0x3c] sm:$0xf]
        %v1057 = vunpack.c.l.b16 %v1025
        %v1058 = vunpack.c.l.b16 %v1026
        %v1059 = vunpack.c.l.b16 %v1027
        %v1060 = vunpack.c.l.b16 %v1028
        %v1061 = vunpack.c.l.b16 %v1029
        %v1062 = vunpack.c.l.b16 %v1030
        %v1063 = vunpack.c.l.b16 %v1031
        %v1064 = vunpack.c.l.b16 %v1032
        %v1065 = vunpack.c.l.b16 %v1033
        %v1066 = vunpack.c.l.b16 %v1034
        %v1067 = vunpack.c.l.b16 %v1035
        %v1068 = vunpack.c.l.b16 %v1036
        %v1069 = vunpack.c.l.b16 %v1037
        %v1070 = vunpack.c.l.b16 %v1038
        %v1071 = vunpack.c.l.b16 %v1039
        %v1072 = vunpack.c.l.b16 %v1040
        %v1073 = vpack.c.b16 %v1058, %v1057
        %v1074 = vpack.c.b16 %v1060, %v1059
        %v1075 = vpack.c.b16 %v1062, %v1061
        %v1076 = vpack.c.b16 %v1064, %v1063
        %v1077 = vpack.c.b16 %v1066, %v1065
        %v1078 = vpack.c.b16 %v1068, %v1067
        %v1079 = vpack.c.b16 %v1070, %v1069
        %v1080 = vpack.c.b16 %v1072, %v1071
        %1089 = vmatprep.subr.bf16.mxu0 0
        %1090 = vmatpush1.bf16.msra.mxu0 %v1073
        %1091 = vmatprep.subr.bf16.mxu0 0
        %1092 = vmatpush1.bf16.msra.mxu0 %v1074
        %1093 = vmatprep.subr.bf16.mxu0 0
        %1094 = vmatpush1.bf16.msra.mxu0 %v1075
        %1095 = vmatprep.subr.bf16.mxu0 0
        %1096 = vmatpush1.bf16.msra.mxu0 %v1076
        %1097 = vmatprep.subr.bf16.mxu0 0
        %1098 = vmatpush1.bf16.msra.mxu0 %v1077
        %1099 = vmatprep.subr.bf16.mxu0 0
        %1100 = vmatpush1.bf16.msra.mxu0 %v1078
        %1101 = vmatprep.subr.bf16.mxu0 0
        %1102 = vmatpush1.bf16.msra.mxu0 %v1079
        %1103 = vmatprep.subr.bf16.mxu0 0
        %1104 = vmatpush1.bf16.msra.mxu0 %v1080
        %1105 = vmatprep.subr.bf16.mxu0 0
        %1106 = vmatpush1.bf16.msra.mxu0 0
        %1107 = vmatprep.subr.bf16.mxu0 0
        %1108 = vmatpush1.bf16.msra.mxu0 0
        %1109 = vmatprep.subr.bf16.mxu0 0
        %1110 = vmatpush1.bf16.msra.mxu0 0
        %1111 = vmatprep.subr.bf16.mxu0 0
        %1112 = vmatpush1.bf16.msra.mxu0 0
        %1113 = vmatprep.subr.bf16.mxu0 0
        %1114 = vmatpush1.bf16.msra.mxu0 0
        %1115 = vmatprep.subr.bf16.mxu0 0
        %1116 = vmatpush1.bf16.msra.mxu0 0
        %1117 = vmatprep.subr.bf16.mxu0 0
        %1118 = vmatpush1.bf16.msra.mxu0 0
        %1119 = vmatprep.subr.bf16.mxu0 0
        %1120 = vmatpush1.bf16.msra.mxu0 0
        %1121 = vmatprep.mubr.bf16.mxu0 0
        %1122 = vmatmul.mubr.bf16.gmra.mrb[0].mxu0 %v917
        %v1123 = vpop.f32.mrb[0].mxu0
        %v1124 = vadd.f32 0.0, %v1123
        %v1125 = vpop.f32.mrb[0].mxu0
        %v1126 = vpop.f32.mrb[0].mxu0
        %v1127 = vadd.f32 0.0, %v1126
        %v1128 = vpop.f32.mrb[0].mxu0
        %1129 = vdwg.mxu0
        %s1130 = scalar_lea.vmem [#allocation5], 512
        %v1131 = vld [vmem:[%s1130] sm:$0xf]
        %v1132 = vld [vmem:[%s1130 + $0x4] sm:$0xf]
        %v1133 = vld [vmem:[%s1130 + $0x8] sm:$0xf]
        %v1134 = vld [vmem:[%s1130 + $0xc] sm:$0xf]
        %v1135 = vld [vmem:[%s1130 + $0x10] sm:$0xf]
        %v1136 = vld [vmem:[%s1130 + $0x14] sm:$0xf]
        %v1137 = vld [vmem:[%s1130 + $0x18] sm:$0xf]
        %v1138 = vld [vmem:[%s1130 + $0x1c] sm:$0xf]
        %v1139 = vld [vmem:[%s1130 + $0x20] sm:$0xf]
        %v1140 = vld [vmem:[%s1130 + $0x24] sm:$0xf]
        %v1141 = vld [vmem:[%s1130 + $0x28] sm:$0xf]
        %v1142 = vld [vmem:[%s1130 + $0x2c] sm:$0xf]
        %v1143 = vld [vmem:[%s1130 + $0x30] sm:$0xf]
        %v1144 = vld [vmem:[%s1130 + $0x34] sm:$0xf]
        %v1145 = vld [vmem:[%s1130 + $0x38] sm:$0xf]
        %v1146 = vld [vmem:[%s1130 + $0x3c] sm:$0xf]
        %v1163 = vunpack.c.l.b16 %v1131
        %v1164 = vunpack.c.l.b16 %v1132
        %v1165 = vunpack.c.l.b16 %v1133
        %v1166 = vunpack.c.l.b16 %v1134
        %v1167 = vunpack.c.l.b16 %v1135
        %v1168 = vunpack.c.l.b16 %v1136
        %v1169 = vunpack.c.l.b16 %v1137
        %v1170 = vunpack.c.l.b16 %v1138
        %v1171 = vunpack.c.l.b16 %v1139
        %v1172 = vunpack.c.l.b16 %v1140
        %v1173 = vunpack.c.l.b16 %v1141
        %v1174 = vunpack.c.l.b16 %v1142
        %v1175 = vunpack.c.l.b16 %v1143
        %v1176 = vunpack.c.l.b16 %v1144
        %v1177 = vunpack.c.l.b16 %v1145
        %v1178 = vunpack.c.l.b16 %v1146
        %v1179 = vpack.c.b16 %v1164, %v1163
        %v1180 = vpack.c.b16 %v1166, %v1165
        %v1181 = vpack.c.b16 %v1168, %v1167
        %v1182 = vpack.c.b16 %v1170, %v1169
        %v1183 = vpack.c.b16 %v1172, %v1171
        %v1184 = vpack.c.b16 %v1174, %v1173
        %v1185 = vpack.c.b16 %v1176, %v1175
        %v1186 = vpack.c.b16 %v1178, %v1177
        %1195 = vmatprep.subr.bf16.mxu0 0
        %1196 = vmatpush1.bf16.msra.mxu0 %v1179
        %1197 = vmatprep.subr.bf16.mxu0 0
        %1198 = vmatpush1.bf16.msra.mxu0 %v1180
        %1199 = vmatprep.subr.bf16.mxu0 0
        %1200 = vmatpush1.bf16.msra.mxu0 %v1181
        %1201 = vmatprep.subr.bf16.mxu0 0
        %1202 = vmatpush1.bf16.msra.mxu0 %v1182
        %1203 = vmatprep.subr.bf16.mxu0 0
        %1204 = vmatpush1.bf16.msra.mxu0 %v1183
        %1205 = vmatprep.subr.bf16.mxu0 0
        %1206 = vmatpush1.bf16.msra.mxu0 %v1184
        %1207 = vmatprep.subr.bf16.mxu0 0
        %1208 = vmatpush1.bf16.msra.mxu0 %v1185
        %1209 = vmatprep.subr.bf16.mxu0 0
        %1210 = vmatpush1.bf16.msra.mxu0 %v1186
        %1211 = vmatprep.subr.bf16.mxu0 0
        %1212 = vmatpush1.bf16.msra.mxu0 0
        %1213 = vmatprep.subr.bf16.mxu0 0
        %1214 = vmatpush1.bf16.msra.mxu0 0
        %1215 = vmatprep.subr.bf16.mxu0 0
        %1216 = vmatpush1.bf16.msra.mxu0 0
        %1217 = vmatprep.subr.bf16.mxu0 0
        %1218 = vmatpush1.bf16.msra.mxu0 0
        %1219 = vmatprep.subr.bf16.mxu0 0
        %1220 = vmatpush1.bf16.msra.mxu0 0
        %1221 = vmatprep.subr.bf16.mxu0 0
        %1222 = vmatpush1.bf16.msra.mxu0 0
        %1223 = vmatprep.subr.bf16.mxu0 0
        %1224 = vmatpush1.bf16.msra.mxu0 0
        %1225 = vmatprep.subr.bf16.mxu0 0
        %1226 = vmatpush1.bf16.msra.mxu0 0
        %1227 = vmatprep.mubr.bf16.mxu0 0
        %1228 = vmatmul.mubr.bf16.gmra.mrb[0].mxu0 %v917
        %v1229 = vpop.f32.mrb[0].mxu0
        %v1230 = vadd.f32 0.0, %v1229
        %v1231 = vpop.f32.mrb[0].mxu0
        %v1232 = vpop.f32.mrb[0].mxu0
        %v1233 = vadd.f32 0.0, %v1232
        %v1234 = vpop.f32.mrb[0].mxu0
        %1235 = vdwg.mxu0
        %v1238 = vrot.slane %v1018, 7
        %v1239 = vrot.slane %v1021, 7
        %v1240 = vsel %vm540, %v1238, %v1239
        %v1243 = vsel %vm540, 0.0, %v1238
        %v1244 = vadd.f32 %v1243, %v1124
        %v1245 = vadd.f32 %v1240, %v1127
        %v1248 = vrot.slane %v1230, 1
        %v1249 = vrot.slane %v1233, 1
        %v1250 = vsel %vm551, %v1248, %v1249
        %v1253 = vsel %vm551, %v1249, 0.0
        %v1254 = vadd.f32 %v1244, %v1250
        %v1255 = vadd.f32 %v1245, %v1253
        %v1256 = vld [vmem:[#allocation7 + $0x2] sm:$0x1]
        %v1257 = vlaneseq
        %v1258 = vshrl.u32 %v1257, 7
        %v1259 = vsub.s32 0, %v1258
        %v1260 = vrot.slane %v1256, %v1259
        %v1261 = vadd.f32 %v1254, %v1260
        %v1262 = vadd.f32 %v1255, %v1260
        %v1263 = vadd.f32 %v1261, %v567
        %v1264 = vadd.f32 %v1262, %v568
        %v1265 = vmax.f32 %v1263, 0.0
        %v1266 = vmax.f32 %v1264, 0.0
        %v1267 = vpack.c.bf16 %v1266, %v1265
        %s1268 = scalar_lea.vmem [#allocation5], 576
        %v1269 = vld [vmem:[%s1268] sm:$0xf]
        %v1270 = vld [vmem:[%s1268 + $0x4] sm:$0xf]
        %v1271 = vld [vmem:[%s1268 + $0x8] sm:$0xf]
        %v1272 = vld [vmem:[%s1268 + $0xc] sm:$0xf]
        %v1273 = vld [vmem:[%s1268 + $0x10] sm:$0xf]
        %v1274 = vld [vmem:[%s1268 + $0x14] sm:$0xf]
        %v1275 = vld [vmem:[%s1268 + $0x18] sm:$0xf]
        %v1276 = vld [vmem:[%s1268 + $0x1c] sm:$0xf]
        %v1277 = vld [vmem:[%s1268 + $0x20] sm:$0xf]
        %v1278 = vld [vmem:[%s1268 + $0x24] sm:$0xf]
        %v1279 = vld [vmem:[%s1268 + $0x28] sm:$0xf]
        %v1280 = vld [vmem:[%s1268 + $0x2c] sm:$0xf]
        %v1281 = vld [vmem:[%s1268 + $0x30] sm:$0xf]
        %v1282 = vld [vmem:[%s1268 + $0x34] sm:$0xf]
        %v1283 = vld [vmem:[%s1268 + $0x38] sm:$0xf]
        %v1284 = vld [vmem:[%s1268 + $0x3c] sm:$0xf]
        %v1301 = vunpack.c.l.b16 %v1269
        %v1302 = vunpack.c.l.b16 %v1270
        %v1303 = vunpack.c.l.b16 %v1271
        %v1304 = vunpack.c.l.b16 %v1272
        %v1305 = vunpack.c.l.b16 %v1273
        %v1306 = vunpack.c.l.b16 %v1274
        %v1307 = vunpack.c.l.b16 %v1275
        %v1308 = vunpack.c.l.b16 %v1276
        %v1309 = vunpack.c.l.b16 %v1277
        %v1310 = vunpack.c.l.b16 %v1278
        %v1311 = vunpack.c.l.b16 %v1279
        %v1312 = vunpack.c.l.b16 %v1280
        %v1313 = vunpack.c.l.b16 %v1281
        %v1314 = vunpack.c.l.b16 %v1282
        %v1315 = vunpack.c.l.b16 %v1283
        %v1316 = vunpack.c.l.b16 %v1284
        %v1317 = vpack.c.b16 %v1302, %v1301
        %v1318 = vpack.c.b16 %v1304, %v1303
        %v1319 = vpack.c.b16 %v1306, %v1305
        %v1320 = vpack.c.b16 %v1308, %v1307
        %v1321 = vpack.c.b16 %v1310, %v1309
        %v1322 = vpack.c.b16 %v1312, %v1311
        %v1323 = vpack.c.b16 %v1314, %v1313
        %v1324 = vpack.c.b16 %v1316, %v1315
        %1333 = vmatprep.subr.bf16.mxu0 0
        %1334 = vmatpush1.bf16.msra.mxu0 %v1317
        %1335 = vmatprep.subr.bf16.mxu0 0
        %1336 = vmatpush1.bf16.msra.mxu0 %v1318
        %1337 = vmatprep.subr.bf16.mxu0 0
        %1338 = vmatpush1.bf16.msra.mxu0 %v1319
        %1339 = vmatprep.subr.bf16.mxu0 0
        %1340 = vmatpush1.bf16.msra.mxu0 %v1320
        %1341 = vmatprep.subr.bf16.mxu0 0
        %1342 = vmatpush1.bf16.msra.mxu0 %v1321
        %1343 = vmatprep.subr.bf16.mxu0 0
        %1344 = vmatpush1.bf16.msra.mxu0 %v1322
        %1345 = vmatprep.subr.bf16.mxu0 0
        %1346 = vmatpush1.bf16.msra.mxu0 %v1323
        %1347 = vmatprep.subr.bf16.mxu0 0
        %1348 = vmatpush1.bf16.msra.mxu0 %v1324
        %1349 = vmatprep.subr.bf16.mxu0 0
        %1350 = vmatpush1.bf16.msra.mxu0 0
        %1351 = vmatprep.subr.bf16.mxu0 0
        %1352 = vmatpush1.bf16.msra.mxu0 0
        %1353 = vmatprep.subr.bf16.mxu0 0
        %1354 = vmatpush1.bf16.msra.mxu0 0
        %1355 = vmatprep.subr.bf16.mxu0 0
        %1356 = vmatpush1.bf16.msra.mxu0 0
        %1357 = vmatprep.subr.bf16.mxu0 0
        %1358 = vmatpush1.bf16.msra.mxu0 0
        %1359 = vmatprep.subr.bf16.mxu0 0
        %1360 = vmatpush1.bf16.msra.mxu0 0
        %1361 = vmatprep.subr.bf16.mxu0 0
        %1362 = vmatpush1.bf16.msra.mxu0 0
        %1363 = vmatprep.subr.bf16.mxu0 0
        %1364 = vmatpush1.bf16.msra.mxu0 0
        %1365 = vmatprep.mubr.bf16.mxu0 0
        %1366 = vmatmul.mubr.bf16.gmra.mrb[0].mxu0 %v1267
        %v1367 = vpop.f32.mrb[0].mxu0
        %v1368 = vadd.f32 0.0, %v1367
        %v1369 = vpop.f32.mrb[0].mxu0
        %v1370 = vpop.f32.mrb[0].mxu0
        %v1371 = vadd.f32 0.0, %v1370
        %v1372 = vpop.f32.mrb[0].mxu0
        %1373 = vdwg.mxu0
        %s1374 = scalar_lea.vmem [#allocation5], 640
        %v1375 = vld [vmem:[%s1374] sm:$0xf]
        %v1376 = vld [vmem:[%s1374 + $0x4] sm:$0xf]
        %v1377 = vld [vmem:[%s1374 + $0x8] sm:$0xf]
        %v1378 = vld [vmem:[%s1374 + $0xc] sm:$0xf]
        %v1379 = vld [vmem:[%s1374 + $0x10] sm:$0xf]
        %v1380 = vld [vmem:[%s1374 + $0x14] sm:$0xf]
        %v1381 = vld [vmem:[%s1374 + $0x18] sm:$0xf]
        %v1382 = vld [vmem:[%s1374 + $0x1c] sm:$0xf]
        %v1383 = vld [vmem:[%s1374 + $0x20] sm:$0xf]
        %v1384 = vld [vmem:[%s1374 + $0x24] sm:$0xf]
        %v1385 = vld [vmem:[%s1374 + $0x28] sm:$0xf]
        %v1386 = vld [vmem:[%s1374 + $0x2c] sm:$0xf]
        %v1387 = vld [vmem:[%s1374 + $0x30] sm:$0xf]
        %v1388 = vld [vmem:[%s1374 + $0x34] sm:$0xf]
        %v1389 = vld [vmem:[%s1374 + $0x38] sm:$0xf]
        %v1390 = vld [vmem:[%s1374 + $0x3c] sm:$0xf]
        %v1407 = vunpack.c.l.b16 %v1375
        %v1408 = vunpack.c.l.b16 %v1376
        %v1409 = vunpack.c.l.b16 %v1377
        %v1410 = vunpack.c.l.b16 %v1378
        %v1411 = vunpack.c.l.b16 %v1379
        %v1412 = vunpack.c.l.b16 %v1380
        %v1413 = vunpack.c.l.b16 %v1381
        %v1414 = vunpack.c.l.b16 %v1382
        %v1415 = vunpack.c.l.b16 %v1383
        %v1416 = vunpack.c.l.b16 %v1384
        %v1417 = vunpack.c.l.b16 %v1385
        %v1418 = vunpack.c.l.b16 %v1386
        %v1419 = vunpack.c.l.b16 %v1387
        %v1420 = vunpack.c.l.b16 %v1388
        %v1421 = vunpack.c.l.b16 %v1389
        %v1422 = vunpack.c.l.b16 %v1390
        %v1423 = vpack.c.b16 %v1408, %v1407
        %v1424 = vpack.c.b16 %v1410, %v1409
        %v1425 = vpack.c.b16 %v1412, %v1411
        %v1426 = vpack.c.b16 %v1414, %v1413
        %v1427 = vpack.c.b16 %v1416, %v1415
        %v1428 = vpack.c.b16 %v1418, %v1417
        %v1429 = vpack.c.b16 %v1420, %v1419
        %v1430 = vpack.c.b16 %v1422, %v1421
        %1439 = vmatprep.subr.bf16.mxu0 0
        %1440 = vmatpush1.bf16.msra.mxu0 %v1423
        %1441 = vmatprep.subr.bf16.mxu0 0
        %1442 = vmatpush1.bf16.msra.mxu0 %v1424
        %1443 = vmatprep.subr.bf16.mxu0 0
        %1444 = vmatpush1.bf16.msra.mxu0 %v1425
        %1445 = vmatprep.subr.bf16.mxu0 0
        %1446 = vmatpush1.bf16.msra.mxu0 %v1426
        %1447 = vmatprep.subr.bf16.mxu0 0
        %1448 = vmatpush1.bf16.msra.mxu0 %v1427
        %1449 = vmatprep.subr.bf16.mxu0 0
        %1450 = vmatpush1.bf16.msra.mxu0 %v1428
        %1451 = vmatprep.subr.bf16.mxu0 0
        %1452 = vmatpush1.bf16.msra.mxu0 %v1429
        %1453 = vmatprep.subr.bf16.mxu0 0
        %1454 = vmatpush1.bf16.msra.mxu0 %v1430
        %1455 = vmatprep.subr.bf16.mxu0 0
        %1456 = vmatpush1.bf16.msra.mxu0 0
        %1457 = vmatprep.subr.bf16.mxu0 0
        %1458 = vmatpush1.bf16.msra.mxu0 0
        %1459 = vmatprep.subr.bf16.mxu0 0
        %1460 = vmatpush1.bf16.msra.mxu0 0
        %1461 = vmatprep.subr.bf16.mxu0 0
        %1462 = vmatpush1.bf16.msra.mxu0 0
        %1463 = vmatprep.subr.bf16.mxu0 0
        %1464 = vmatpush1.bf16.msra.mxu0 0
        %1465 = vmatprep.subr.bf16.mxu0 0
        %1466 = vmatpush1.bf16.msra.mxu0 0
        %1467 = vmatprep.subr.bf16.mxu0 0
        %1468 = vmatpush1.bf16.msra.mxu0 0
        %1469 = vmatprep.subr.bf16.mxu0 0
        %1470 = vmatpush1.bf16.msra.mxu0 0
        %1471 = vmatprep.mubr.bf16.mxu0 0
        %1472 = vmatmul.mubr.bf16.gmra.mrb[0].mxu0 %v1267
        %v1473 = vpop.f32.mrb[0].mxu0
        %v1474 = vadd.f32 0.0, %v1473
        %v1475 = vpop.f32.mrb[0].mxu0
        %v1476 = vpop.f32.mrb[0].mxu0
        %v1477 = vadd.f32 0.0, %v1476
        %v1478 = vpop.f32.mrb[0].mxu0
        %1479 = vdwg.mxu0
        %s1480 = scalar_lea.vmem [#allocation5], 704
        %v1481 = vld [vmem:[%s1480] sm:$0xf]
        %v1482 = vld [vmem:[%s1480 + $0x4] sm:$0xf]
        %v1483 = vld [vmem:[%s1480 + $0x8] sm:$0xf]
        %v1484 = vld [vmem:[%s1480 + $0xc] sm:$0xf]
        %v1485 = vld [vmem:[%s1480 + $0x10] sm:$0xf]
        %v1486 = vld [vmem:[%s1480 + $0x14] sm:$0xf]
        %v1487 = vld [vmem:[%s1480 + $0x18] sm:$0xf]
        %v1488 = vld [vmem:[%s1480 + $0x1c] sm:$0xf]
        %v1489 = vld [vmem:[%s1480 + $0x20] sm:$0xf]
        %v1490 = vld [vmem:[%s1480 + $0x24] sm:$0xf]
        %v1491 = vld [vmem:[%s1480 + $0x28] sm:$0xf]
        %v1492 = vld [vmem:[%s1480 + $0x2c] sm:$0xf]
        %v1493 = vld [vmem:[%s1480 + $0x30] sm:$0xf]
        %v1494 = vld [vmem:[%s1480 + $0x34] sm:$0xf]
        %v1495 = vld [vmem:[%s1480 + $0x38] sm:$0xf]
        %v1496 = vld [vmem:[%s1480 + $0x3c] sm:$0xf]
        %v1513 = vunpack.c.l.b16 %v1481
        %v1514 = vunpack.c.l.b16 %v1482
        %v1515 = vunpack.c.l.b16 %v1483
        %v1516 = vunpack.c.l.b16 %v1484
        %v1517 = vunpack.c.l.b16 %v1485
        %v1518 = vunpack.c.l.b16 %v1486
        %v1519 = vunpack.c.l.b16 %v1487
        %v1520 = vunpack.c.l.b16 %v1488
        %v1521 = vunpack.c.l.b16 %v1489
        %v1522 = vunpack.c.l.b16 %v1490
        %v1523 = vunpack.c.l.b16 %v1491
        %v1524 = vunpack.c.l.b16 %v1492
        %v1525 = vunpack.c.l.b16 %v1493
        %v1526 = vunpack.c.l.b16 %v1494
        %v1527 = vunpack.c.l.b16 %v1495
        %v1528 = vunpack.c.l.b16 %v1496
        %v1529 = vpack.c.b16 %v1514, %v1513
        %v1530 = vpack.c.b16 %v1516, %v1515
        %v1531 = vpack.c.b16 %v1518, %v1517
        %v1532 = vpack.c.b16 %v1520, %v1519
        %v1533 = vpack.c.b16 %v1522, %v1521
        %v1534 = vpack.c.b16 %v1524, %v1523
        %v1535 = vpack.c.b16 %v1526, %v1525
        %v1536 = vpack.c.b16 %v1528, %v1527
        %1545 = vmatprep.subr.bf16.mxu0 0
        %1546 = vmatpush1.bf16.msra.mxu0 %v1529
        %1547 = vmatprep.subr.bf16.mxu0 0
        %1548 = vmatpush1.bf16.msra.mxu0 %v1530
        %1549 = vmatprep.subr.bf16.mxu0 0
        %1550 = vmatpush1.bf16.msra.mxu0 %v1531
        %1551 = vmatprep.subr.bf16.mxu0 0
        %1552 = vmatpush1.bf16.msra.mxu0 %v1532
        %1553 = vmatprep.subr.bf16.mxu0 0
        %1554 = vmatpush1.bf16.msra.mxu0 %v1533
        %1555 = vmatprep.subr.bf16.mxu0 0
        %1556 = vmatpush1.bf16.msra.mxu0 %v1534
        %1557 = vmatprep.subr.bf16.mxu0 0
        %1558 = vmatpush1.bf16.msra.mxu0 %v1535
        %1559 = vmatprep.subr.bf16.mxu0 0
        %1560 = vmatpush1.bf16.msra.mxu0 %v1536
        %1561 = vmatprep.subr.bf16.mxu0 0
        %1562 = vmatpush1.bf16.msra.mxu0 0
        %1563 = vmatprep.subr.bf16.mxu0 0
        %1564 = vmatpush1.bf16.msra.mxu0 0
        %1565 = vmatprep.subr.bf16.mxu0 0
        %1566 = vmatpush1.bf16.msra.mxu0 0
        %1567 = vmatprep.subr.bf16.mxu0 0
        %1568 = vmatpush1.bf16.msra.mxu0 0
        %1569 = vmatprep.subr.bf16.mxu0 0
        %1570 = vmatpush1.bf16.msra.mxu0 0
        %1571 = vmatprep.subr.bf16.mxu0 0
        %1572 = vmatpush1.bf16.msra.mxu0 0
        %1573 = vmatprep.subr.bf16.mxu0 0
        %1574 = vmatpush1.bf16.msra.mxu0 0
        %1575 = vmatprep.subr.bf16.mxu0 0
        %1576 = vmatpush1.bf16.msra.mxu0 0
        %1577 = vmatprep.mubr.bf16.mxu0 0
        %1578 = vmatmul.mubr.bf16.gmra.mrb[0].mxu0 %v1267
        %v1579 = vpop.f32.mrb[0].mxu0
        %v1580 = vadd.f32 0.0, %v1579
        %v1581 = vpop.f32.mrb[0].mxu0
        %v1582 = vpop.f32.mrb[0].mxu0
        %v1583 = vadd.f32 0.0, %v1582
        %v1584 = vpop.f32.mrb[0].mxu0
        %1585 = vdwg.mxu0
        %v1588 = vrot.slane %v1368, 7
        %v1589 = vrot.slane %v1371, 7
        %v1590 = vsel %vm540, %v1588, %v1589
        %v1593 = vsel %vm540, 0.0, %v1588
        %v1594 = vadd.f32 %v1593, %v1474
        %v1595 = vadd.f32 %v1590, %v1477
        %v1598 = vrot.slane %v1580, 1
        %v1599 = vrot.slane %v1583, 1
        %v1600 = vsel %vm551, %v1598, %v1599
        %v1603 = vsel %vm551, %v1599, 0.0
        %v1604 = vadd.f32 %v1594, %v1600
        %v1605 = vadd.f32 %v1595, %v1603
        %v1606 = vld [vmem:[#allocation7 + $0x3] sm:$0x1]
        %v1607 = vlaneseq
        %v1608 = vshrl.u32 %v1607, 7
        %v1609 = vsub.s32 0, %v1608
        %v1610 = vrot.slane %v1606, %v1609
        %v1611 = vadd.f32 %v1604, %v1610
        %v1612 = vadd.f32 %v1605, %v1610
        %v1613 = vmax.f32 %v1611, 0.0
        %v1614 = vmax.f32 %v1612, 0.0
        %v1615 = vpack.c.bf16 %v1614, %v1613
        %s1616 = scalar_lea.vmem [#allocation5], 768
        %v1617 = vld [vmem:[%s1616] sm:$0xf]
        %v1618 = vld [vmem:[%s1616 + $0x4] sm:$0xf]
        %v1619 = vld [vmem:[%s1616 + $0x8] sm:$0xf]
        %v1620 = vld [vmem:[%s1616 + $0xc] sm:$0xf]
        %v1621 = vld [vmem:[%s1616 + $0x10] sm:$0xf]
        %v1622 = vld [vmem:[%s1616 + $0x14] sm:$0xf]
        %v1623 = vld [vmem:[%s1616 + $0x18] sm:$0xf]
        %v1624 = vld [vmem:[%s1616 + $0x1c] sm:$0xf]
        %v1625 = vld [vmem:[%s1616 + $0x20] sm:$0xf]
        %v1626 = vld [vmem:[%s1616 + $0x24] sm:$0xf]
        %v1627 = vld [vmem:[%s1616 + $0x28] sm:$0xf]
        %v1628 = vld [vmem:[%s1616 + $0x2c] sm:$0xf]
        %v1629 = vld [vmem:[%s1616 + $0x30] sm:$0xf]
        %v1630 = vld [vmem:[%s1616 + $0x34] sm:$0xf]
        %v1631 = vld [vmem:[%s1616 + $0x38] sm:$0xf]
        %v1632 = vld [vmem:[%s1616 + $0x3c] sm:$0xf]
        %v1649 = vunpack.c.l.b16 %v1617
        %v1650 = vunpack.c.l.b16 %v1618
        %v1651 = vunpack.c.l.b16 %v1619
        %v1652 = vunpack.c.l.b16 %v1620
        %v1653 = vunpack.c.l.b16 %v1621
        %v1654 = vunpack.c.l.b16 %v1622
        %v1655 = vunpack.c.l.b16 %v1623
        %v1656 = vunpack.c.l.b16 %v1624
        %v1657 = vunpack.c.l.b16 %v1625
        %v1658 = vunpack.c.l.b16 %v1626
        %v1659 = vunpack.c.l.b16 %v1627
        %v1660 = vunpack.c.l.b16 %v1628
        %v1661 = vunpack.c.l.b16 %v1629
        %v1662 = vunpack.c.l.b16 %v1630
        %v1663 = vunpack.c.l.b16 %v1631
        %v1664 = vunpack.c.l.b16 %v1632
        %v1665 = vpack.c.b16 %v1650, %v1649
        %v1666 = vpack.c.b16 %v1652, %v1651
        %v1667 = vpack.c.b16 %v1654, %v1653
        %v1668 = vpack.c.b16 %v1656, %v1655
        %v1669 = vpack.c.b16 %v1658, %v1657
        %v1670 = vpack.c.b16 %v1660, %v1659
        %v1671 = vpack.c.b16 %v1662, %v1661
        %v1672 = vpack.c.b16 %v1664, %v1663
        %1681 = vmatprep.subr.bf16.mxu0 0
        %1682 = vmatpush1.bf16.msra.mxu0 %v1665
        %1683 = vmatprep.subr.bf16.mxu0 0
        %1684 = vmatpush1.bf16.msra.mxu0 %v1666
        %1685 = vmatprep.subr.bf16.mxu0 0
        %1686 = vmatpush1.bf16.msra.mxu0 %v1667
        %1687 = vmatprep.subr.bf16.mxu0 0
        %1688 = vmatpush1.bf16.msra.mxu0 %v1668
        %1689 = vmatprep.subr.bf16.mxu0 0
        %1690 = vmatpush1.bf16.msra.mxu0 %v1669
        %1691 = vmatprep.subr.bf16.mxu0 0
        %1692 = vmatpush1.bf16.msra.mxu0 %v1670
        %1693 = vmatprep.subr.bf16.mxu0 0
        %1694 = vmatpush1.bf16.msra.mxu0 %v1671
        %1695 = vmatprep.subr.bf16.mxu0 0
        %1696 = vmatpush1.bf16.msra.mxu0 %v1672
        %1697 = vmatprep.subr.bf16.mxu0 0
        %1698 = vmatpush1.bf16.msra.mxu0 0
        %1699 = vmatprep.subr.bf16.mxu0 0
        %1700 = vmatpush1.bf16.msra.mxu0 0
        %1701 = vmatprep.subr.bf16.mxu0 0
        %1702 = vmatpush1.bf16.msra.mxu0 0
        %1703 = vmatprep.subr.bf16.mxu0 0
        %1704 = vmatpush1.bf16.msra.mxu0 0
        %1705 = vmatprep.subr.bf16.mxu0 0
        %1706 = vmatpush1.bf16.msra.mxu0 0
        %1707 = vmatprep.subr.bf16.mxu0 0
        %1708 = vmatpush1.bf16.msra.mxu0 0
        %1709 = vmatprep.subr.bf16.mxu0 0
        %1710 = vmatpush1.bf16.msra.mxu0 0
        %1711 = vmatprep.subr.bf16.mxu0 0
        %1712 = vmatpush1.bf16.msra.mxu0 0
        %1713 = vmatprep.mubr.bf16.mxu0 0
        %1714 = vmatmul.mubr.bf16.gmra.mrb[0].mxu0 %v1615
        %v1715 = vpop.f32.mrb[0].mxu0
        %v1716 = vadd.f32 0.0, %v1715
        %v1717 = vpop.f32.mrb[0].mxu0
        %v1718 = vpop.f32.mrb[0].mxu0
        %v1719 = vadd.f32 0.0, %v1718
        %v1720 = vpop.f32.mrb[0].mxu0
        %1721 = vdwg.mxu0
        %s1722 = scalar_lea.vmem [#allocation5], 832
        %v1723 = vld [vmem:[%s1722] sm:$0xf]
        %v1724 = vld [vmem:[%s1722 + $0x4] sm:$0xf]
        %v1725 = vld [vmem:[%s1722 + $0x8] sm:$0xf]
        %v1726 = vld [vmem:[%s1722 + $0xc] sm:$0xf]
        %v1727 = vld [vmem:[%s1722 + $0x10] sm:$0xf]
        %v1728 = vld [vmem:[%s1722 + $0x14] sm:$0xf]
        %v1729 = vld [vmem:[%s1722 + $0x18] sm:$0xf]
        %v1730 = vld [vmem:[%s1722 + $0x1c] sm:$0xf]
        %v1731 = vld [vmem:[%s1722 + $0x20] sm:$0xf]
        %v1732 = vld [vmem:[%s1722 + $0x24] sm:$0xf]
        %v1733 = vld [vmem:[%s1722 + $0x28] sm:$0xf]
        %v1734 = vld [vmem:[%s1722 + $0x2c] sm:$0xf]
        %v1735 = vld [vmem:[%s1722 + $0x30] sm:$0xf]
        %v1736 = vld [vmem:[%s1722 + $0x34] sm:$0xf]
        %v1737 = vld [vmem:[%s1722 + $0x38] sm:$0xf]
        %v1738 = vld [vmem:[%s1722 + $0x3c] sm:$0xf]
        %v1755 = vunpack.c.l.b16 %v1723
        %v1756 = vunpack.c.l.b16 %v1724
        %v1757 = vunpack.c.l.b16 %v1725
        %v1758 = vunpack.c.l.b16 %v1726
        %v1759 = vunpack.c.l.b16 %v1727
        %v1760 = vunpack.c.l.b16 %v1728
        %v1761 = vunpack.c.l.b16 %v1729
        %v1762 = vunpack.c.l.b16 %v1730
        %v1763 = vunpack.c.l.b16 %v1731
        %v1764 = vunpack.c.l.b16 %v1732
        %v1765 = vunpack.c.l.b16 %v1733
        %v1766 = vunpack.c.l.b16 %v1734
        %v1767 = vunpack.c.l.b16 %v1735
        %v1768 = vunpack.c.l.b16 %v1736
        %v1769 = vunpack.c.l.b16 %v1737
        %v1770 = vunpack.c.l.b16 %v1738
        %v1771 = vpack.c.b16 %v1756, %v1755
        %v1772 = vpack.c.b16 %v1758, %v1757
        %v1773 = vpack.c.b16 %v1760, %v1759
        %v1774 = vpack.c.b16 %v1762, %v1761
        %v1775 = vpack.c.b16 %v1764, %v1763
        %v1776 = vpack.c.b16 %v1766, %v1765
        %v1777 = vpack.c.b16 %v1768, %v1767
        %v1778 = vpack.c.b16 %v1770, %v1769
        %1787 = vmatprep.subr.bf16.mxu0 0
        %1788 = vmatpush1.bf16.msra.mxu0 %v1771
        %1789 = vmatprep.subr.bf16.mxu0 0
        %1790 = vmatpush1.bf16.msra.mxu0 %v1772
        %1791 = vmatprep.subr.bf16.mxu0 0
        %1792 = vmatpush1.bf16.msra.mxu0 %v1773
        %1793 = vmatprep.subr.bf16.mxu0 0
        %1794 = vmatpush1.bf16.msra.mxu0 %v1774
        %1795 = vmatprep.subr.bf16.mxu0 0
        %1796 = vmatpush1.bf16.msra.mxu0 %v1775
        %1797 = vmatprep.subr.bf16.mxu0 0
        %1798 = vmatpush1.bf16.msra.mxu0 %v1776
        %1799 = vmatprep.subr.bf16.mxu0 0
        %1800 = vmatpush1.bf16.msra.mxu0 %v1777
        %1801 = vmatprep.subr.bf16.mxu0 0
        %1802 = vmatpush1.bf16.msra.mxu0 %v1778
        %1803 = vmatprep.subr.bf16.mxu0 0
        %1804 = vmatpush1.bf16.msra.mxu0 0
        %1805 = vmatprep.subr.bf16.mxu0 0
        %1806 = vmatpush1.bf16.msra.mxu0 0
        %1807 = vmatprep.subr.bf16.mxu0 0
        %1808 = vmatpush1.bf16.msra.mxu0 0
        %1809 = vmatprep.subr.bf16.mxu0 0
        %1810 = vmatpush1.bf16.msra.mxu0 0
        %1811 = vmatprep.subr.bf16.mxu0 0
        %1812 = vmatpush1.bf16.msra.mxu0 0
        %1813 = vmatprep.subr.bf16.mxu0 0
        %1814 = vmatpush1.bf16.msra.mxu0 0
        %1815 = vmatprep.subr.bf16.mxu0 0
        %1816 = vmatpush1.bf16.msra.mxu0 0
        %1817 = vmatprep.subr.bf16.mxu0 0
        %1818 = vmatpush1.bf16.msra.mxu0 0
        %1819 = vmatprep.mubr.bf16.mxu0 0
        %1820 = vmatmul.mubr.bf16.gmra.mrb[0].mxu0 %v1615
        %v1821 = vpop.f32.mrb[0].mxu0
        %v1822 = vadd.f32 0.0, %v1821
        %v1823 = vpop.f32.mrb[0].mxu0
        %v1824 = vpop.f32.mrb[0].mxu0
        %v1825 = vadd.f32 0.0, %v1824
        %v1826 = vpop.f32.mrb[0].mxu0
        %1827 = vdwg.mxu0
        %s1828 = scalar_lea.vmem [#allocation5], 896
        %v1829 = vld [vmem:[%s1828] sm:$0xf]
        %v1830 = vld [vmem:[%s1828 + $0x4] sm:$0xf]
        %v1831 = vld [vmem:[%s1828 + $0x8] sm:$0xf]
        %v1832 = vld [vmem:[%s1828 + $0xc] sm:$0xf]
        %v1833 = vld [vmem:[%s1828 + $0x10] sm:$0xf]
        %v1834 = vld [vmem:[%s1828 + $0x14] sm:$0xf]
        %v1835 = vld [vmem:[%s1828 + $0x18] sm:$0xf]
        %v1836 = vld [vmem:[%s1828 + $0x1c] sm:$0xf]
        %v1837 = vld [vmem:[%s1828 + $0x20] sm:$0xf]
        %v1838 = vld [vmem:[%s1828 + $0x24] sm:$0xf]
        %v1839 = vld [vmem:[%s1828 + $0x28] sm:$0xf]
        %v1840 = vld [vmem:[%s1828 + $0x2c] sm:$0xf]
        %v1841 = vld [vmem:[%s1828 + $0x30] sm:$0xf]
        %v1842 = vld [vmem:[%s1828 + $0x34] sm:$0xf]
        %v1843 = vld [vmem:[%s1828 + $0x38] sm:$0xf]
        %v1844 = vld [vmem:[%s1828 + $0x3c] sm:$0xf]
        %v1861 = vunpack.c.l.b16 %v1829
        %v1862 = vunpack.c.l.b16 %v1830
        %v1863 = vunpack.c.l.b16 %v1831
        %v1864 = vunpack.c.l.b16 %v1832
        %v1865 = vunpack.c.l.b16 %v1833
        %v1866 = vunpack.c.l.b16 %v1834
        %v1867 = vunpack.c.l.b16 %v1835
        %v1868 = vunpack.c.l.b16 %v1836
        %v1869 = vunpack.c.l.b16 %v1837
        %v1870 = vunpack.c.l.b16 %v1838
        %v1871 = vunpack.c.l.b16 %v1839
        %v1872 = vunpack.c.l.b16 %v1840
        %v1873 = vunpack.c.l.b16 %v1841
        %v1874 = vunpack.c.l.b16 %v1842
        %v1875 = vunpack.c.l.b16 %v1843
        %v1876 = vunpack.c.l.b16 %v1844
        %v1877 = vpack.c.b16 %v1862, %v1861
        %v1878 = vpack.c.b16 %v1864, %v1863
        %v1879 = vpack.c.b16 %v1866, %v1865
        %v1880 = vpack.c.b16 %v1868, %v1867
        %v1881 = vpack.c.b16 %v1870, %v1869
        %v1882 = vpack.c.b16 %v1872, %v1871
        %v1883 = vpack.c.b16 %v1874, %v1873
        %v1884 = vpack.c.b16 %v1876, %v1875
        %1893 = vmatprep.subr.bf16.mxu0 0
        %1894 = vmatpush1.bf16.msra.mxu0 %v1877
        %1895 = vmatprep.subr.bf16.mxu0 0
        %1896 = vmatpush1.bf16.msra.mxu0 %v1878
        %1897 = vmatprep.subr.bf16.mxu0 0
        %1898 = vmatpush1.bf16.msra.mxu0 %v1879
        %1899 = vmatprep.subr.bf16.mxu0 0
        %1900 = vmatpush1.bf16.msra.mxu0 %v1880
        %1901 = vmatprep.subr.bf16.mxu0 0
        %1902 = vmatpush1.bf16.msra.mxu0 %v1881
        %1903 = vmatprep.subr.bf16.mxu0 0
        %1904 = vmatpush1.bf16.msra.mxu0 %v1882
        %1905 = vmatprep.subr.bf16.mxu0 0
        %1906 = vmatpush1.bf16.msra.mxu0 %v1883
        %1907 = vmatprep.subr.bf16.mxu0 0
        %1908 = vmatpush1.bf16.msra.mxu0 %v1884
        %1909 = vmatprep.subr.bf16.mxu0 0
        %1910 = vmatpush1.bf16.msra.mxu0 0
        %1911 = vmatprep.subr.bf16.mxu0 0
        %1912 = vmatpush1.bf16.msra.mxu0 0
        %1913 = vmatprep.subr.bf16.mxu0 0
        %1914 = vmatpush1.bf16.msra.mxu0 0
        %1915 = vmatprep.subr.bf16.mxu0 0
        %1916 = vmatpush1.bf16.msra.mxu0 0
        %1917 = vmatprep.subr.bf16.mxu0 0
        %1918 = vmatpush1.bf16.msra.mxu0 0
        %1919 = vmatprep.subr.bf16.mxu0 0
        %1920 = vmatpush1.bf16.msra.mxu0 0
        %1921 = vmatprep.subr.bf16.mxu0 0
        %1922 = vmatpush1.bf16.msra.mxu0 0
        %1923 = vmatprep.subr.bf16.mxu0 0
        %1924 = vmatpush1.bf16.msra.mxu0 0
        %1925 = vmatprep.mubr.bf16.mxu0 0
        %1926 = vmatmul.mubr.bf16.gmra.mrb[0].mxu0 %v1615
        %v1927 = vpop.f32.mrb[0].mxu0
        %v1928 = vadd.f32 0.0, %v1927
        %v1929 = vpop.f32.mrb[0].mxu0
        %v1930 = vpop.f32.mrb[0].mxu0
        %v1931 = vadd.f32 0.0, %v1930
        %v1932 = vpop.f32.mrb[0].mxu0
        %1933 = vdwg.mxu0
        %v1936 = vrot.slane %v1716, 7
        %v1937 = vrot.slane %v1719, 7
        %v1938 = vsel %vm540, %v1936, %v1937
        %v1941 = vsel %vm540, 0.0, %v1936
        %v1942 = vadd.f32 %v1941, %v1822
        %v1943 = vadd.f32 %v1938, %v1825
        %v1946 = vrot.slane %v1928, 1
        %v1947 = vrot.slane %v1931, 1
        %v1948 = vsel %vm551, %v1946, %v1947
        %v1951 = vsel %vm551, %v1947, 0.0
        %v1952 = vadd.f32 %v1942, %v1948
        %v1953 = vadd.f32 %v1943, %v1951
        %v1954 = vld [vmem:[#allocation7 + $0x4] sm:$0x1]
        %v1955 = vlaneseq
        %v1956 = vshrl.u32 %v1955, 7
        %v1957 = vsub.s32 0, %v1956
        %v1958 = vrot.slane %v1954, %v1957
        %v1959 = vadd.f32 %v1952, %v1958
        %v1960 = vadd.f32 %v1953, %v1958
        %v1961 = vadd.f32 %v1959, %v1265
        %v1962 = vadd.f32 %v1960, %v1266
        %v1963 = vmax.f32 %v1961, 0.0
        %v1964 = vmax.f32 %v1962, 0.0
        %v1965 = vpack.c.bf16 %v1964, %v1963
        %s1966 = scalar_lea.vmem [#allocation5], 960
        %v1967 = vld [vmem:[%s1966] sm:$0xf]
        %v1968 = vld [vmem:[%s1966 + $0x4] sm:$0xf]
        %v1969 = vld [vmem:[%s1966 + $0x8] sm:$0xf]
        %v1970 = vld [vmem:[%s1966 + $0xc] sm:$0xf]
        %v1971 = vld [vmem:[%s1966 + $0x10] sm:$0xf]
        %v1972 = vld [vmem:[%s1966 + $0x14] sm:$0xf]
        %v1973 = vld [vmem:[%s1966 + $0x18] sm:$0xf]
        %v1974 = vld [vmem:[%s1966 + $0x1c] sm:$0xf]
        %v1975 = vld [vmem:[%s1966 + $0x20] sm:$0xf]
        %v1976 = vld [vmem:[%s1966 + $0x24] sm:$0xf]
        %v1977 = vld [vmem:[%s1966 + $0x28] sm:$0xf]
        %v1978 = vld [vmem:[%s1966 + $0x2c] sm:$0xf]
        %v1979 = vld [vmem:[%s1966 + $0x30] sm:$0xf]
        %v1980 = vld [vmem:[%s1966 + $0x34] sm:$0xf]
        %v1981 = vld [vmem:[%s1966 + $0x38] sm:$0xf]
        %v1982 = vld [vmem:[%s1966 + $0x3c] sm:$0xf]
        %v1999 = vunpack.c.l.b16 %v1967
        %v2000 = vunpack.c.l.b16 %v1968
        %v2001 = vunpack.c.l.b16 %v1969
        %v2002 = vunpack.c.l.b16 %v1970
        %v2003 = vunpack.c.l.b16 %v1971
        %v2004 = vunpack.c.l.b16 %v1972
        %v2005 = vunpack.c.l.b16 %v1973
        %v2006 = vunpack.c.l.b16 %v1974
        %v2007 = vunpack.c.l.b16 %v1975
        %v2008 = vunpack.c.l.b16 %v1976
        %v2009 = vunpack.c.l.b16 %v1977
        %v2010 = vunpack.c.l.b16 %v1978
        %v2011 = vunpack.c.l.b16 %v1979
        %v2012 = vunpack.c.l.b16 %v1980
        %v2013 = vunpack.c.l.b16 %v1981
        %v2014 = vunpack.c.l.b16 %v1982
        %v2015 = vpack.c.b16 %v2000, %v1999
        %v2016 = vpack.c.b16 %v2002, %v2001
        %v2017 = vpack.c.b16 %v2004, %v2003
        %v2018 = vpack.c.b16 %v2006, %v2005
        %v2019 = vpack.c.b16 %v2008, %v2007
        %v2020 = vpack.c.b16 %v2010, %v2009
        %v2021 = vpack.c.b16 %v2012, %v2011
        %v2022 = vpack.c.b16 %v2014, %v2013
        %2031 = vmatprep.subr.bf16.mxu0 0
        %2032 = vmatpush1.bf16.msra.mxu0 %v2015
        %2033 = vmatprep.subr.bf16.mxu0 0
        %2034 = vmatpush1.bf16.msra.mxu0 %v2016
        %2035 = vmatprep.subr.bf16.mxu0 0
        %2036 = vmatpush1.bf16.msra.mxu0 %v2017
        %2037 = vmatprep.subr.bf16.mxu0 0
        %2038 = vmatpush1.bf16.msra.mxu0 %v2018
        %2039 = vmatprep.subr.bf16.mxu0 0
        %2040 = vmatpush1.bf16.msra.mxu0 %v2019
        %2041 = vmatprep.subr.bf16.mxu0 0
        %2042 = vmatpush1.bf16.msra.mxu0 %v2020
        %2043 = vmatprep.subr.bf16.mxu0 0
        %2044 = vmatpush1.bf16.msra.mxu0 %v2021
        %2045 = vmatprep.subr.bf16.mxu0 0
        %2046 = vmatpush1.bf16.msra.mxu0 %v2022
        %2047 = vmatprep.subr.bf16.mxu0 0
        %2048 = vmatpush1.bf16.msra.mxu0 0
        %2049 = vmatprep.subr.bf16.mxu0 0
        %2050 = vmatpush1.bf16.msra.mxu0 0
        %2051 = vmatprep.subr.bf16.mxu0 0
        %2052 = vmatpush1.bf16.msra.mxu0 0
        %2053 = vmatprep.subr.bf16.mxu0 0
        %2054 = vmatpush1.bf16.msra.mxu0 0
        %2055 = vmatprep.subr.bf16.mxu0 0
        %2056 = vmatpush1.bf16.msra.mxu0 0
        %2057 = vmatprep.subr.bf16.mxu0 0
        %2058 = vmatpush1.bf16.msra.mxu0 0
        %2059 = vmatprep.subr.bf16.mxu0 0
        %2060 = vmatpush1.bf16.msra.mxu0 0
        %2061 = vmatprep.subr.bf16.mxu0 0
        %2062 = vmatpush1.bf16.msra.mxu0 0
        %2063 = vmatprep.mubr.bf16.mxu0 0
        %2064 = vmatmul.mubr.bf16.gmra.mrb[0].mxu0 %v1965
        %v2065 = vpop.f32.mrb[0].mxu0
        %v2066 = vadd.f32 0.0, %v2065
        %v2067 = vpop.f32.mrb[0].mxu0
        %v2068 = vpop.f32.mrb[0].mxu0
        %v2069 = vadd.f32 0.0, %v2068
        %v2070 = vpop.f32.mrb[0].mxu0
        %2071 = vdwg.mxu0
        %s2072 = scalar_lea.vmem [#allocation5], 1024
        %v2073 = vld [vmem:[%s2072] sm:$0xf]
        %v2074 = vld [vmem:[%s2072 + $0x4] sm:$0xf]
        %v2075 = vld [vmem:[%s2072 + $0x8] sm:$0xf]
        %v2076 = vld [vmem:[%s2072 + $0xc] sm:$0xf]
        %v2077 = vld [vmem:[%s2072 + $0x10] sm:$0xf]
        %v2078 = vld [vmem:[%s2072 + $0x14] sm:$0xf]
        %v2079 = vld [vmem:[%s2072 + $0x18] sm:$0xf]
        %v2080 = vld [vmem:[%s2072 + $0x1c] sm:$0xf]
        %v2081 = vld [vmem:[%s2072 + $0x20] sm:$0xf]
        %v2082 = vld [vmem:[%s2072 + $0x24] sm:$0xf]
        %v2083 = vld [vmem:[%s2072 + $0x28] sm:$0xf]
        %v2084 = vld [vmem:[%s2072 + $0x2c] sm:$0xf]
        %v2085 = vld [vmem:[%s2072 + $0x30] sm:$0xf]
        %v2086 = vld [vmem:[%s2072 + $0x34] sm:$0xf]
        %v2087 = vld [vmem:[%s2072 + $0x38] sm:$0xf]
        %v2088 = vld [vmem:[%s2072 + $0x3c] sm:$0xf]
        %v2105 = vunpack.c.l.b16 %v2073
        %v2106 = vunpack.c.l.b16 %v2074
        %v2107 = vunpack.c.l.b16 %v2075
        %v2108 = vunpack.c.l.b16 %v2076
        %v2109 = vunpack.c.l.b16 %v2077
        %v2110 = vunpack.c.l.b16 %v2078
        %v2111 = vunpack.c.l.b16 %v2079
        %v2112 = vunpack.c.l.b16 %v2080
        %v2113 = vunpack.c.l.b16 %v2081
        %v2114 = vunpack.c.l.b16 %v2082
        %v2115 = vunpack.c.l.b16 %v2083
        %v2116 = vunpack.c.l.b16 %v2084
        %v2117 = vunpack.c.l.b16 %v2085
        %v2118 = vunpack.c.l.b16 %v2086
        %v2119 = vunpack.c.l.b16 %v2087
        %v2120 = vunpack.c.l.b16 %v2088
        %v2121 = vpack.c.b16 %v2106, %v2105
        %v2122 = vpack.c.b16 %v2108, %v2107
        %v2123 = vpack.c.b16 %v2110, %v2109
        %v2124 = vpack.c.b16 %v2112, %v2111
        %v2125 = vpack.c.b16 %v2114, %v2113
        %v2126 = vpack.c.b16 %v2116, %v2115
        %v2127 = vpack.c.b16 %v2118, %v2117
        %v2128 = vpack.c.b16 %v2120, %v2119
        %2137 = vmatprep.subr.bf16.mxu0 0
        %2138 = vmatpush1.bf16.msra.mxu0 %v2121
        %2139 = vmatprep.subr.bf16.mxu0 0
        %2140 = vmatpush1.bf16.msra.mxu0 %v2122
        %2141 = vmatprep.subr.bf16.mxu0 0
        %2142 = vmatpush1.bf16.msra.mxu0 %v2123
        %2143 = vmatprep.subr.bf16.mxu0 0
        %2144 = vmatpush1.bf16.msra.mxu0 %v2124
        %2145 = vmatprep.subr.bf16.mxu0 0
        %2146 = vmatpush1.bf16.msra.mxu0 %v2125
        %2147 = vmatprep.subr.bf16.mxu0 0
        %2148 = vmatpush1.bf16.msra.mxu0 %v2126
        %2149 = vmatprep.subr.bf16.mxu0 0
        %2150 = vmatpush1.bf16.msra.mxu0 %v2127
        %2151 = vmatprep.subr.bf16.mxu0 0
        %2152 = vmatpush1.bf16.msra.mxu0 %v2128
        %2153 = vmatprep.subr.bf16.mxu0 0
        %2154 = vmatpush1.bf16.msra.mxu0 0
        %2155 = vmatprep.subr.bf16.mxu0 0
        %2156 = vmatpush1.bf16.msra.mxu0 0
        %2157 = vmatprep.subr.bf16.mxu0 0
        %2158 = vmatpush1.bf16.msra.mxu0 0
        %2159 = vmatprep.subr.bf16.mxu0 0
        %2160 = vmatpush1.bf16.msra.mxu0 0
        %2161 = vmatprep.subr.bf16.mxu0 0
        %2162 = vmatpush1.bf16.msra.mxu0 0
        %2163 = vmatprep.subr.bf16.mxu0 0
        %2164 = vmatpush1.bf16.msra.mxu0 0
        %2165 = vmatprep.subr.bf16.mxu0 0
        %2166 = vmatpush1.bf16.msra.mxu0 0
        %2167 = vmatprep.subr.bf16.mxu0 0
        %2168 = vmatpush1.bf16.msra.mxu0 0
        %2169 = vmatprep.mubr.bf16.mxu0 0
        %2170 = vmatmul.mubr.bf16.gmra.mrb[0].mxu0 %v1965
        %v2171 = vpop.f32.mrb[0].mxu0
        %v2172 = vadd.f32 0.0, %v2171
        %v2173 = vpop.f32.mrb[0].mxu0
        %v2174 = vpop.f32.mrb[0].mxu0
        %v2175 = vadd.f32 0.0, %v2174
        %v2176 = vpop.f32.mrb[0].mxu0
        %2177 = vdwg.mxu0
        %s2178 = scalar_lea.vmem [#allocation5], 1088
        %v2179 = vld [vmem:[%s2178] sm:$0xf]
        %v2180 = vld [vmem:[%s2178 + $0x4] sm:$0xf]
        %v2181 = vld [vmem:[%s2178 + $0x8] sm:$0xf]
        %v2182 = vld [vmem:[%s2178 + $0xc] sm:$0xf]
        %v2183 = vld [vmem:[%s2178 + $0x10] sm:$0xf]
        %v2184 = vld [vmem:[%s2178 + $0x14] sm:$0xf]
        %v2185 = vld [vmem:[%s2178 + $0x18] sm:$0xf]
        %v2186 = vld [vmem:[%s2178 + $0x1c] sm:$0xf]
        %v2187 = vld [vmem:[%s2178 + $0x20] sm:$0xf]
        %v2188 = vld [vmem:[%s2178 + $0x24] sm:$0xf]
        %v2189 = vld [vmem:[%s2178 + $0x28] sm:$0xf]
        %v2190 = vld [vmem:[%s2178 + $0x2c] sm:$0xf]
        %v2191 = vld [vmem:[%s2178 + $0x30] sm:$0xf]
        %v2192 = vld [vmem:[%s2178 + $0x34] sm:$0xf]
        %v2193 = vld [vmem:[%s2178 + $0x38] sm:$0xf]
        %v2194 = vld [vmem:[%s2178 + $0x3c] sm:$0xf]
        %v2211 = vunpack.c.l.b16 %v2179
        %v2212 = vunpack.c.l.b16 %v2180
        %v2213 = vunpack.c.l.b16 %v2181
        %v2214 = vunpack.c.l.b16 %v2182
        %v2215 = vunpack.c.l.b16 %v2183
        %v2216 = vunpack.c.l.b16 %v2184
        %v2217 = vunpack.c.l.b16 %v2185
        %v2218 = vunpack.c.l.b16 %v2186
        %v2219 = vunpack.c.l.b16 %v2187
        %v2220 = vunpack.c.l.b16 %v2188
        %v2221 = vunpack.c.l.b16 %v2189
        %v2222 = vunpack.c.l.b16 %v2190
        %v2223 = vunpack.c.l.b16 %v2191
        %v2224 = vunpack.c.l.b16 %v2192
        %v2225 = vunpack.c.l.b16 %v2193
        %v2226 = vunpack.c.l.b16 %v2194
        %v2227 = vpack.c.b16 %v2212, %v2211
        %v2228 = vpack.c.b16 %v2214, %v2213
        %v2229 = vpack.c.b16 %v2216, %v2215
        %v2230 = vpack.c.b16 %v2218, %v2217
        %v2231 = vpack.c.b16 %v2220, %v2219
        %v2232 = vpack.c.b16 %v2222, %v2221
        %v2233 = vpack.c.b16 %v2224, %v2223
        %v2234 = vpack.c.b16 %v2226, %v2225
        %2243 = vmatprep.subr.bf16.mxu0 0
        %2244 = vmatpush1.bf16.msra.mxu0 %v2227
        %2245 = vmatprep.subr.bf16.mxu0 0
        %2246 = vmatpush1.bf16.msra.mxu0 %v2228
        %2247 = vmatprep.subr.bf16.mxu0 0
        %2248 = vmatpush1.bf16.msra.mxu0 %v2229
        %2249 = vmatprep.subr.bf16.mxu0 0
        %2250 = vmatpush1.bf16.msra.mxu0 %v2230
        %2251 = vmatprep.subr.bf16.mxu0 0
        %2252 = vmatpush1.bf16.msra.mxu0 %v2231
        %2253 = vmatprep.subr.bf16.mxu0 0
        %2254 = vmatpush1.bf16.msra.mxu0 %v2232
        %2255 = vmatprep.subr.bf16.mxu0 0
        %2256 = vmatpush1.bf16.msra.mxu0 %v2233
        %2257 = vmatprep.subr.bf16.mxu0 0
        %2258 = vmatpush1.bf16.msra.mxu0 %v2234
        %2259 = vmatprep.subr.bf16.mxu0 0
        %2260 = vmatpush1.bf16.msra.mxu0 0
        %2261 = vmatprep.subr.bf16.mxu0 0
        %2262 = vmatpush1.bf16.msra.mxu0 0
        %2263 = vmatprep.subr.bf16.mxu0 0
        %2264 = vmatpush1.bf16.msra.mxu0 0
        %2265 = vmatprep.subr.bf16.mxu0 0
        %2266 = vmatpush1.bf16.msra.mxu0 0
        %2267 = vmatprep.subr.bf16.mxu0 0
        %2268 = vmatpush1.bf16.msra.mxu0 0
        %2269 = vmatprep.subr.bf16.mxu0 0
        %2270 = vmatpush1.bf16.msra.mxu0 0
        %2271 = vmatprep.subr.bf16.mxu0 0
        %2272 = vmatpush1.bf16.msra.mxu0 0
        %2273 = vmatprep.subr.bf16.mxu0 0
        %2274 = vmatpush1.bf16.msra.mxu0 0
        %2275 = vmatprep.mubr.bf16.mxu0 0
        %2276 = vmatmul.mubr.bf16.gmra.mrb[0].mxu0 %v1965
        %v2277 = vpop.f32.mrb[0].mxu0
        %v2278 = vadd.f32 0.0, %v2277
        %v2279 = vpop.f32.mrb[0].mxu0
        %v2280 = vpop.f32.mrb[0].mxu0
        %v2281 = vadd.f32 0.0, %v2280
        %v2282 = vpop.f32.mrb[0].mxu0
        %2283 = vdwg.mxu0
        %v2286 = vrot.slane %v2066, 7
        %v2287 = vrot.slane %v2069, 7
        %v2288 = vsel %vm540, %v2286, %v2287
        %v2291 = vsel %vm540, 0.0, %v2286
        %v2292 = vadd.f32 %v2291, %v2172
        %v2293 = vadd.f32 %v2288, %v2175
        %v2296 = vrot.slane %v2278, 1
        %v2297 = vrot.slane %v2281, 1
        %v2298 = vsel %vm551, %v2296, %v2297
        %v2301 = vsel %vm551, %v2297, 0.0
        %v2302 = vadd.f32 %v2292, %v2298
        %v2303 = vadd.f32 %v2293, %v2301
        %v2306 = vcombine.high %v2302, %v2302
        %v2308 = vunpack.c.l.s4 1983009808
        %v2309 = vunpack.c.0.s8 %v2308
        %v2310 = vlaneseq
        %v2311 = vshrl.u32 %v2310, 7
        %v2312 = vsub.s32 %v2309, %v2311
        %v2313 = vrot.slane %v2302, %v2312
        %v2315 = vunpack.c.l.s4 1983009808
        %v2316 = vunpack.c.0.s8 %v2315
        %v2317 = vlaneseq
        %v2318 = vshrl.u32 %v2317, 7
        %v2319 = vsub.s32 %v2316, %v2318
        %v2320 = vrot.slane %v2306, %v2319
        %v2321 = vcombine.high %v2313, %v2313
        %v2322 = vcombine.high %v2320, %v2320
        %v2323 = vcombine.high %v2303, %v2303
        %v2325 = vunpack.c.l.s4 1983009808
        %v2326 = vunpack.c.0.s8 %v2325
        %v2327 = vlaneseq
        %v2328 = vshrl.u32 %v2327, 7
        %v2329 = vsub.s32 %v2326, %v2328
        %v2330 = vrot.slane %v2303, %v2329
        %v2332 = vunpack.c.l.s4 1983009808
        %v2333 = vunpack.c.0.s8 %v2332
        %v2334 = vlaneseq
        %v2335 = vshrl.u32 %v2334, 7
        %v2336 = vsub.s32 %v2333, %v2335
        %v2337 = vrot.slane %v2323, %v2336
        %v2338 = vcombine.high %v2330, %v2330
        %v2339 = vcombine.high %v2337, %v2337
        %v2348 = vld [vmem:[#allocation7 + $0x5] sm:$0x1]
        %v2349 = vlaneseq
        %v2350 = vshrl.u32 %v2349, 7
        %v2351 = vsub.s32 0, %v2350
        %v2352 = vrot.slane %v2348, %v2351
        %v2354 = vcombine.high %v2352, %v2352
        %v2356 = vunpack.c.l.s4 1983009808
        %v2357 = vunpack.c.0.s8 %v2356
        %v2358 = vlaneseq
        %v2359 = vshrl.u32 %v2358, 7
        %v2360 = vsub.s32 %v2357, %v2359
        %v2361 = vrot.slane %v2352, %v2360
        %v2363 = vunpack.c.l.s4 1983009808
        %v2364 = vunpack.c.0.s8 %v2363
        %v2365 = vlaneseq
        %v2366 = vshrl.u32 %v2365, 7
        %v2367 = vsub.s32 %v2364, %v2366
        %v2368 = vrot.slane %v2354, %v2367
        %v2369 = vcombine.high %v2361, %v2361
        %v2370 = vcombine.high %v2368, %v2368
        %v2371 = vrot.slane %v2361, 1
        %v2372 = vrot.slane %v2369, 1
        %v2373 = vrot.slane %v2368, 1
        %v2374 = vrot.slane %v2370, 1
        %v2383 = vadd.f32 %v2313, %v2361
        %v2384 = vadd.f32 %v2321, %v2371
        %v2385 = vadd.f32 %v2320, %v2369
        %v2386 = vadd.f32 %v2322, %v2372
        %v2387 = vadd.f32 %v2330, %v2368
        %v2388 = vadd.f32 %v2338, %v2373
        %v2389 = vadd.f32 %v2337, %v2370
        %v2390 = vadd.f32 %v2339, %v2374
        %v2391 = vmax.f32 %v2383, 0.0
        %v2392 = vmax.f32 %v2384, 0.0
        %v2393 = vmax.f32 %v2385, 0.0
        %v2394 = vmax.f32 %v2386, 0.0
        %v2395 = vmax.f32 %v2387, 0.0
        %v2396 = vmax.f32 %v2388, 0.0
        %v2397 = vmax.f32 %v2389, 0.0
        %v2398 = vmax.f32 %v2390, 0.0
        %v2399 = vpack.c.bf16 %v2391, %v2391
        %v2400 = vpack.c.bf16 %v2392, %v2392
        %v2401 = vpack.c.bf16 %v2393, %v2393
        %v2402 = vpack.c.bf16 %v2394, %v2394
        %v2403 = vpack.c.bf16 %v2395, %v2395
        %v2404 = vpack.c.bf16 %v2396, %v2396
        %v2405 = vpack.c.bf16 %v2397, %v2397
        %v2406 = vpack.c.bf16 %v2398, %v2398
        %s2407 = scalar_lea.vmem [#allocation5], 1152
        %v2408 = vld [vmem:[%s2407] sm:$0xf]
        %v2409 = vld [vmem:[%s2407 + $0x4] sm:$0xf]
        %v2410 = vld [vmem:[%s2407 + $0x8] sm:$0xf]
        %v2411 = vld [vmem:[%s2407 + $0xc] sm:$0xf]
        %v2412 = vld [vmem:[%s2407 + $0x10] sm:$0xf]
        %v2413 = vld [vmem:[%s2407 + $0x14] sm:$0xf]
        %v2414 = vld [vmem:[%s2407 + $0x18] sm:$0xf]
        %v2415 = vld [vmem:[%s2407 + $0x1c] sm:$0xf]
        %v2416 = vld [vmem:[%s2407 + $0x20] sm:$0xf]
        %v2417 = vld [vmem:[%s2407 + $0x24] sm:$0xf]
        %v2418 = vld [vmem:[%s2407 + $0x28] sm:$0xf]
        %v2419 = vld [vmem:[%s2407 + $0x2c] sm:$0xf]
        %v2420 = vld [vmem:[%s2407 + $0x30] sm:$0xf]
        %v2421 = vld [vmem:[%s2407 + $0x34] sm:$0xf]
        %v2422 = vld [vmem:[%s2407 + $0x38] sm:$0xf]
        %v2423 = vld [vmem:[%s2407 + $0x3c] sm:$0xf]
        %v2432 = vunpack.c.l.b16 %v2399
        %v2433 = vunpack.c.l.b16 %v2400
        %v2434 = vunpack.c.l.b16 %v2401
        %v2435 = vunpack.c.l.b16 %v2402
        %v2436 = vunpack.c.l.b16 %v2403
        %v2437 = vunpack.c.l.b16 %v2404
        %v2438 = vunpack.c.l.b16 %v2405
        %v2439 = vunpack.c.l.b16 %v2406
        %v2440 = vrot.slane %v2433, 7
        %vm2441 = vcmask 1041409
        %v2442 = vsel %vm2441, %v2440, %v2432
        %v2443 = vrot.slane %v2434, 6
        %vm2444 = vcmask 1042434
        %v2445 = vsel %vm2444, %v2443, %v2442
        %v2446 = vrot.slane %v2435, 5
        %vm2447 = vcmask 1043459
        %v2448 = vsel %vm2447, %v2446, %v2445
        %v2449 = vrot.slane %v2436, 4
        %vm2450 = vcmask 1044484
        %v2451 = vsel %vm2450, %v2449, %v2448
        %v2452 = vrot.slane %v2437, 3
        %vm2453 = vcmask 1045509
        %v2454 = vsel %vm2453, %v2452, %v2451
        %v2455 = vrot.slane %v2438, 2
        %vm2456 = vcmask 1046534
        %v2457 = vsel %vm2456, %v2455, %v2454
        %v2458 = vrot.slane %v2439, 1
        %vm2459 = vcmask 1047559
        %v2460 = vsel %vm2459, %v2458, %v2457
        %v2461 = vpack.c.b16 %v2460, %v2460
        %v2479 = vunpack.c.l.b16 %v2408
        %v2480 = vunpack.c.l.b16 %v2409
        %v2481 = vunpack.c.l.b16 %v2410
        %v2482 = vunpack.c.l.b16 %v2411
        %v2483 = vunpack.c.l.b16 %v2412
        %v2484 = vunpack.c.l.b16 %v2413
        %v2485 = vunpack.c.l.b16 %v2414
        %v2486 = vunpack.c.l.b16 %v2415
        %v2487 = vunpack.c.l.b16 %v2416
        %v2488 = vunpack.c.l.b16 %v2417
        %v2489 = vunpack.c.l.b16 %v2418
        %v2490 = vunpack.c.l.b16 %v2419
        %v2491 = vunpack.c.l.b16 %v2420
        %v2492 = vunpack.c.l.b16 %v2421
        %v2493 = vunpack.c.l.b16 %v2422
        %v2494 = vunpack.c.l.b16 %v2423
        %v2495 = vpack.c.b16 %v2480, %v2479
        %v2496 = vpack.c.b16 %v2482, %v2481
        %v2497 = vpack.c.b16 %v2484, %v2483
        %v2498 = vpack.c.b16 %v2486, %v2485
        %v2499 = vpack.c.b16 %v2488, %v2487
        %v2500 = vpack.c.b16 %v2490, %v2489
        %v2501 = vpack.c.b16 %v2492, %v2491
        %v2502 = vpack.c.b16 %v2494, %v2493
        %2511 = vmatprep.subr.bf16.mxu0 0
        %2512 = vmatpush1.bf16.msra.mxu0 %v2495
        %2513 = vmatprep.subr.bf16.mxu0 0
        %2514 = vmatpush1.bf16.msra.mxu0 %v2496
        %2515 = vmatprep.subr.bf16.mxu0 0
        %2516 = vmatpush1.bf16.msra.mxu0 %v2497
        %2517 = vmatprep.subr.bf16.mxu0 0
        %2518 = vmatpush1.bf16.msra.mxu0 %v2498
        %2519 = vmatprep.subr.bf16.mxu0 0
        %2520 = vmatpush1.bf16.msra.mxu0 %v2499
        %2521 = vmatprep.subr.bf16.mxu0 0
        %2522 = vmatpush1.bf16.msra.mxu0 %v2500
        %2523 = vmatprep.subr.bf16.mxu0 0
        %2524 = vmatpush1.bf16.msra.mxu0 %v2501
        %2525 = vmatprep.subr.bf16.mxu0 0
        %2526 = vmatpush1.bf16.msra.mxu0 %v2502
        %2527 = vmatprep.subr.bf16.mxu0 0
        %2528 = vmatpush1.bf16.msra.mxu0 0
        %2529 = vmatprep.subr.bf16.mxu0 0
        %2530 = vmatpush1.bf16.msra.mxu0 0
        %2531 = vmatprep.subr.bf16.mxu0 0
        %2532 = vmatpush1.bf16.msra.mxu0 0
        %2533 = vmatprep.subr.bf16.mxu0 0
        %2534 = vmatpush1.bf16.msra.mxu0 0
        %2535 = vmatprep.subr.bf16.mxu0 0
        %2536 = vmatpush1.bf16.msra.mxu0 0
        %2537 = vmatprep.subr.bf16.mxu0 0
        %2538 = vmatpush1.bf16.msra.mxu0 0
        %2539 = vmatprep.subr.bf16.mxu0 0
        %2540 = vmatpush1.bf16.msra.mxu0 0
        %2541 = vmatprep.subr.bf16.mxu0 0
        %2542 = vmatpush1.bf16.msra.mxu0 0
        %2543 = vmatprep.mubr.bf16.mxu0 0
        %2544 = vmatmul.mubr.bf16.gmra.mrb[0].mxu0 %v2461
        %v2545 = vpop.f32.mrb[0].mxu0
        %v2546 = vadd.f32 0.0, %v2545
        %v2547 = vpop.f32.mrb[0].mxu0
        %v2548 = vpop.f32.mrb[0].mxu0
        %v2549 = vpop.f32.mrb[0].mxu0
        %2550 = vdwg.mxu0
        %s2551 = scalar_lea.vmem [#allocation5], 1216
        %v2552 = vld [vmem:[%s2551] sm:$0xf]
        %v2553 = vld [vmem:[%s2551 + $0x4] sm:$0xf]
        %v2554 = vld [vmem:[%s2551 + $0x8] sm:$0xf]
        %v2555 = vld [vmem:[%s2551 + $0xc] sm:$0xf]
        %v2556 = vld [vmem:[%s2551 + $0x10] sm:$0xf]
        %v2557 = vld [vmem:[%s2551 + $0x14] sm:$0xf]
        %v2558 = vld [vmem:[%s2551 + $0x18] sm:$0xf]
        %v2559 = vld [vmem:[%s2551 + $0x1c] sm:$0xf]
        %v2560 = vld [vmem:[%s2551 + $0x20] sm:$0xf]
        %v2561 = vld [vmem:[%s2551 + $0x24] sm:$0xf]
        %v2562 = vld [vmem:[%s2551 + $0x28] sm:$0xf]
        %v2563 = vld [vmem:[%s2551 + $0x2c] sm:$0xf]
        %v2564 = vld [vmem:[%s2551 + $0x30] sm:$0xf]
        %v2565 = vld [vmem:[%s2551 + $0x34] sm:$0xf]
        %v2566 = vld [vmem:[%s2551 + $0x38] sm:$0xf]
        %v2567 = vld [vmem:[%s2551 + $0x3c] sm:$0xf]
        %v2584 = vunpack.c.l.b16 %v2552
        %v2585 = vunpack.c.l.b16 %v2553
        %v2586 = vunpack.c.l.b16 %v2554
        %v2587 = vunpack.c.l.b16 %v2555
        %v2588 = vunpack.c.l.b16 %v2556
        %v2589 = vunpack.c.l.b16 %v2557
        %v2590 = vunpack.c.l.b16 %v2558
        %v2591 = vunpack.c.l.b16 %v2559
        %v2592 = vunpack.c.l.b16 %v2560
        %v2593 = vunpack.c.l.b16 %v2561
        %v2594 = vunpack.c.l.b16 %v2562
        %v2595 = vunpack.c.l.b16 %v2563
        %v2596 = vunpack.c.l.b16 %v2564
        %v2597 = vunpack.c.l.b16 %v2565
        %v2598 = vunpack.c.l.b16 %v2566
        %v2599 = vunpack.c.l.b16 %v2567
        %v2600 = vpack.c.b16 %v2585, %v2584
        %v2601 = vpack.c.b16 %v2587, %v2586
        %v2602 = vpack.c.b16 %v2589, %v2588
        %v2603 = vpack.c.b16 %v2591, %v2590
        %v2604 = vpack.c.b16 %v2593, %v2592
        %v2605 = vpack.c.b16 %v2595, %v2594
        %v2606 = vpack.c.b16 %v2597, %v2596
        %v2607 = vpack.c.b16 %v2599, %v2598
        %2616 = vmatprep.subr.bf16.mxu0 0
        %2617 = vmatpush1.bf16.msra.mxu0 %v2600
        %2618 = vmatprep.subr.bf16.mxu0 0
        %2619 = vmatpush1.bf16.msra.mxu0 %v2601
        %2620 = vmatprep.subr.bf16.mxu0 0
        %2621 = vmatpush1.bf16.msra.mxu0 %v2602
        %2622 = vmatprep.subr.bf16.mxu0 0
        %2623 = vmatpush1.bf16.msra.mxu0 %v2603
        %2624 = vmatprep.subr.bf16.mxu0 0
        %2625 = vmatpush1.bf16.msra.mxu0 %v2604
        %2626 = vmatprep.subr.bf16.mxu0 0
        %2627 = vmatpush1.bf16.msra.mxu0 %v2605
        %2628 = vmatprep.subr.bf16.mxu0 0
        %2629 = vmatpush1.bf16.msra.mxu0 %v2606
        %2630 = vmatprep.subr.bf16.mxu0 0
        %2631 = vmatpush1.bf16.msra.mxu0 %v2607
        %2632 = vmatprep.subr.bf16.mxu0 0
        %2633 = vmatpush1.bf16.msra.mxu0 0
        %2634 = vmatprep.subr.bf16.mxu0 0
        %2635 = vmatpush1.bf16.msra.mxu0 0
        %2636 = vmatprep.subr.bf16.mxu0 0
        %2637 = vmatpush1.bf16.msra.mxu0 0
        %2638 = vmatprep.subr.bf16.mxu0 0
        %2639 = vmatpush1.bf16.msra.mxu0 0
        %2640 = vmatprep.subr.bf16.mxu0 0
        %2641 = vmatpush1.bf16.msra.mxu0 0
        %2642 = vmatprep.subr.bf16.mxu0 0
        %2643 = vmatpush1.bf16.msra.mxu0 0
        %2644 = vmatprep.subr.bf16.mxu0 0
        %2645 = vmatpush1.bf16.msra.mxu0 0
        %2646 = vmatprep.subr.bf16.mxu0 0
        %2647 = vmatpush1.bf16.msra.mxu0 0
        %2648 = vmatprep.mubr.bf16.mxu0 0
        %2649 = vmatmul.mubr.bf16.gmra.mrb[0].mxu0 %v2461
        %v2650 = vpop.f32.mrb[0].mxu0
        %v2651 = vadd.f32 0.0, %v2650
        %v2652 = vpop.f32.mrb[0].mxu0
        %v2653 = vpop.f32.mrb[0].mxu0
        %v2654 = vpop.f32.mrb[0].mxu0
        %2655 = vdwg.mxu0
        %s2656 = scalar_lea.vmem [#allocation5], 1280
        %v2657 = vld [vmem:[%s2656] sm:$0xf]
        %v2658 = vld [vmem:[%s2656 + $0x4] sm:$0xf]
        %v2659 = vld [vmem:[%s2656 + $0x8] sm:$0xf]
        %v2660 = vld [vmem:[%s2656 + $0xc] sm:$0xf]
        %v2661 = vld [vmem:[%s2656 + $0x10] sm:$0xf]
        %v2662 = vld [vmem:[%s2656 + $0x14] sm:$0xf]
        %v2663 = vld [vmem:[%s2656 + $0x18] sm:$0xf]
        %v2664 = vld [vmem:[%s2656 + $0x1c] sm:$0xf]
        %v2665 = vld [vmem:[%s2656 + $0x20] sm:$0xf]
        %v2666 = vld [vmem:[%s2656 + $0x24] sm:$0xf]
        %v2667 = vld [vmem:[%s2656 + $0x28] sm:$0xf]
        %v2668 = vld [vmem:[%s2656 + $0x2c] sm:$0xf]
        %v2669 = vld [vmem:[%s2656 + $0x30] sm:$0xf]
        %v2670 = vld [vmem:[%s2656 + $0x34] sm:$0xf]
        %v2671 = vld [vmem:[%s2656 + $0x38] sm:$0xf]
        %v2672 = vld [vmem:[%s2656 + $0x3c] sm:$0xf]
        %v2689 = vunpack.c.l.b16 %v2657
        %v2690 = vunpack.c.l.b16 %v2658
        %v2691 = vunpack.c.l.b16 %v2659
        %v2692 = vunpack.c.l.b16 %v2660
        %v2693 = vunpack.c.l.b16 %v2661
        %v2694 = vunpack.c.l.b16 %v2662
        %v2695 = vunpack.c.l.b16 %v2663
        %v2696 = vunpack.c.l.b16 %v2664
        %v2697 = vunpack.c.l.b16 %v2665
        %v2698 = vunpack.c.l.b16 %v2666
        %v2699 = vunpack.c.l.b16 %v2667
        %v2700 = vunpack.c.l.b16 %v2668
        %v2701 = vunpack.c.l.b16 %v2669
        %v2702 = vunpack.c.l.b16 %v2670
        %v2703 = vunpack.c.l.b16 %v2671
        %v2704 = vunpack.c.l.b16 %v2672
        %v2705 = vpack.c.b16 %v2690, %v2689
        %v2706 = vpack.c.b16 %v2692, %v2691
        %v2707 = vpack.c.b16 %v2694, %v2693
        %v2708 = vpack.c.b16 %v2696, %v2695
        %v2709 = vpack.c.b16 %v2698, %v2697
        %v2710 = vpack.c.b16 %v2700, %v2699
        %v2711 = vpack.c.b16 %v2702, %v2701
        %v2712 = vpack.c.b16 %v2704, %v2703
        %2721 = vmatprep.subr.bf16.mxu0 0
        %2722 = vmatpush1.bf16.msra.mxu0 %v2705
        %2723 = vmatprep.subr.bf16.mxu0 0
        %2724 = vmatpush1.bf16.msra.mxu0 %v2706
        %2725 = vmatprep.subr.bf16.mxu0 0
        %2726 = vmatpush1.bf16.msra.mxu0 %v2707
        %2727 = vmatprep.subr.bf16.mxu0 0
        %2728 = vmatpush1.bf16.msra.mxu0 %v2708
        %2729 = vmatprep.subr.bf16.mxu0 0
        %2730 = vmatpush1.bf16.msra.mxu0 %v2709
        %2731 = vmatprep.subr.bf16.mxu0 0
        %2732 = vmatpush1.bf16.msra.mxu0 %v2710
        %2733 = vmatprep.subr.bf16.mxu0 0
        %2734 = vmatpush1.bf16.msra.mxu0 %v2711
        %2735 = vmatprep.subr.bf16.mxu0 0
        %2736 = vmatpush1.bf16.msra.mxu0 %v2712
        %2737 = vmatprep.subr.bf16.mxu0 0
        %2738 = vmatpush1.bf16.msra.mxu0 0
        %2739 = vmatprep.subr.bf16.mxu0 0
        %2740 = vmatpush1.bf16.msra.mxu0 0
        %2741 = vmatprep.subr.bf16.mxu0 0
        %2742 = vmatpush1.bf16.msra.mxu0 0
        %2743 = vmatprep.subr.bf16.mxu0 0
        %2744 = vmatpush1.bf16.msra.mxu0 0
        %2745 = vmatprep.subr.bf16.mxu0 0
        %2746 = vmatpush1.bf16.msra.mxu0 0
        %2747 = vmatprep.subr.bf16.mxu0 0
        %2748 = vmatpush1.bf16.msra.mxu0 0
        %2749 = vmatprep.subr.bf16.mxu0 0
        %2750 = vmatpush1.bf16.msra.mxu0 0
        %2751 = vmatprep.subr.bf16.mxu0 0
        %2752 = vmatpush1.bf16.msra.mxu0 0
        %2753 = vmatprep.mubr.bf16.mxu0 0
        %2754 = vmatmul.mubr.bf16.gmra.mrb[0].mxu0 %v2461
        %v2755 = vpop.f32.mrb[0].mxu0
        %v2756 = vadd.f32 0.0, %v2755
        %v2757 = vpop.f32.mrb[0].mxu0
        %v2758 = vpop.f32.mrb[0].mxu0
        %v2759 = vpop.f32.mrb[0].mxu0
        %2760 = vdwg.mxu0
        %v2762 = vrot.slane %v2546, 7
        %v2764 = vsel %vm540, 0.0, %v2762
        %v2765 = vadd.f32 %v2764, %v2651
        %v2767 = vrot.slane %v2756, 1
        %v2769 = vsel %vm551, %v2767, 0.0
        %v2770 = vadd.f32 %v2765, %v2769
        %v2771 = vld [vmem:[#allocation7 + $0x6] sm:$0x1]
        %v2772 = vlaneseq
        %v2773 = vshrl.u32 %v2772, 7
        %v2774 = vsub.s32 0, %v2773
        %v2775 = vrot.slane %v2771, %v2774
        %v2776 = vadd.f32 %v2770, %v2775
        %s2777 = scalar_lea.vmem [#allocation5], 1344
        %v2778 = vld [vmem:[%s2777] sm:$0xf]
        %v2779 = vld [vmem:[%s2777 + $0x4] sm:$0xf]
        %v2780 = vld [vmem:[%s2777 + $0x8] sm:$0xf]
        %v2781 = vld [vmem:[%s2777 + $0xc] sm:$0xf]
        %v2782 = vld [vmem:[%s2777 + $0x10] sm:$0xf]
        %v2783 = vld [vmem:[%s2777 + $0x14] sm:$0xf]
        %v2784 = vld [vmem:[%s2777 + $0x18] sm:$0xf]
        %v2785 = vld [vmem:[%s2777 + $0x1c] sm:$0xf]
        %v2786 = vld [vmem:[%s2777 + $0x20] sm:$0xf]
        %v2787 = vld [vmem:[%s2777 + $0x24] sm:$0xf]
        %v2788 = vld [vmem:[%s2777 + $0x28] sm:$0xf]
        %v2789 = vld [vmem:[%s2777 + $0x2c] sm:$0xf]
        %v2790 = vld [vmem:[%s2777 + $0x30] sm:$0xf]
        %v2791 = vld [vmem:[%s2777 + $0x34] sm:$0xf]
        %v2792 = vld [vmem:[%s2777 + $0x38] sm:$0xf]
        %v2793 = vld [vmem:[%s2777 + $0x3c] sm:$0xf]
        %v2810 = vunpack.c.l.b16 %v2778
        %v2811 = vunpack.c.l.b16 %v2779
        %v2812 = vunpack.c.l.b16 %v2780
        %v2813 = vunpack.c.l.b16 %v2781
        %v2814 = vunpack.c.l.b16 %v2782
        %v2815 = vunpack.c.l.b16 %v2783
        %v2816 = vunpack.c.l.b16 %v2784
        %v2817 = vunpack.c.l.b16 %v2785
        %v2818 = vunpack.c.l.b16 %v2786
        %v2819 = vunpack.c.l.b16 %v2787
        %v2820 = vunpack.c.l.b16 %v2788
        %v2821 = vunpack.c.l.b16 %v2789
        %v2822 = vunpack.c.l.b16 %v2790
        %v2823 = vunpack.c.l.b16 %v2791
        %v2824 = vunpack.c.l.b16 %v2792
        %v2825 = vunpack.c.l.b16 %v2793
        %v2826 = vpack.c.b16 %v2811, %v2810
        %v2827 = vpack.c.b16 %v2813, %v2812
        %v2828 = vpack.c.b16 %v2815, %v2814
        %v2829 = vpack.c.b16 %v2817, %v2816
        %v2830 = vpack.c.b16 %v2819, %v2818
        %v2831 = vpack.c.b16 %v2821, %v2820
        %v2832 = vpack.c.b16 %v2823, %v2822
        %v2833 = vpack.c.b16 %v2825, %v2824
        %2842 = vmatprep.subr.bf16.mxu0 0
        %2843 = vmatpush1.bf16.msra.mxu0 %v2826
        %2844 = vmatprep.subr.bf16.mxu0 0
        %2845 = vmatpush1.bf16.msra.mxu0 %v2827
        %2846 = vmatprep.subr.bf16.mxu0 0
        %2847 = vmatpush1.bf16.msra.mxu0 %v2828
        %2848 = vmatprep.subr.bf16.mxu0 0
        %2849 = vmatpush1.bf16.msra.mxu0 %v2829
        %2850 = vmatprep.subr.bf16.mxu0 0
        %2851 = vmatpush1.bf16.msra.mxu0 %v2830
        %2852 = vmatprep.subr.bf16.mxu0 0
        %2853 = vmatpush1.bf16.msra.mxu0 %v2831
        %2854 = vmatprep.subr.bf16.mxu0 0
        %2855 = vmatpush1.bf16.msra.mxu0 %v2832
        %2856 = vmatprep.subr.bf16.mxu0 0
        %2857 = vmatpush1.bf16.msra.mxu0 %v2833
        %2858 = vmatprep.subr.bf16.mxu0 0
        %2859 = vmatpush1.bf16.msra.mxu0 0
        %2860 = vmatprep.subr.bf16.mxu0 0
        %2861 = vmatpush1.bf16.msra.mxu0 0
        %2862 = vmatprep.subr.bf16.mxu0 0
        %2863 = vmatpush1.bf16.msra.mxu0 0
        %2864 = vmatprep.subr.bf16.mxu0 0
        %2865 = vmatpush1.bf16.msra.mxu0 0
        %2866 = vmatprep.subr.bf16.mxu0 0
        %2867 = vmatpush1.bf16.msra.mxu0 0
        %2868 = vmatprep.subr.bf16.mxu0 0
        %2869 = vmatpush1.bf16.msra.mxu0 0
        %2870 = vmatprep.subr.bf16.mxu0 0
        %2871 = vmatpush1.bf16.msra.mxu0 0
        %2872 = vmatprep.subr.bf16.mxu0 0
        %2873 = vmatpush1.bf16.msra.mxu0 0
        %2874 = vmatprep.mubr.bf16.mxu0 0
        %2875 = vmatmul.mubr.bf16.gmra.mrb[0].mxu0 %v1965
        %v2876 = vpop.f32.mrb[0].mxu0
        %v2877 = vadd.f32 0.0, %v2876
        %v2878 = vpop.f32.mrb[0].mxu0
        %v2879 = vpop.f32.mrb[0].mxu0
        %v2880 = vadd.f32 0.0, %v2879
        %v2881 = vpop.f32.mrb[0].mxu0
        %2882 = vdwg.mxu0
        %v2885 = vcombine.high %v2877, %v2877
        %v2887 = vunpack.c.l.s4 1983009808
        %v2888 = vunpack.c.0.s8 %v2887
        %v2889 = vlaneseq
        %v2890 = vshrl.u32 %v2889, 7
        %v2891 = vsub.s32 %v2888, %v2890
        %v2892 = vrot.slane %v2877, %v2891
        %v2894 = vunpack.c.l.s4 1983009808
        %v2895 = vunpack.c.0.s8 %v2894
        %v2896 = vlaneseq
        %v2897 = vshrl.u32 %v2896, 7
        %v2898 = vsub.s32 %v2895, %v2897
        %v2899 = vrot.slane %v2885, %v2898
        %v2900 = vcombine.high %v2892, %v2892
        %v2901 = vcombine.high %v2899, %v2899
        %v2902 = vcombine.high %v2880, %v2880
        %v2904 = vunpack.c.l.s4 1983009808
        %v2905 = vunpack.c.0.s8 %v2904
        %v2906 = vlaneseq
        %v2907 = vshrl.u32 %v2906, 7
        %v2908 = vsub.s32 %v2905, %v2907
        %v2909 = vrot.slane %v2880, %v2908
        %v2911 = vunpack.c.l.s4 1983009808
        %v2912 = vunpack.c.0.s8 %v2911
        %v2913 = vlaneseq
        %v2914 = vshrl.u32 %v2913, 7
        %v2915 = vsub.s32 %v2912, %v2914
        %v2916 = vrot.slane %v2902, %v2915
        %v2917 = vcombine.high %v2909, %v2909
        %v2918 = vcombine.high %v2916, %v2916
        %v2927 = vld [vmem:[#allocation7 + $0x7] sm:$0x1]
        %v2928 = vlaneseq
        %v2929 = vshrl.u32 %v2928, 7
        %v2930 = vsub.s32 0, %v2929
        %v2931 = vrot.slane %v2927, %v2930
        %v2933 = vcombine.high %v2931, %v2931
        %v2935 = vunpack.c.l.s4 1983009808
        %v2936 = vunpack.c.0.s8 %v2935
        %v2937 = vlaneseq
        %v2938 = vshrl.u32 %v2937, 7
        %v2939 = vsub.s32 %v2936, %v2938
        %v2940 = vrot.slane %v2931, %v2939
        %v2942 = vunpack.c.l.s4 1983009808
        %v2943 = vunpack.c.0.s8 %v2942
        %v2944 = vlaneseq
        %v2945 = vshrl.u32 %v2944, 7
        %v2946 = vsub.s32 %v2943, %v2945
        %v2947 = vrot.slane %v2933, %v2946
        %v2948 = vcombine.high %v2940, %v2940
        %v2949 = vcombine.high %v2947, %v2947
        %v2950 = vrot.slane %v2940, 1
        %v2951 = vrot.slane %v2948, 1
        %v2952 = vrot.slane %v2947, 1
        %v2953 = vrot.slane %v2949, 1
        %v2962 = vadd.f32 %v2892, %v2940
        %v2963 = vadd.f32 %v2900, %v2950
        %v2964 = vadd.f32 %v2899, %v2948
        %v2965 = vadd.f32 %v2901, %v2951
        %v2966 = vadd.f32 %v2909, %v2947
        %v2967 = vadd.f32 %v2917, %v2952
        %v2968 = vadd.f32 %v2916, %v2949
        %v2969 = vadd.f32 %v2918, %v2953
        %v2978 = vlaneseq
        %v2979 = vshrl.u32 %v2978, 7
        %v2980 = vsub.s32 0, %v2979
        %v2981 = vrot.slane %v2962, %v2980
        %v2982 = vlaneseq
        %v2983 = vshrl.u32 %v2982, 7
        %v2984 = vsub.s32 0, %v2983
        %v2985 = vrot.slane %v2963, %v2984
        %v2986 = vlaneseq
        %v2987 = vshrl.u32 %v2986, 7
        %v2988 = vsub.s32 0, %v2987
        %v2989 = vrot.slane %v2964, %v2988
        %v2990 = vlaneseq
        %v2991 = vshrl.u32 %v2990, 7
        %v2992 = vsub.s32 0, %v2991
        %v2993 = vrot.slane %v2965, %v2992
        %v2994 = vlaneseq
        %v2995 = vshrl.u32 %v2994, 7
        %v2996 = vsub.s32 0, %v2995
        %v2997 = vrot.slane %v2966, %v2996
        %v2998 = vlaneseq
        %v2999 = vshrl.u32 %v2998, 7
        %v3000 = vsub.s32 0, %v2999
        %v3001 = vrot.slane %v2967, %v3000
        %v3002 = vlaneseq
        %v3003 = vshrl.u32 %v3002, 7
        %v3004 = vsub.s32 0, %v3003
        %v3005 = vrot.slane %v2968, %v3004
        %v3006 = vlaneseq
        %v3007 = vshrl.u32 %v3006, 7
        %v3008 = vsub.s32 0, %v3007
        %v3009 = vrot.slane %v2969, %v3008
        %v3010 = vsel %vm2441, %v2985, %v2981
        %v3011 = vsel %vm2444, %v2989, %v3010
        %v3012 = vsel %vm2447, %v2993, %v3011
        %v3013 = vsel %vm2450, %v2997, %v3012
        %v3014 = vsel %vm2453, %v3001, %v3013
        %v3015 = vsel %vm2456, %v3005, %v3014
        %v3016 = vsel %vm2459, %v3009, %v3015
        %v3018 = vadd.f32 %v2776, %v3016
        %v3019 = vmax.f32 %v3018, 0.0
        %v3020 = vpack.c.bf16 %v3019, %v3019
        %s3021 = scalar_lea.vmem [#allocation5], 1408
        %v3022 = vld [vmem:[%s3021] sm:$0xf]
        %v3023 = vld [vmem:[%s3021 + $0x4] sm:$0xf]
        %v3024 = vld [vmem:[%s3021 + $0x8] sm:$0xf]
        %v3025 = vld [vmem:[%s3021 + $0xc] sm:$0xf]
        %v3026 = vld [vmem:[%s3021 + $0x10] sm:$0xf]
        %v3027 = vld [vmem:[%s3021 + $0x14] sm:$0xf]
        %v3028 = vld [vmem:[%s3021 + $0x18] sm:$0xf]
        %v3029 = vld [vmem:[%s3021 + $0x1c] sm:$0xf]
        %v3030 = vld [vmem:[%s3021 + $0x20] sm:$0xf]
        %v3031 = vld [vmem:[%s3021 + $0x24] sm:$0xf]
        %v3032 = vld [vmem:[%s3021 + $0x28] sm:$0xf]
        %v3033 = vld [vmem:[%s3021 + $0x2c] sm:$0xf]
        %v3034 = vld [vmem:[%s3021 + $0x30] sm:$0xf]
        %v3035 = vld [vmem:[%s3021 + $0x34] sm:$0xf]
        %v3036 = vld [vmem:[%s3021 + $0x38] sm:$0xf]
        %v3037 = vld [vmem:[%s3021 + $0x3c] sm:$0xf]
        %v3054 = vunpack.c.l.b16 %v3022
        %v3055 = vunpack.c.l.b16 %v3023
        %v3056 = vunpack.c.l.b16 %v3024
        %v3057 = vunpack.c.l.b16 %v3025
        %v3058 = vunpack.c.l.b16 %v3026
        %v3059 = vunpack.c.l.b16 %v3027
        %v3060 = vunpack.c.l.b16 %v3028
        %v3061 = vunpack.c.l.b16 %v3029
        %v3062 = vunpack.c.l.b16 %v3030
        %v3063 = vunpack.c.l.b16 %v3031
        %v3064 = vunpack.c.l.b16 %v3032
        %v3065 = vunpack.c.l.b16 %v3033
        %v3066 = vunpack.c.l.b16 %v3034
        %v3067 = vunpack.c.l.b16 %v3035
        %v3068 = vunpack.c.l.b16 %v3036
        %v3069 = vunpack.c.l.b16 %v3037
        %v3070 = vpack.c.b16 %v3055, %v3054
        %v3071 = vpack.c.b16 %v3057, %v3056
        %v3072 = vpack.c.b16 %v3059, %v3058
        %v3073 = vpack.c.b16 %v3061, %v3060
        %v3074 = vpack.c.b16 %v3063, %v3062
        %v3075 = vpack.c.b16 %v3065, %v3064
        %v3076 = vpack.c.b16 %v3067, %v3066
        %v3077 = vpack.c.b16 %v3069, %v3068
        %3086 = vmatprep.subr.bf16.mxu0 0
        %3087 = vmatpush1.bf16.msra.mxu0 %v3070
        %3088 = vmatprep.subr.bf16.mxu0 0
        %3089 = vmatpush1.bf16.msra.mxu0 %v3071
        %3090 = vmatprep.subr.bf16.mxu0 0
        %3091 = vmatpush1.bf16.msra.mxu0 %v3072
        %3092 = vmatprep.subr.bf16.mxu0 0
        %3093 = vmatpush1.bf16.msra.mxu0 %v3073
        %3094 = vmatprep.subr.bf16.mxu0 0
        %3095 = vmatpush1.bf16.msra.mxu0 %v3074
        %3096 = vmatprep.subr.bf16.mxu0 0
        %3097 = vmatpush1.bf16.msra.mxu0 %v3075
        %3098 = vmatprep.subr.bf16.mxu0 0
        %3099 = vmatpush1.bf16.msra.mxu0 %v3076
        %3100 = vmatprep.subr.bf16.mxu0 0
        %3101 = vmatpush1.bf16.msra.mxu0 %v3077
        %3102 = vmatprep.subr.bf16.mxu0 0
        %3103 = vmatpush1.bf16.msra.mxu0 0
        %3104 = vmatprep.subr.bf16.mxu0 0
        %3105 = vmatpush1.bf16.msra.mxu0 0
        %3106 = vmatprep.subr.bf16.mxu0 0
        %3107 = vmatpush1.bf16.msra.mxu0 0
        %3108 = vmatprep.subr.bf16.mxu0 0
        %3109 = vmatpush1.bf16.msra.mxu0 0
        %3110 = vmatprep.subr.bf16.mxu0 0
        %3111 = vmatpush1.bf16.msra.mxu0 0
        %3112 = vmatprep.subr.bf16.mxu0 0
        %3113 = vmatpush1.bf16.msra.mxu0 0
        %3114 = vmatprep.subr.bf16.mxu0 0
        %3115 = vmatpush1.bf16.msra.mxu0 0
        %3116 = vmatprep.subr.bf16.mxu0 0
        %3117 = vmatpush1.bf16.msra.mxu0 0
        %3118 = vmatprep.mubr.bf16.mxu0 0
        %3119 = vmatmul.mubr.bf16.gmra.mrb[0].mxu0 %v3020
        %v3120 = vpop.f32.mrb[0].mxu0
        %v3121 = vadd.f32 0.0, %v3120
        %v3122 = vpop.f32.mrb[0].mxu0
        %v3123 = vpop.f32.mrb[0].mxu0
        %v3124 = vpop.f32.mrb[0].mxu0
        %3125 = vdwg.mxu0
        %s3126 = scalar_lea.vmem [#allocation5], 1472
        %v3127 = vld [vmem:[%s3126] sm:$0xf]
        %v3128 = vld [vmem:[%s3126 + $0x4] sm:$0xf]
        %v3129 = vld [vmem:[%s3126 + $0x8] sm:$0xf]
        %v3130 = vld [vmem:[%s3126 + $0xc] sm:$0xf]
        %v3131 = vld [vmem:[%s3126 + $0x10] sm:$0xf]
        %v3132 = vld [vmem:[%s3126 + $0x14] sm:$0xf]
        %v3133 = vld [vmem:[%s3126 + $0x18] sm:$0xf]
        %v3134 = vld [vmem:[%s3126 + $0x1c] sm:$0xf]
        %v3135 = vld [vmem:[%s3126 + $0x20] sm:$0xf]
        %v3136 = vld [vmem:[%s3126 + $0x24] sm:$0xf]
        %v3137 = vld [vmem:[%s3126 + $0x28] sm:$0xf]
        %v3138 = vld [vmem:[%s3126 + $0x2c] sm:$0xf]
        %v3139 = vld [vmem:[%s3126 + $0x30] sm:$0xf]
        %v3140 = vld [vmem:[%s3126 + $0x34] sm:$0xf]
        %v3141 = vld [vmem:[%s3126 + $0x38] sm:$0xf]
        %v3142 = vld [vmem:[%s3126 + $0x3c] sm:$0xf]
        %v3159 = vunpack.c.l.b16 %v3127
        %v3160 = vunpack.c.l.b16 %v3128
        %v3161 = vunpack.c.l.b16 %v3129
        %v3162 = vunpack.c.l.b16 %v3130
        %v3163 = vunpack.c.l.b16 %v3131
        %v3164 = vunpack.c.l.b16 %v3132
        %v3165 = vunpack.c.l.b16 %v3133
        %v3166 = vunpack.c.l.b16 %v3134
        %v3167 = vunpack.c.l.b16 %v3135
        %v3168 = vunpack.c.l.b16 %v3136
        %v3169 = vunpack.c.l.b16 %v3137
        %v3170 = vunpack.c.l.b16 %v3138
        %v3171 = vunpack.c.l.b16 %v3139
        %v3172 = vunpack.c.l.b16 %v3140
        %v3173 = vunpack.c.l.b16 %v3141
        %v3174 = vunpack.c.l.b16 %v3142
        %v3175 = vpack.c.b16 %v3160, %v3159
        %v3176 = vpack.c.b16 %v3162, %v3161
        %v3177 = vpack.c.b16 %v3164, %v3163
        %v3178 = vpack.c.b16 %v3166, %v3165
        %v3179 = vpack.c.b16 %v3168, %v3167
        %v3180 = vpack.c.b16 %v3170, %v3169
        %v3181 = vpack.c.b16 %v3172, %v3171
        %v3182 = vpack.c.b16 %v3174, %v3173
        %3191 = vmatprep.subr.bf16.mxu0 0
        %3192 = vmatpush1.bf16.msra.mxu0 %v3175
        %3193 = vmatprep.subr.bf16.mxu0 0
        %3194 = vmatpush1.bf16.msra.mxu0 %v3176
        %3195 = vmatprep.subr.bf16.mxu0 0
        %3196 = vmatpush1.bf16.msra.mxu0 %v3177
        %3197 = vmatprep.subr.bf16.mxu0 0
        %3198 = vmatpush1.bf16.msra.mxu0 %v3178
        %3199 = vmatprep.subr.bf16.mxu0 0
        %3200 = vmatpush1.bf16.msra.mxu0 %v3179
        %3201 = vmatprep.subr.bf16.mxu0 0
        %3202 = vmatpush1.bf16.msra.mxu0 %v3180
        %3203 = vmatprep.subr.bf16.mxu0 0
        %3204 = vmatpush1.bf16.msra.mxu0 %v3181
        %3205 = vmatprep.subr.bf16.mxu0 0
        %3206 = vmatpush1.bf16.msra.mxu0 %v3182
        %3207 = vmatprep.subr.bf16.mxu0 0
        %3208 = vmatpush1.bf16.msra.mxu0 0
        %3209 = vmatprep.subr.bf16.mxu0 0
        %3210 = vmatpush1.bf16.msra.mxu0 0
        %3211 = vmatprep.subr.bf16.mxu0 0
        %3212 = vmatpush1.bf16.msra.mxu0 0
        %3213 = vmatprep.subr.bf16.mxu0 0
        %3214 = vmatpush1.bf16.msra.mxu0 0
        %3215 = vmatprep.subr.bf16.mxu0 0
        %3216 = vmatpush1.bf16.msra.mxu0 0
        %3217 = vmatprep.subr.bf16.mxu0 0
        %3218 = vmatpush1.bf16.msra.mxu0 0
        %3219 = vmatprep.subr.bf16.mxu0 0
        %3220 = vmatpush1.bf16.msra.mxu0 0
        %3221 = vmatprep.subr.bf16.mxu0 0
        %3222 = vmatpush1.bf16.msra.mxu0 0
        %3223 = vmatprep.mubr.bf16.mxu0 0
        %3224 = vmatmul.mubr.bf16.gmra.mrb[0].mxu0 %v3020
        %v3225 = vpop.f32.mrb[0].mxu0
        %v3226 = vadd.f32 0.0, %v3225
        %v3227 = vpop.f32.mrb[0].mxu0
        %v3228 = vpop.f32.mrb[0].mxu0
        %v3229 = vpop.f32.mrb[0].mxu0
        %3230 = vdwg.mxu0
        %s3231 = scalar_lea.vmem [#allocation5], 1536
        %v3232 = vld [vmem:[%s3231] sm:$0xf]
        %v3233 = vld [vmem:[%s3231 + $0x4] sm:$0xf]
        %v3234 = vld [vmem:[%s3231 + $0x8] sm:$0xf]
        %v3235 = vld [vmem:[%s3231 + $0xc] sm:$0xf]
        %v3236 = vld [vmem:[%s3231 + $0x10] sm:$0xf]
        %v3237 = vld [vmem:[%s3231 + $0x14] sm:$0xf]
        %v3238 = vld [vmem:[%s3231 + $0x18] sm:$0xf]
        %v3239 = vld [vmem:[%s3231 + $0x1c] sm:$0xf]
        %v3240 = vld [vmem:[%s3231 + $0x20] sm:$0xf]
        %v3241 = vld [vmem:[%s3231 + $0x24] sm:$0xf]
        %v3242 = vld [vmem:[%s3231 + $0x28] sm:$0xf]
        %v3243 = vld [vmem:[%s3231 + $0x2c] sm:$0xf]
        %v3244 = vld [vmem:[%s3231 + $0x30] sm:$0xf]
        %v3245 = vld [vmem:[%s3231 + $0x34] sm:$0xf]
        %v3246 = vld [vmem:[%s3231 + $0x38] sm:$0xf]
        %v3247 = vld [vmem:[%s3231 + $0x3c] sm:$0xf]
        %v3264 = vunpack.c.l.b16 %v3232
        %v3265 = vunpack.c.l.b16 %v3233
        %v3266 = vunpack.c.l.b16 %v3234
        %v3267 = vunpack.c.l.b16 %v3235
        %v3268 = vunpack.c.l.b16 %v3236
        %v3269 = vunpack.c.l.b16 %v3237
        %v3270 = vunpack.c.l.b16 %v3238
        %v3271 = vunpack.c.l.b16 %v3239
        %v3272 = vunpack.c.l.b16 %v3240
        %v3273 = vunpack.c.l.b16 %v3241
        %v3274 = vunpack.c.l.b16 %v3242
        %v3275 = vunpack.c.l.b16 %v3243
        %v3276 = vunpack.c.l.b16 %v3244
        %v3277 = vunpack.c.l.b16 %v3245
        %v3278 = vunpack.c.l.b16 %v3246
        %v3279 = vunpack.c.l.b16 %v3247
        %v3280 = vpack.c.b16 %v3265, %v3264
        %v3281 = vpack.c.b16 %v3267, %v3266
        %v3282 = vpack.c.b16 %v3269, %v3268
        %v3283 = vpack.c.b16 %v3271, %v3270
        %v3284 = vpack.c.b16 %v3273, %v3272
        %v3285 = vpack.c.b16 %v3275, %v3274
        %v3286 = vpack.c.b16 %v3277, %v3276
        %v3287 = vpack.c.b16 %v3279, %v3278
        %3296 = vmatprep.subr.bf16.mxu0 0
        %3297 = vmatpush1.bf16.msra.mxu0 %v3280
        %3298 = vmatprep.subr.bf16.mxu0 0
        %3299 = vmatpush1.bf16.msra.mxu0 %v3281
        %3300 = vmatprep.subr.bf16.mxu0 0
        %3301 = vmatpush1.bf16.msra.mxu0 %v3282
        %3302 = vmatprep.subr.bf16.mxu0 0
        %3303 = vmatpush1.bf16.msra.mxu0 %v3283
        %3304 = vmatprep.subr.bf16.mxu0 0
        %3305 = vmatpush1.bf16.msra.mxu0 %v3284
        %3306 = vmatprep.subr.bf16.mxu0 0
        %3307 = vmatpush1.bf16.msra.mxu0 %v3285
        %3308 = vmatprep.subr.bf16.mxu0 0
        %3309 = vmatpush1.bf16.msra.mxu0 %v3286
        %3310 = vmatprep.subr.bf16.mxu0 0
        %3311 = vmatpush1.bf16.msra.mxu0 %v3287
        %3312 = vmatprep.subr.bf16.mxu0 0
        %3313 = vmatpush1.bf16.msra.mxu0 0
        %3314 = vmatprep.subr.bf16.mxu0 0
        %3315 = vmatpush1.bf16.msra.mxu0 0
        %3316 = vmatprep.subr.bf16.mxu0 0
        %3317 = vmatpush1.bf16.msra.mxu0 0
        %3318 = vmatprep.subr.bf16.mxu0 0
        %3319 = vmatpush1.bf16.msra.mxu0 0
        %3320 = vmatprep.subr.bf16.mxu0 0
        %3321 = vmatpush1.bf16.msra.mxu0 0
        %3322 = vmatprep.subr.bf16.mxu0 0
        %3323 = vmatpush1.bf16.msra.mxu0 0
        %3324 = vmatprep.subr.bf16.mxu0 0
        %3325 = vmatpush1.bf16.msra.mxu0 0
        %3326 = vmatprep.subr.bf16.mxu0 0
        %3327 = vmatpush1.bf16.msra.mxu0 0
        %3328 = vmatprep.mubr.bf16.mxu0 0
        %3329 = vmatmul.mubr.bf16.gmra.mrb[0].mxu0 %v3020
        %v3330 = vpop.f32.mrb[0].mxu0
        %v3331 = vadd.f32 0.0, %v3330
        %v3332 = vpop.f32.mrb[0].mxu0
        %v3333 = vpop.f32.mrb[0].mxu0
        %v3334 = vpop.f32.mrb[0].mxu0
        %3335 = vdwg.mxu0
        %v3337 = vrot.slane %v3121, 7
        %v3339 = vsel %vm540, 0.0, %v3337
        %v3340 = vadd.f32 %v3339, %v3226
        %v3342 = vrot.slane %v3331, 1
        %v3344 = vsel %vm551, %v3342, 0.0
        %v3345 = vadd.f32 %v3340, %v3344
        %v3346 = vld [vmem:[#allocation7 + $0x8] sm:$0x1]
        %v3347 = vlaneseq
        %v3348 = vshrl.u32 %v3347, 7
        %v3349 = vsub.s32 0, %v3348
        %v3350 = vrot.slane %v3346, %v3349
        %v3351 = vadd.f32 %v3345, %v3350
        %v3352 = vmax.f32 %v3351, 0.0
        %v3353 = vpack.c.bf16 %v3352, %v3352
        %s3354 = scalar_lea.vmem [#allocation5], 1600
        %v3355 = vld [vmem:[%s3354] sm:$0xf]
        %v3356 = vld [vmem:[%s3354 + $0x4] sm:$0xf]
        %v3357 = vld [vmem:[%s3354 + $0x8] sm:$0xf]
        %v3358 = vld [vmem:[%s3354 + $0xc] sm:$0xf]
        %v3359 = vld [vmem:[%s3354 + $0x10] sm:$0xf]
        %v3360 = vld [vmem:[%s3354 + $0x14] sm:$0xf]
        %v3361 = vld [vmem:[%s3354 + $0x18] sm:$0xf]
        %v3362 = vld [vmem:[%s3354 + $0x1c] sm:$0xf]
        %v3363 = vld [vmem:[%s3354 + $0x20] sm:$0xf]
        %v3364 = vld [vmem:[%s3354 + $0x24] sm:$0xf]
        %v3365 = vld [vmem:[%s3354 + $0x28] sm:$0xf]
        %v3366 = vld [vmem:[%s3354 + $0x2c] sm:$0xf]
        %v3367 = vld [vmem:[%s3354 + $0x30] sm:$0xf]
        %v3368 = vld [vmem:[%s3354 + $0x34] sm:$0xf]
        %v3369 = vld [vmem:[%s3354 + $0x38] sm:$0xf]
        %v3370 = vld [vmem:[%s3354 + $0x3c] sm:$0xf]
        %v3387 = vunpack.c.l.b16 %v3355
        %v3388 = vunpack.c.l.b16 %v3356
        %v3389 = vunpack.c.l.b16 %v3357
        %v3390 = vunpack.c.l.b16 %v3358
        %v3391 = vunpack.c.l.b16 %v3359
        %v3392 = vunpack.c.l.b16 %v3360
        %v3393 = vunpack.c.l.b16 %v3361
        %v3394 = vunpack.c.l.b16 %v3362
        %v3395 = vunpack.c.l.b16 %v3363
        %v3396 = vunpack.c.l.b16 %v3364
        %v3397 = vunpack.c.l.b16 %v3365
        %v3398 = vunpack.c.l.b16 %v3366
        %v3399 = vunpack.c.l.b16 %v3367
        %v3400 = vunpack.c.l.b16 %v3368
        %v3401 = vunpack.c.l.b16 %v3369
        %v3402 = vunpack.c.l.b16 %v3370
        %v3403 = vpack.c.b16 %v3388, %v3387
        %v3404 = vpack.c.b16 %v3390, %v3389
        %v3405 = vpack.c.b16 %v3392, %v3391
        %v3406 = vpack.c.b16 %v3394, %v3393
        %v3407 = vpack.c.b16 %v3396, %v3395
        %v3408 = vpack.c.b16 %v3398, %v3397
        %v3409 = vpack.c.b16 %v3400, %v3399
        %v3410 = vpack.c.b16 %v3402, %v3401
        %3419 = vmatprep.subr.bf16.mxu0 0
        %3420 = vmatpush1.bf16.msra.mxu0 %v3403
        %3421 = vmatprep.subr.bf16.mxu0 0
        %3422 = vmatpush1.bf16.msra.mxu0 %v3404
        %3423 = vmatprep.subr.bf16.mxu0 0
        %3424 = vmatpush1.bf16.msra.mxu0 %v3405
        %3425 = vmatprep.subr.bf16.mxu0 0
        %3426 = vmatpush1.bf16.msra.mxu0 %v3406
        %3427 = vmatprep.subr.bf16.mxu0 0
        %3428 = vmatpush1.bf16.msra.mxu0 %v3407
        %3429 = vmatprep.subr.bf16.mxu0 0
        %3430 = vmatpush1.bf16.msra.mxu0 %v3408
        %3431 = vmatprep.subr.bf16.mxu0 0
        %3432 = vmatpush1.bf16.msra.mxu0 %v3409
        %3433 = vmatprep.subr.bf16.mxu0 0
        %3434 = vmatpush1.bf16.msra.mxu0 %v3410
        %3435 = vmatprep.subr.bf16.mxu0 0
        %3436 = vmatpush1.bf16.msra.mxu0 0
        %3437 = vmatprep.subr.bf16.mxu0 0
        %3438 = vmatpush1.bf16.msra.mxu0 0
        %3439 = vmatprep.subr.bf16.mxu0 0
        %3440 = vmatpush1.bf16.msra.mxu0 0
        %3441 = vmatprep.subr.bf16.mxu0 0
        %3442 = vmatpush1.bf16.msra.mxu0 0
        %3443 = vmatprep.subr.bf16.mxu0 0
        %3444 = vmatpush1.bf16.msra.mxu0 0
        %3445 = vmatprep.subr.bf16.mxu0 0
        %3446 = vmatpush1.bf16.msra.mxu0 0
        %3447 = vmatprep.subr.bf16.mxu0 0
        %3448 = vmatpush1.bf16.msra.mxu0 0
        %3449 = vmatprep.subr.bf16.mxu0 0
        %3450 = vmatpush1.bf16.msra.mxu0 0
        %3451 = vmatprep.mubr.bf16.mxu0 0
        %3452 = vmatmul.mubr.bf16.gmra.mrb[0].mxu0 %v3353
        %v3453 = vpop.f32.mrb[0].mxu0
        %v3454 = vadd.f32 0.0, %v3453
        %v3455 = vpop.f32.mrb[0].mxu0
        %v3456 = vpop.f32.mrb[0].mxu0
        %v3457 = vpop.f32.mrb[0].mxu0
        %3458 = vdwg.mxu0
        %s3459 = scalar_lea.vmem [#allocation5], 1664
        %v3460 = vld [vmem:[%s3459] sm:$0xf]
        %v3461 = vld [vmem:[%s3459 + $0x4] sm:$0xf]
        %v3462 = vld [vmem:[%s3459 + $0x8] sm:$0xf]
        %v3463 = vld [vmem:[%s3459 + $0xc] sm:$0xf]
        %v3464 = vld [vmem:[%s3459 + $0x10] sm:$0xf]
        %v3465 = vld [vmem:[%s3459 + $0x14] sm:$0xf]
        %v3466 = vld [vmem:[%s3459 + $0x18] sm:$0xf]
        %v3467 = vld [vmem:[%s3459 + $0x1c] sm:$0xf]
        %v3468 = vld [vmem:[%s3459 + $0x20] sm:$0xf]
        %v3469 = vld [vmem:[%s3459 + $0x24] sm:$0xf]
        %v3470 = vld [vmem:[%s3459 + $0x28] sm:$0xf]
        %v3471 = vld [vmem:[%s3459 + $0x2c] sm:$0xf]
        %v3472 = vld [vmem:[%s3459 + $0x30] sm:$0xf]
        %v3473 = vld [vmem:[%s3459 + $0x34] sm:$0xf]
        %v3474 = vld [vmem:[%s3459 + $0x38] sm:$0xf]
        %v3475 = vld [vmem:[%s3459 + $0x3c] sm:$0xf]
        %v3492 = vunpack.c.l.b16 %v3460
        %v3493 = vunpack.c.l.b16 %v3461
        %v3494 = vunpack.c.l.b16 %v3462
        %v3495 = vunpack.c.l.b16 %v3463
        %v3496 = vunpack.c.l.b16 %v3464
        %v3497 = vunpack.c.l.b16 %v3465
        %v3498 = vunpack.c.l.b16 %v3466
        %v3499 = vunpack.c.l.b16 %v3467
        %v3500 = vunpack.c.l.b16 %v3468
        %v3501 = vunpack.c.l.b16 %v3469
        %v3502 = vunpack.c.l.b16 %v3470
        %v3503 = vunpack.c.l.b16 %v3471
        %v3504 = vunpack.c.l.b16 %v3472
        %v3505 = vunpack.c.l.b16 %v3473
        %v3506 = vunpack.c.l.b16 %v3474
        %v3507 = vunpack.c.l.b16 %v3475
        %v3508 = vpack.c.b16 %v3493, %v3492
        %v3509 = vpack.c.b16 %v3495, %v3494
        %v3510 = vpack.c.b16 %v3497, %v3496
        %v3511 = vpack.c.b16 %v3499, %v3498
        %v3512 = vpack.c.b16 %v3501, %v3500
        %v3513 = vpack.c.b16 %v3503, %v3502
        %v3514 = vpack.c.b16 %v3505, %v3504
        %v3515 = vpack.c.b16 %v3507, %v3506
        %3524 = vmatprep.subr.bf16.mxu0 0
        %3525 = vmatpush1.bf16.msra.mxu0 %v3508
        %3526 = vmatprep.subr.bf16.mxu0 0
        %3527 = vmatpush1.bf16.msra.mxu0 %v3509
        %3528 = vmatprep.subr.bf16.mxu0 0
        %3529 = vmatpush1.bf16.msra.mxu0 %v3510
        %3530 = vmatprep.subr.bf16.mxu0 0
        %3531 = vmatpush1.bf16.msra.mxu0 %v3511
        %3532 = vmatprep.subr.bf16.mxu0 0
        %3533 = vmatpush1.bf16.msra.mxu0 %v3512
        %3534 = vmatprep.subr.bf16.mxu0 0
        %3535 = vmatpush1.bf16.msra.mxu0 %v3513
        %3536 = vmatprep.subr.bf16.mxu0 0
        %3537 = vmatpush1.bf16.msra.mxu0 %v3514
        %3538 = vmatprep.subr.bf16.mxu0 0
        %3539 = vmatpush1.bf16.msra.mxu0 %v3515
        %3540 = vmatprep.subr.bf16.mxu0 0
        %3541 = vmatpush1.bf16.msra.mxu0 0
        %3542 = vmatprep.subr.bf16.mxu0 0
        %3543 = vmatpush1.bf16.msra.mxu0 0
        %3544 = vmatprep.subr.bf16.mxu0 0
        %3545 = vmatpush1.bf16.msra.mxu0 0
        %3546 = vmatprep.subr.bf16.mxu0 0
        %3547 = vmatpush1.bf16.msra.mxu0 0
        %3548 = vmatprep.subr.bf16.mxu0 0
        %3549 = vmatpush1.bf16.msra.mxu0 0
        %3550 = vmatprep.subr.bf16.mxu0 0
        %3551 = vmatpush1.bf16.msra.mxu0 0
        %3552 = vmatprep.subr.bf16.mxu0 0
        %3553 = vmatpush1.bf16.msra.mxu0 0
        %3554 = vmatprep.subr.bf16.mxu0 0
        %3555 = vmatpush1.bf16.msra.mxu0 0
        %3556 = vmatprep.mubr.bf16.mxu0 0
        %3557 = vmatmul.mubr.bf16.gmra.mrb[0].mxu0 %v3353
        %v3558 = vpop.f32.mrb[0].mxu0
        %v3559 = vadd.f32 0.0, %v3558
        %v3560 = vpop.f32.mrb[0].mxu0
        %v3561 = vpop.f32.mrb[0].mxu0
        %v3562 = vpop.f32.mrb[0].mxu0
        %3563 = vdwg.mxu0
        %s3564 = scalar_lea.vmem [#allocation5], 1728
        %v3565 = vld [vmem:[%s3564] sm:$0xf]
        %v3566 = vld [vmem:[%s3564 + $0x4] sm:$0xf]
        %v3567 = vld [vmem:[%s3564 + $0x8] sm:$0xf]
        %v3568 = vld [vmem:[%s3564 + $0xc] sm:$0xf]
        %v3569 = vld [vmem:[%s3564 + $0x10] sm:$0xf]
        %v3570 = vld [vmem:[%s3564 + $0x14] sm:$0xf]
        %v3571 = vld [vmem:[%s3564 + $0x18] sm:$0xf]
        %v3572 = vld [vmem:[%s3564 + $0x1c] sm:$0xf]
        %v3573 = vld [vmem:[%s3564 + $0x20] sm:$0xf]
        %v3574 = vld [vmem:[%s3564 + $0x24] sm:$0xf]
        %v3575 = vld [vmem:[%s3564 + $0x28] sm:$0xf]
        %v3576 = vld [vmem:[%s3564 + $0x2c] sm:$0xf]
        %v3577 = vld [vmem:[%s3564 + $0x30] sm:$0xf]
        %v3578 = vld [vmem:[%s3564 + $0x34] sm:$0xf]
        %v3579 = vld [vmem:[%s3564 + $0x38] sm:$0xf]
        %v3580 = vld [vmem:[%s3564 + $0x3c] sm:$0xf]
        %v3597 = vunpack.c.l.b16 %v3565
        %v3598 = vunpack.c.l.b16 %v3566
        %v3599 = vunpack.c.l.b16 %v3567
        %v3600 = vunpack.c.l.b16 %v3568
        %v3601 = vunpack.c.l.b16 %v3569
        %v3602 = vunpack.c.l.b16 %v3570
        %v3603 = vunpack.c.l.b16 %v3571
        %v3604 = vunpack.c.l.b16 %v3572
        %v3605 = vunpack.c.l.b16 %v3573
        %v3606 = vunpack.c.l.b16 %v3574
        %v3607 = vunpack.c.l.b16 %v3575
        %v3608 = vunpack.c.l.b16 %v3576
        %v3609 = vunpack.c.l.b16 %v3577
        %v3610 = vunpack.c.l.b16 %v3578
        %v3611 = vunpack.c.l.b16 %v3579
        %v3612 = vunpack.c.l.b16 %v3580
        %v3613 = vpack.c.b16 %v3598, %v3597
        %v3614 = vpack.c.b16 %v3600, %v3599
        %v3615 = vpack.c.b16 %v3602, %v3601
        %v3616 = vpack.c.b16 %v3604, %v3603
        %v3617 = vpack.c.b16 %v3606, %v3605
        %v3618 = vpack.c.b16 %v3608, %v3607
        %v3619 = vpack.c.b16 %v3610, %v3609
        %v3620 = vpack.c.b16 %v3612, %v3611
        %3629 = vmatprep.subr.bf16.mxu0 0
        %3630 = vmatpush1.bf16.msra.mxu0 %v3613
        %3631 = vmatprep.subr.bf16.mxu0 0
        %3632 = vmatpush1.bf16.msra.mxu0 %v3614
        %3633 = vmatprep.subr.bf16.mxu0 0
        %3634 = vmatpush1.bf16.msra.mxu0 %v3615
        %3635 = vmatprep.subr.bf16.mxu0 0
        %3636 = vmatpush1.bf16.msra.mxu0 %v3616
        %3637 = vmatprep.subr.bf16.mxu0 0
        %3638 = vmatpush1.bf16.msra.mxu0 %v3617
        %3639 = vmatprep.subr.bf16.mxu0 0
        %3640 = vmatpush1.bf16.msra.mxu0 %v3618
        %3641 = vmatprep.subr.bf16.mxu0 0
        %3642 = vmatpush1.bf16.msra.mxu0 %v3619
        %3643 = vmatprep.subr.bf16.mxu0 0
        %3644 = vmatpush1.bf16.msra.mxu0 %v3620
        %3645 = vmatprep.subr.bf16.mxu0 0
        %3646 = vmatpush1.bf16.msra.mxu0 0
        %3647 = vmatprep.subr.bf16.mxu0 0
        %3648 = vmatpush1.bf16.msra.mxu0 0
        %3649 = vmatprep.subr.bf16.mxu0 0
        %3650 = vmatpush1.bf16.msra.mxu0 0
        %3651 = vmatprep.subr.bf16.mxu0 0
        %3652 = vmatpush1.bf16.msra.mxu0 0
        %3653 = vmatprep.subr.bf16.mxu0 0
        %3654 = vmatpush1.bf16.msra.mxu0 0
        %3655 = vmatprep.subr.bf16.mxu0 0
        %3656 = vmatpush1.bf16.msra.mxu0 0
        %3657 = vmatprep.subr.bf16.mxu0 0
        %3658 = vmatpush1.bf16.msra.mxu0 0
        %3659 = vmatprep.subr.bf16.mxu0 0
        %3660 = vmatpush1.bf16.msra.mxu0 0
        %3661 = vmatprep.mubr.bf16.mxu0 0
        %3662 = vmatmul.mubr.bf16.gmra.mrb[0].mxu0 %v3353
        %v3663 = vpop.f32.mrb[0].mxu0
        %v3664 = vadd.f32 0.0, %v3663
        %v3665 = vpop.f32.mrb[0].mxu0
        %v3666 = vpop.f32.mrb[0].mxu0
        %v3667 = vpop.f32.mrb[0].mxu0
        %3668 = vdwg.mxu0
        %v3670 = vrot.slane %v3454, 7
        %v3672 = vsel %vm540, 0.0, %v3670
        %v3673 = vadd.f32 %v3672, %v3559
        %v3675 = vrot.slane %v3664, 1
        %v3677 = vsel %vm551, %v3675, 0.0
        %v3678 = vadd.f32 %v3673, %v3677
        %v3679 = vld [vmem:[#allocation7 + $0x9] sm:$0x1]
        %v3680 = vlaneseq
        %v3681 = vshrl.u32 %v3680, 7
        %v3682 = vsub.s32 0, %v3681
        %v3683 = vrot.slane %v3679, %v3682
        %v3684 = vadd.f32 %v3678, %v3683
        %v3685 = vadd.f32 %v3684, %v3019
        %v3686 = vmax.f32 %v3685, 0.0
        %v3687 = vpack.c.bf16 %v3686, %v3686
        %s3688 = scalar_lea.vmem [#allocation5], 1792
        %v3689 = vld [vmem:[%s3688] sm:$0xf]
        %v3690 = vld [vmem:[%s3688 + $0x4] sm:$0xf]
        %v3691 = vld [vmem:[%s3688 + $0x8] sm:$0xf]
        %v3692 = vld [vmem:[%s3688 + $0xc] sm:$0xf]
        %v3693 = vld [vmem:[%s3688 + $0x10] sm:$0xf]
        %v3694 = vld [vmem:[%s3688 + $0x14] sm:$0xf]
        %v3695 = vld [vmem:[%s3688 + $0x18] sm:$0xf]
        %v3696 = vld [vmem:[%s3688 + $0x1c] sm:$0xf]
        %v3697 = vld [vmem:[%s3688 + $0x20] sm:$0xf]
        %v3698 = vld [vmem:[%s3688 + $0x24] sm:$0xf]
        %v3699 = vld [vmem:[%s3688 + $0x28] sm:$0xf]
        %v3700 = vld [vmem:[%s3688 + $0x2c] sm:$0xf]
        %v3701 = vld [vmem:[%s3688 + $0x30] sm:$0xf]
        %v3702 = vld [vmem:[%s3688 + $0x34] sm:$0xf]
        %v3703 = vld [vmem:[%s3688 + $0x38] sm:$0xf]
        %v3704 = vld [vmem:[%s3688 + $0x3c] sm:$0xf]
        %v3721 = vunpack.c.l.b16 %v3689
        %v3722 = vunpack.c.l.b16 %v3690
        %v3723 = vunpack.c.l.b16 %v3691
        %v3724 = vunpack.c.l.b16 %v3692
        %v3725 = vunpack.c.l.b16 %v3693
        %v3726 = vunpack.c.l.b16 %v3694
        %v3727 = vunpack.c.l.b16 %v3695
        %v3728 = vunpack.c.l.b16 %v3696
        %v3729 = vunpack.c.l.b16 %v3697
        %v3730 = vunpack.c.l.b16 %v3698
        %v3731 = vunpack.c.l.b16 %v3699
        %v3732 = vunpack.c.l.b16 %v3700
        %v3733 = vunpack.c.l.b16 %v3701
        %v3734 = vunpack.c.l.b16 %v3702
        %v3735 = vunpack.c.l.b16 %v3703
        %v3736 = vunpack.c.l.b16 %v3704
        %v3737 = vpack.c.b16 %v3722, %v3721
        %v3738 = vpack.c.b16 %v3724, %v3723
        %v3739 = vpack.c.b16 %v3726, %v3725
        %v3740 = vpack.c.b16 %v3728, %v3727
        %v3741 = vpack.c.b16 %v3730, %v3729
        %v3742 = vpack.c.b16 %v3732, %v3731
        %v3743 = vpack.c.b16 %v3734, %v3733
        %v3744 = vpack.c.b16 %v3736, %v3735
        %3753 = vmatprep.subr.bf16.mxu0 0
        %3754 = vmatpush1.bf16.msra.mxu0 %v3737
        %3755 = vmatprep.subr.bf16.mxu0 0
        %3756 = vmatpush1.bf16.msra.mxu0 %v3738
        %3757 = vmatprep.subr.bf16.mxu0 0
        %3758 = vmatpush1.bf16.msra.mxu0 %v3739
        %3759 = vmatprep.subr.bf16.mxu0 0
        %3760 = vmatpush1.bf16.msra.mxu0 %v3740
        %3761 = vmatprep.subr.bf16.mxu0 0
        %3762 = vmatpush1.bf16.msra.mxu0 %v3741
        %3763 = vmatprep.subr.bf16.mxu0 0
        %3764 = vmatpush1.bf16.msra.mxu0 %v3742
        %3765 = vmatprep.subr.bf16.mxu0 0
        %3766 = vmatpush1.bf16.msra.mxu0 %v3743
        %3767 = vmatprep.subr.bf16.mxu0 0
        %3768 = vmatpush1.bf16.msra.mxu0 %v3744
        %3769 = vmatprep.subr.bf16.mxu0 0
        %3770 = vmatpush1.bf16.msra.mxu0 0
        %3771 = vmatprep.subr.bf16.mxu0 0
        %3772 = vmatpush1.bf16.msra.mxu0 0
        %3773 = vmatprep.subr.bf16.mxu0 0
        %3774 = vmatpush1.bf16.msra.mxu0 0
        %3775 = vmatprep.subr.bf16.mxu0 0
        %3776 = vmatpush1.bf16.msra.mxu0 0
        %3777 = vmatprep.subr.bf16.mxu0 0
        %3778 = vmatpush1.bf16.msra.mxu0 0
        %3779 = vmatprep.subr.bf16.mxu0 0
        %3780 = vmatpush1.bf16.msra.mxu0 0
        %3781 = vmatprep.subr.bf16.mxu0 0
        %3782 = vmatpush1.bf16.msra.mxu0 0
        %3783 = vmatprep.subr.bf16.mxu0 0
        %3784 = vmatpush1.bf16.msra.mxu0 0
        %3785 = vmatprep.mubr.bf16.mxu0 0
        %3786 = vmatmul.mubr.bf16.gmra.mrb[0].mxu0 %v3687
        %v3787 = vpop.f32.mrb[0].mxu0
        %v3788 = vadd.f32 0.0, %v3787
        %v3789 = vpop.f32.mrb[0].mxu0
        %v3790 = vpop.f32.mrb[0].mxu0
        %v3791 = vpop.f32.mrb[0].mxu0
        %3792 = vdwg.mxu0
        %s3793 = scalar_lea.vmem [#allocation5], 1856
        %v3794 = vld [vmem:[%s3793] sm:$0xf]
        %v3795 = vld [vmem:[%s3793 + $0x4] sm:$0xf]
        %v3796 = vld [vmem:[%s3793 + $0x8] sm:$0xf]
        %v3797 = vld [vmem:[%s3793 + $0xc] sm:$0xf]
        %v3798 = vld [vmem:[%s3793 + $0x10] sm:$0xf]
        %v3799 = vld [vmem:[%s3793 + $0x14] sm:$0xf]
        %v3800 = vld [vmem:[%s3793 + $0x18] sm:$0xf]
        %v3801 = vld [vmem:[%s3793 + $0x1c] sm:$0xf]
        %v3802 = vld [vmem:[%s3793 + $0x20] sm:$0xf]
        %v3803 = vld [vmem:[%s3793 + $0x24] sm:$0xf]
        %v3804 = vld [vmem:[%s3793 + $0x28] sm:$0xf]
        %v3805 = vld [vmem:[%s3793 + $0x2c] sm:$0xf]
        %v3806 = vld [vmem:[%s3793 + $0x30] sm:$0xf]
        %v3807 = vld [vmem:[%s3793 + $0x34] sm:$0xf]
        %v3808 = vld [vmem:[%s3793 + $0x38] sm:$0xf]
        %v3809 = vld [vmem:[%s3793 + $0x3c] sm:$0xf]
        %v3826 = vunpack.c.l.b16 %v3794
        %v3827 = vunpack.c.l.b16 %v3795
        %v3828 = vunpack.c.l.b16 %v3796
        %v3829 = vunpack.c.l.b16 %v3797
        %v3830 = vunpack.c.l.b16 %v3798
        %v3831 = vunpack.c.l.b16 %v3799
        %v3832 = vunpack.c.l.b16 %v3800
        %v3833 = vunpack.c.l.b16 %v3801
        %v3834 = vunpack.c.l.b16 %v3802
        %v3835 = vunpack.c.l.b16 %v3803
        %v3836 = vunpack.c.l.b16 %v3804
        %v3837 = vunpack.c.l.b16 %v3805
        %v3838 = vunpack.c.l.b16 %v3806
        %v3839 = vunpack.c.l.b16 %v3807
        %v3840 = vunpack.c.l.b16 %v3808
        %v3841 = vunpack.c.l.b16 %v3809
        %v3842 = vpack.c.b16 %v3827, %v3826
        %v3843 = vpack.c.b16 %v3829, %v3828
        %v3844 = vpack.c.b16 %v3831, %v3830
        %v3845 = vpack.c.b16 %v3833, %v3832
        %v3846 = vpack.c.b16 %v3835, %v3834
        %v3847 = vpack.c.b16 %v3837, %v3836
        %v3848 = vpack.c.b16 %v3839, %v3838
        %v3849 = vpack.c.b16 %v3841, %v3840
        %3858 = vmatprep.subr.bf16.mxu0 0
        %3859 = vmatpush1.bf16.msra.mxu0 %v3842
        %3860 = vmatprep.subr.bf16.mxu0 0
        %3861 = vmatpush1.bf16.msra.mxu0 %v3843
        %3862 = vmatprep.subr.bf16.mxu0 0
        %3863 = vmatpush1.bf16.msra.mxu0 %v3844
        %3864 = vmatprep.subr.bf16.mxu0 0
        %3865 = vmatpush1.bf16.msra.mxu0 %v3845
        %3866 = vmatprep.subr.bf16.mxu0 0
        %3867 = vmatpush1.bf16.msra.mxu0 %v3846
        %3868 = vmatprep.subr.bf16.mxu0 0
        %3869 = vmatpush1.bf16.msra.mxu0 %v3847
        %3870 = vmatprep.subr.bf16.mxu0 0
        %3871 = vmatpush1.bf16.msra.mxu0 %v3848
        %3872 = vmatprep.subr.bf16.mxu0 0
        %3873 = vmatpush1.bf16.msra.mxu0 %v3849
        %3874 = vmatprep.subr.bf16.mxu0 0
        %3875 = vmatpush1.bf16.msra.mxu0 0
        %3876 = vmatprep.subr.bf16.mxu0 0
        %3877 = vmatpush1.bf16.msra.mxu0 0
        %3878 = vmatprep.subr.bf16.mxu0 0
        %3879 = vmatpush1.bf16.msra.mxu0 0
        %3880 = vmatprep.subr.bf16.mxu0 0
        %3881 = vmatpush1.bf16.msra.mxu0 0
        %3882 = vmatprep.subr.bf16.mxu0 0
        %3883 = vmatpush1.bf16.msra.mxu0 0
        %3884 = vmatprep.subr.bf16.mxu0 0
        %3885 = vmatpush1.bf16.msra.mxu0 0
        %3886 = vmatprep.subr.bf16.mxu0 0
        %3887 = vmatpush1.bf16.msra.mxu0 0
        %3888 = vmatprep.subr.bf16.mxu0 0
        %3889 = vmatpush1.bf16.msra.mxu0 0
        %3890 = vmatprep.mubr.bf16.mxu0 0
        %3891 = vmatmul.mubr.bf16.gmra.mrb[0].mxu0 %v3687
        %v3892 = vpop.f32.mrb[0].mxu0
        %v3893 = vadd.f32 0.0, %v3892
        %v3894 = vpop.f32.mrb[0].mxu0
        %v3895 = vpop.f32.mrb[0].mxu0
        %v3896 = vpop.f32.mrb[0].mxu0
        %3897 = vdwg.mxu0
        %s3898 = scalar_lea.vmem [#allocation5], 1920
        %v3899 = vld [vmem:[%s3898] sm:$0xf]
        %v3900 = vld [vmem:[%s3898 + $0x4] sm:$0xf]
        %v3901 = vld [vmem:[%s3898 + $0x8] sm:$0xf]
        %v3902 = vld [vmem:[%s3898 + $0xc] sm:$0xf]
        %v3903 = vld [vmem:[%s3898 + $0x10] sm:$0xf]
        %v3904 = vld [vmem:[%s3898 + $0x14] sm:$0xf]
        %v3905 = vld [vmem:[%s3898 + $0x18] sm:$0xf]
        %v3906 = vld [vmem:[%s3898 + $0x1c] sm:$0xf]
        %v3907 = vld [vmem:[%s3898 + $0x20] sm:$0xf]
        %v3908 = vld [vmem:[%s3898 + $0x24] sm:$0xf]
        %v3909 = vld [vmem:[%s3898 + $0x28] sm:$0xf]
        %v3910 = vld [vmem:[%s3898 + $0x2c] sm:$0xf]
        %v3911 = vld [vmem:[%s3898 + $0x30] sm:$0xf]
        %v3912 = vld [vmem:[%s3898 + $0x34] sm:$0xf]
        %v3913 = vld [vmem:[%s3898 + $0x38] sm:$0xf]
        %v3914 = vld [vmem:[%s3898 + $0x3c] sm:$0xf]
        %v3931 = vunpack.c.l.b16 %v3899
        %v3932 = vunpack.c.l.b16 %v3900
        %v3933 = vunpack.c.l.b16 %v3901
        %v3934 = vunpack.c.l.b16 %v3902
        %v3935 = vunpack.c.l.b16 %v3903
        %v3936 = vunpack.c.l.b16 %v3904
        %v3937 = vunpack.c.l.b16 %v3905
        %v3938 = vunpack.c.l.b16 %v3906
        %v3939 = vunpack.c.l.b16 %v3907
        %v3940 = vunpack.c.l.b16 %v3908
        %v3941 = vunpack.c.l.b16 %v3909
        %v3942 = vunpack.c.l.b16 %v3910
        %v3943 = vunpack.c.l.b16 %v3911
        %v3944 = vunpack.c.l.b16 %v3912
        %v3945 = vunpack.c.l.b16 %v3913
        %v3946 = vunpack.c.l.b16 %v3914
        %v3947 = vpack.c.b16 %v3932, %v3931
        %v3948 = vpack.c.b16 %v3934, %v3933
        %v3949 = vpack.c.b16 %v3936, %v3935
        %v3950 = vpack.c.b16 %v3938, %v3937
        %v3951 = vpack.c.b16 %v3940, %v3939
        %v3952 = vpack.c.b16 %v3942, %v3941
        %v3953 = vpack.c.b16 %v3944, %v3943
        %v3954 = vpack.c.b16 %v3946, %v3945
        %3963 = vmatprep.subr.bf16.mxu0 0
        %3964 = vmatpush1.bf16.msra.mxu0 %v3947
        %3965 = vmatprep.subr.bf16.mxu0 0
        %3966 = vmatpush1.bf16.msra.mxu0 %v3948
        %3967 = vmatprep.subr.bf16.mxu0 0
        %3968 = vmatpush1.bf16.msra.mxu0 %v3949
        %3969 = vmatprep.subr.bf16.mxu0 0
        %3970 = vmatpush1.bf16.msra.mxu0 %v3950
        %3971 = vmatprep.subr.bf16.mxu0 0
        %3972 = vmatpush1.bf16.msra.mxu0 %v3951
        %3973 = vmatprep.subr.bf16.mxu0 0
        %3974 = vmatpush1.bf16.msra.mxu0 %v3952
        %3975 = vmatprep.subr.bf16.mxu0 0
        %3976 = vmatpush1.bf16.msra.mxu0 %v3953
        %3977 = vmatprep.subr.bf16.mxu0 0
        %3978 = vmatpush1.bf16.msra.mxu0 %v3954
        %3979 = vmatprep.subr.bf16.mxu0 0
        %3980 = vmatpush1.bf16.msra.mxu0 0
        %3981 = vmatprep.subr.bf16.mxu0 0
        %3982 = vmatpush1.bf16.msra.mxu0 0
        %3983 = vmatprep.subr.bf16.mxu0 0
        %3984 = vmatpush1.bf16.msra.mxu0 0
        %3985 = vmatprep.subr.bf16.mxu0 0
        %3986 = vmatpush1.bf16.msra.mxu0 0
        %3987 = vmatprep.subr.bf16.mxu0 0
        %3988 = vmatpush1.bf16.msra.mxu0 0
        %3989 = vmatprep.subr.bf16.mxu0 0
        %3990 = vmatpush1.bf16.msra.mxu0 0
        %3991 = vmatprep.subr.bf16.mxu0 0
        %3992 = vmatpush1.bf16.msra.mxu0 0
        %3993 = vmatprep.subr.bf16.mxu0 0
        %3994 = vmatpush1.bf16.msra.mxu0 0
        %3995 = vmatprep.mubr.bf16.mxu0 0
        %3996 = vmatmul.mubr.bf16.gmra.mrb[0].mxu0 %v3687
        %v3997 = vpop.f32.mrb[0].mxu0
        %v3998 = vadd.f32 0.0, %v3997
        %v3999 = vpop.f32.mrb[0].mxu0
        %v4000 = vpop.f32.mrb[0].mxu0
        %v4001 = vpop.f32.mrb[0].mxu0
        %4002 = vdwg.mxu0
        %v4004 = vrot.slane %v3788, 7
        %v4006 = vsel %vm540, 0.0, %v4004
        %v4007 = vadd.f32 %v4006, %v3893
        %v4009 = vrot.slane %v3998, 1
        %v4011 = vsel %vm551, %v4009, 0.0
        %v4012 = vadd.f32 %v4007, %v4011
        %v4014 = vcombine.high %v4012, %v4012
        %v4016 = vunpack.c.l.s4 1983009808
        %v4017 = vunpack.c.0.s8 %v4016
        %v4018 = vlaneseq
        %v4019 = vshrl.u32 %v4018, 7
        %v4020 = vsub.s32 %v4017, %v4019
        %v4021 = vrot.slane %v4012, %v4020
        %v4023 = vunpack.c.l.s4 1983009808
        %v4024 = vunpack.c.0.s8 %v4023
        %v4025 = vlaneseq
        %v4026 = vshrl.u32 %v4025, 7
        %v4027 = vsub.s32 %v4024, %v4026
        %v4028 = vrot.slane %v4014, %v4027
        %v4029 = vcombine.high %v4021, %v4021
        %v4030 = vcombine.high %v4028, %v4028
        %v4035 = vld [vmem:[#allocation7 + $0xa] sm:$0x1]
        %v4036 = vlaneseq
        %v4037 = vshrl.u32 %v4036, 7
        %v4038 = vsub.s32 0, %v4037
        %v4039 = vrot.slane %v4035, %v4038
        %v4042 = vunpack.c.l.s4 1983009808
        %v4043 = vunpack.c.0.s8 %v4042
        %v4044 = vlaneseq
        %v4045 = vshrl.u32 %v4044, 7
        %v4046 = vsub.s32 %v4043, %v4045
        %v4047 = vrot.slane %v4039, %v4046
        %v4048 = vcombine.high %v4047, %v4047
        %v4049 = vrot.slane %v4047, 1
        %v4050 = vrot.slane %v4048, 1
        %v4055 = vadd.f32 %v4021, %v4047
        %v4056 = vadd.f32 %v4029, %v4049
        %v4057 = vadd.f32 %v4028, %v4048
        %v4058 = vadd.f32 %v4030, %v4050
        %v4059 = vmax.f32 %v4055, 0.0
        %v4060 = vmax.f32 %v4056, 0.0
        %v4061 = vmax.f32 %v4057, 0.0
        %v4062 = vmax.f32 %v4058, 0.0
        %v4063 = vpack.c.bf16 %v4059, %v4059
        %v4064 = vpack.c.bf16 %v4060, %v4060
        %v4065 = vpack.c.bf16 %v4061, %v4061
        %v4066 = vpack.c.bf16 %v4062, %v4062
        %s4067 = scalar_lea.vmem [#allocation5], 1984
        %v4068 = vld [vmem:[%s4067] sm:$0xf]
        %v4069 = vld [vmem:[%s4067 + $0x4] sm:$0xf]
        %v4070 = vld [vmem:[%s4067 + $0x8] sm:$0xf]
        %v4071 = vld [vmem:[%s4067 + $0xc] sm:$0xf]
        %v4072 = vld [vmem:[%s4067 + $0x10] sm:$0xf]
        %v4073 = vld [vmem:[%s4067 + $0x14] sm:$0xf]
        %v4074 = vld [vmem:[%s4067 + $0x18] sm:$0xf]
        %v4075 = vld [vmem:[%s4067 + $0x1c] sm:$0xf]
        %v4076 = vld [vmem:[%s4067 + $0x20] sm:$0xf]
        %v4077 = vld [vmem:[%s4067 + $0x24] sm:$0xf]
        %v4078 = vld [vmem:[%s4067 + $0x28] sm:$0xf]
        %v4079 = vld [vmem:[%s4067 + $0x2c] sm:$0xf]
        %v4080 = vld [vmem:[%s4067 + $0x30] sm:$0xf]
        %v4081 = vld [vmem:[%s4067 + $0x34] sm:$0xf]
        %v4082 = vld [vmem:[%s4067 + $0x38] sm:$0xf]
        %v4083 = vld [vmem:[%s4067 + $0x3c] sm:$0xf]
        %v4088 = vunpack.c.l.b16 %v4063
        %v4089 = vunpack.c.l.b16 %v4064
        %v4090 = vunpack.c.l.b16 %v4065
        %v4091 = vunpack.c.l.b16 %v4066
        %v4092 = vrot.slane %v4089, 7
        %v4093 = vsel %vm2441, %v4092, %v4088
        %v4094 = vrot.slane %v4090, 6
        %v4095 = vsel %vm2444, %v4094, %v4093
        %v4096 = vrot.slane %v4091, 5
        %v4097 = vsel %vm2447, %v4096, %v4095
        %v4098 = vpack.c.b16 %v4097, %v4097
        %v4116 = vunpack.c.l.b16 %v4068
        %v4117 = vunpack.c.l.b16 %v4069
        %v4118 = vunpack.c.l.b16 %v4070
        %v4119 = vunpack.c.l.b16 %v4071
        %v4120 = vunpack.c.l.b16 %v4072
        %v4121 = vunpack.c.l.b16 %v4073
        %v4122 = vunpack.c.l.b16 %v4074
        %v4123 = vunpack.c.l.b16 %v4075
        %v4124 = vunpack.c.l.b16 %v4076
        %v4125 = vunpack.c.l.b16 %v4077
        %v4126 = vunpack.c.l.b16 %v4078
        %v4127 = vunpack.c.l.b16 %v4079
        %v4128 = vunpack.c.l.b16 %v4080
        %v4129 = vunpack.c.l.b16 %v4081
        %v4130 = vunpack.c.l.b16 %v4082
        %v4131 = vunpack.c.l.b16 %v4083
        %v4132 = vpack.c.b16 %v4117, %v4116
        %v4133 = vpack.c.b16 %v4119, %v4118
        %v4134 = vpack.c.b16 %v4121, %v4120
        %v4135 = vpack.c.b16 %v4123, %v4122
        %v4136 = vpack.c.b16 %v4125, %v4124
        %v4137 = vpack.c.b16 %v4127, %v4126
        %v4138 = vpack.c.b16 %v4129, %v4128
        %v4139 = vpack.c.b16 %v4131, %v4130
        %4148 = vmatprep.subr.bf16.mxu0 0
        %4149 = vmatpush1.bf16.msra.mxu0 %v4132
        %4150 = vmatprep.subr.bf16.mxu0 0
        %4151 = vmatpush1.bf16.msra.mxu0 %v4133
        %4152 = vmatprep.subr.bf16.mxu0 0
        %4153 = vmatpush1.bf16.msra.mxu0 %v4134
        %4154 = vmatprep.subr.bf16.mxu0 0
        %4155 = vmatpush1.bf16.msra.mxu0 %v4135
        %4156 = vmatprep.subr.bf16.mxu0 0
        %4157 = vmatpush1.bf16.msra.mxu0 %v4136
        %4158 = vmatprep.subr.bf16.mxu0 0
        %4159 = vmatpush1.bf16.msra.mxu0 %v4137
        %4160 = vmatprep.subr.bf16.mxu0 0
        %4161 = vmatpush1.bf16.msra.mxu0 %v4138
        %4162 = vmatprep.subr.bf16.mxu0 0
        %4163 = vmatpush1.bf16.msra.mxu0 %v4139
        %4164 = vmatprep.subr.bf16.mxu0 0
        %4165 = vmatpush1.bf16.msra.mxu0 0
        %4166 = vmatprep.subr.bf16.mxu0 0
        %4167 = vmatpush1.bf16.msra.mxu0 0
        %4168 = vmatprep.subr.bf16.mxu0 0
        %4169 = vmatpush1.bf16.msra.mxu0 0
        %4170 = vmatprep.subr.bf16.mxu0 0
        %4171 = vmatpush1.bf16.msra.mxu0 0
        %4172 = vmatprep.subr.bf16.mxu0 0
        %4173 = vmatpush1.bf16.msra.mxu0 0
        %4174 = vmatprep.subr.bf16.mxu0 0
        %4175 = vmatpush1.bf16.msra.mxu0 0
        %4176 = vmatprep.subr.bf16.mxu0 0
        %4177 = vmatpush1.bf16.msra.mxu0 0
        %4178 = vmatprep.subr.bf16.mxu0 0
        %4179 = vmatpush1.bf16.msra.mxu0 0
        %4180 = vmatprep.mubr.bf16.mxu0 0
        %4181 = vmatmul.mubr.bf16.gmra.mrb[0].mxu0 %v4098
        %v4182 = vpop.f32.mrb[0].mxu0
        %v4183 = vadd.f32 0.0, %v4182
        %v4184 = vpop.f32.mrb[0].mxu0
        %v4185 = vpop.f32.mrb[0].mxu0
        %v4186 = vpop.f32.mrb[0].mxu0
        %4187 = vdwg.mxu0
        %s4188 = scalar_lea.vmem [#allocation5], 2048
        %v4189 = vld [vmem:[%s4188] sm:$0xf]
        %v4190 = vld [vmem:[%s4188 + $0x4] sm:$0xf]
        %v4191 = vld [vmem:[%s4188 + $0x8] sm:$0xf]
        %v4192 = vld [vmem:[%s4188 + $0xc] sm:$0xf]
        %v4193 = vld [vmem:[%s4188 + $0x10] sm:$0xf]
        %v4194 = vld [vmem:[%s4188 + $0x14] sm:$0xf]
        %v4195 = vld [vmem:[%s4188 + $0x18] sm:$0xf]
        %v4196 = vld [vmem:[%s4188 + $0x1c] sm:$0xf]
        %v4197 = vld [vmem:[%s4188 + $0x20] sm:$0xf]
        %v4198 = vld [vmem:[%s4188 + $0x24] sm:$0xf]
        %v4199 = vld [vmem:[%s4188 + $0x28] sm:$0xf]
        %v4200 = vld [vmem:[%s4188 + $0x2c] sm:$0xf]
        %v4201 = vld [vmem:[%s4188 + $0x30] sm:$0xf]
        %v4202 = vld [vmem:[%s4188 + $0x34] sm:$0xf]
        %v4203 = vld [vmem:[%s4188 + $0x38] sm:$0xf]
        %v4204 = vld [vmem:[%s4188 + $0x3c] sm:$0xf]
        %v4221 = vunpack.c.l.b16 %v4189
        %v4222 = vunpack.c.l.b16 %v4190
        %v4223 = vunpack.c.l.b16 %v4191
        %v4224 = vunpack.c.l.b16 %v4192
        %v4225 = vunpack.c.l.b16 %v4193
        %v4226 = vunpack.c.l.b16 %v4194
        %v4227 = vunpack.c.l.b16 %v4195
        %v4228 = vunpack.c.l.b16 %v4196
        %v4229 = vunpack.c.l.b16 %v4197
        %v4230 = vunpack.c.l.b16 %v4198
        %v4231 = vunpack.c.l.b16 %v4199
        %v4232 = vunpack.c.l.b16 %v4200
        %v4233 = vunpack.c.l.b16 %v4201
        %v4234 = vunpack.c.l.b16 %v4202
        %v4235 = vunpack.c.l.b16 %v4203
        %v4236 = vunpack.c.l.b16 %v4204
        %v4237 = vpack.c.b16 %v4222, %v4221
        %v4238 = vpack.c.b16 %v4224, %v4223
        %v4239 = vpack.c.b16 %v4226, %v4225
        %v4240 = vpack.c.b16 %v4228, %v4227
        %v4241 = vpack.c.b16 %v4230, %v4229
        %v4242 = vpack.c.b16 %v4232, %v4231
        %v4243 = vpack.c.b16 %v4234, %v4233
        %v4244 = vpack.c.b16 %v4236, %v4235
        %4253 = vmatprep.subr.bf16.mxu0 0
        %4254 = vmatpush1.bf16.msra.mxu0 %v4237
        %4255 = vmatprep.subr.bf16.mxu0 0
        %4256 = vmatpush1.bf16.msra.mxu0 %v4238
        %4257 = vmatprep.subr.bf16.mxu0 0
        %4258 = vmatpush1.bf16.msra.mxu0 %v4239
        %4259 = vmatprep.subr.bf16.mxu0 0
        %4260 = vmatpush1.bf16.msra.mxu0 %v4240
        %4261 = vmatprep.subr.bf16.mxu0 0
        %4262 = vmatpush1.bf16.msra.mxu0 %v4241
        %4263 = vmatprep.subr.bf16.mxu0 0
        %4264 = vmatpush1.bf16.msra.mxu0 %v4242
        %4265 = vmatprep.subr.bf16.mxu0 0
        %4266 = vmatpush1.bf16.msra.mxu0 %v4243
        %4267 = vmatprep.subr.bf16.mxu0 0
        %4268 = vmatpush1.bf16.msra.mxu0 %v4244
        %4269 = vmatprep.subr.bf16.mxu0 0
        %4270 = vmatpush1.bf16.msra.mxu0 0
        %4271 = vmatprep.subr.bf16.mxu0 0
        %4272 = vmatpush1.bf16.msra.mxu0 0
        %4273 = vmatprep.subr.bf16.mxu0 0
        %4274 = vmatpush1.bf16.msra.mxu0 0
        %4275 = vmatprep.subr.bf16.mxu0 0
        %4276 = vmatpush1.bf16.msra.mxu0 0
        %4277 = vmatprep.subr.bf16.mxu0 0
        %4278 = vmatpush1.bf16.msra.mxu0 0
        %4279 = vmatprep.subr.bf16.mxu0 0
        %4280 = vmatpush1.bf16.msra.mxu0 0
        %4281 = vmatprep.subr.bf16.mxu0 0
        %4282 = vmatpush1.bf16.msra.mxu0 0
        %4283 = vmatprep.subr.bf16.mxu0 0
        %4284 = vmatpush1.bf16.msra.mxu0 0
        %4285 = vmatprep.mubr.bf16.mxu0 0
        %4286 = vmatmul.mubr.bf16.gmra.mrb[0].mxu0 %v4098
        %v4287 = vpop.f32.mrb[0].mxu0
        %v4288 = vadd.f32 0.0, %v4287
        %v4289 = vpop.f32.mrb[0].mxu0
        %v4290 = vpop.f32.mrb[0].mxu0
        %v4291 = vpop.f32.mrb[0].mxu0
        %4292 = vdwg.mxu0
        %s4293 = scalar_lea.vmem [#allocation5], 2112
        %v4294 = vld [vmem:[%s4293] sm:$0xf]
        %v4295 = vld [vmem:[%s4293 + $0x4] sm:$0xf]
        %v4296 = vld [vmem:[%s4293 + $0x8] sm:$0xf]
        %v4297 = vld [vmem:[%s4293 + $0xc] sm:$0xf]
        %v4298 = vld [vmem:[%s4293 + $0x10] sm:$0xf]
        %v4299 = vld [vmem:[%s4293 + $0x14] sm:$0xf]
        %v4300 = vld [vmem:[%s4293 + $0x18] sm:$0xf]
        %v4301 = vld [vmem:[%s4293 + $0x1c] sm:$0xf]
        %v4302 = vld [vmem:[%s4293 + $0x20] sm:$0xf]
        %v4303 = vld [vmem:[%s4293 + $0x24] sm:$0xf]
        %v4304 = vld [vmem:[%s4293 + $0x28] sm:$0xf]
        %v4305 = vld [vmem:[%s4293 + $0x2c] sm:$0xf]
        %v4306 = vld [vmem:[%s4293 + $0x30] sm:$0xf]
        %v4307 = vld [vmem:[%s4293 + $0x34] sm:$0xf]
        %v4308 = vld [vmem:[%s4293 + $0x38] sm:$0xf]
        %v4309 = vld [vmem:[%s4293 + $0x3c] sm:$0xf]
        %v4326 = vunpack.c.l.b16 %v4294
        %v4327 = vunpack.c.l.b16 %v4295
        %v4328 = vunpack.c.l.b16 %v4296
        %v4329 = vunpack.c.l.b16 %v4297
        %v4330 = vunpack.c.l.b16 %v4298
        %v4331 = vunpack.c.l.b16 %v4299
        %v4332 = vunpack.c.l.b16 %v4300
        %v4333 = vunpack.c.l.b16 %v4301
        %v4334 = vunpack.c.l.b16 %v4302
        %v4335 = vunpack.c.l.b16 %v4303
        %v4336 = vunpack.c.l.b16 %v4304
        %v4337 = vunpack.c.l.b16 %v4305
        %v4338 = vunpack.c.l.b16 %v4306
        %v4339 = vunpack.c.l.b16 %v4307
        %v4340 = vunpack.c.l.b16 %v4308
        %v4341 = vunpack.c.l.b16 %v4309
        %v4342 = vpack.c.b16 %v4327, %v4326
        %v4343 = vpack.c.b16 %v4329, %v4328
        %v4344 = vpack.c.b16 %v4331, %v4330
        %v4345 = vpack.c.b16 %v4333, %v4332
        %v4346 = vpack.c.b16 %v4335, %v4334
        %v4347 = vpack.c.b16 %v4337, %v4336
        %v4348 = vpack.c.b16 %v4339, %v4338
        %v4349 = vpack.c.b16 %v4341, %v4340
        %4358 = vmatprep.subr.bf16.mxu0 0
        %4359 = vmatpush1.bf16.msra.mxu0 %v4342
        %4360 = vmatprep.subr.bf16.mxu0 0
        %4361 = vmatpush1.bf16.msra.mxu0 %v4343
        %4362 = vmatprep.subr.bf16.mxu0 0
        %4363 = vmatpush1.bf16.msra.mxu0 %v4344
        %4364 = vmatprep.subr.bf16.mxu0 0
        %4365 = vmatpush1.bf16.msra.mxu0 %v4345
        %4366 = vmatprep.subr.bf16.mxu0 0
        %4367 = vmatpush1.bf16.msra.mxu0 %v4346
        %4368 = vmatprep.subr.bf16.mxu0 0
        %4369 = vmatpush1.bf16.msra.mxu0 %v4347
        %4370 = vmatprep.subr.bf16.mxu0 0
        %4371 = vmatpush1.bf16.msra.mxu0 %v4348
        %4372 = vmatprep.subr.bf16.mxu0 0
        %4373 = vmatpush1.bf16.msra.mxu0 %v4349
        %4374 = vmatprep.subr.bf16.mxu0 0
        %4375 = vmatpush1.bf16.msra.mxu0 0
        %4376 = vmatprep.subr.bf16.mxu0 0
        %4377 = vmatpush1.bf16.msra.mxu0 0
        %4378 = vmatprep.subr.bf16.mxu0 0
        %4379 = vmatpush1.bf16.msra.mxu0 0
        %4380 = vmatprep.subr.bf16.mxu0 0
        %4381 = vmatpush1.bf16.msra.mxu0 0
        %4382 = vmatprep.subr.bf16.mxu0 0
        %4383 = vmatpush1.bf16.msra.mxu0 0
        %4384 = vmatprep.subr.bf16.mxu0 0
        %4385 = vmatpush1.bf16.msra.mxu0 0
        %4386 = vmatprep.subr.bf16.mxu0 0
        %4387 = vmatpush1.bf16.msra.mxu0 0
        %4388 = vmatprep.subr.bf16.mxu0 0
        %4389 = vmatpush1.bf16.msra.mxu0 0
        %4390 = vmatprep.mubr.bf16.mxu0 0
        %4391 = vmatmul.mubr.bf16.gmra.mrb[0].mxu0 %v4098
        %v4392 = vpop.f32.mrb[0].mxu0
        %v4393 = vadd.f32 0.0, %v4392
        %v4394 = vpop.f32.mrb[0].mxu0
        %v4395 = vpop.f32.mrb[0].mxu0
        %v4396 = vpop.f32.mrb[0].mxu0
        %4397 = vdwg.mxu0
        %v4399 = vrot.slane %v4183, 7
        %v4401 = vsel %vm540, 0.0, %v4399
        %v4402 = vadd.f32 %v4401, %v4288
        %v4404 = vrot.slane %v4393, 1
        %vm4406 = vcmask 1042432
        %v4407 = vsel %vm4406, %v4404, 0.0
        %v4408 = vadd.f32 %v4402, %v4407
        %v4409 = vld [vmem:[#allocation7 + $0xb] sm:$0x1]
        %v4410 = vlaneseq
        %v4411 = vshrl.u32 %v4410, 7
        %v4412 = vsub.s32 0, %v4411
        %v4413 = vrot.slane %v4409, %v4412
        %v4414 = vadd.f32 %v4408, %v4413
        %s4415 = scalar_lea.vmem [#allocation5], 2176
        %v4416 = vld [vmem:[%s4415] sm:$0xf]
        %v4417 = vld [vmem:[%s4415 + $0x4] sm:$0xf]
        %v4418 = vld [vmem:[%s4415 + $0x8] sm:$0xf]
        %v4419 = vld [vmem:[%s4415 + $0xc] sm:$0xf]
        %v4420 = vld [vmem:[%s4415 + $0x10] sm:$0xf]
        %v4421 = vld [vmem:[%s4415 + $0x14] sm:$0xf]
        %v4422 = vld [vmem:[%s4415 + $0x18] sm:$0xf]
        %v4423 = vld [vmem:[%s4415 + $0x1c] sm:$0xf]
        %v4424 = vld [vmem:[%s4415 + $0x20] sm:$0xf]
        %v4425 = vld [vmem:[%s4415 + $0x24] sm:$0xf]
        %v4426 = vld [vmem:[%s4415 + $0x28] sm:$0xf]
        %v4427 = vld [vmem:[%s4415 + $0x2c] sm:$0xf]
        %v4428 = vld [vmem:[%s4415 + $0x30] sm:$0xf]
        %v4429 = vld [vmem:[%s4415 + $0x34] sm:$0xf]
        %v4430 = vld [vmem:[%s4415 + $0x38] sm:$0xf]
        %v4431 = vld [vmem:[%s4415 + $0x3c] sm:$0xf]
        %v4448 = vunpack.c.l.b16 %v4416
        %v4449 = vunpack.c.l.b16 %v4417
        %v4450 = vunpack.c.l.b16 %v4418
        %v4451 = vunpack.c.l.b16 %v4419
        %v4452 = vunpack.c.l.b16 %v4420
        %v4453 = vunpack.c.l.b16 %v4421
        %v4454 = vunpack.c.l.b16 %v4422
        %v4455 = vunpack.c.l.b16 %v4423
        %v4456 = vunpack.c.l.b16 %v4424
        %v4457 = vunpack.c.l.b16 %v4425
        %v4458 = vunpack.c.l.b16 %v4426
        %v4459 = vunpack.c.l.b16 %v4427
        %v4460 = vunpack.c.l.b16 %v4428
        %v4461 = vunpack.c.l.b16 %v4429
        %v4462 = vunpack.c.l.b16 %v4430
        %v4463 = vunpack.c.l.b16 %v4431
        %v4464 = vpack.c.b16 %v4449, %v4448
        %v4465 = vpack.c.b16 %v4451, %v4450
        %v4466 = vpack.c.b16 %v4453, %v4452
        %v4467 = vpack.c.b16 %v4455, %v4454
        %v4468 = vpack.c.b16 %v4457, %v4456
        %v4469 = vpack.c.b16 %v4459, %v4458
        %v4470 = vpack.c.b16 %v4461, %v4460
        %v4471 = vpack.c.b16 %v4463, %v4462
        %4480 = vmatprep.subr.bf16.mxu0 0
        %4481 = vmatpush1.bf16.msra.mxu0 %v4464
        %4482 = vmatprep.subr.bf16.mxu0 0
        %4483 = vmatpush1.bf16.msra.mxu0 %v4465
        %4484 = vmatprep.subr.bf16.mxu0 0
        %4485 = vmatpush1.bf16.msra.mxu0 %v4466
        %4486 = vmatprep.subr.bf16.mxu0 0
        %4487 = vmatpush1.bf16.msra.mxu0 %v4467
        %4488 = vmatprep.subr.bf16.mxu0 0
        %4489 = vmatpush1.bf16.msra.mxu0 %v4468
        %4490 = vmatprep.subr.bf16.mxu0 0
        %4491 = vmatpush1.bf16.msra.mxu0 %v4469
        %4492 = vmatprep.subr.bf16.mxu0 0
        %4493 = vmatpush1.bf16.msra.mxu0 %v4470
        %4494 = vmatprep.subr.bf16.mxu0 0
        %4495 = vmatpush1.bf16.msra.mxu0 %v4471
        %4496 = vmatprep.subr.bf16.mxu0 0
        %4497 = vmatpush1.bf16.msra.mxu0 0
        %4498 = vmatprep.subr.bf16.mxu0 0
        %4499 = vmatpush1.bf16.msra.mxu0 0
        %4500 = vmatprep.subr.bf16.mxu0 0
        %4501 = vmatpush1.bf16.msra.mxu0 0
        %4502 = vmatprep.subr.bf16.mxu0 0
        %4503 = vmatpush1.bf16.msra.mxu0 0
        %4504 = vmatprep.subr.bf16.mxu0 0
        %4505 = vmatpush1.bf16.msra.mxu0 0
        %4506 = vmatprep.subr.bf16.mxu0 0
        %4507 = vmatpush1.bf16.msra.mxu0 0
        %4508 = vmatprep.subr.bf16.mxu0 0
        %4509 = vmatpush1.bf16.msra.mxu0 0
        %4510 = vmatprep.subr.bf16.mxu0 0
        %4511 = vmatpush1.bf16.msra.mxu0 0
        %4512 = vmatprep.mubr.bf16.mxu0 0
        %4513 = vmatmul.mubr.bf16.gmra.mrb[0].mxu0 %v3687
        %v4514 = vpop.f32.mrb[0].mxu0
        %v4515 = vadd.f32 0.0, %v4514
        %v4516 = vpop.f32.mrb[0].mxu0
        %v4517 = vpop.f32.mrb[0].mxu0
        %v4518 = vpop.f32.mrb[0].mxu0
        %4519 = vdwg.mxu0
        %v4521 = vcombine.high %v4515, %v4515
        %v4523 = vunpack.c.l.s4 1983009808
        %v4524 = vunpack.c.0.s8 %v4523
        %v4525 = vlaneseq
        %v4526 = vshrl.u32 %v4525, 7
        %v4527 = vsub.s32 %v4524, %v4526
        %v4528 = vrot.slane %v4515, %v4527
        %v4530 = vunpack.c.l.s4 1983009808
        %v4531 = vunpack.c.0.s8 %v4530
        %v4532 = vlaneseq
        %v4533 = vshrl.u32 %v4532, 7
        %v4534 = vsub.s32 %v4531, %v4533
        %v4535 = vrot.slane %v4521, %v4534
        %v4536 = vcombine.high %v4528, %v4528
        %v4537 = vcombine.high %v4535, %v4535
        %v4542 = vld [vmem:[#allocation7 + $0xc] sm:$0x1]
        %v4543 = vlaneseq
        %v4544 = vshrl.u32 %v4543, 7
        %v4545 = vsub.s32 0, %v4544
        %v4546 = vrot.slane %v4542, %v4545
        %v4549 = vunpack.c.l.s4 1983009808
        %v4550 = vunpack.c.0.s8 %v4549
        %v4551 = vlaneseq
        %v4552 = vshrl.u32 %v4551, 7
        %v4553 = vsub.s32 %v4550, %v4552
        %v4554 = vrot.slane %v4546, %v4553
        %v4555 = vcombine.high %v4554, %v4554
        %v4556 = vrot.slane %v4554, 1
        %v4557 = vrot.slane %v4555, 1
        %v4562 = vadd.f32 %v4528, %v4554
        %v4563 = vadd.f32 %v4536, %v4556
        %v4564 = vadd.f32 %v4535, %v4555
        %v4565 = vadd.f32 %v4537, %v4557
        %v4570 = vlaneseq
        %v4571 = vshrl.u32 %v4570, 7
        %v4572 = vsub.s32 0, %v4571
        %v4573 = vrot.slane %v4562, %v4572
        %v4574 = vlaneseq
        %v4575 = vshrl.u32 %v4574, 7
        %v4576 = vsub.s32 0, %v4575
        %v4577 = vrot.slane %v4563, %v4576
        %v4578 = vlaneseq
        %v4579 = vshrl.u32 %v4578, 7
        %v4580 = vsub.s32 0, %v4579
        %v4581 = vrot.slane %v4564, %v4580
        %v4582 = vlaneseq
        %v4583 = vshrl.u32 %v4582, 7
        %v4584 = vsub.s32 0, %v4583
        %v4585 = vrot.slane %v4565, %v4584
        %v4586 = vsel %vm2441, %v4577, %v4573
        %v4587 = vsel %vm2444, %v4581, %v4586
        %v4588 = vsel %vm2447, %v4585, %v4587
        %v4590 = vadd.f32 %v4414, %v4588
        %v4591 = vmax.f32 %v4590, 0.0
        %v4592 = vpack.c.bf16 %v4591, %v4591
        %s4593 = scalar_lea.vmem [#allocation5], 2240
        %v4594 = vld [vmem:[%s4593] sm:$0xf]
        %v4595 = vld [vmem:[%s4593 + $0x4] sm:$0xf]
        %v4596 = vld [vmem:[%s4593 + $0x8] sm:$0xf]
        %v4597 = vld [vmem:[%s4593 + $0xc] sm:$0xf]
        %v4598 = vld [vmem:[%s4593 + $0x10] sm:$0xf]
        %v4599 = vld [vmem:[%s4593 + $0x14] sm:$0xf]
        %v4600 = vld [vmem:[%s4593 + $0x18] sm:$0xf]
        %v4601 = vld [vmem:[%s4593 + $0x1c] sm:$0xf]
        %v4602 = vld [vmem:[%s4593 + $0x20] sm:$0xf]
        %v4603 = vld [vmem:[%s4593 + $0x24] sm:$0xf]
        %v4604 = vld [vmem:[%s4593 + $0x28] sm:$0xf]
        %v4605 = vld [vmem:[%s4593 + $0x2c] sm:$0xf]
        %v4606 = vld [vmem:[%s4593 + $0x30] sm:$0xf]
        %v4607 = vld [vmem:[%s4593 + $0x34] sm:$0xf]
        %v4608 = vld [vmem:[%s4593 + $0x38] sm:$0xf]
        %v4609 = vld [vmem:[%s4593 + $0x3c] sm:$0xf]
        %v4626 = vunpack.c.l.b16 %v4594
        %v4627 = vunpack.c.l.b16 %v4595
        %v4628 = vunpack.c.l.b16 %v4596
        %v4629 = vunpack.c.l.b16 %v4597
        %v4630 = vunpack.c.l.b16 %v4598
        %v4631 = vunpack.c.l.b16 %v4599
        %v4632 = vunpack.c.l.b16 %v4600
        %v4633 = vunpack.c.l.b16 %v4601
        %v4634 = vunpack.c.l.b16 %v4602
        %v4635 = vunpack.c.l.b16 %v4603
        %v4636 = vunpack.c.l.b16 %v4604
        %v4637 = vunpack.c.l.b16 %v4605
        %v4638 = vunpack.c.l.b16 %v4606
        %v4639 = vunpack.c.l.b16 %v4607
        %v4640 = vunpack.c.l.b16 %v4608
        %v4641 = vunpack.c.l.b16 %v4609
        %v4642 = vpack.c.b16 %v4627, %v4626
        %v4643 = vpack.c.b16 %v4629, %v4628
        %v4644 = vpack.c.b16 %v4631, %v4630
        %v4645 = vpack.c.b16 %v4633, %v4632
        %v4646 = vpack.c.b16 %v4635, %v4634
        %v4647 = vpack.c.b16 %v4637, %v4636
        %v4648 = vpack.c.b16 %v4639, %v4638
        %v4649 = vpack.c.b16 %v4641, %v4640
        %4658 = vmatprep.subr.bf16.mxu0 0
        %4659 = vmatpush1.bf16.msra.mxu0 %v4642
        %4660 = vmatprep.subr.bf16.mxu0 0
        %4661 = vmatpush1.bf16.msra.mxu0 %v4643
        %4662 = vmatprep.subr.bf16.mxu0 0
        %4663 = vmatpush1.bf16.msra.mxu0 %v4644
        %4664 = vmatprep.subr.bf16.mxu0 0
        %4665 = vmatpush1.bf16.msra.mxu0 %v4645
        %4666 = vmatprep.subr.bf16.mxu0 0
        %4667 = vmatpush1.bf16.msra.mxu0 %v4646
        %4668 = vmatprep.subr.bf16.mxu0 0
        %4669 = vmatpush1.bf16.msra.mxu0 %v4647
        %4670 = vmatprep.subr.bf16.mxu0 0
        %4671 = vmatpush1.bf16.msra.mxu0 %v4648
        %4672 = vmatprep.subr.bf16.mxu0 0
        %4673 = vmatpush1.bf16.msra.mxu0 %v4649
        %4674 = vmatprep.subr.bf16.mxu0 0
        %4675 = vmatpush1.bf16.msra.mxu0 0
        %4676 = vmatprep.subr.bf16.mxu0 0
        %4677 = vmatpush1.bf16.msra.mxu0 0
        %4678 = vmatprep.subr.bf16.mxu0 0
        %4679 = vmatpush1.bf16.msra.mxu0 0
        %4680 = vmatprep.subr.bf16.mxu0 0
        %4681 = vmatpush1.bf16.msra.mxu0 0
        %4682 = vmatprep.subr.bf16.mxu0 0
        %4683 = vmatpush1.bf16.msra.mxu0 0
        %4684 = vmatprep.subr.bf16.mxu0 0
        %4685 = vmatpush1.bf16.msra.mxu0 0
        %4686 = vmatprep.subr.bf16.mxu0 0
        %4687 = vmatpush1.bf16.msra.mxu0 0
        %4688 = vmatprep.subr.bf16.mxu0 0
        %4689 = vmatpush1.bf16.msra.mxu0 0
        %4690 = vmatprep.mubr.bf16.mxu0 0
        %4691 = vmatmul.mubr.bf16.gmra.mrb[0].mxu0 %v4592
        %v4692 = vpop.f32.mrb[0].mxu0
        %v4693 = vadd.f32 0.0, %v4692
        %v4694 = vpop.f32.mrb[0].mxu0
        %v4695 = vpop.f32.mrb[0].mxu0
        %v4696 = vpop.f32.mrb[0].mxu0
        %4697 = vdwg.mxu0
        %s4698 = scalar_lea.vmem [#allocation5], 2304
        %v4699 = vld [vmem:[%s4698] sm:$0xf]
        %v4700 = vld [vmem:[%s4698 + $0x4] sm:$0xf]
        %v4701 = vld [vmem:[%s4698 + $0x8] sm:$0xf]
        %v4702 = vld [vmem:[%s4698 + $0xc] sm:$0xf]
        %v4703 = vld [vmem:[%s4698 + $0x10] sm:$0xf]
        %v4704 = vld [vmem:[%s4698 + $0x14] sm:$0xf]
        %v4705 = vld [vmem:[%s4698 + $0x18] sm:$0xf]
        %v4706 = vld [vmem:[%s4698 + $0x1c] sm:$0xf]
        %v4707 = vld [vmem:[%s4698 + $0x20] sm:$0xf]
        %v4708 = vld [vmem:[%s4698 + $0x24] sm:$0xf]
        %v4709 = vld [vmem:[%s4698 + $0x28] sm:$0xf]
        %v4710 = vld [vmem:[%s4698 + $0x2c] sm:$0xf]
        %v4711 = vld [vmem:[%s4698 + $0x30] sm:$0xf]
        %v4712 = vld [vmem:[%s4698 + $0x34] sm:$0xf]
        %v4713 = vld [vmem:[%s4698 + $0x38] sm:$0xf]
        %v4714 = vld [vmem:[%s4698 + $0x3c] sm:$0xf]
        %v4731 = vunpack.c.l.b16 %v4699
        %v4732 = vunpack.c.l.b16 %v4700
        %v4733 = vunpack.c.l.b16 %v4701
        %v4734 = vunpack.c.l.b16 %v4702
        %v4735 = vunpack.c.l.b16 %v4703
        %v4736 = vunpack.c.l.b16 %v4704
        %v4737 = vunpack.c.l.b16 %v4705
        %v4738 = vunpack.c.l.b16 %v4706
        %v4739 = vunpack.c.l.b16 %v4707
        %v4740 = vunpack.c.l.b16 %v4708
        %v4741 = vunpack.c.l.b16 %v4709
        %v4742 = vunpack.c.l.b16 %v4710
        %v4743 = vunpack.c.l.b16 %v4711
        %v4744 = vunpack.c.l.b16 %v4712
        %v4745 = vunpack.c.l.b16 %v4713
        %v4746 = vunpack.c.l.b16 %v4714
        %v4747 = vpack.c.b16 %v4732, %v4731
        %v4748 = vpack.c.b16 %v4734, %v4733
        %v4749 = vpack.c.b16 %v4736, %v4735
        %v4750 = vpack.c.b16 %v4738, %v4737
        %v4751 = vpack.c.b16 %v4740, %v4739
        %v4752 = vpack.c.b16 %v4742, %v4741
        %v4753 = vpack.c.b16 %v4744, %v4743
        %v4754 = vpack.c.b16 %v4746, %v4745
        %4763 = vmatprep.subr.bf16.mxu0 0
        %4764 = vmatpush1.bf16.msra.mxu0 %v4747
        %4765 = vmatprep.subr.bf16.mxu0 0
        %4766 = vmatpush1.bf16.msra.mxu0 %v4748
        %4767 = vmatprep.subr.bf16.mxu0 0
        %4768 = vmatpush1.bf16.msra.mxu0 %v4749
        %4769 = vmatprep.subr.bf16.mxu0 0
        %4770 = vmatpush1.bf16.msra.mxu0 %v4750
        %4771 = vmatprep.subr.bf16.mxu0 0
        %4772 = vmatpush1.bf16.msra.mxu0 %v4751
        %4773 = vmatprep.subr.bf16.mxu0 0
        %4774 = vmatpush1.bf16.msra.mxu0 %v4752
        %4775 = vmatprep.subr.bf16.mxu0 0
        %4776 = vmatpush1.bf16.msra.mxu0 %v4753
        %4777 = vmatprep.subr.bf16.mxu0 0
        %4778 = vmatpush1.bf16.msra.mxu0 %v4754
        %4779 = vmatprep.subr.bf16.mxu0 0
        %4780 = vmatpush1.bf16.msra.mxu0 0
        %4781 = vmatprep.subr.bf16.mxu0 0
        %4782 = vmatpush1.bf16.msra.mxu0 0
        %4783 = vmatprep.subr.bf16.mxu0 0
        %4784 = vmatpush1.bf16.msra.mxu0 0
        %4785 = vmatprep.subr.bf16.mxu0 0
        %4786 = vmatpush1.bf16.msra.mxu0 0
        %4787 = vmatprep.subr.bf16.mxu0 0
        %4788 = vmatpush1.bf16.msra.mxu0 0
        %4789 = vmatprep.subr.bf16.mxu0 0
        %4790 = vmatpush1.bf16.msra.mxu0 0
        %4791 = vmatprep.subr.bf16.mxu0 0
        %4792 = vmatpush1.bf16.msra.mxu0 0
        %4793 = vmatprep.subr.bf16.mxu0 0
        %4794 = vmatpush1.bf16.msra.mxu0 0
        %4795 = vmatprep.mubr.bf16.mxu0 0
        %4796 = vmatmul.mubr.bf16.gmra.mrb[0].mxu0 %v4592
        %v4797 = vpop.f32.mrb[0].mxu0
        %v4798 = vadd.f32 0.0, %v4797
        %v4799 = vpop.f32.mrb[0].mxu0
        %v4800 = vpop.f32.mrb[0].mxu0
        %v4801 = vpop.f32.mrb[0].mxu0
        %4802 = vdwg.mxu0
        %s4803 = scalar_lea.vmem [#allocation5], 2368
        %v4804 = vld [vmem:[%s4803] sm:$0xf]
        %v4805 = vld [vmem:[%s4803 + $0x4] sm:$0xf]
        %v4806 = vld [vmem:[%s4803 + $0x8] sm:$0xf]
        %v4807 = vld [vmem:[%s4803 + $0xc] sm:$0xf]
        %v4808 = vld [vmem:[%s4803 + $0x10] sm:$0xf]
        %v4809 = vld [vmem:[%s4803 + $0x14] sm:$0xf]
        %v4810 = vld [vmem:[%s4803 + $0x18] sm:$0xf]
        %v4811 = vld [vmem:[%s4803 + $0x1c] sm:$0xf]
        %v4812 = vld [vmem:[%s4803 + $0x20] sm:$0xf]
        %v4813 = vld [vmem:[%s4803 + $0x24] sm:$0xf]
        %v4814 = vld [vmem:[%s4803 + $0x28] sm:$0xf]
        %v4815 = vld [vmem:[%s4803 + $0x2c] sm:$0xf]
        %v4816 = vld [vmem:[%s4803 + $0x30] sm:$0xf]
        %v4817 = vld [vmem:[%s4803 + $0x34] sm:$0xf]
        %v4818 = vld [vmem:[%s4803 + $0x38] sm:$0xf]
        %v4819 = vld [vmem:[%s4803 + $0x3c] sm:$0xf]
        %v4836 = vunpack.c.l.b16 %v4804
        %v4837 = vunpack.c.l.b16 %v4805
        %v4838 = vunpack.c.l.b16 %v4806
        %v4839 = vunpack.c.l.b16 %v4807
        %v4840 = vunpack.c.l.b16 %v4808
        %v4841 = vunpack.c.l.b16 %v4809
        %v4842 = vunpack.c.l.b16 %v4810
        %v4843 = vunpack.c.l.b16 %v4811
        %v4844 = vunpack.c.l.b16 %v4812
        %v4845 = vunpack.c.l.b16 %v4813
        %v4846 = vunpack.c.l.b16 %v4814
        %v4847 = vunpack.c.l.b16 %v4815
        %v4848 = vunpack.c.l.b16 %v4816
        %v4849 = vunpack.c.l.b16 %v4817
        %v4850 = vunpack.c.l.b16 %v4818
        %v4851 = vunpack.c.l.b16 %v4819
        %v4852 = vpack.c.b16 %v4837, %v4836
        %v4853 = vpack.c.b16 %v4839, %v4838
        %v4854 = vpack.c.b16 %v4841, %v4840
        %v4855 = vpack.c.b16 %v4843, %v4842
        %v4856 = vpack.c.b16 %v4845, %v4844
        %v4857 = vpack.c.b16 %v4847, %v4846
        %v4858 = vpack.c.b16 %v4849, %v4848
        %v4859 = vpack.c.b16 %v4851, %v4850
        %4868 = vmatprep.subr.bf16.mxu0 0
        %4869 = vmatpush1.bf16.msra.mxu0 %v4852
        %4870 = vmatprep.subr.bf16.mxu0 0
        %4871 = vmatpush1.bf16.msra.mxu0 %v4853
        %4872 = vmatprep.subr.bf16.mxu0 0
        %4873 = vmatpush1.bf16.msra.mxu0 %v4854
        %4874 = vmatprep.subr.bf16.mxu0 0
        %4875 = vmatpush1.bf16.msra.mxu0 %v4855
        %4876 = vmatprep.subr.bf16.mxu0 0
        %4877 = vmatpush1.bf16.msra.mxu0 %v4856
        %4878 = vmatprep.subr.bf16.mxu0 0
        %4879 = vmatpush1.bf16.msra.mxu0 %v4857
        %4880 = vmatprep.subr.bf16.mxu0 0
        %4881 = vmatpush1.bf16.msra.mxu0 %v4858
        %4882 = vmatprep.subr.bf16.mxu0 0
        %4883 = vmatpush1.bf16.msra.mxu0 %v4859
        %4884 = vmatprep.subr.bf16.mxu0 0
        %4885 = vmatpush1.bf16.msra.mxu0 0
        %4886 = vmatprep.subr.bf16.mxu0 0
        %4887 = vmatpush1.bf16.msra.mxu0 0
        %4888 = vmatprep.subr.bf16.mxu0 0
        %4889 = vmatpush1.bf16.msra.mxu0 0
        %4890 = vmatprep.subr.bf16.mxu0 0
        %4891 = vmatpush1.bf16.msra.mxu0 0
        %4892 = vmatprep.subr.bf16.mxu0 0
        %4893 = vmatpush1.bf16.msra.mxu0 0
        %4894 = vmatprep.subr.bf16.mxu0 0
        %4895 = vmatpush1.bf16.msra.mxu0 0
        %4896 = vmatprep.subr.bf16.mxu0 0
        %4897 = vmatpush1.bf16.msra.mxu0 0
        %4898 = vmatprep.subr.bf16.mxu0 0
        %4899 = vmatpush1.bf16.msra.mxu0 0
        %4900 = vmatprep.mubr.bf16.mxu0 0
        %4901 = vmatmul.mubr.bf16.gmra.mrb[0].mxu0 %v4592
        %v4902 = vpop.f32.mrb[0].mxu0
        %v4903 = vadd.f32 0.0, %v4902
        %v4904 = vpop.f32.mrb[0].mxu0
        %v4905 = vpop.f32.mrb[0].mxu0
        %v4906 = vpop.f32.mrb[0].mxu0
        %4907 = vdwg.mxu0
        %v4909 = vrot.slane %v4693, 7
        %v4911 = vsel %vm540, 0.0, %v4909
        %v4912 = vadd.f32 %v4911, %v4798
        %v4914 = vrot.slane %v4903, 1
        %v4916 = vsel %vm4406, %v4914, 0.0
        %v4917 = vadd.f32 %v4912, %v4916
        %v4918 = vld [vmem:[#allocation7 + $0xd] sm:$0x1]
        %v4919 = vlaneseq
        %v4920 = vshrl.u32 %v4919, 7
        %v4921 = vsub.s32 0, %v4920
        %v4922 = vrot.slane %v4918, %v4921
        %v4923 = vadd.f32 %v4917, %v4922
        %v4924 = vmax.f32 %v4923, 0.0
        %v4925 = vpack.c.bf16 %v4924, %v4924
        %s4926 = scalar_lea.vmem [#allocation5], 2432
        %v4927 = vld [vmem:[%s4926] sm:$0xf]
        %v4928 = vld [vmem:[%s4926 + $0x4] sm:$0xf]
        %v4929 = vld [vmem:[%s4926 + $0x8] sm:$0xf]
        %v4930 = vld [vmem:[%s4926 + $0xc] sm:$0xf]
        %v4931 = vld [vmem:[%s4926 + $0x10] sm:$0xf]
        %v4932 = vld [vmem:[%s4926 + $0x14] sm:$0xf]
        %v4933 = vld [vmem:[%s4926 + $0x18] sm:$0xf]
        %v4934 = vld [vmem:[%s4926 + $0x1c] sm:$0xf]
        %v4935 = vld [vmem:[%s4926 + $0x20] sm:$0xf]
        %v4936 = vld [vmem:[%s4926 + $0x24] sm:$0xf]
        %v4937 = vld [vmem:[%s4926 + $0x28] sm:$0xf]
        %v4938 = vld [vmem:[%s4926 + $0x2c] sm:$0xf]
        %v4939 = vld [vmem:[%s4926 + $0x30] sm:$0xf]
        %v4940 = vld [vmem:[%s4926 + $0x34] sm:$0xf]
        %v4941 = vld [vmem:[%s4926 + $0x38] sm:$0xf]
        %v4942 = vld [vmem:[%s4926 + $0x3c] sm:$0xf]
        %v4959 = vunpack.c.l.b16 %v4927
        %v4960 = vunpack.c.l.b16 %v4928
        %v4961 = vunpack.c.l.b16 %v4929
        %v4962 = vunpack.c.l.b16 %v4930
        %v4963 = vunpack.c.l.b16 %v4931
        %v4964 = vunpack.c.l.b16 %v4932
        %v4965 = vunpack.c.l.b16 %v4933
        %v4966 = vunpack.c.l.b16 %v4934
        %v4967 = vunpack.c.l.b16 %v4935
        %v4968 = vunpack.c.l.b16 %v4936
        %v4969 = vunpack.c.l.b16 %v4937
        %v4970 = vunpack.c.l.b16 %v4938
        %v4971 = vunpack.c.l.b16 %v4939
        %v4972 = vunpack.c.l.b16 %v4940
        %v4973 = vunpack.c.l.b16 %v4941
        %v4974 = vunpack.c.l.b16 %v4942
        %v4975 = vpack.c.b16 %v4960, %v4959
        %v4976 = vpack.c.b16 %v4962, %v4961
        %v4977 = vpack.c.b16 %v4964, %v4963
        %v4978 = vpack.c.b16 %v4966, %v4965
        %v4979 = vpack.c.b16 %v4968, %v4967
        %v4980 = vpack.c.b16 %v4970, %v4969
        %v4981 = vpack.c.b16 %v4972, %v4971
        %v4982 = vpack.c.b16 %v4974, %v4973
        %4991 = vmatprep.subr.bf16.mxu0 0
        %4992 = vmatpush1.bf16.msra.mxu0 %v4975
        %4993 = vmatprep.subr.bf16.mxu0 0
        %4994 = vmatpush1.bf16.msra.mxu0 %v4976
        %4995 = vmatprep.subr.bf16.mxu0 0
        %4996 = vmatpush1.bf16.msra.mxu0 %v4977
        %4997 = vmatprep.subr.bf16.mxu0 0
        %4998 = vmatpush1.bf16.msra.mxu0 %v4978
        %4999 = vmatprep.subr.bf16.mxu0 0
        %5000 = vmatpush1.bf16.msra.mxu0 %v4979
        %5001 = vmatprep.subr.bf16.mxu0 0
        %5002 = vmatpush1.bf16.msra.mxu0 %v4980
        %5003 = vmatprep.subr.bf16.mxu0 0
        %5004 = vmatpush1.bf16.msra.mxu0 %v4981
        %5005 = vmatprep.subr.bf16.mxu0 0
        %5006 = vmatpush1.bf16.msra.mxu0 %v4982
        %5007 = vmatprep.subr.bf16.mxu0 0
        %5008 = vmatpush1.bf16.msra.mxu0 0
        %5009 = vmatprep.subr.bf16.mxu0 0
        %5010 = vmatpush1.bf16.msra.mxu0 0
        %5011 = vmatprep.subr.bf16.mxu0 0
        %5012 = vmatpush1.bf16.msra.mxu0 0
        %5013 = vmatprep.subr.bf16.mxu0 0
        %5014 = vmatpush1.bf16.msra.mxu0 0
        %5015 = vmatprep.subr.bf16.mxu0 0
        %5016 = vmatpush1.bf16.msra.mxu0 0
        %5017 = vmatprep.subr.bf16.mxu0 0
        %5018 = vmatpush1.bf16.msra.mxu0 0
        %5019 = vmatprep.subr.bf16.mxu0 0
        %5020 = vmatpush1.bf16.msra.mxu0 0
        %5021 = vmatprep.subr.bf16.mxu0 0
        %5022 = vmatpush1.bf16.msra.mxu0 0
        %5023 = vmatprep.mubr.bf16.mxu0 0
        %5024 = vmatmul.mubr.bf16.gmra.mrb[0].mxu0 %v4925
        %v5025 = vpop.f32.mrb[0].mxu0
        %v5026 = vadd.f32 0.0, %v5025
        %v5027 = vpop.f32.mrb[0].mxu0
        %v5028 = vpop.f32.mrb[0].mxu0
        %v5029 = vpop.f32.mrb[0].mxu0
        %5030 = vdwg.mxu0
        %s5031 = scalar_lea.vmem [#allocation5], 2496
        %v5032 = vld [vmem:[%s5031] sm:$0xf]
        %v5033 = vld [vmem:[%s5031 + $0x4] sm:$0xf]
        %v5034 = vld [vmem:[%s5031 + $0x8] sm:$0xf]
        %v5035 = vld [vmem:[%s5031 + $0xc] sm:$0xf]
        %v5036 = vld [vmem:[%s5031 + $0x10] sm:$0xf]
        %v5037 = vld [vmem:[%s5031 + $0x14] sm:$0xf]
        %v5038 = vld [vmem:[%s5031 + $0x18] sm:$0xf]
        %v5039 = vld [vmem:[%s5031 + $0x1c] sm:$0xf]
        %v5040 = vld [vmem:[%s5031 + $0x20] sm:$0xf]
        %v5041 = vld [vmem:[%s5031 + $0x24] sm:$0xf]
        %v5042 = vld [vmem:[%s5031 + $0x28] sm:$0xf]
        %v5043 = vld [vmem:[%s5031 + $0x2c] sm:$0xf]
        %v5044 = vld [vmem:[%s5031 + $0x30] sm:$0xf]
        %v5045 = vld [vmem:[%s5031 + $0x34] sm:$0xf]
        %v5046 = vld [vmem:[%s5031 + $0x38] sm:$0xf]
        %v5047 = vld [vmem:[%s5031 + $0x3c] sm:$0xf]
        %v5064 = vunpack.c.l.b16 %v5032
        %v5065 = vunpack.c.l.b16 %v5033
        %v5066 = vunpack.c.l.b16 %v5034
        %v5067 = vunpack.c.l.b16 %v5035
        %v5068 = vunpack.c.l.b16 %v5036
        %v5069 = vunpack.c.l.b16 %v5037
        %v5070 = vunpack.c.l.b16 %v5038
        %v5071 = vunpack.c.l.b16 %v5039
        %v5072 = vunpack.c.l.b16 %v5040
        %v5073 = vunpack.c.l.b16 %v5041
        %v5074 = vunpack.c.l.b16 %v5042
        %v5075 = vunpack.c.l.b16 %v5043
        %v5076 = vunpack.c.l.b16 %v5044
        %v5077 = vunpack.c.l.b16 %v5045
        %v5078 = vunpack.c.l.b16 %v5046
        %v5079 = vunpack.c.l.b16 %v5047
        %v5080 = vpack.c.b16 %v5065, %v5064
        %v5081 = vpack.c.b16 %v5067, %v5066
        %v5082 = vpack.c.b16 %v5069, %v5068
        %v5083 = vpack.c.b16 %v5071, %v5070
        %v5084 = vpack.c.b16 %v5073, %v5072
        %v5085 = vpack.c.b16 %v5075, %v5074
        %v5086 = vpack.c.b16 %v5077, %v5076
        %v5087 = vpack.c.b16 %v5079, %v5078
        %5096 = vmatprep.subr.bf16.mxu0 0
        %5097 = vmatpush1.bf16.msra.mxu0 %v5080
        %5098 = vmatprep.subr.bf16.mxu0 0
        %5099 = vmatpush1.bf16.msra.mxu0 %v5081
        %5100 = vmatprep.subr.bf16.mxu0 0
        %5101 = vmatpush1.bf16.msra.mxu0 %v5082
        %5102 = vmatprep.subr.bf16.mxu0 0
        %5103 = vmatpush1.bf16.msra.mxu0 %v5083
        %5104 = vmatprep.subr.bf16.mxu0 0
        %5105 = vmatpush1.bf16.msra.mxu0 %v5084
        %5106 = vmatprep.subr.bf16.mxu0 0
        %5107 = vmatpush1.bf16.msra.mxu0 %v5085
        %5108 = vmatprep.subr.bf16.mxu0 0
        %5109 = vmatpush1.bf16.msra.mxu0 %v5086
        %5110 = vmatprep.subr.bf16.mxu0 0
        %5111 = vmatpush1.bf16.msra.mxu0 %v5087
        %5112 = vmatprep.subr.bf16.mxu0 0
        %5113 = vmatpush1.bf16.msra.mxu0 0
        %5114 = vmatprep.subr.bf16.mxu0 0
        %5115 = vmatpush1.bf16.msra.mxu0 0
        %5116 = vmatprep.subr.bf16.mxu0 0
        %5117 = vmatpush1.bf16.msra.mxu0 0
        %5118 = vmatprep.subr.bf16.mxu0 0
        %5119 = vmatpush1.bf16.msra.mxu0 0
        %5120 = vmatprep.subr.bf16.mxu0 0
        %5121 = vmatpush1.bf16.msra.mxu0 0
        %5122 = vmatprep.subr.bf16.mxu0 0
        %5123 = vmatpush1.bf16.msra.mxu0 0
        %5124 = vmatprep.subr.bf16.mxu0 0
        %5125 = vmatpush1.bf16.msra.mxu0 0
        %5126 = vmatprep.subr.bf16.mxu0 0
        %5127 = vmatpush1.bf16.msra.mxu0 0
        %5128 = vmatprep.mubr.bf16.mxu0 0
        %5129 = vmatmul.mubr.bf16.gmra.mrb[0].mxu0 %v4925
        %v5130 = vpop.f32.mrb[0].mxu0
        %v5131 = vadd.f32 0.0, %v5130
        %v5132 = vpop.f32.mrb[0].mxu0
        %v5133 = vpop.f32.mrb[0].mxu0
        %v5134 = vpop.f32.mrb[0].mxu0
        %5135 = vdwg.mxu0
        %s5136 = scalar_lea.vmem [#allocation5], 2560
        %v5137 = vld [vmem:[%s5136] sm:$0xf]
        %v5138 = vld [vmem:[%s5136 + $0x4] sm:$0xf]
        %v5139 = vld [vmem:[%s5136 + $0x8] sm:$0xf]
        %v5140 = vld [vmem:[%s5136 + $0xc] sm:$0xf]
        %v5141 = vld [vmem:[%s5136 + $0x10] sm:$0xf]
        %v5142 = vld [vmem:[%s5136 + $0x14] sm:$0xf]
        %v5143 = vld [vmem:[%s5136 + $0x18] sm:$0xf]
        %v5144 = vld [vmem:[%s5136 + $0x1c] sm:$0xf]
        %v5145 = vld [vmem:[%s5136 + $0x20] sm:$0xf]
        %v5146 = vld [vmem:[%s5136 + $0x24] sm:$0xf]
        %v5147 = vld [vmem:[%s5136 + $0x28] sm:$0xf]
        %v5148 = vld [vmem:[%s5136 + $0x2c] sm:$0xf]
        %v5149 = vld [vmem:[%s5136 + $0x30] sm:$0xf]
        %v5150 = vld [vmem:[%s5136 + $0x34] sm:$0xf]
        %v5151 = vld [vmem:[%s5136 + $0x38] sm:$0xf]
        %v5152 = vld [vmem:[%s5136 + $0x3c] sm:$0xf]
        %v5169 = vunpack.c.l.b16 %v5137
        %v5170 = vunpack.c.l.b16 %v5138
        %v5171 = vunpack.c.l.b16 %v5139
        %v5172 = vunpack.c.l.b16 %v5140
        %v5173 = vunpack.c.l.b16 %v5141
        %v5174 = vunpack.c.l.b16 %v5142
        %v5175 = vunpack.c.l.b16 %v5143
        %v5176 = vunpack.c.l.b16 %v5144
        %v5177 = vunpack.c.l.b16 %v5145
        %v5178 = vunpack.c.l.b16 %v5146
        %v5179 = vunpack.c.l.b16 %v5147
        %v5180 = vunpack.c.l.b16 %v5148
        %v5181 = vunpack.c.l.b16 %v5149
        %v5182 = vunpack.c.l.b16 %v5150
        %v5183 = vunpack.c.l.b16 %v5151
        %v5184 = vunpack.c.l.b16 %v5152
        %v5185 = vpack.c.b16 %v5170, %v5169
        %v5186 = vpack.c.b16 %v5172, %v5171
        %v5187 = vpack.c.b16 %v5174, %v5173
        %v5188 = vpack.c.b16 %v5176, %v5175
        %v5189 = vpack.c.b16 %v5178, %v5177
        %v5190 = vpack.c.b16 %v5180, %v5179
        %v5191 = vpack.c.b16 %v5182, %v5181
        %v5192 = vpack.c.b16 %v5184, %v5183
        %5201 = vmatprep.subr.bf16.mxu0 0
        %5202 = vmatpush1.bf16.msra.mxu0 %v5185
        %5203 = vmatprep.subr.bf16.mxu0 0
        %5204 = vmatpush1.bf16.msra.mxu0 %v5186
        %5205 = vmatprep.subr.bf16.mxu0 0
        %5206 = vmatpush1.bf16.msra.mxu0 %v5187
        %5207 = vmatprep.subr.bf16.mxu0 0
        %5208 = vmatpush1.bf16.msra.mxu0 %v5188
        %5209 = vmatprep.subr.bf16.mxu0 0
        %5210 = vmatpush1.bf16.msra.mxu0 %v5189
        %5211 = vmatprep.subr.bf16.mxu0 0
        %5212 = vmatpush1.bf16.msra.mxu0 %v5190
        %5213 = vmatprep.subr.bf16.mxu0 0
        %5214 = vmatpush1.bf16.msra.mxu0 %v5191
        %5215 = vmatprep.subr.bf16.mxu0 0
        %5216 = vmatpush1.bf16.msra.mxu0 %v5192
        %5217 = vmatprep.subr.bf16.mxu0 0
        %5218 = vmatpush1.bf16.msra.mxu0 0
        %5219 = vmatprep.subr.bf16.mxu0 0
        %5220 = vmatpush1.bf16.msra.mxu0 0
        %5221 = vmatprep.subr.bf16.mxu0 0
        %5222 = vmatpush1.bf16.msra.mxu0 0
        %5223 = vmatprep.subr.bf16.mxu0 0
        %5224 = vmatpush1.bf16.msra.mxu0 0
        %5225 = vmatprep.subr.bf16.mxu0 0
        %5226 = vmatpush1.bf16.msra.mxu0 0
        %5227 = vmatprep.subr.bf16.mxu0 0
        %5228 = vmatpush1.bf16.msra.mxu0 0
        %5229 = vmatprep.subr.bf16.mxu0 0
        %5230 = vmatpush1.bf16.msra.mxu0 0
        %5231 = vmatprep.subr.bf16.mxu0 0
        %5232 = vmatpush1.bf16.msra.mxu0 0
        %5233 = vmatprep.mubr.bf16.mxu0 0
        %5234 = vmatmul.mubr.bf16.gmra.mrb[0].mxu0 %v4925
        %v5235 = vpop.f32.mrb[0].mxu0
        %v5236 = vadd.f32 0.0, %v5235
        %v5237 = vpop.f32.mrb[0].mxu0
        %v5238 = vpop.f32.mrb[0].mxu0
        %v5239 = vpop.f32.mrb[0].mxu0
        %5240 = vdwg.mxu0
        %v5242 = vrot.slane %v5026, 7
        %v5244 = vsel %vm540, 0.0, %v5242
        %v5245 = vadd.f32 %v5244, %v5131
        %v5247 = vrot.slane %v5236, 1
        %v5249 = vsel %vm4406, %v5247, 0.0
        %v5250 = vadd.f32 %v5245, %v5249
        %v5251 = vld [vmem:[#allocation7 + $0xe] sm:$0x1]
        %v5252 = vlaneseq
        %v5253 = vshrl.u32 %v5252, 7
        %v5254 = vsub.s32 0, %v5253
        %v5255 = vrot.slane %v5251, %v5254
        %v5256 = vadd.f32 %v5250, %v5255
        %v5257 = vadd.f32 %v5256, %v4591
        %v5258 = vmax.f32 %v5257, 0.0
        %v5259 = vpack.c.bf16 %v5258, %v5258
        %s5260 = scalar_lea.vmem [#allocation5], 2624
        %v5261 = vld [vmem:[%s5260] sm:$0xf]
        %v5262 = vld [vmem:[%s5260 + $0x4] sm:$0xf]
        %v5263 = vld [vmem:[%s5260 + $0x8] sm:$0xf]
        %v5264 = vld [vmem:[%s5260 + $0xc] sm:$0xf]
        %v5265 = vld [vmem:[%s5260 + $0x10] sm:$0xf]
        %v5266 = vld [vmem:[%s5260 + $0x14] sm:$0xf]
        %v5267 = vld [vmem:[%s5260 + $0x18] sm:$0xf]
        %v5268 = vld [vmem:[%s5260 + $0x1c] sm:$0xf]
        %v5269 = vld [vmem:[%s5260 + $0x20] sm:$0xf]
        %v5270 = vld [vmem:[%s5260 + $0x24] sm:$0xf]
        %v5271 = vld [vmem:[%s5260 + $0x28] sm:$0xf]
        %v5272 = vld [vmem:[%s5260 + $0x2c] sm:$0xf]
        %v5273 = vld [vmem:[%s5260 + $0x30] sm:$0xf]
        %v5274 = vld [vmem:[%s5260 + $0x34] sm:$0xf]
        %v5275 = vld [vmem:[%s5260 + $0x38] sm:$0xf]
        %v5276 = vld [vmem:[%s5260 + $0x3c] sm:$0xf]
        %v5293 = vunpack.c.l.b16 %v5261
        %v5294 = vunpack.c.l.b16 %v5262
        %v5295 = vunpack.c.l.b16 %v5263
        %v5296 = vunpack.c.l.b16 %v5264
        %v5297 = vunpack.c.l.b16 %v5265
        %v5298 = vunpack.c.l.b16 %v5266
        %v5299 = vunpack.c.l.b16 %v5267
        %v5300 = vunpack.c.l.b16 %v5268
        %v5301 = vunpack.c.l.b16 %v5269
        %v5302 = vunpack.c.l.b16 %v5270
        %v5303 = vunpack.c.l.b16 %v5271
        %v5304 = vunpack.c.l.b16 %v5272
        %v5305 = vunpack.c.l.b16 %v5273
        %v5306 = vunpack.c.l.b16 %v5274
        %v5307 = vunpack.c.l.b16 %v5275
        %v5308 = vunpack.c.l.b16 %v5276
        %v5309 = vpack.c.b16 %v5294, %v5293
        %v5310 = vpack.c.b16 %v5296, %v5295
        %v5311 = vpack.c.b16 %v5298, %v5297
        %v5312 = vpack.c.b16 %v5300, %v5299
        %v5313 = vpack.c.b16 %v5302, %v5301
        %v5314 = vpack.c.b16 %v5304, %v5303
        %v5315 = vpack.c.b16 %v5306, %v5305
        %v5316 = vpack.c.b16 %v5308, %v5307
        %5325 = vmatprep.subr.bf16.mxu0 0
        %5326 = vmatpush1.bf16.msra.mxu0 %v5309
        %5327 = vmatprep.subr.bf16.mxu0 0
        %5328 = vmatpush1.bf16.msra.mxu0 %v5310
        %5329 = vmatprep.subr.bf16.mxu0 0
        %5330 = vmatpush1.bf16.msra.mxu0 %v5311
        %5331 = vmatprep.subr.bf16.mxu0 0
        %5332 = vmatpush1.bf16.msra.mxu0 %v5312
        %5333 = vmatprep.subr.bf16.mxu0 0
        %5334 = vmatpush1.bf16.msra.mxu0 %v5313
        %5335 = vmatprep.subr.bf16.mxu0 0
        %5336 = vmatpush1.bf16.msra.mxu0 %v5314
        %5337 = vmatprep.subr.bf16.mxu0 0
        %5338 = vmatpush1.bf16.msra.mxu0 %v5315
        %5339 = vmatprep.subr.bf16.mxu0 0
        %5340 = vmatpush1.bf16.msra.mxu0 %v5316
        %5341 = vmatprep.subr.bf16.mxu0 0
        %5342 = vmatpush1.bf16.msra.mxu0 0
        %5343 = vmatprep.subr.bf16.mxu0 0
        %5344 = vmatpush1.bf16.msra.mxu0 0
        %5345 = vmatprep.subr.bf16.mxu0 0
        %5346 = vmatpush1.bf16.msra.mxu0 0
        %5347 = vmatprep.subr.bf16.mxu0 0
        %5348 = vmatpush1.bf16.msra.mxu0 0
        %5349 = vmatprep.subr.bf16.mxu0 0
        %5350 = vmatpush1.bf16.msra.mxu0 0
        %5351 = vmatprep.subr.bf16.mxu0 0
        %5352 = vmatpush1.bf16.msra.mxu0 0
        %5353 = vmatprep.subr.bf16.mxu0 0
        %5354 = vmatpush1.bf16.msra.mxu0 0
        %5355 = vmatprep.subr.bf16.mxu0 0
        %5356 = vmatpush1.bf16.msra.mxu0 0
        %5357 = vmatprep.mubr.bf16.mxu0 0
        %5358 = vmatmul.mubr.bf16.gmra.mrb[0].mxu0 %v5259
        %v5359 = vpop.f32.mrb[0].mxu0
        %v5360 = vadd.f32 0.0, %v5359
        %v5361 = vpop.f32.mrb[0].mxu0
        %v5362 = vpop.f32.mrb[0].mxu0
        %v5363 = vpop.f32.mrb[0].mxu0
        %5364 = vdwg.mxu0
        %s5365 = scalar_lea.vmem [#allocation5], 2688
        %v5366 = vld [vmem:[%s5365] sm:$0xf]
        %v5367 = vld [vmem:[%s5365 + $0x4] sm:$0xf]
        %v5368 = vld [vmem:[%s5365 + $0x8] sm:$0xf]
        %v5369 = vld [vmem:[%s5365 + $0xc] sm:$0xf]
        %v5370 = vld [vmem:[%s5365 + $0x10] sm:$0xf]
        %v5371 = vld [vmem:[%s5365 + $0x14] sm:$0xf]
        %v5372 = vld [vmem:[%s5365 + $0x18] sm:$0xf]
        %v5373 = vld [vmem:[%s5365 + $0x1c] sm:$0xf]
        %v5374 = vld [vmem:[%s5365 + $0x20] sm:$0xf]
        %v5375 = vld [vmem:[%s5365 + $0x24] sm:$0xf]
        %v5376 = vld [vmem:[%s5365 + $0x28] sm:$0xf]
        %v5377 = vld [vmem:[%s5365 + $0x2c] sm:$0xf]
        %v5378 = vld [vmem:[%s5365 + $0x30] sm:$0xf]
        %v5379 = vld [vmem:[%s5365 + $0x34] sm:$0xf]
        %v5380 = vld [vmem:[%s5365 + $0x38] sm:$0xf]
        %v5381 = vld [vmem:[%s5365 + $0x3c] sm:$0xf]
        %v5398 = vunpack.c.l.b16 %v5366
        %v5399 = vunpack.c.l.b16 %v5367
        %v5400 = vunpack.c.l.b16 %v5368
        %v5401 = vunpack.c.l.b16 %v5369
        %v5402 = vunpack.c.l.b16 %v5370
        %v5403 = vunpack.c.l.b16 %v5371
        %v5404 = vunpack.c.l.b16 %v5372
        %v5405 = vunpack.c.l.b16 %v5373
        %v5406 = vunpack.c.l.b16 %v5374
        %v5407 = vunpack.c.l.b16 %v5375
        %v5408 = vunpack.c.l.b16 %v5376
        %v5409 = vunpack.c.l.b16 %v5377
        %v5410 = vunpack.c.l.b16 %v5378
        %v5411 = vunpack.c.l.b16 %v5379
        %v5412 = vunpack.c.l.b16 %v5380
        %v5413 = vunpack.c.l.b16 %v5381
        %v5414 = vpack.c.b16 %v5399, %v5398
        %v5415 = vpack.c.b16 %v5401, %v5400
        %v5416 = vpack.c.b16 %v5403, %v5402
        %v5417 = vpack.c.b16 %v5405, %v5404
        %v5418 = vpack.c.b16 %v5407, %v5406
        %v5419 = vpack.c.b16 %v5409, %v5408
        %v5420 = vpack.c.b16 %v5411, %v5410
        %v5421 = vpack.c.b16 %v5413, %v5412
        %5430 = vmatprep.subr.bf16.mxu0 0
        %5431 = vmatpush1.bf16.msra.mxu0 %v5414
        %5432 = vmatprep.subr.bf16.mxu0 0
        %5433 = vmatpush1.bf16.msra.mxu0 %v5415
        %5434 = vmatprep.subr.bf16.mxu0 0
        %5435 = vmatpush1.bf16.msra.mxu0 %v5416
        %5436 = vmatprep.subr.bf16.mxu0 0
        %5437 = vmatpush1.bf16.msra.mxu0 %v5417
        %5438 = vmatprep.subr.bf16.mxu0 0
        %5439 = vmatpush1.bf16.msra.mxu0 %v5418
        %5440 = vmatprep.subr.bf16.mxu0 0
        %5441 = vmatpush1.bf16.msra.mxu0 %v5419
        %5442 = vmatprep.subr.bf16.mxu0 0
        %5443 = vmatpush1.bf16.msra.mxu0 %v5420
        %5444 = vmatprep.subr.bf16.mxu0 0
        %5445 = vmatpush1.bf16.msra.mxu0 %v5421
        %5446 = vmatprep.subr.bf16.mxu0 0
        %5447 = vmatpush1.bf16.msra.mxu0 0
        %5448 = vmatprep.subr.bf16.mxu0 0
        %5449 = vmatpush1.bf16.msra.mxu0 0
        %5450 = vmatprep.subr.bf16.mxu0 0
        %5451 = vmatpush1.bf16.msra.mxu0 0
        %5452 = vmatprep.subr.bf16.mxu0 0
        %5453 = vmatpush1.bf16.msra.mxu0 0
        %5454 = vmatprep.subr.bf16.mxu0 0
        %5455 = vmatpush1.bf16.msra.mxu0 0
        %5456 = vmatprep.subr.bf16.mxu0 0
        %5457 = vmatpush1.bf16.msra.mxu0 0
        %5458 = vmatprep.subr.bf16.mxu0 0
        %5459 = vmatpush1.bf16.msra.mxu0 0
        %5460 = vmatprep.subr.bf16.mxu0 0
        %5461 = vmatpush1.bf16.msra.mxu0 0
        %5462 = vmatprep.mubr.bf16.mxu0 0
        %5463 = vmatmul.mubr.bf16.gmra.mrb[0].mxu0 %v5259
        %v5464 = vpop.f32.mrb[0].mxu0
        %v5465 = vadd.f32 0.0, %v5464
        %v5466 = vpop.f32.mrb[0].mxu0
        %v5467 = vpop.f32.mrb[0].mxu0
        %v5468 = vpop.f32.mrb[0].mxu0
        %5469 = vdwg.mxu0
        %s5470 = scalar_lea.vmem [#allocation5], 2752
        %v5471 = vld [vmem:[%s5470] sm:$0xf]
        %v5472 = vld [vmem:[%s5470 + $0x4] sm:$0xf]
        %v5473 = vld [vmem:[%s5470 + $0x8] sm:$0xf]
        %v5474 = vld [vmem:[%s5470 + $0xc] sm:$0xf]
        %v5475 = vld [vmem:[%s5470 + $0x10] sm:$0xf]
        %v5476 = vld [vmem:[%s5470 + $0x14] sm:$0xf]
        %v5477 = vld [vmem:[%s5470 + $0x18] sm:$0xf]
        %v5478 = vld [vmem:[%s5470 + $0x1c] sm:$0xf]
        %v5479 = vld [vmem:[%s5470 + $0x20] sm:$0xf]
        %v5480 = vld [vmem:[%s5470 + $0x24] sm:$0xf]
        %v5481 = vld [vmem:[%s5470 + $0x28] sm:$0xf]
        %v5482 = vld [vmem:[%s5470 + $0x2c] sm:$0xf]
        %v5483 = vld [vmem:[%s5470 + $0x30] sm:$0xf]
        %v5484 = vld [vmem:[%s5470 + $0x34] sm:$0xf]
        %v5485 = vld [vmem:[%s5470 + $0x38] sm:$0xf]
        %v5486 = vld [vmem:[%s5470 + $0x3c] sm:$0xf]
        %v5503 = vunpack.c.l.b16 %v5471
        %v5504 = vunpack.c.l.b16 %v5472
        %v5505 = vunpack.c.l.b16 %v5473
        %v5506 = vunpack.c.l.b16 %v5474
        %v5507 = vunpack.c.l.b16 %v5475
        %v5508 = vunpack.c.l.b16 %v5476
        %v5509 = vunpack.c.l.b16 %v5477
        %v5510 = vunpack.c.l.b16 %v5478
        %v5511 = vunpack.c.l.b16 %v5479
        %v5512 = vunpack.c.l.b16 %v5480
        %v5513 = vunpack.c.l.b16 %v5481
        %v5514 = vunpack.c.l.b16 %v5482
        %v5515 = vunpack.c.l.b16 %v5483
        %v5516 = vunpack.c.l.b16 %v5484
        %v5517 = vunpack.c.l.b16 %v5485
        %v5518 = vunpack.c.l.b16 %v5486
        %v5519 = vpack.c.b16 %v5504, %v5503
        %v5520 = vpack.c.b16 %v5506, %v5505
        %v5521 = vpack.c.b16 %v5508, %v5507
        %v5522 = vpack.c.b16 %v5510, %v5509
        %v5523 = vpack.c.b16 %v5512, %v5511
        %v5524 = vpack.c.b16 %v5514, %v5513
        %v5525 = vpack.c.b16 %v5516, %v5515
        %v5526 = vpack.c.b16 %v5518, %v5517
        %5535 = vmatprep.subr.bf16.mxu0 0
        %5536 = vmatpush1.bf16.msra.mxu0 %v5519
        %5537 = vmatprep.subr.bf16.mxu0 0
        %5538 = vmatpush1.bf16.msra.mxu0 %v5520
        %5539 = vmatprep.subr.bf16.mxu0 0
        %5540 = vmatpush1.bf16.msra.mxu0 %v5521
        %5541 = vmatprep.subr.bf16.mxu0 0
        %5542 = vmatpush1.bf16.msra.mxu0 %v5522
        %5543 = vmatprep.subr.bf16.mxu0 0
        %5544 = vmatpush1.bf16.msra.mxu0 %v5523
        %5545 = vmatprep.subr.bf16.mxu0 0
        %5546 = vmatpush1.bf16.msra.mxu0 %v5524
        %5547 = vmatprep.subr.bf16.mxu0 0
        %5548 = vmatpush1.bf16.msra.mxu0 %v5525
        %5549 = vmatprep.subr.bf16.mxu0 0
        %5550 = vmatpush1.bf16.msra.mxu0 %v5526
        %5551 = vmatprep.subr.bf16.mxu0 0
        %5552 = vmatpush1.bf16.msra.mxu0 0
        %5553 = vmatprep.subr.bf16.mxu0 0
        %5554 = vmatpush1.bf16.msra.mxu0 0
        %5555 = vmatprep.subr.bf16.mxu0 0
        %5556 = vmatpush1.bf16.msra.mxu0 0
        %5557 = vmatprep.subr.bf16.mxu0 0
        %5558 = vmatpush1.bf16.msra.mxu0 0
        %5559 = vmatprep.subr.bf16.mxu0 0
        %5560 = vmatpush1.bf16.msra.mxu0 0
        %5561 = vmatprep.subr.bf16.mxu0 0
        %5562 = vmatpush1.bf16.msra.mxu0 0
        %5563 = vmatprep.subr.bf16.mxu0 0
        %5564 = vmatpush1.bf16.msra.mxu0 0
        %5565 = vmatprep.subr.bf16.mxu0 0
        %5566 = vmatpush1.bf16.msra.mxu0 0
        %5567 = vmatprep.mubr.bf16.mxu0 0
        %5568 = vmatmul.mubr.bf16.gmra.mrb[0].mxu0 %v5259
        %v5569 = vpop.f32.mrb[0].mxu0
        %v5570 = vadd.f32 0.0, %v5569
        %v5571 = vpop.f32.mrb[0].mxu0
        %v5572 = vpop.f32.mrb[0].mxu0
        %v5573 = vpop.f32.mrb[0].mxu0
        %5574 = vdwg.mxu0
        %v5576 = vrot.slane %v5360, 7
        %v5578 = vsel %vm540, 0.0, %v5576
        %v5579 = vadd.f32 %v5578, %v5465
        %v5581 = vrot.slane %v5570, 1
        %v5583 = vsel %vm4406, %v5581, 0.0
        %v5584 = vadd.f32 %v5579, %v5583
        %v5587 = vunpack.c.l.s4 1983009808
        %v5588 = vunpack.c.0.s8 %v5587
        %v5589 = vlaneseq
        %v5590 = vshrl.u32 %v5589, 7
        %v5591 = vsub.s32 %v5588, %v5590
        %v5592 = vrot.slane %v5584, %v5591
        %v5593 = vcombine.high %v5592, %v5592
        %v5596 = vld [vmem:[#allocation7 + $0xf] sm:$0x1]
        %v5597 = vlaneseq
        %v5598 = vshrl.u32 %v5597, 7
        %v5599 = vsub.s32 0, %v5598
        %v5600 = vrot.slane %v5596, %v5599
        %v5603 = vunpack.c.l.s4 1983009808
        %v5604 = vunpack.c.0.s8 %v5603
        %v5605 = vlaneseq
        %v5606 = vshrl.u32 %v5605, 7
        %v5607 = vsub.s32 %v5604, %v5606
        %v5608 = vrot.slane %v5600, %v5607
        %v5609 = vrot.slane %v5608, 1
        %v5612 = vadd.f32 %v5592, %v5608
        %v5613 = vadd.f32 %v5593, %v5609
        %v5614 = vmax.f32 %v5612, 0.0
        %v5615 = vmax.f32 %v5613, 0.0
        %v5616 = vpack.c.bf16 %v5614, %v5614
        %v5617 = vpack.c.bf16 %v5615, %v5615
        %s5618 = scalar_lea.vmem [#allocation5], 2816
        %v5619 = vld [vmem:[%s5618] sm:$0xf]
        %v5620 = vld [vmem:[%s5618 + $0x4] sm:$0xf]
        %v5621 = vld [vmem:[%s5618 + $0x8] sm:$0xf]
        %v5622 = vld [vmem:[%s5618 + $0xc] sm:$0xf]
        %v5623 = vld [vmem:[%s5618 + $0x10] sm:$0xf]
        %v5624 = vld [vmem:[%s5618 + $0x14] sm:$0xf]
        %v5625 = vld [vmem:[%s5618 + $0x18] sm:$0xf]
        %v5626 = vld [vmem:[%s5618 + $0x1c] sm:$0xf]
        %v5627 = vld [vmem:[%s5618 + $0x20] sm:$0xf]
        %v5628 = vld [vmem:[%s5618 + $0x24] sm:$0xf]
        %v5629 = vld [vmem:[%s5618 + $0x28] sm:$0xf]
        %v5630 = vld [vmem:[%s5618 + $0x2c] sm:$0xf]
        %v5631 = vld [vmem:[%s5618 + $0x30] sm:$0xf]
        %v5632 = vld [vmem:[%s5618 + $0x34] sm:$0xf]
        %v5633 = vld [vmem:[%s5618 + $0x38] sm:$0xf]
        %v5634 = vld [vmem:[%s5618 + $0x3c] sm:$0xf]
        %v5637 = vunpack.c.l.b16 %v5616
        %v5638 = vunpack.c.l.b16 %v5617
        %v5639 = vrot.slane %v5638, 7
        %v5640 = vsel %vm2441, %v5639, %v5637
        %v5641 = vpack.c.b16 %v5640, %v5640
        %v5659 = vunpack.c.l.b16 %v5619
        %v5660 = vunpack.c.l.b16 %v5620
        %v5661 = vunpack.c.l.b16 %v5621
        %v5662 = vunpack.c.l.b16 %v5622
        %v5663 = vunpack.c.l.b16 %v5623
        %v5664 = vunpack.c.l.b16 %v5624
        %v5665 = vunpack.c.l.b16 %v5625
        %v5666 = vunpack.c.l.b16 %v5626
        %v5667 = vunpack.c.l.b16 %v5627
        %v5668 = vunpack.c.l.b16 %v5628
        %v5669 = vunpack.c.l.b16 %v5629
        %v5670 = vunpack.c.l.b16 %v5630
        %v5671 = vunpack.c.l.b16 %v5631
        %v5672 = vunpack.c.l.b16 %v5632
        %v5673 = vunpack.c.l.b16 %v5633
        %v5674 = vunpack.c.l.b16 %v5634
        %v5675 = vpack.c.b16 %v5660, %v5659
        %v5676 = vpack.c.b16 %v5662, %v5661
        %v5677 = vpack.c.b16 %v5664, %v5663
        %v5678 = vpack.c.b16 %v5666, %v5665
        %v5679 = vpack.c.b16 %v5668, %v5667
        %v5680 = vpack.c.b16 %v5670, %v5669
        %v5681 = vpack.c.b16 %v5672, %v5671
        %v5682 = vpack.c.b16 %v5674, %v5673
        %5691 = vmatprep.subr.bf16.mxu0 0
        %5692 = vmatpush1.bf16.msra.mxu0 %v5675
        %5693 = vmatprep.subr.bf16.mxu0 0
        %5694 = vmatpush1.bf16.msra.mxu0 %v5676
        %5695 = vmatprep.subr.bf16.mxu0 0
        %5696 = vmatpush1.bf16.msra.mxu0 %v5677
        %5697 = vmatprep.subr.bf16.mxu0 0
        %5698 = vmatpush1.bf16.msra.mxu0 %v5678
        %5699 = vmatprep.subr.bf16.mxu0 0
        %5700 = vmatpush1.bf16.msra.mxu0 %v5679
        %5701 = vmatprep.subr.bf16.mxu0 0
        %5702 = vmatpush1.bf16.msra.mxu0 %v5680
        %5703 = vmatprep.subr.bf16.mxu0 0
        %5704 = vmatpush1.bf16.msra.mxu0 %v5681
        %5705 = vmatprep.subr.bf16.mxu0 0
        %5706 = vmatpush1.bf16.msra.mxu0 %v5682
        %5707 = vmatprep.subr.bf16.mxu0 0
        %5708 = vmatpush1.bf16.msra.mxu0 0
        %5709 = vmatprep.subr.bf16.mxu0 0
        %5710 = vmatpush1.bf16.msra.mxu0 0
        %5711 = vmatprep.subr.bf16.mxu0 0
        %5712 = vmatpush1.bf16.msra.mxu0 0
        %5713 = vmatprep.subr.bf16.mxu0 0
        %5714 = vmatpush1.bf16.msra.mxu0 0
        %5715 = vmatprep.subr.bf16.mxu0 0
        %5716 = vmatpush1.bf16.msra.mxu0 0
        %5717 = vmatprep.subr.bf16.mxu0 0
        %5718 = vmatpush1.bf16.msra.mxu0 0
        %5719 = vmatprep.subr.bf16.mxu0 0
        %5720 = vmatpush1.bf16.msra.mxu0 0
        %5721 = vmatprep.subr.bf16.mxu0 0
        %5722 = vmatpush1.bf16.msra.mxu0 0
        %5723 = vmatprep.mubr.bf16.mxu0 0
        %5724 = vmatmul.mubr.bf16.gmra.mrb[0].mxu0 %v5641
        %v5725 = vpop.f32.mrb[0].mxu0
        %v5726 = vadd.f32 0.0, %v5725
        %v5727 = vpop.f32.mrb[0].mxu0
        %v5728 = vpop.f32.mrb[0].mxu0
        %v5729 = vpop.f32.mrb[0].mxu0
        %5730 = vdwg.mxu0
        %s5731 = scalar_lea.vmem [#allocation5], 2880
        %v5732 = vld [vmem:[%s5731] sm:$0xf]
        %v5733 = vld [vmem:[%s5731 + $0x4] sm:$0xf]
        %v5734 = vld [vmem:[%s5731 + $0x8] sm:$0xf]
        %v5735 = vld [vmem:[%s5731 + $0xc] sm:$0xf]
        %v5736 = vld [vmem:[%s5731 + $0x10] sm:$0xf]
        %v5737 = vld [vmem:[%s5731 + $0x14] sm:$0xf]
        %v5738 = vld [vmem:[%s5731 + $0x18] sm:$0xf]
        %v5739 = vld [vmem:[%s5731 + $0x1c] sm:$0xf]
        %v5740 = vld [vmem:[%s5731 + $0x20] sm:$0xf]
        %v5741 = vld [vmem:[%s5731 + $0x24] sm:$0xf]
        %v5742 = vld [vmem:[%s5731 + $0x28] sm:$0xf]
        %v5743 = vld [vmem:[%s5731 + $0x2c] sm:$0xf]
        %v5744 = vld [vmem:[%s5731 + $0x30] sm:$0xf]
        %v5745 = vld [vmem:[%s5731 + $0x34] sm:$0xf]
        %v5746 = vld [vmem:[%s5731 + $0x38] sm:$0xf]
        %v5747 = vld [vmem:[%s5731 + $0x3c] sm:$0xf]
        %v5764 = vunpack.c.l.b16 %v5732
        %v5765 = vunpack.c.l.b16 %v5733
        %v5766 = vunpack.c.l.b16 %v5734
        %v5767 = vunpack.c.l.b16 %v5735
        %v5768 = vunpack.c.l.b16 %v5736
        %v5769 = vunpack.c.l.b16 %v5737
        %v5770 = vunpack.c.l.b16 %v5738
        %v5771 = vunpack.c.l.b16 %v5739
        %v5772 = vunpack.c.l.b16 %v5740
        %v5773 = vunpack.c.l.b16 %v5741
        %v5774 = vunpack.c.l.b16 %v5742
        %v5775 = vunpack.c.l.b16 %v5743
        %v5776 = vunpack.c.l.b16 %v5744
        %v5777 = vunpack.c.l.b16 %v5745
        %v5778 = vunpack.c.l.b16 %v5746
        %v5779 = vunpack.c.l.b16 %v5747
        %v5780 = vpack.c.b16 %v5765, %v5764
        %v5781 = vpack.c.b16 %v5767, %v5766
        %v5782 = vpack.c.b16 %v5769, %v5768
        %v5783 = vpack.c.b16 %v5771, %v5770
        %v5784 = vpack.c.b16 %v5773, %v5772
        %v5785 = vpack.c.b16 %v5775, %v5774
        %v5786 = vpack.c.b16 %v5777, %v5776
        %v5787 = vpack.c.b16 %v5779, %v5778
        %5796 = vmatprep.subr.bf16.mxu0 0
        %5797 = vmatpush1.bf16.msra.mxu0 %v5780
        %5798 = vmatprep.subr.bf16.mxu0 0
        %5799 = vmatpush1.bf16.msra.mxu0 %v5781
        %5800 = vmatprep.subr.bf16.mxu0 0
        %5801 = vmatpush1.bf16.msra.mxu0 %v5782
        %5802 = vmatprep.subr.bf16.mxu0 0
        %5803 = vmatpush1.bf16.msra.mxu0 %v5783
        %5804 = vmatprep.subr.bf16.mxu0 0
        %5805 = vmatpush1.bf16.msra.mxu0 %v5784
        %5806 = vmatprep.subr.bf16.mxu0 0
        %5807 = vmatpush1.bf16.msra.mxu0 %v5785
        %5808 = vmatprep.subr.bf16.mxu0 0
        %5809 = vmatpush1.bf16.msra.mxu0 %v5786
        %5810 = vmatprep.subr.bf16.mxu0 0
        %5811 = vmatpush1.bf16.msra.mxu0 %v5787
        %5812 = vmatprep.subr.bf16.mxu0 0
        %5813 = vmatpush1.bf16.msra.mxu0 0
        %5814 = vmatprep.subr.bf16.mxu0 0
        %5815 = vmatpush1.bf16.msra.mxu0 0
        %5816 = vmatprep.subr.bf16.mxu0 0
        %5817 = vmatpush1.bf16.msra.mxu0 0
        %5818 = vmatprep.subr.bf16.mxu0 0
        %5819 = vmatpush1.bf16.msra.mxu0 0
        %5820 = vmatprep.subr.bf16.mxu0 0
        %5821 = vmatpush1.bf16.msra.mxu0 0
        %5822 = vmatprep.subr.bf16.mxu0 0
        %5823 = vmatpush1.bf16.msra.mxu0 0
        %5824 = vmatprep.subr.bf16.mxu0 0
        %5825 = vmatpush1.bf16.msra.mxu0 0
        %5826 = vmatprep.subr.bf16.mxu0 0
        %5827 = vmatpush1.bf16.msra.mxu0 0
        %5828 = vmatprep.mubr.bf16.mxu0 0
        %5829 = vmatmul.mubr.bf16.gmra.mrb[0].mxu0 %v5641
        %v5830 = vpop.f32.mrb[0].mxu0
        %v5831 = vadd.f32 0.0, %v5830
        %v5832 = vpop.f32.mrb[0].mxu0
        %v5833 = vpop.f32.mrb[0].mxu0
        %v5834 = vpop.f32.mrb[0].mxu0
        %5835 = vdwg.mxu0
        %s5836 = scalar_lea.vmem [#allocation5], 2944
        %v5837 = vld [vmem:[%s5836] sm:$0xf]
        %v5838 = vld [vmem:[%s5836 + $0x4] sm:$0xf]
        %v5839 = vld [vmem:[%s5836 + $0x8] sm:$0xf]
        %v5840 = vld [vmem:[%s5836 + $0xc] sm:$0xf]
        %v5841 = vld [vmem:[%s5836 + $0x10] sm:$0xf]
        %v5842 = vld [vmem:[%s5836 + $0x14] sm:$0xf]
        %v5843 = vld [vmem:[%s5836 + $0x18] sm:$0xf]
        %v5844 = vld [vmem:[%s5836 + $0x1c] sm:$0xf]
        %v5845 = vld [vmem:[%s5836 + $0x20] sm:$0xf]
        %v5846 = vld [vmem:[%s5836 + $0x24] sm:$0xf]
        %v5847 = vld [vmem:[%s5836 + $0x28] sm:$0xf]
        %v5848 = vld [vmem:[%s5836 + $0x2c] sm:$0xf]
        %v5849 = vld [vmem:[%s5836 + $0x30] sm:$0xf]
        %v5850 = vld [vmem:[%s5836 + $0x34] sm:$0xf]
        %v5851 = vld [vmem:[%s5836 + $0x38] sm:$0xf]
        %v5852 = vld [vmem:[%s5836 + $0x3c] sm:$0xf]
        %v5869 = vunpack.c.l.b16 %v5837
        %v5870 = vunpack.c.l.b16 %v5838
        %v5871 = vunpack.c.l.b16 %v5839
        %v5872 = vunpack.c.l.b16 %v5840
        %v5873 = vunpack.c.l.b16 %v5841
        %v5874 = vunpack.c.l.b16 %v5842
        %v5875 = vunpack.c.l.b16 %v5843
        %v5876 = vunpack.c.l.b16 %v5844
        %v5877 = vunpack.c.l.b16 %v5845
        %v5878 = vunpack.c.l.b16 %v5846
        %v5879 = vunpack.c.l.b16 %v5847
        %v5880 = vunpack.c.l.b16 %v5848
        %v5881 = vunpack.c.l.b16 %v5849
        %v5882 = vunpack.c.l.b16 %v5850
        %v5883 = vunpack.c.l.b16 %v5851
        %v5884 = vunpack.c.l.b16 %v5852
        %v5885 = vpack.c.b16 %v5870, %v5869
        %v5886 = vpack.c.b16 %v5872, %v5871
        %v5887 = vpack.c.b16 %v5874, %v5873
        %v5888 = vpack.c.b16 %v5876, %v5875
        %v5889 = vpack.c.b16 %v5878, %v5877
        %v5890 = vpack.c.b16 %v5880, %v5879
        %v5891 = vpack.c.b16 %v5882, %v5881
        %v5892 = vpack.c.b16 %v5884, %v5883
        %5901 = vmatprep.subr.bf16.mxu0 0
        %5902 = vmatpush1.bf16.msra.mxu0 %v5885
        %5903 = vmatprep.subr.bf16.mxu0 0
        %5904 = vmatpush1.bf16.msra.mxu0 %v5886
        %5905 = vmatprep.subr.bf16.mxu0 0
        %5906 = vmatpush1.bf16.msra.mxu0 %v5887
        %5907 = vmatprep.subr.bf16.mxu0 0
        %5908 = vmatpush1.bf16.msra.mxu0 %v5888
        %5909 = vmatprep.subr.bf16.mxu0 0
        %5910 = vmatpush1.bf16.msra.mxu0 %v5889
        %5911 = vmatprep.subr.bf16.mxu0 0
        %5912 = vmatpush1.bf16.msra.mxu0 %v5890
        %5913 = vmatprep.subr.bf16.mxu0 0
        %5914 = vmatpush1.bf16.msra.mxu0 %v5891
        %5915 = vmatprep.subr.bf16.mxu0 0
        %5916 = vmatpush1.bf16.msra.mxu0 %v5892
        %5917 = vmatprep.subr.bf16.mxu0 0
        %5918 = vmatpush1.bf16.msra.mxu0 0
        %5919 = vmatprep.subr.bf16.mxu0 0
        %5920 = vmatpush1.bf16.msra.mxu0 0
        %5921 = vmatprep.subr.bf16.mxu0 0
        %5922 = vmatpush1.bf16.msra.mxu0 0
        %5923 = vmatprep.subr.bf16.mxu0 0
        %5924 = vmatpush1.bf16.msra.mxu0 0
        %5925 = vmatprep.subr.bf16.mxu0 0
        %5926 = vmatpush1.bf16.msra.mxu0 0
        %5927 = vmatprep.subr.bf16.mxu0 0
        %5928 = vmatpush1.bf16.msra.mxu0 0
        %5929 = vmatprep.subr.bf16.mxu0 0
        %5930 = vmatpush1.bf16.msra.mxu0 0
        %5931 = vmatprep.subr.bf16.mxu0 0
        %5932 = vmatpush1.bf16.msra.mxu0 0
        %5933 = vmatprep.mubr.bf16.mxu0 0
        %5934 = vmatmul.mubr.bf16.gmra.mrb[0].mxu0 %v5641
        %v5935 = vpop.f32.mrb[0].mxu0
        %v5936 = vadd.f32 0.0, %v5935
        %v5937 = vpop.f32.mrb[0].mxu0
        %v5938 = vpop.f32.mrb[0].mxu0
        %v5939 = vpop.f32.mrb[0].mxu0
        %5940 = vdwg.mxu0
        %v5942 = vrot.slane %v5726, 7
        %v5944 = vsel %vm540, 0.0, %v5942
        %v5945 = vadd.f32 %v5944, %v5831
        %v5947 = vrot.slane %v5936, 1
        %v5949 = vsel %vm540, %v5947, 0.0
        %v5950 = vadd.f32 %v5945, %v5949
        %v5951 = vld [vmem:[#allocation7 + $0x10] sm:$0x1]
        %v5952 = vlaneseq
        %v5953 = vshrl.u32 %v5952, 7
        %v5954 = vsub.s32 0, %v5953
        %v5955 = vrot.slane %v5951, %v5954
        %v5956 = vadd.f32 %v5950, %v5955
        %s5957 = scalar_lea.vmem [#allocation5], 3008
        %v5958 = vld [vmem:[%s5957] sm:$0xf]
        %v5959 = vld [vmem:[%s5957 + $0x4] sm:$0xf]
        %v5960 = vld [vmem:[%s5957 + $0x8] sm:$0xf]
        %v5961 = vld [vmem:[%s5957 + $0xc] sm:$0xf]
        %v5962 = vld [vmem:[%s5957 + $0x10] sm:$0xf]
        %v5963 = vld [vmem:[%s5957 + $0x14] sm:$0xf]
        %v5964 = vld [vmem:[%s5957 + $0x18] sm:$0xf]
        %v5965 = vld [vmem:[%s5957 + $0x1c] sm:$0xf]
        %v5966 = vld [vmem:[%s5957 + $0x20] sm:$0xf]
        %v5967 = vld [vmem:[%s5957 + $0x24] sm:$0xf]
        %v5968 = vld [vmem:[%s5957 + $0x28] sm:$0xf]
        %v5969 = vld [vmem:[%s5957 + $0x2c] sm:$0xf]
        %v5970 = vld [vmem:[%s5957 + $0x30] sm:$0xf]
        %v5971 = vld [vmem:[%s5957 + $0x34] sm:$0xf]
        %v5972 = vld [vmem:[%s5957 + $0x38] sm:$0xf]
        %v5973 = vld [vmem:[%s5957 + $0x3c] sm:$0xf]
        %v5990 = vunpack.c.l.b16 %v5958
        %v5991 = vunpack.c.l.b16 %v5959
        %v5992 = vunpack.c.l.b16 %v5960
        %v5993 = vunpack.c.l.b16 %v5961
        %v5994 = vunpack.c.l.b16 %v5962
        %v5995 = vunpack.c.l.b16 %v5963
        %v5996 = vunpack.c.l.b16 %v5964
        %v5997 = vunpack.c.l.b16 %v5965
        %v5998 = vunpack.c.l.b16 %v5966
        %v5999 = vunpack.c.l.b16 %v5967
        %v6000 = vunpack.c.l.b16 %v5968
        %v6001 = vunpack.c.l.b16 %v5969
        %v6002 = vunpack.c.l.b16 %v5970
        %v6003 = vunpack.c.l.b16 %v5971
        %v6004 = vunpack.c.l.b16 %v5972
        %v6005 = vunpack.c.l.b16 %v5973
        %v6006 = vpack.c.b16 %v5991, %v5990
        %v6007 = vpack.c.b16 %v5993, %v5992
        %v6008 = vpack.c.b16 %v5995, %v5994
        %v6009 = vpack.c.b16 %v5997, %v5996
        %v6010 = vpack.c.b16 %v5999, %v5998
        %v6011 = vpack.c.b16 %v6001, %v6000
        %v6012 = vpack.c.b16 %v6003, %v6002
        %v6013 = vpack.c.b16 %v6005, %v6004
        %6022 = vmatprep.subr.bf16.mxu0 0
        %6023 = vmatpush1.bf16.msra.mxu0 %v6006
        %6024 = vmatprep.subr.bf16.mxu0 0
        %6025 = vmatpush1.bf16.msra.mxu0 %v6007
        %6026 = vmatprep.subr.bf16.mxu0 0
        %6027 = vmatpush1.bf16.msra.mxu0 %v6008
        %6028 = vmatprep.subr.bf16.mxu0 0
        %6029 = vmatpush1.bf16.msra.mxu0 %v6009
        %6030 = vmatprep.subr.bf16.mxu0 0
        %6031 = vmatpush1.bf16.msra.mxu0 %v6010
        %6032 = vmatprep.subr.bf16.mxu0 0
        %6033 = vmatpush1.bf16.msra.mxu0 %v6011
        %6034 = vmatprep.subr.bf16.mxu0 0
        %6035 = vmatpush1.bf16.msra.mxu0 %v6012
        %6036 = vmatprep.subr.bf16.mxu0 0
        %6037 = vmatpush1.bf16.msra.mxu0 %v6013
        %6038 = vmatprep.subr.bf16.mxu0 0
        %6039 = vmatpush1.bf16.msra.mxu0 0
        %6040 = vmatprep.subr.bf16.mxu0 0
        %6041 = vmatpush1.bf16.msra.mxu0 0
        %6042 = vmatprep.subr.bf16.mxu0 0
        %6043 = vmatpush1.bf16.msra.mxu0 0
        %6044 = vmatprep.subr.bf16.mxu0 0
        %6045 = vmatpush1.bf16.msra.mxu0 0
        %6046 = vmatprep.subr.bf16.mxu0 0
        %6047 = vmatpush1.bf16.msra.mxu0 0
        %6048 = vmatprep.subr.bf16.mxu0 0
        %6049 = vmatpush1.bf16.msra.mxu0 0
        %6050 = vmatprep.subr.bf16.mxu0 0
        %6051 = vmatpush1.bf16.msra.mxu0 0
        %6052 = vmatprep.subr.bf16.mxu0 0
        %6053 = vmatpush1.bf16.msra.mxu0 0
        %6054 = vmatprep.mubr.bf16.mxu0 0
        %6055 = vmatmul.mubr.bf16.gmra.mrb[0].mxu0 %v5259
        %v6056 = vpop.f32.mrb[0].mxu0
        %v6057 = vadd.f32 0.0, %v6056
        %v6058 = vpop.f32.mrb[0].mxu0
        %v6059 = vpop.f32.mrb[0].mxu0
        %v6060 = vpop.f32.mrb[0].mxu0
        %6061 = vdwg.mxu0
        %v6064 = vunpack.c.l.s4 1983009808
        %v6065 = vunpack.c.0.s8 %v6064
        %v6066 = vlaneseq
        %v6067 = vshrl.u32 %v6066, 7
        %v6068 = vsub.s32 %v6065, %v6067
        %v6069 = vrot.slane %v6057, %v6068
        %v6070 = vcombine.high %v6069, %v6069
        %v6073 = vld [vmem:[#allocation7 + $0x11] sm:$0x1]
        %v6074 = vlaneseq
        %v6075 = vshrl.u32 %v6074, 7
        %v6076 = vsub.s32 0, %v6075
        %v6077 = vrot.slane %v6073, %v6076
        %v6080 = vunpack.c.l.s4 1983009808
        %v6081 = vunpack.c.0.s8 %v6080
        %v6082 = vlaneseq
        %v6083 = vshrl.u32 %v6082, 7
        %v6084 = vsub.s32 %v6081, %v6083
        %v6085 = vrot.slane %v6077, %v6084
        %v6086 = vrot.slane %v6085, 1
        %v6089 = vadd.f32 %v6069, %v6085
        %v6090 = vadd.f32 %v6070, %v6086
        %v6093 = vlaneseq
        %v6094 = vshrl.u32 %v6093, 7
        %v6095 = vsub.s32 0, %v6094
        %v6096 = vrot.slane %v6089, %v6095
        %v6097 = vlaneseq
        %v6098 = vshrl.u32 %v6097, 7
        %v6099 = vsub.s32 0, %v6098
        %v6100 = vrot.slane %v6090, %v6099
        %v6101 = vsel %vm2441, %v6100, %v6096
        %v6103 = vadd.f32 %v5956, %v6101
        %v6104 = vmax.f32 %v6103, 0.0
        %v6105 = vpack.c.bf16 %v6104, %v6104
        %s6106 = scalar_lea.vmem [#allocation5], 3072
        %v6107 = vld [vmem:[%s6106] sm:$0xf]
        %v6108 = vld [vmem:[%s6106 + $0x4] sm:$0xf]
        %v6109 = vld [vmem:[%s6106 + $0x8] sm:$0xf]
        %v6110 = vld [vmem:[%s6106 + $0xc] sm:$0xf]
        %v6111 = vld [vmem:[%s6106 + $0x10] sm:$0xf]
        %v6112 = vld [vmem:[%s6106 + $0x14] sm:$0xf]
        %v6113 = vld [vmem:[%s6106 + $0x18] sm:$0xf]
        %v6114 = vld [vmem:[%s6106 + $0x1c] sm:$0xf]
        %v6115 = vld [vmem:[%s6106 + $0x20] sm:$0xf]
        %v6116 = vld [vmem:[%s6106 + $0x24] sm:$0xf]
        %v6117 = vld [vmem:[%s6106 + $0x28] sm:$0xf]
        %v6118 = vld [vmem:[%s6106 + $0x2c] sm:$0xf]
        %v6119 = vld [vmem:[%s6106 + $0x30] sm:$0xf]
        %v6120 = vld [vmem:[%s6106 + $0x34] sm:$0xf]
        %v6121 = vld [vmem:[%s6106 + $0x38] sm:$0xf]
        %v6122 = vld [vmem:[%s6106 + $0x3c] sm:$0xf]
        %v6139 = vunpack.c.l.b16 %v6107
        %v6140 = vunpack.c.l.b16 %v6108
        %v6141 = vunpack.c.l.b16 %v6109
        %v6142 = vunpack.c.l.b16 %v6110
        %v6143 = vunpack.c.l.b16 %v6111
        %v6144 = vunpack.c.l.b16 %v6112
        %v6145 = vunpack.c.l.b16 %v6113
        %v6146 = vunpack.c.l.b16 %v6114
        %v6147 = vunpack.c.l.b16 %v6115
        %v6148 = vunpack.c.l.b16 %v6116
        %v6149 = vunpack.c.l.b16 %v6117
        %v6150 = vunpack.c.l.b16 %v6118
        %v6151 = vunpack.c.l.b16 %v6119
        %v6152 = vunpack.c.l.b16 %v6120
        %v6153 = vunpack.c.l.b16 %v6121
        %v6154 = vunpack.c.l.b16 %v6122
        %v6155 = vpack.c.b16 %v6140, %v6139
        %v6156 = vpack.c.b16 %v6142, %v6141
        %v6157 = vpack.c.b16 %v6144, %v6143
        %v6158 = vpack.c.b16 %v6146, %v6145
        %v6159 = vpack.c.b16 %v6148, %v6147
        %v6160 = vpack.c.b16 %v6150, %v6149
        %v6161 = vpack.c.b16 %v6152, %v6151
        %v6162 = vpack.c.b16 %v6154, %v6153
        %6171 = vmatprep.subr.bf16.mxu0 0
        %6172 = vmatpush1.bf16.msra.mxu0 %v6155
        %6173 = vmatprep.subr.bf16.mxu0 0
        %6174 = vmatpush1.bf16.msra.mxu0 %v6156
        %6175 = vmatprep.subr.bf16.mxu0 0
        %6176 = vmatpush1.bf16.msra.mxu0 %v6157
        %6177 = vmatprep.subr.bf16.mxu0 0
        %6178 = vmatpush1.bf16.msra.mxu0 %v6158
        %6179 = vmatprep.subr.bf16.mxu0 0
        %6180 = vmatpush1.bf16.msra.mxu0 %v6159
        %6181 = vmatprep.subr.bf16.mxu0 0
        %6182 = vmatpush1.bf16.msra.mxu0 %v6160
        %6183 = vmatprep.subr.bf16.mxu0 0
        %6184 = vmatpush1.bf16.msra.mxu0 %v6161
        %6185 = vmatprep.subr.bf16.mxu0 0
        %6186 = vmatpush1.bf16.msra.mxu0 %v6162
        %6187 = vmatprep.subr.bf16.mxu0 0
        %6188 = vmatpush1.bf16.msra.mxu0 0
        %6189 = vmatprep.subr.bf16.mxu0 0
        %6190 = vmatpush1.bf16.msra.mxu0 0
        %6191 = vmatprep.subr.bf16.mxu0 0
        %6192 = vmatpush1.bf16.msra.mxu0 0
        %6193 = vmatprep.subr.bf16.mxu0 0
        %6194 = vmatpush1.bf16.msra.mxu0 0
        %6195 = vmatprep.subr.bf16.mxu0 0
        %6196 = vmatpush1.bf16.msra.mxu0 0
        %6197 = vmatprep.subr.bf16.mxu0 0
        %6198 = vmatpush1.bf16.msra.mxu0 0
        %6199 = vmatprep.subr.bf16.mxu0 0
        %6200 = vmatpush1.bf16.msra.mxu0 0
        %6201 = vmatprep.subr.bf16.mxu0 0
        %6202 = vmatpush1.bf16.msra.mxu0 0
        %6203 = vmatprep.mubr.bf16.mxu0 0
        %6204 = vmatmul.mubr.bf16.gmra.mrb[0].mxu0 %v6105
        %v6205 = vpop.f32.mrb[0].mxu0
        %v6206 = vadd.f32 0.0, %v6205
        %v6207 = vpop.f32.mrb[0].mxu0
        %v6208 = vpop.f32.mrb[0].mxu0
        %v6209 = vpop.f32.mrb[0].mxu0
        %6210 = vdwg.mxu0
        %s6211 = scalar_lea.vmem [#allocation5], 3136
        %v6212 = vld [vmem:[%s6211] sm:$0xf]
        %v6213 = vld [vmem:[%s6211 + $0x4] sm:$0xf]
        %v6214 = vld [vmem:[%s6211 + $0x8] sm:$0xf]
        %v6215 = vld [vmem:[%s6211 + $0xc] sm:$0xf]
        %v6216 = vld [vmem:[%s6211 + $0x10] sm:$0xf]
        %v6217 = vld [vmem:[%s6211 + $0x14] sm:$0xf]
        %v6218 = vld [vmem:[%s6211 + $0x18] sm:$0xf]
        %v6219 = vld [vmem:[%s6211 + $0x1c] sm:$0xf]
        %v6220 = vld [vmem:[%s6211 + $0x20] sm:$0xf]
        %v6221 = vld [vmem:[%s6211 + $0x24] sm:$0xf]
        %v6222 = vld [vmem:[%s6211 + $0x28] sm:$0xf]
        %v6223 = vld [vmem:[%s6211 + $0x2c] sm:$0xf]
        %v6224 = vld [vmem:[%s6211 + $0x30] sm:$0xf]
        %v6225 = vld [vmem:[%s6211 + $0x34] sm:$0xf]
        %v6226 = vld [vmem:[%s6211 + $0x38] sm:$0xf]
        %v6227 = vld [vmem:[%s6211 + $0x3c] sm:$0xf]
        %v6244 = vunpack.c.l.b16 %v6212
        %v6245 = vunpack.c.l.b16 %v6213
        %v6246 = vunpack.c.l.b16 %v6214
        %v6247 = vunpack.c.l.b16 %v6215
        %v6248 = vunpack.c.l.b16 %v6216
        %v6249 = vunpack.c.l.b16 %v6217
        %v6250 = vunpack.c.l.b16 %v6218
        %v6251 = vunpack.c.l.b16 %v6219
        %v6252 = vunpack.c.l.b16 %v6220
        %v6253 = vunpack.c.l.b16 %v6221
        %v6254 = vunpack.c.l.b16 %v6222
        %v6255 = vunpack.c.l.b16 %v6223
        %v6256 = vunpack.c.l.b16 %v6224
        %v6257 = vunpack.c.l.b16 %v6225
        %v6258 = vunpack.c.l.b16 %v6226
        %v6259 = vunpack.c.l.b16 %v6227
        %v6260 = vpack.c.b16 %v6245, %v6244
        %v6261 = vpack.c.b16 %v6247, %v6246
        %v6262 = vpack.c.b16 %v6249, %v6248
        %v6263 = vpack.c.b16 %v6251, %v6250
        %v6264 = vpack.c.b16 %v6253, %v6252
        %v6265 = vpack.c.b16 %v6255, %v6254
        %v6266 = vpack.c.b16 %v6257, %v6256
        %v6267 = vpack.c.b16 %v6259, %v6258
        %6276 = vmatprep.subr.bf16.mxu0 0
        %6277 = vmatpush1.bf16.msra.mxu0 %v6260
        %6278 = vmatprep.subr.bf16.mxu0 0
        %6279 = vmatpush1.bf16.msra.mxu0 %v6261
        %6280 = vmatprep.subr.bf16.mxu0 0
        %6281 = vmatpush1.bf16.msra.mxu0 %v6262
        %6282 = vmatprep.subr.bf16.mxu0 0
        %6283 = vmatpush1.bf16.msra.mxu0 %v6263
        %6284 = vmatprep.subr.bf16.mxu0 0
        %6285 = vmatpush1.bf16.msra.mxu0 %v6264
        %6286 = vmatprep.subr.bf16.mxu0 0
        %6287 = vmatpush1.bf16.msra.mxu0 %v6265
        %6288 = vmatprep.subr.bf16.mxu0 0
        %6289 = vmatpush1.bf16.msra.mxu0 %v6266
        %6290 = vmatprep.subr.bf16.mxu0 0
        %6291 = vmatpush1.bf16.msra.mxu0 %v6267
        %6292 = vmatprep.subr.bf16.mxu0 0
        %6293 = vmatpush1.bf16.msra.mxu0 0
        %6294 = vmatprep.subr.bf16.mxu0 0
        %6295 = vmatpush1.bf16.msra.mxu0 0
        %6296 = vmatprep.subr.bf16.mxu0 0
        %6297 = vmatpush1.bf16.msra.mxu0 0
        %6298 = vmatprep.subr.bf16.mxu0 0
        %6299 = vmatpush1.bf16.msra.mxu0 0
        %6300 = vmatprep.subr.bf16.mxu0 0
        %6301 = vmatpush1.bf16.msra.mxu0 0
        %6302 = vmatprep.subr.bf16.mxu0 0
        %6303 = vmatpush1.bf16.msra.mxu0 0
        %6304 = vmatprep.subr.bf16.mxu0 0
        %6305 = vmatpush1.bf16.msra.mxu0 0
        %6306 = vmatprep.subr.bf16.mxu0 0
        %6307 = vmatpush1.bf16.msra.mxu0 0
        %6308 = vmatprep.mubr.bf16.mxu0 0
        %6309 = vmatmul.mubr.bf16.gmra.mrb[0].mxu0 %v6105
        %v6310 = vpop.f32.mrb[0].mxu0
        %v6311 = vadd.f32 0.0, %v6310
        %v6312 = vpop.f32.mrb[0].mxu0
        %v6313 = vpop.f32.mrb[0].mxu0
        %v6314 = vpop.f32.mrb[0].mxu0
        %6315 = vdwg.mxu0
        %s6316 = scalar_lea.vmem [#allocation5], 3200
        %v6317 = vld [vmem:[%s6316] sm:$0xf]
        %v6318 = vld [vmem:[%s6316 + $0x4] sm:$0xf]
        %v6319 = vld [vmem:[%s6316 + $0x8] sm:$0xf]
        %v6320 = vld [vmem:[%s6316 + $0xc] sm:$0xf]
        %v6321 = vld [vmem:[%s6316 + $0x10] sm:$0xf]
        %v6322 = vld [vmem:[%s6316 + $0x14] sm:$0xf]
        %v6323 = vld [vmem:[%s6316 + $0x18] sm:$0xf]
        %v6324 = vld [vmem:[%s6316 + $0x1c] sm:$0xf]
        %v6325 = vld [vmem:[%s6316 + $0x20] sm:$0xf]
        %v6326 = vld [vmem:[%s6316 + $0x24] sm:$0xf]
        %v6327 = vld [vmem:[%s6316 + $0x28] sm:$0xf]
        %v6328 = vld [vmem:[%s6316 + $0x2c] sm:$0xf]
        %v6329 = vld [vmem:[%s6316 + $0x30] sm:$0xf]
        %v6330 = vld [vmem:[%s6316 + $0x34] sm:$0xf]
        %v6331 = vld [vmem:[%s6316 + $0x38] sm:$0xf]
        %v6332 = vld [vmem:[%s6316 + $0x3c] sm:$0xf]
        %v6349 = vunpack.c.l.b16 %v6317
        %v6350 = vunpack.c.l.b16 %v6318
        %v6351 = vunpack.c.l.b16 %v6319
        %v6352 = vunpack.c.l.b16 %v6320
        %v6353 = vunpack.c.l.b16 %v6321
        %v6354 = vunpack.c.l.b16 %v6322
        %v6355 = vunpack.c.l.b16 %v6323
        %v6356 = vunpack.c.l.b16 %v6324
        %v6357 = vunpack.c.l.b16 %v6325
        %v6358 = vunpack.c.l.b16 %v6326
        %v6359 = vunpack.c.l.b16 %v6327
        %v6360 = vunpack.c.l.b16 %v6328
        %v6361 = vunpack.c.l.b16 %v6329
        %v6362 = vunpack.c.l.b16 %v6330
        %v6363 = vunpack.c.l.b16 %v6331
        %v6364 = vunpack.c.l.b16 %v6332
        %v6365 = vpack.c.b16 %v6350, %v6349
        %v6366 = vpack.c.b16 %v6352, %v6351
        %v6367 = vpack.c.b16 %v6354, %v6353
        %v6368 = vpack.c.b16 %v6356, %v6355
        %v6369 = vpack.c.b16 %v6358, %v6357
        %v6370 = vpack.c.b16 %v6360, %v6359
        %v6371 = vpack.c.b16 %v6362, %v6361
        %v6372 = vpack.c.b16 %v6364, %v6363
        %6381 = vmatprep.subr.bf16.mxu0 0
        %6382 = vmatpush1.bf16.msra.mxu0 %v6365
        %6383 = vmatprep.subr.bf16.mxu0 0
        %6384 = vmatpush1.bf16.msra.mxu0 %v6366
        %6385 = vmatprep.subr.bf16.mxu0 0
        %6386 = vmatpush1.bf16.msra.mxu0 %v6367
        %6387 = vmatprep.subr.bf16.mxu0 0
        %6388 = vmatpush1.bf16.msra.mxu0 %v6368
        %6389 = vmatprep.subr.bf16.mxu0 0
        %6390 = vmatpush1.bf16.msra.mxu0 %v6369
        %6391 = vmatprep.subr.bf16.mxu0 0
        %6392 = vmatpush1.bf16.msra.mxu0 %v6370
        %6393 = vmatprep.subr.bf16.mxu0 0
        %6394 = vmatpush1.bf16.msra.mxu0 %v6371
        %6395 = vmatprep.subr.bf16.mxu0 0
        %6396 = vmatpush1.bf16.msra.mxu0 %v6372
        %6397 = vmatprep.subr.bf16.mxu0 0
        %6398 = vmatpush1.bf16.msra.mxu0 0
        %6399 = vmatprep.subr.bf16.mxu0 0
        %6400 = vmatpush1.bf16.msra.mxu0 0
        %6401 = vmatprep.subr.bf16.mxu0 0
        %6402 = vmatpush1.bf16.msra.mxu0 0
        %6403 = vmatprep.subr.bf16.mxu0 0
        %6404 = vmatpush1.bf16.msra.mxu0 0
        %6405 = vmatprep.subr.bf16.mxu0 0
        %6406 = vmatpush1.bf16.msra.mxu0 0
        %6407 = vmatprep.subr.bf16.mxu0 0
        %6408 = vmatpush1.bf16.msra.mxu0 0
        %6409 = vmatprep.subr.bf16.mxu0 0
        %6410 = vmatpush1.bf16.msra.mxu0 0
        %6411 = vmatprep.subr.bf16.mxu0 0
        %6412 = vmatpush1.bf16.msra.mxu0 0
        %6413 = vmatprep.mubr.bf16.mxu0 0
        %6414 = vmatmul.mubr.bf16.gmra.mrb[0].mxu0 %v6105
        %v6415 = vpop.f32.mrb[0].mxu0
        %v6416 = vadd.f32 0.0, %v6415
        %v6417 = vpop.f32.mrb[0].mxu0
        %v6418 = vpop.f32.mrb[0].mxu0
        %v6419 = vpop.f32.mrb[0].mxu0
        %6420 = vdwg.mxu0
        %v6422 = vrot.slane %v6206, 7
        %v6424 = vsel %vm540, 0.0, %v6422
        %v6425 = vadd.f32 %v6424, %v6311
        %v6427 = vrot.slane %v6416, 1
        %v6429 = vsel %vm540, %v6427, 0.0
        %v6430 = vadd.f32 %v6425, %v6429
        %v6431 = vld [vmem:[#allocation7 + $0x12] sm:$0x1]
        %v6432 = vlaneseq
        %v6433 = vshrl.u32 %v6432, 7
        %v6434 = vsub.s32 0, %v6433
        %v6435 = vrot.slane %v6431, %v6434
        %v6436 = vadd.f32 %v6430, %v6435
        %v6437 = vmax.f32 %v6436, 0.0
        %v6438 = vpack.c.bf16 %v6437, %v6437
        %s6439 = scalar_lea.vmem [#allocation5], 3264
        %v6440 = vld [vmem:[%s6439] sm:$0xf]
        %v6441 = vld [vmem:[%s6439 + $0x4] sm:$0xf]
        %v6442 = vld [vmem:[%s6439 + $0x8] sm:$0xf]
        %v6443 = vld [vmem:[%s6439 + $0xc] sm:$0xf]
        %v6444 = vld [vmem:[%s6439 + $0x10] sm:$0xf]
        %v6445 = vld [vmem:[%s6439 + $0x14] sm:$0xf]
        %v6446 = vld [vmem:[%s6439 + $0x18] sm:$0xf]
        %v6447 = vld [vmem:[%s6439 + $0x1c] sm:$0xf]
        %v6448 = vld [vmem:[%s6439 + $0x20] sm:$0xf]
        %v6449 = vld [vmem:[%s6439 + $0x24] sm:$0xf]
        %v6450 = vld [vmem:[%s6439 + $0x28] sm:$0xf]
        %v6451 = vld [vmem:[%s6439 + $0x2c] sm:$0xf]
        %v6452 = vld [vmem:[%s6439 + $0x30] sm:$0xf]
        %v6453 = vld [vmem:[%s6439 + $0x34] sm:$0xf]
        %v6454 = vld [vmem:[%s6439 + $0x38] sm:$0xf]
        %v6455 = vld [vmem:[%s6439 + $0x3c] sm:$0xf]
        %v6472 = vunpack.c.l.b16 %v6440
        %v6473 = vunpack.c.l.b16 %v6441
        %v6474 = vunpack.c.l.b16 %v6442
        %v6475 = vunpack.c.l.b16 %v6443
        %v6476 = vunpack.c.l.b16 %v6444
        %v6477 = vunpack.c.l.b16 %v6445
        %v6478 = vunpack.c.l.b16 %v6446
        %v6479 = vunpack.c.l.b16 %v6447
        %v6480 = vunpack.c.l.b16 %v6448
        %v6481 = vunpack.c.l.b16 %v6449
        %v6482 = vunpack.c.l.b16 %v6450
        %v6483 = vunpack.c.l.b16 %v6451
        %v6484 = vunpack.c.l.b16 %v6452
        %v6485 = vunpack.c.l.b16 %v6453
        %v6486 = vunpack.c.l.b16 %v6454
        %v6487 = vunpack.c.l.b16 %v6455
        %v6488 = vpack.c.b16 %v6473, %v6472
        %v6489 = vpack.c.b16 %v6475, %v6474
        %v6490 = vpack.c.b16 %v6477, %v6476
        %v6491 = vpack.c.b16 %v6479, %v6478
        %v6492 = vpack.c.b16 %v6481, %v6480
        %v6493 = vpack.c.b16 %v6483, %v6482
        %v6494 = vpack.c.b16 %v6485, %v6484
        %v6495 = vpack.c.b16 %v6487, %v6486
        %6504 = vmatprep.subr.bf16.mxu0 0
        %6505 = vmatpush1.bf16.msra.mxu0 %v6488
        %6506 = vmatprep.subr.bf16.mxu0 0
        %6507 = vmatpush1.bf16.msra.mxu0 %v6489
        %6508 = vmatprep.subr.bf16.mxu0 0
        %6509 = vmatpush1.bf16.msra.mxu0 %v6490
        %6510 = vmatprep.subr.bf16.mxu0 0
        %6511 = vmatpush1.bf16.msra.mxu0 %v6491
        %6512 = vmatprep.subr.bf16.mxu0 0
        %6513 = vmatpush1.bf16.msra.mxu0 %v6492
        %6514 = vmatprep.subr.bf16.mxu0 0
        %6515 = vmatpush1.bf16.msra.mxu0 %v6493
        %6516 = vmatprep.subr.bf16.mxu0 0
        %6517 = vmatpush1.bf16.msra.mxu0 %v6494
        %6518 = vmatprep.subr.bf16.mxu0 0
        %6519 = vmatpush1.bf16.msra.mxu0 %v6495
        %6520 = vmatprep.subr.bf16.mxu0 0
        %6521 = vmatpush1.bf16.msra.mxu0 0
        %6522 = vmatprep.subr.bf16.mxu0 0
        %6523 = vmatpush1.bf16.msra.mxu0 0
        %6524 = vmatprep.subr.bf16.mxu0 0
        %6525 = vmatpush1.bf16.msra.mxu0 0
        %6526 = vmatprep.subr.bf16.mxu0 0
        %6527 = vmatpush1.bf16.msra.mxu0 0
        %6528 = vmatprep.subr.bf16.mxu0 0
        %6529 = vmatpush1.bf16.msra.mxu0 0
        %6530 = vmatprep.subr.bf16.mxu0 0
        %6531 = vmatpush1.bf16.msra.mxu0 0
        %6532 = vmatprep.subr.bf16.mxu0 0
        %6533 = vmatpush1.bf16.msra.mxu0 0
        %6534 = vmatprep.subr.bf16.mxu0 0
        %6535 = vmatpush1.bf16.msra.mxu0 0
        %6536 = vmatprep.mubr.bf16.mxu0 0
        %6537 = vmatmul.mubr.bf16.gmra.mrb[0].mxu0 %v6438
        %v6538 = vpop.f32.mrb[0].mxu0
        %v6539 = vadd.f32 0.0, %v6538
        %v6540 = vpop.f32.mrb[0].mxu0
        %v6541 = vpop.f32.mrb[0].mxu0
        %v6542 = vpop.f32.mrb[0].mxu0
        %6543 = vdwg.mxu0
        %s6544 = scalar_lea.vmem [#allocation5], 3328
        %v6545 = vld [vmem:[%s6544] sm:$0xf]
        %v6546 = vld [vmem:[%s6544 + $0x4] sm:$0xf]
        %v6547 = vld [vmem:[%s6544 + $0x8] sm:$0xf]
        %v6548 = vld [vmem:[%s6544 + $0xc] sm:$0xf]
        %v6549 = vld [vmem:[%s6544 + $0x10] sm:$0xf]
        %v6550 = vld [vmem:[%s6544 + $0x14] sm:$0xf]
        %v6551 = vld [vmem:[%s6544 + $0x18] sm:$0xf]
        %v6552 = vld [vmem:[%s6544 + $0x1c] sm:$0xf]
        %v6553 = vld [vmem:[%s6544 + $0x20] sm:$0xf]
        %v6554 = vld [vmem:[%s6544 + $0x24] sm:$0xf]
        %v6555 = vld [vmem:[%s6544 + $0x28] sm:$0xf]
        %v6556 = vld [vmem:[%s6544 + $0x2c] sm:$0xf]
        %v6557 = vld [vmem:[%s6544 + $0x30] sm:$0xf]
        %v6558 = vld [vmem:[%s6544 + $0x34] sm:$0xf]
        %v6559 = vld [vmem:[%s6544 + $0x38] sm:$0xf]
        %v6560 = vld [vmem:[%s6544 + $0x3c] sm:$0xf]
        %v6577 = vunpack.c.l.b16 %v6545
        %v6578 = vunpack.c.l.b16 %v6546
        %v6579 = vunpack.c.l.b16 %v6547
        %v6580 = vunpack.c.l.b16 %v6548
        %v6581 = vunpack.c.l.b16 %v6549
        %v6582 = vunpack.c.l.b16 %v6550
        %v6583 = vunpack.c.l.b16 %v6551
        %v6584 = vunpack.c.l.b16 %v6552
        %v6585 = vunpack.c.l.b16 %v6553
        %v6586 = vunpack.c.l.b16 %v6554
        %v6587 = vunpack.c.l.b16 %v6555
        %v6588 = vunpack.c.l.b16 %v6556
        %v6589 = vunpack.c.l.b16 %v6557
        %v6590 = vunpack.c.l.b16 %v6558
        %v6591 = vunpack.c.l.b16 %v6559
        %v6592 = vunpack.c.l.b16 %v6560
        %v6593 = vpack.c.b16 %v6578, %v6577
        %v6594 = vpack.c.b16 %v6580, %v6579
        %v6595 = vpack.c.b16 %v6582, %v6581
        %v6596 = vpack.c.b16 %v6584, %v6583
        %v6597 = vpack.c.b16 %v6586, %v6585
        %v6598 = vpack.c.b16 %v6588, %v6587
        %v6599 = vpack.c.b16 %v6590, %v6589
        %v6600 = vpack.c.b16 %v6592, %v6591
        %6609 = vmatprep.subr.bf16.mxu0 0
        %6610 = vmatpush1.bf16.msra.mxu0 %v6593
        %6611 = vmatprep.subr.bf16.mxu0 0
        %6612 = vmatpush1.bf16.msra.mxu0 %v6594
        %6613 = vmatprep.subr.bf16.mxu0 0
        %6614 = vmatpush1.bf16.msra.mxu0 %v6595
        %6615 = vmatprep.subr.bf16.mxu0 0
        %6616 = vmatpush1.bf16.msra.mxu0 %v6596
        %6617 = vmatprep.subr.bf16.mxu0 0
        %6618 = vmatpush1.bf16.msra.mxu0 %v6597
        %6619 = vmatprep.subr.bf16.mxu0 0
        %6620 = vmatpush1.bf16.msra.mxu0 %v6598
        %6621 = vmatprep.subr.bf16.mxu0 0
        %6622 = vmatpush1.bf16.msra.mxu0 %v6599
        %6623 = vmatprep.subr.bf16.mxu0 0
        %6624 = vmatpush1.bf16.msra.mxu0 %v6600
        %6625 = vmatprep.subr.bf16.mxu0 0
        %6626 = vmatpush1.bf16.msra.mxu0 0
        %6627 = vmatprep.subr.bf16.mxu0 0
        %6628 = vmatpush1.bf16.msra.mxu0 0
        %6629 = vmatprep.subr.bf16.mxu0 0
        %6630 = vmatpush1.bf16.msra.mxu0 0
        %6631 = vmatprep.subr.bf16.mxu0 0
        %6632 = vmatpush1.bf16.msra.mxu0 0
        %6633 = vmatprep.subr.bf16.mxu0 0
        %6634 = vmatpush1.bf16.msra.mxu0 0
        %6635 = vmatprep.subr.bf16.mxu0 0
        %6636 = vmatpush1.bf16.msra.mxu0 0
        %6637 = vmatprep.subr.bf16.mxu0 0
        %6638 = vmatpush1.bf16.msra.mxu0 0
        %6639 = vmatprep.subr.bf16.mxu0 0
        %6640 = vmatpush1.bf16.msra.mxu0 0
        %6641 = vmatprep.mubr.bf16.mxu0 0
        %6642 = vmatmul.mubr.bf16.gmra.mrb[0].mxu0 %v6438
        %v6643 = vpop.f32.mrb[0].mxu0
        %v6644 = vadd.f32 0.0, %v6643
        %v6645 = vpop.f32.mrb[0].mxu0
        %v6646 = vpop.f32.mrb[0].mxu0
        %v6647 = vpop.f32.mrb[0].mxu0
        %6648 = vdwg.mxu0
        %s6649 = scalar_lea.vmem [#allocation5], 3392
        %v6650 = vld [vmem:[%s6649] sm:$0xf]
        %v6651 = vld [vmem:[%s6649 + $0x4] sm:$0xf]
        %v6652 = vld [vmem:[%s6649 + $0x8] sm:$0xf]
        %v6653 = vld [vmem:[%s6649 + $0xc] sm:$0xf]
        %v6654 = vld [vmem:[%s6649 + $0x10] sm:$0xf]
        %v6655 = vld [vmem:[%s6649 + $0x14] sm:$0xf]
        %v6656 = vld [vmem:[%s6649 + $0x18] sm:$0xf]
        %v6657 = vld [vmem:[%s6649 + $0x1c] sm:$0xf]
        %v6658 = vld [vmem:[%s6649 + $0x20] sm:$0xf]
        %v6659 = vld [vmem:[%s6649 + $0x24] sm:$0xf]
        %v6660 = vld [vmem:[%s6649 + $0x28] sm:$0xf]
        %v6661 = vld [vmem:[%s6649 + $0x2c] sm:$0xf]
        %v6662 = vld [vmem:[%s6649 + $0x30] sm:$0xf]
        %v6663 = vld [vmem:[%s6649 + $0x34] sm:$0xf]
        %v6664 = vld [vmem:[%s6649 + $0x38] sm:$0xf]
        %v6665 = vld [vmem:[%s6649 + $0x3c] sm:$0xf]
        %v6682 = vunpack.c.l.b16 %v6650
        %v6683 = vunpack.c.l.b16 %v6651
        %v6684 = vunpack.c.l.b16 %v6652
        %v6685 = vunpack.c.l.b16 %v6653
        %v6686 = vunpack.c.l.b16 %v6654
        %v6687 = vunpack.c.l.b16 %v6655
        %v6688 = vunpack.c.l.b16 %v6656
        %v6689 = vunpack.c.l.b16 %v6657
        %v6690 = vunpack.c.l.b16 %v6658
        %v6691 = vunpack.c.l.b16 %v6659
        %v6692 = vunpack.c.l.b16 %v6660
        %v6693 = vunpack.c.l.b16 %v6661
        %v6694 = vunpack.c.l.b16 %v6662
        %v6695 = vunpack.c.l.b16 %v6663
        %v6696 = vunpack.c.l.b16 %v6664
        %v6697 = vunpack.c.l.b16 %v6665
        %v6698 = vpack.c.b16 %v6683, %v6682
        %v6699 = vpack.c.b16 %v6685, %v6684
        %v6700 = vpack.c.b16 %v6687, %v6686
        %v6701 = vpack.c.b16 %v6689, %v6688
        %v6702 = vpack.c.b16 %v6691, %v6690
        %v6703 = vpack.c.b16 %v6693, %v6692
        %v6704 = vpack.c.b16 %v6695, %v6694
        %v6705 = vpack.c.b16 %v6697, %v6696
        %6714 = vmatprep.subr.bf16.mxu0 0
        %6715 = vmatpush1.bf16.msra.mxu0 %v6698
        %6716 = vmatprep.subr.bf16.mxu0 0
        %6717 = vmatpush1.bf16.msra.mxu0 %v6699
        %6718 = vmatprep.subr.bf16.mxu0 0
        %6719 = vmatpush1.bf16.msra.mxu0 %v6700
        %6720 = vmatprep.subr.bf16.mxu0 0
        %6721 = vmatpush1.bf16.msra.mxu0 %v6701
        %6722 = vmatprep.subr.bf16.mxu0 0
        %6723 = vmatpush1.bf16.msra.mxu0 %v6702
        %6724 = vmatprep.subr.bf16.mxu0 0
        %6725 = vmatpush1.bf16.msra.mxu0 %v6703
        %6726 = vmatprep.subr.bf16.mxu0 0
        %6727 = vmatpush1.bf16.msra.mxu0 %v6704
        %6728 = vmatprep.subr.bf16.mxu0 0
        %6729 = vmatpush1.bf16.msra.mxu0 %v6705
        %6730 = vmatprep.subr.bf16.mxu0 0
        %6731 = vmatpush1.bf16.msra.mxu0 0
        %6732 = vmatprep.subr.bf16.mxu0 0
        %6733 = vmatpush1.bf16.msra.mxu0 0
        %6734 = vmatprep.subr.bf16.mxu0 0
        %6735 = vmatpush1.bf16.msra.mxu0 0
        %6736 = vmatprep.subr.bf16.mxu0 0
        %6737 = vmatpush1.bf16.msra.mxu0 0
        %6738 = vmatprep.subr.bf16.mxu0 0
        %6739 = vmatpush1.bf16.msra.mxu0 0
        %6740 = vmatprep.subr.bf16.mxu0 0
        %6741 = vmatpush1.bf16.msra.mxu0 0
        %6742 = vmatprep.subr.bf16.mxu0 0
        %6743 = vmatpush1.bf16.msra.mxu0 0
        %6744 = vmatprep.subr.bf16.mxu0 0
        %6745 = vmatpush1.bf16.msra.mxu0 0
        %6746 = vmatprep.mubr.bf16.mxu0 0
        %6747 = vmatmul.mubr.bf16.gmra.mrb[0].mxu0 %v6438
        %v6748 = vpop.f32.mrb[0].mxu0
        %v6749 = vadd.f32 0.0, %v6748
        %v6750 = vpop.f32.mrb[0].mxu0
        %v6751 = vpop.f32.mrb[0].mxu0
        %v6752 = vpop.f32.mrb[0].mxu0
        %6753 = vdwg.mxu0
        %v6755 = vrot.slane %v6539, 7
        %v6757 = vsel %vm540, 0.0, %v6755
        %v6758 = vadd.f32 %v6757, %v6644
        %v6760 = vrot.slane %v6749, 1
        %v6762 = vsel %vm540, %v6760, 0.0
        %v6763 = vadd.f32 %v6758, %v6762
        %v6764 = vld [vmem:[#allocation7 + $0x13] sm:$0x1]
        %v6765 = vlaneseq
        %v6766 = vshrl.u32 %v6765, 7
        %v6767 = vsub.s32 0, %v6766
        %v6768 = vrot.slane %v6764, %v6767
        %v6769 = vadd.f32 %v6763, %v6768
        %v6770 = vadd.f32 %v6769, %v6104
        %v6771 = vmax.f32 %v6770, 0.0
        %vm6772 = vcmask 1041408
        %v6773 = vsel %vm6772, %v6771, 0.0
        %v6774 = vrot.slane %v6773, 4
        %v6775 = vadd.f32 %v6773, %v6774
        %v6776 = vrot.slane %v6775, 2
        %v6777 = vadd.f32 %v6775, %v6776
        %v6778 = vrot.slane %v6777, 1
        %v6779 = vadd.f32 %v6777, %v6778
        %v6780 = vpack.c.bf16 %v6779, %v6779
        %s6781 = scalar_lea.vmem [#allocation5], 3456
        %v6782 = vld [vmem:[%s6781] sm:$0xf]
        %v6783 = vld [vmem:[%s6781 + $0x4] sm:$0xf]
        %v6784 = vld [vmem:[%s6781 + $0x8] sm:$0xf]
        %v6785 = vld [vmem:[%s6781 + $0xc] sm:$0xf]
        %v6786 = vld [vmem:[%s6781 + $0x10] sm:$0xf]
        %v6787 = vld [vmem:[%s6781 + $0x14] sm:$0xf]
        %v6788 = vld [vmem:[%s6781 + $0x18] sm:$0xf]
        %v6789 = vld [vmem:[%s6781 + $0x1c] sm:$0xf]
        %v6790 = vld [vmem:[%s6781 + $0x20] sm:$0xf]
        %v6791 = vld [vmem:[%s6781 + $0x24] sm:$0xf]
        %v6792 = vld [vmem:[%s6781 + $0x28] sm:$0xf]
        %v6793 = vld [vmem:[%s6781 + $0x2c] sm:$0xf]
        %v6794 = vld [vmem:[%s6781 + $0x30] sm:$0xf]
        %v6795 = vld [vmem:[%s6781 + $0x34] sm:$0xf]
        %v6796 = vld [vmem:[%s6781 + $0x38] sm:$0xf]
        %v6797 = vld [vmem:[%s6781 + $0x3c] sm:$0xf]
        %v6798 = vld [vmem:[#allocation7 + $0x14] sm:$0x1]
        %v6815 = vunpack.c.l.b16 %v6782
        %v6816 = vunpack.c.l.b16 %v6783
        %v6817 = vunpack.c.l.b16 %v6784
        %v6818 = vunpack.c.l.b16 %v6785
        %v6819 = vunpack.c.l.b16 %v6786
        %v6820 = vunpack.c.l.b16 %v6787
        %v6821 = vunpack.c.l.b16 %v6788
        %v6822 = vunpack.c.l.b16 %v6789
        %v6823 = vunpack.c.l.b16 %v6790
        %v6824 = vunpack.c.l.b16 %v6791
        %v6825 = vunpack.c.l.b16 %v6792
        %v6826 = vunpack.c.l.b16 %v6793
        %v6827 = vunpack.c.l.b16 %v6794
        %v6828 = vunpack.c.l.b16 %v6795
        %v6829 = vunpack.c.l.b16 %v6796
        %v6830 = vunpack.c.l.b16 %v6797
        %v6831 = vpack.c.b16 %v6816, %v6815
        %v6832 = vpack.c.b16 %v6818, %v6817
        %v6833 = vpack.c.b16 %v6820, %v6819
        %v6834 = vpack.c.b16 %v6822, %v6821
        %v6835 = vpack.c.b16 %v6824, %v6823
        %v6836 = vpack.c.b16 %v6826, %v6825
        %v6837 = vpack.c.b16 %v6828, %v6827
        %v6838 = vpack.c.b16 %v6830, %v6829
        %6847 = vmatprep.subr.bf16.mxu0 0
        %6848 = vmatpush1.bf16.msra.mxu0 %v6831
        %6849 = vmatprep.subr.bf16.mxu0 0
        %6850 = vmatpush1.bf16.msra.mxu0 %v6832
        %6851 = vmatprep.subr.bf16.mxu0 0
        %6852 = vmatpush1.bf16.msra.mxu0 %v6833
        %6853 = vmatprep.subr.bf16.mxu0 0
        %6854 = vmatpush1.bf16.msra.mxu0 %v6834
        %6855 = vmatprep.subr.bf16.mxu0 0
        %6856 = vmatpush1.bf16.msra.mxu0 %v6835
        %6857 = vmatprep.subr.bf16.mxu0 0
        %6858 = vmatpush1.bf16.msra.mxu0 %v6836
        %6859 = vmatprep.subr.bf16.mxu0 0
        %6860 = vmatpush1.bf16.msra.mxu0 %v6837
        %6861 = vmatprep.subr.bf16.mxu0 0
        %6862 = vmatpush1.bf16.msra.mxu0 %v6838
        %6863 = vmatprep.subr.bf16.mxu0 0
        %6864 = vmatpush1.bf16.msra.mxu0 0
        %6865 = vmatprep.subr.bf16.mxu0 0
        %6866 = vmatpush1.bf16.msra.mxu0 0
        %6867 = vmatprep.subr.bf16.mxu0 0
        %6868 = vmatpush1.bf16.msra.mxu0 0
        %6869 = vmatprep.subr.bf16.mxu0 0
        %6870 = vmatpush1.bf16.msra.mxu0 0
        %6871 = vmatprep.subr.bf16.mxu0 0
        %6872 = vmatpush1.bf16.msra.mxu0 0
        %6873 = vmatprep.subr.bf16.mxu0 0
        %6874 = vmatpush1.bf16.msra.mxu0 0
        %6875 = vmatprep.subr.bf16.mxu0 0
        %6876 = vmatpush1.bf16.msra.mxu0 0
        %6877 = vmatprep.subr.bf16.mxu0 0
        %6878 = vmatpush1.bf16.msra.mxu0 0
        %6879 = vmatprep.mubr.bf16.mxu0 0
        %6880 = vmatmul.mubr.bf16.gmra.mrb[0].mxu0 %v6780
        %v6881 = vpop.f32.mrb[0].mxu0
        %v6882 = vadd.f32 %v6798, %v6881
        %v6883 = vpop.f32.mrb[0].mxu0
        %v6884 = vpop.f32.mrb[0].mxu0
        %v6885 = vpop.f32.mrb[0].mxu0
        %6886 = vdwg.mxu0
        %v6887 = vsel %vm540, %v6882, -inf
        %6888 = vmax.xlane.f32.xlu0 %v6887
        %v6889 = vpop.xlane.xlu0 %6888
        %v6890 = vsub.f32 %v6882, %v6889
        %v6891 = vmul.f32 %v6890, 1.442695
        %v6892 = vpow.pop %v6891
        %v6893 = vsel %vm540, %v6892, 0.0
        %6894 = vadd.xlane.f32.xlu0 %v6893
        %v6895 = vpop.xlane.xlu0 %6894
        %v6896 = vlog2.pop %v6895
        %v6897 = vmul.f32 %v6896, 0.6931472
        %v6898 = vsub.f32 %v6890, %v6897
        %6899 = vst [vmem:[%s216] sm:$0x1] %v6898
        %s6900 = sand.u32 %s97, 1
        %s6901 = scalar_lea.sflag [#allocation4], %s6900
        %s6902 = sand.u32 %s97, 1
        %s6903 = scalar_lea.vmem [#allocation8], %s6902
        // Predicated region
        $region45: #{tpu_custom_call.1} parent=31 // pred_check
          %p6904 = pneg %p107
        $region46: #{tpu_custom_call.1} parent=31 // pred_check_branch
          %6906 = sbr.rel (%p6904) target = $region48
        $region47: #{tpu_custom_call.1} parent=31 // pred_region
          %s6908 = ssub.s32 16, 16
          %6909 = vsyncadd %s6901, %s6908
          %s6910 = smul.addr %s21, 16
          %s6911 = scalar_lea.hbm %s3, %s6910
          %s6913 = sshll.u32 %s6903, 4
          %s6914 = int_to_ptr.vmem [resolvable:$true] %s6913
          %6916 = dma.vmem_to_hbm [thread:$0]  %s6914, 16, %s6911, %s6901
        $region48: #{tpu_custom_call.1} parent=31 // pred_fallthru
          _
      $region32: #{tpu_custom_call.1} parent=5 // pred_fallthru
        _
      %p6917 = scmp.le.s32.totalorder 2, %s16
      // Predicated region
      $region49: #{tpu_custom_call.1} parent=5 // pred_check
        %p6918 = pneg %p6917
      $region50: #{tpu_custom_call.1} parent=5 // pred_check_branch
        %6920 = sbr.rel (%p6918) target = $region52
      $region51: #{tpu_custom_call.1} parent=5 // pred_region
        %s6921 = ssub.s32 %s16, 2
        // Predicated region
        $region53: #{tpu_custom_call.1} parent=51 // pred_check
          %p6922 = pneg %p113
        $region54: #{tpu_custom_call.1} parent=51 // pred_check_branch
          %6924 = sbr.rel (%p6922) target = $region56
        $region55: #{tpu_custom_call.1} parent=51 // pred_region
          %s6925 = sand.u32 %s98, 1
          %s6926 = scalar_lea.sflag [#allocation4], %s6925
          %s6927 = sand.u32 %s98, 1
          %s6928 = scalar_lea.vmem [#allocation8], %s6927
          %6929 = dma.done %s6926, 16
        $region56: #{tpu_custom_call.1} parent=51 // pred_fallthru
          _
      $region52: #{tpu_custom_call.1} parent=5 // pred_fallthru
        _
    $region6: #{tpu_custom_call.1} parent=1 // loop_footer
      %s20 = sadd.s32 1, %s16
    $region7: #{tpu_custom_call.1} parent=1 // loop_footer_branch
      %15 = sbr.rel target = $region3
    $region8: #{tpu_custom_call.1} parent=1 // loop_exit
      _
    %6930 = vsyncpa [#allocation3], 1
    %s6931 = scalar_lea.sflag [#allocation3], 1
    %6932 = vsyncpa %s6931, 1
    %6933 = vsyncpa [#allocation6], 1
    %6934 = vsyncpa [#allocation4], 1
    %s6935 = scalar_lea.sflag [#allocation4], 1
    %6936 = vsyncpa %s6935, 1

</llo_original>
